<compile_context>
chip_gen: v6e
topology: v6e:2x2x1
jax: 0.10.0
libtpu: 0.0.40
codegen_flags: <defaults>
</compile_context>

<pallas_src>
import jax
import jax.numpy as jnp
from jax import lax
from jax.experimental import pallas as pl
from jax.experimental.pallas import tpu as pltpu

# ---------------------------------------------------------------------------
# Fixed LeNet geometry (fc1 = 16*5*5 pins the input to (B, 3, 32, 32))
# ---------------------------------------------------------------------------
H = W = 32
CIN = 3
KS = 5                     # conv kernel size
C1 = 6                     # conv1 out channels (real)
C1P = 8                    # conv1 out channels padded
C2 = 16                    # conv2 out channels (exact)
C_OUT = 4                  # fc4 output width (real logits)
H1 = H - KS + 1            # 28 conv1 output spatial
P1 = H1 // 2               # 14 pool1 output spatial
H2 = P1 - KS + 1           # 10 conv2 output spatial
P2 = H2 // 2               # 5  pool2 output spatial
Q1P = 8                    # conv1 output columns per (mod-4) phase, padded 7 -> 8
Q2P = 8                    # conv2 output columns per parity, padded 5 -> 8
K1 = KS * KS * CIN         # 75  conv1 im2col depth
K2 = KS * KS * C1P         # 200 conv2 im2col depth
NFC = 128                  # fc widths padded to one lane-dense 128 slab
MXU_DTYPE = jnp.bfloat16   # MXU input dtype (f32 accumulation everywhere)


# ---------------------------------------------------------------------------
# The fused LeNet kernel (one grid step == BLK images)
# ---------------------------------------------------------------------------
def _lenet_kernel(x_ref,
                  w1_ref, b1_ref, w2_ref, b2_ref,
                  f1w_ref, f1b_ref, f2w_ref, f2b_ref,
                  f3w_ref, f3b_ref, f4w_ref, f4b_ref,
                  o_ref,
                  p1_scr, c2p_scr, fc_scr):
    blk = x_ref.shape[1]

    # ---------------- conv1 + ReLU + fused 2x2 max-pool ----------------------
    # x_ref: (1, BLK, 4, 28, 8, 75) bf16 im2col patches; axis 2 = out-col mod 4,
    # axis 4 = out-col // 4 (index 7 is a zero-padded garbage column).
    b1 = b1_ref[...]                                              # (1, 8) f32
    for half in range(2):            # half 0 -> even pooled cols, 1 -> odd
        xp = x_ref[0, :, 2 * half:2 * half + 2]                   # (BLK,2,28,8,75)
        a = jnp.dot(xp.reshape(blk * 2 * H1 * Q1P, K1), w1_ref[...],
                    preferred_element_type=jnp.float32)           # (BLK*448, 8)
        a = jnp.maximum(a + b1, 0.0).reshape(blk, 2, H1, Q1P, C1P)
        cols = jnp.maximum(a[:, 0], a[:, 1])                      # column pool
        cols = cols.reshape(blk, P1, 2, Q1P, C1P)
        p1_scr[half] = jnp.maximum(cols[:, :, 0], cols[:, :, 1]).astype(MXU_DTYPE)

    # ---------------- conv2 + ReLU + fused 2x2 max-pool ----------------------
    b2 = b2_ref[...]                                              # (1, 16) f32
    # Keep the padded within-parity columns finite & deterministic (never read,
    # but avoids stale-data carryover across grid steps).
    c2p_scr[:, :, P2:, :] = jnp.zeros((blk, H2, Q2P - P2, K2), MXU_DTYPE)
    conv2_halves = []
    for parity in range(2):          # parity of the conv2 output column
        for t in range(KS * KS):     # in-VMEM im2col, K order = (ky, kx, c-padded)
            ky, kx = divmod(t, KS)
            cb = parity + kx
            q, s = cb % 2, cb // 2
            c2p_scr[:, :, 0:P2, t * C1P:(t + 1) * C1P] = \
                p1_scr[q, :, ky:ky + H2, s:s + P2, :]
        pt = c2p_scr[...].reshape(blk * H2 * Q2P, K2)             # (BLK*80, 200)
        a = jnp.dot(pt, w2_ref[...], preferred_element_type=jnp.float32)
        a = jnp.maximum(a + b2, 0.0).reshape(blk, H2, Q2P, C2)
        conv2_halves.append(a)
    c2 = jnp.maximum(conv2_halves[0], conv2_halves[1])            # column pool
    c2 = c2.reshape(blk, P2, 2, Q2P, C2)
    p2 = jnp.maximum(c2[:, :, 0], c2[:, :, 1])                    # (BLK, 5, 8, 16)

    # ---------------- flatten (h, w, c) + fc1..fc4 stack ----------------------
    for hh in range(P2):
        for ww in range(P2):
            t = hh * P2 + ww
            fc_scr[:, t * C2:(t + 1) * C2] = p2[:, hh, ww, :].astype(MXU_DTYPE)

    def dense(v, w_r, b_r, relu):
        y = jnp.dot(v, w_r[...], preferred_element_type=jnp.float32) + b_r[...]
        return jnp.maximum(y, 0.0) if relu else y

    act = fc_scr[...]                                             # (BLK, 400) bf16
    act = dense(act, f1w_ref, f1b_ref, True).astype(MXU_DTYPE)    # (BLK, 128) [120 real]
    act = dense(act, f2w_ref, f2b_ref, True).astype(MXU_DTYPE)    # (BLK, 128) [ 84 real]
    act = dense(act, f3w_ref, f3b_ref, True).astype(MXU_DTYPE)    # (BLK, 128) [ 10 real]
    o_ref[0] = dense(act, f4w_ref, f4b_ref, False)                # (BLK, 128) [  4 real]


# ---------------------------------------------------------------------------
# Parameter prep: PyTorch layout -> kernel layout (done once, outside forward)
# ---------------------------------------------------------------------------
def prepare_params(p):
    def pad_to(a, shape):
        return jnp.pad(a, [(0, s - d) for d, s in zip(a.shape, shape)])

    # conv weights: (O, Cin, kh, kw) -> (kh, kw, Cin, O) -> (kh*kw*Cin, O)
    w1 = jnp.transpose(p["conv1_w"], (2, 3, 1, 0)).reshape(K1, C1)
    w1 = pad_to(w1, (K1, C1P))                                    # (75, 8)
    b1 = pad_to(p["conv1_b"], (C1P,)).reshape(1, C1P)

    w2 = pad_to(jnp.transpose(p["conv2_w"], (2, 3, 1, 0)), (KS, KS, C1P, C2))
    w2 = w2.reshape(K2, C2)                                       # (200, 16)
    b2 = p["conv2_b"].reshape(1, C2)

    # fc1: torch flattens (c, h, w); the kernel flattens (h, w, c).
    f1 = p["fc1_w"].reshape(120, C2, P2, P2)                      # (out, c, h, w)
    f1 = jnp.transpose(f1, (2, 3, 1, 0)).reshape(P2 * P2 * C2, 120)
    f1 = pad_to(f1, (P2 * P2 * C2, NFC))                          # (400, 128)
    f1b = pad_to(p["fc1_b"], (NFC,)).reshape(1, NFC)

    def fc(w, b):
        return pad_to(w.T, (NFC, NFC)), pad_to(b, (NFC,)).reshape(1, NFC)

    f2, f2b = fc(p["fc2_w"], p["fc2_b"])
    f3, f3b = fc(p["fc3_w"], p["fc3_b"])
    f4, f4b = fc(p["fc4_w"], p["fc4_b"])

    lo = lambda a: a.astype(MXU_DTYPE)
    hi = lambda a: a.astype(jnp.float32)
    return {"w1": lo(w1), "b1": hi(b1), "w2": lo(w2), "b2": hi(b2),
            "f1w": lo(f1), "f1b": hi(f1b), "f2w": lo(f2), "f2b": hi(f2b),
            "f3w": lo(f3), "f3b": hi(f3b), "f4w": lo(f4), "f4b": hi(f4b)}


# ---------------------------------------------------------------------------
# Input prep: build lane-dense conv1 im2col patches, phase-split by out-col mod 4
# ---------------------------------------------------------------------------
def _prep_input(x, g, blk):
    """(B,3,32,32) f32 NCHW -> (g, blk, 4, 28, 8, 75) bf16 conv1 patches."""
    B = g * blk
    xh = jnp.transpose(x, (0, 2, 3, 1))                            # (B,32,32,3)
    slabs = [xh[:, ky:ky + H1, kx:kx + H1, :]
             for ky in range(KS) for kx in range(KS)]              # 25 x (B,28,28,3)
    patches = jnp.stack(slabs, axis=3).reshape(B, H1, H1, K1)      # (B,28,28,75)
    # pad output columns 28 -> 32 so every (mod-4) phase holds exactly 8 columns
    patches = jnp.pad(patches, ((0, 0), (0, 0), (0, 4 * Q1P - H1), (0, 0)))
    patches = patches.reshape(B, H1, Q1P, 4, K1)                   # ox = 4*q + r
    patches = jnp.transpose(patches, (0, 3, 1, 2, 4))              # (B,4,28,8,75)
    return patches.reshape(g, blk, 4, H1, Q1P, K1).astype(MXU_DTYPE)


def _choose_blk(B):
    """Largest block <= 8 that divides B while keeping grid length >= 2."""
    for blk in (8, 4, 2, 1):
        if B % blk == 0 and B // blk >= 2:
            return blk
    return B   # B == 1 -> single grid step


_WEIGHT_ORDER = ("w1", "b1", "w2", "b2", "f1w", "f1b", "f2w", "f2b",
                 "f3w", "f3b", "f4w", "f4b")


def _full_spec(arr):
    nd = arr.ndim
    return pl.BlockSpec(arr.shape, lambda b, _nd=nd: (0,) * _nd)


def lenet_forward(kparams, x):
    """LeNet forward. x: (B, 3, 32, 32) f32 NCHW -> (B, 4) f32 logits."""
    B = x.shape[0]
    blk = _choose_blk(B)
    g = B // blk
    xp = _prep_input(x.astype(jnp.float32), g, blk)    # (g, blk, 4, 28, 8, 75) bf16
    weights = [kparams[k] for k in _WEIGHT_ORDER]

    out = pl.pallas_call(
        _lenet_kernel,
        out_shape=jax.ShapeDtypeStruct((g, blk, NFC), jnp.float32),
        grid=(g,),
        in_specs=[pl.BlockSpec((1, blk, 4, H1, Q1P, K1),
                               lambda b: (b, 0, 0, 0, 0, 0))]
                 + [_full_spec(a) for a in weights],
        out_specs=pl.BlockSpec((1, blk, NFC), lambda b: (b, 0, 0)),
        scratch_shapes=[
            pltpu.VMEM((2, blk, P1, Q1P, C1P), MXU_DTYPE),   # pool1 (even/odd cols)
            pltpu.VMEM((blk, H2, Q2P, K2), MXU_DTYPE),       # conv2 patches
            pltpu.VMEM((blk, P2 * P2 * C2), MXU_DTYPE),      # fc input rows
        ],
        compiler_params=pltpu.CompilerParams(
            dimension_semantics=("parallel",)),
    )(xp, *weights)

    return out.reshape(B, NFC)[:, :C_OUT]


# ---------------------------------------------------------------------------
# Deterministic synthetic params (PyTorch layout) + pure-XLA reference
# ---------------------------------------------------------------------------
def init_lenet_params(key):
    ks = jax.random.split(key, 12)
    def t(k, shape, fan_in):
        return jax.random.normal(k, shape, jnp.float32) / jnp.sqrt(float(fan_in))
    return {
        "conv1_w": t(ks[0], (C1, CIN, KS, KS), CIN * KS * KS),
        "conv1_b": t(ks[1], (C1,), CIN * KS * KS),
        "conv2_w": t(ks[2], (C2, C1, KS, KS), C1 * KS * KS),
        "conv2_b": t(ks[3], (C2,), C1 * KS * KS),
        "fc1_w": t(ks[4], (120, C2 * P2 * P2), 400),
        "fc1_b": t(ks[5], (120,), 400),
        "fc2_w": t(ks[6], (84, 120), 120),
        "fc2_b": t(ks[7], (84,), 120),
        "fc3_w": t(ks[8], (10, 84), 84),
        "fc3_b": t(ks[9], (10,), 84),
        "fc4_w": t(ks[10], (4, 10), 10),
        "fc4_b": t(ks[11], (4,), 10),
    }


def lenet_reference(p, x):
    """Pure-XLA reference with the same bf16-input / f32-accumulate precision."""
    lo = lambda a: a.astype(MXU_DTYPE)

    def conv(inp, w, b):
        y = lax.conv_general_dilated(
            lo(inp), lo(w), window_strides=(1, 1), padding="VALID",
            dimension_numbers=("NCHW", "OIHW", "NCHW"),
            preferred_element_type=jnp.float32)
        return jax.nn.relu(y + b.reshape(1, -1, 1, 1))

    def pool(inp):
        return lax.reduce_window(inp, -jnp.inf, lax.max,
                                 (1, 1, 2, 2), (1, 1, 2, 2), "VALID")

    def dense(v, w, b, relu):
        y = jnp.dot(lo(v), lo(w.T), preferred_element_type=jnp.float32) + b
        return jax.nn.relu(y) if relu else y

    h = pool(conv(x, p["conv1_w"], p["conv1_b"]))
    h = pool(conv(h, p["conv2_w"], p["conv2_b"]))
    h = h.reshape(h.shape[0], -1)
    h = dense(h, p["fc1_w"], p["fc1_b"], True)
    h = dense(h, p["fc2_w"], p["fc2_b"], True)
    h = dense(h, p["fc3_w"], p["fc3_b"], True)
    return dense(h, p["fc4_w"], p["fc4_b"], False)


if __name__ == "__main__":
    key = jax.random.PRNGKey(0)
    k_params, k_x = jax.random.split(key)
    tparams = init_lenet_params(k_params)
    kparams = prepare_params(tparams)                  # one-time layout prep
    x = jax.random.normal(k_x, (2, 3, 32, 32), jnp.float32)

    out = jax.block_until_ready(jax.jit(lenet_forward)(kparams, x))
    assert out.shape == (2, C_OUT) and out.dtype == jnp.float32, out.shape

    ref = jax.block_until_ready(jax.jit(lenet_reference)(tparams, x))
    max_err = float(jnp.max(jnp.abs(out - ref)))
    assert max_err < 2e-2, f"mismatch vs XLA reference: max abs err = {max_err}"

    print("KERNEL_OK")
</pallas_src>

<mosaic_0001>
module attributes {stable_mosaic.version = 11 : i64} {
  func.func @_lenet_kernel(%arg0: i32, %arg1: memref<1x1x4x28x8x75xbf16, #tpu.memory_space<vmem>>, %arg2: memref<75x8xbf16, #tpu.memory_space<vmem>>, %arg3: memref<1x8xf32, #tpu.memory_space<vmem>>, %arg4: memref<200x16xbf16, #tpu.memory_space<vmem>>, %arg5: memref<1x16xf32, #tpu.memory_space<vmem>>, %arg6: memref<400x128xbf16, #tpu.memory_space<vmem>>, %arg7: memref<1x128xf32, #tpu.memory_space<vmem>>, %arg8: memref<128x128xbf16, #tpu.memory_space<vmem>>, %arg9: memref<1x128xf32, #tpu.memory_space<vmem>>, %arg10: memref<128x128xbf16, #tpu.memory_space<vmem>>, %arg11: memref<1x128xf32, #tpu.memory_space<vmem>>, %arg12: memref<128x128xbf16, #tpu.memory_space<vmem>>, %arg13: memref<1x128xf32, #tpu.memory_space<vmem>>, %arg14: memref<1x1x128xf32, #tpu.memory_space<vmem>>, %arg15: memref<2x1x14x8x8xbf16, #tpu.memory_space<vmem>>, %arg16: memref<1x10x8x200xbf16, #tpu.memory_space<vmem>>, %arg17: memref<1x400xbf16, #tpu.memory_space<vmem>>) attributes {dimension_semantics = [#tpu.dimension_semantics<parallel>], iteration_bounds = array<i64: 2>, scalar_prefetch = 0 : i64, scratch_operands = 3 : i64, tpu.core_type = #tpu.core_type<tc>, window_params = [{transform_indices = @transform_0, window_bounds = array<i64: 1, 1, 4, 28, 8, 75>}, {pipeline_mode = #tpu.pipeline_mode<synchronous>, transform_indices = @transform_1, window_bounds = array<i64: 75, 8>}, {pipeline_mode = #tpu.pipeline_mode<synchronous>, transform_indices = @transform_2, window_bounds = array<i64: 1, 8>}, {pipeline_mode = #tpu.pipeline_mode<synchronous>, transform_indices = @transform_3, window_bounds = array<i64: 200, 16>}, {pipeline_mode = #tpu.pipeline_mode<synchronous>, transform_indices = @transform_4, window_bounds = array<i64: 1, 16>}, {pipeline_mode = #tpu.pipeline_mode<synchronous>, transform_indices = @transform_5, window_bounds = array<i64: 400, 128>}, {pipeline_mode = #tpu.pipeline_mode<synchronous>, transform_indices = @transform_6, window_bounds = array<i64: 1, 128>}, {pipeline_mode = #tpu.pipeline_mode<synchronous>, transform_indices = @transform_7, window_bounds = array<i64: 128, 128>}, {pipeline_mode = #tpu.pipeline_mode<synchronous>, transform_indices = @transform_8, window_bounds = array<i64: 1, 128>}, {pipeline_mode = #tpu.pipeline_mode<synchronous>, transform_indices = @transform_9, window_bounds = array<i64: 128, 128>}, {pipeline_mode = #tpu.pipeline_mode<synchronous>, transform_indices = @transform_10, window_bounds = array<i64: 1, 128>}, {pipeline_mode = #tpu.pipeline_mode<synchronous>, transform_indices = @transform_11, window_bounds = array<i64: 128, 128>}, {pipeline_mode = #tpu.pipeline_mode<synchronous>, transform_indices = @transform_12, window_bounds = array<i64: 1, 128>}, {transform_indices = @transform_13, window_bounds = array<i64: 1, 1, 128>}]} {
    %c0 = arith.constant 0 : index
    %c0_0 = arith.constant 0 : index
    %0 = vector.load %arg3[%c0, %c0_0] : memref<1x8xf32, #tpu.memory_space<vmem>>, vector<1x8xf32>
    %c0_1 = arith.constant 0 : index
    %c0_2 = arith.constant 0 : index
    %c0_3 = arith.constant 0 : index
    %c0_4 = arith.constant 0 : index
    %c0_5 = arith.constant 0 : index
    %c0_6 = arith.constant 0 : index
    %1 = vector.load %arg1[%c0_1, %c0_2, %c0_3, %c0_4, %c0_5, %c0_6] : memref<1x1x4x28x8x75xbf16, #tpu.memory_space<vmem>>, vector<1x1x2x28x8x75xbf16>
    %2 = vector.shape_cast %1 : vector<1x1x2x28x8x75xbf16> to vector<1x2x28x8x75xbf16>
    %3 = vector.shape_cast %2 : vector<1x2x28x8x75xbf16> to vector<448x75xbf16>
    %c0_7 = arith.constant 0 : index
    %c0_8 = arith.constant 0 : index
    %4 = vector.load %arg2[%c0_7, %c0_8] : memref<75x8xbf16, #tpu.memory_space<vmem>>, vector<75x8xbf16>
    %cst = arith.constant dense<0.000000e+00> : vector<448x8xf32>
    %5 = tpu.matmul %3, %4, %cst {dimension_numbers = #tpu.dot_dimension_numbers<[1], [0], [0], [1], [0, 0, 1, 1], [], []>} : vector<448x75xbf16>, vector<75x8xbf16>, vector<448x8xf32> -> vector<448x8xf32>
    %6 = vector.broadcast %0 : vector<1x8xf32> to vector<448x8xf32>
    %7 = arith.addf %5, %6 : vector<448x8xf32>
    %cst_9 = arith.constant 0.000000e+00 : f32
    %8 = vector.broadcast %cst_9 : f32 to vector<448x8xf32>
    %9 = arith.maximumf %7, %8 : vector<448x8xf32>
    %10 = vector.shape_cast %9 : vector<448x8xf32> to vector<1x2x28x8x8xf32>
    %11 = vector.extract_strided_slice %10 {offsets = [0, 0, 0, 0, 0], sizes = [1, 1, 28, 8, 8], strides = [1, 1, 1, 1, 1]} : vector<1x2x28x8x8xf32> to vector<1x1x28x8x8xf32>
    %12 = vector.shape_cast %11 : vector<1x1x28x8x8xf32> to vector<1x28x8x8xf32>
    %13 = vector.extract_strided_slice %10 {offsets = [0, 1, 0, 0, 0], sizes = [1, 1, 28, 8, 8], strides = [1, 1, 1, 1, 1]} : vector<1x2x28x8x8xf32> to vector<1x1x28x8x8xf32>
    %14 = vector.shape_cast %13 : vector<1x1x28x8x8xf32> to vector<1x28x8x8xf32>
    %15 = arith.maximumf %12, %14 : vector<1x28x8x8xf32>
    %16 = vector.shape_cast %15 : vector<1x28x8x8xf32> to vector<1x14x2x8x8xf32>
    %17 = vector.extract_strided_slice %16 {offsets = [0, 0, 0, 0, 0], sizes = [1, 14, 1, 8, 8], strides = [1, 1, 1, 1, 1]} : vector<1x14x2x8x8xf32> to vector<1x14x1x8x8xf32>
    %18 = vector.shape_cast %17 : vector<1x14x1x8x8xf32> to vector<1x14x8x8xf32>
    %19 = vector.extract_strided_slice %16 {offsets = [0, 0, 1, 0, 0], sizes = [1, 14, 1, 8, 8], strides = [1, 1, 1, 1, 1]} : vector<1x14x2x8x8xf32> to vector<1x14x1x8x8xf32>
    %20 = vector.shape_cast %19 : vector<1x14x1x8x8xf32> to vector<1x14x8x8xf32>
    %21 = arith.maximumf %18, %20 : vector<1x14x8x8xf32>
    %22 = arith.truncf %21 : vector<1x14x8x8xf32> to vector<1x14x8x8xbf16>
    %c0_10 = arith.constant 0 : index
    %c0_11 = arith.constant 0 : index
    %c0_12 = arith.constant 0 : index
    %c0_13 = arith.constant 0 : index
    %c0_14 = arith.constant 0 : index
    %23 = vector.load %arg15[%c0_10, %c0_11, %c0_12, %c0_13, %c0_14] : memref<2x1x14x8x8xbf16, #tpu.memory_space<vmem>>, vector<1x1x14x8x8xbf16>
    %24 = vector.shape_cast %23 : vector<1x1x14x8x8xbf16> to vector<1x14x8x8xbf16>
    %25 = vector.shape_cast %22 : vector<1x14x8x8xbf16> to vector<1x1x14x8x8xbf16>
    tpu.vector_store %arg15[%c0_10, %c0_11, %c0_12, %c0_13, %c0_14], %25 {strides = array<i32>} : memref<2x1x14x8x8xbf16, #tpu.memory_space<vmem>>, vector<1x1x14x8x8xbf16>,
    %c0_15 = arith.constant 0 : index
    %c0_16 = arith.constant 0 : index
    %c2 = arith.constant 2 : index
    %c0_17 = arith.constant 0 : index
    %c0_18 = arith.constant 0 : index
    %c0_19 = arith.constant 0 : index
    %26 = vector.load %arg1[%c0_15, %c0_16, %c2, %c0_17, %c0_18, %c0_19] : memref<1x1x4x28x8x75xbf16, #tpu.memory_space<vmem>>, vector<1x1x2x28x8x75xbf16>
    %27 = vector.shape_cast %26 : vector<1x1x2x28x8x75xbf16> to vector<1x2x28x8x75xbf16>
    %28 = vector.shape_cast %27 : vector<1x2x28x8x75xbf16> to vector<448x75xbf16>
    %c0_20 = arith.constant 0 : index
    %c0_21 = arith.constant 0 : index
    %29 = vector.load %arg2[%c0_20, %c0_21] : memref<75x8xbf16, #tpu.memory_space<vmem>>, vector<75x8xbf16>
    %cst_22 = arith.constant dense<0.000000e+00> : vector<448x8xf32>
    %30 = tpu.matmul %28, %29, %cst_22 {dimension_numbers = #tpu.dot_dimension_numbers<[1], [0], [0], [1], [0, 0, 1, 1], [], []>} : vector<448x75xbf16>, vector<75x8xbf16>, vector<448x8xf32> -> vector<448x8xf32>
    %31 = vector.broadcast %0 : vector<1x8xf32> to vector<448x8xf32>
    %32 = arith.addf %30, %31 : vector<448x8xf32>
    %cst_23 = arith.constant 0.000000e+00 : f32
    %33 = vector.broadcast %cst_23 : f32 to vector<448x8xf32>
    %34 = arith.maximumf %32, %33 : vector<448x8xf32>
    %35 = vector.shape_cast %34 : vector<448x8xf32> to vector<1x2x28x8x8xf32>
    %36 = vector.extract_strided_slice %35 {offsets = [0, 0, 0, 0, 0], sizes = [1, 1, 28, 8, 8], strides = [1, 1, 1, 1, 1]} : vector<1x2x28x8x8xf32> to vector<1x1x28x8x8xf32>
    %37 = vector.shape_cast %36 : vector<1x1x28x8x8xf32> to vector<1x28x8x8xf32>
    %38 = vector.extract_strided_slice %35 {offsets = [0, 1, 0, 0, 0], sizes = [1, 1, 28, 8, 8], strides = [1, 1, 1, 1, 1]} : vector<1x2x28x8x8xf32> to vector<1x1x28x8x8xf32>
    %39 = vector.shape_cast %38 : vector<1x1x28x8x8xf32> to vector<1x28x8x8xf32>
    %40 = arith.maximumf %37, %39 : vector<1x28x8x8xf32>
    %41 = vector.shape_cast %40 : vector<1x28x8x8xf32> to vector<1x14x2x8x8xf32>
    %42 = vector.extract_strided_slice %41 {offsets = [0, 0, 0, 0, 0], sizes = [1, 14, 1, 8, 8], strides = [1, 1, 1, 1, 1]} : vector<1x14x2x8x8xf32> to vector<1x14x1x8x8xf32>
    %43 = vector.shape_cast %42 : vector<1x14x1x8x8xf32> to vector<1x14x8x8xf32>
    %44 = vector.extract_strided_slice %41 {offsets = [0, 0, 1, 0, 0], sizes = [1, 14, 1, 8, 8], strides = [1, 1, 1, 1, 1]} : vector<1x14x2x8x8xf32> to vector<1x14x1x8x8xf32>
    %45 = vector.shape_cast %44 : vector<1x14x1x8x8xf32> to vector<1x14x8x8xf32>
    %46 = arith.maximumf %43, %45 : vector<1x14x8x8xf32>
    %47 = arith.truncf %46 : vector<1x14x8x8xf32> to vector<1x14x8x8xbf16>
    %c1 = arith.constant 1 : index
    %c0_24 = arith.constant 0 : index
    %c0_25 = arith.constant 0 : index
    %c0_26 = arith.constant 0 : index
    %c0_27 = arith.constant 0 : index
    %48 = vector.load %arg15[%c1, %c0_24, %c0_25, %c0_26, %c0_27] : memref<2x1x14x8x8xbf16, #tpu.memory_space<vmem>>, vector<1x1x14x8x8xbf16>
    %49 = vector.shape_cast %48 : vector<1x1x14x8x8xbf16> to vector<1x14x8x8xbf16>
    %50 = vector.shape_cast %47 : vector<1x14x8x8xbf16> to vector<1x1x14x8x8xbf16>
    tpu.vector_store %arg15[%c1, %c0_24, %c0_25, %c0_26, %c0_27], %50 {strides = array<i32>} : memref<2x1x14x8x8xbf16, #tpu.memory_space<vmem>>, vector<1x1x14x8x8xbf16>,
    %c0_28 = arith.constant 0 : index
    %c0_29 = arith.constant 0 : index
    %51 = vector.load %arg5[%c0_28, %c0_29] : memref<1x16xf32, #tpu.memory_space<vmem>>, vector<1x16xf32>
    %cst_30 = arith.constant 0.000000e+00 : bf16
    %52 = vector.broadcast %cst_30 : bf16 to vector<1x10x3x200xbf16>
    %c0_31 = arith.constant 0 : index
    %c0_32 = arith.constant 0 : index
    %c5 = arith.constant 5 : index
    %c0_33 = arith.constant 0 : index
    %53 = vector.load %arg16[%c0_31, %c0_32, %c5, %c0_33] : memref<1x10x8x200xbf16, #tpu.memory_space<vmem>>, vector<1x10x3x200xbf16>
    tpu.vector_store %arg16[%c0_31, %c0_32, %c5, %c0_33], %52 {strides = array<i32>} : memref<1x10x8x200xbf16, #tpu.memory_space<vmem>>, vector<1x10x3x200xbf16>,
    %c0_34 = arith.constant 0 : index
    %c0_35 = arith.constant 0 : index
    %c0_36 = arith.constant 0 : index
    %c0_37 = arith.constant 0 : index
    %c0_38 = arith.constant 0 : index
    %54 = vector.load %arg15[%c0_34, %c0_35, %c0_36, %c0_37, %c0_38] : memref<2x1x14x8x8xbf16, #tpu.memory_space<vmem>>, vector<1x1x10x5x8xbf16>
    %55 = vector.shape_cast %54 : vector<1x1x10x5x8xbf16> to vector<1x10x5x8xbf16>
    %c0_39 = arith.constant 0 : index
    %c0_40 = arith.constant 0 : index
    %c0_41 = arith.constant 0 : index
    %c0_42 = arith.constant 0 : index
    %56 = vector.load %arg16[%c0_39, %c0_40, %c0_41, %c0_42] : memref<1x10x8x200xbf16, #tpu.memory_space<vmem>>, vector<1x10x5x8xbf16>
    tpu.vector_store %arg16[%c0_39, %c0_40, %c0_41, %c0_42], %55 {strides = array<i32>} : memref<1x10x8x200xbf16, #tpu.memory_space<vmem>>, vector<1x10x5x8xbf16>,
    %c1_43 = arith.constant 1 : index
    %c0_44 = arith.constant 0 : index
    %c0_45 = arith.constant 0 : index
    %c0_46 = arith.constant 0 : index
    %c0_47 = arith.constant 0 : index
    %57 = vector.load %arg15[%c1_43, %c0_44, %c0_45, %c0_46, %c0_47] : memref<2x1x14x8x8xbf16, #tpu.memory_space<vmem>>, vector<1x1x10x5x8xbf16>
    %58 = vector.shape_cast %57 : vector<1x1x10x5x8xbf16> to vector<1x10x5x8xbf16>
    %c0_48 = arith.constant 0 : index
    %c0_49 = arith.constant 0 : index
    %c0_50 = arith.constant 0 : index
    %c8 = arith.constant 8 : index
    %59 = vector.load %arg16[%c0_48, %c0_49, %c0_50, %c8] : memref<1x10x8x200xbf16, #tpu.memory_space<vmem>>, vector<1x10x5x8xbf16>
    tpu.vector_store %arg16[%c0_48, %c0_49, %c0_50, %c8], %58 {strides = array<i32>} : memref<1x10x8x200xbf16, #tpu.memory_space<vmem>>, vector<1x10x5x8xbf16>,
    %c0_51 = arith.constant 0 : index
    %c0_52 = arith.constant 0 : index
    %c0_53 = arith.constant 0 : index
    %c1_54 = arith.constant 1 : index
    %c0_55 = arith.constant 0 : index
    %60 = vector.load %arg15[%c0_51, %c0_52, %c0_53, %c1_54, %c0_55] : memref<2x1x14x8x8xbf16, #tpu.memory_space<vmem>>, vector<1x1x10x5x8xbf16>
    %61 = vector.shape_cast %60 : vector<1x1x10x5x8xbf16> to vector<1x10x5x8xbf16>
    %c0_56 = arith.constant 0 : index
    %c0_57 = arith.constant 0 : index
    %c0_58 = arith.constant 0 : index
    %c16 = arith.constant 16 : index
    %62 = vector.load %arg16[%c0_56, %c0_57, %c0_58, %c16] : memref<1x10x8x200xbf16, #tpu.memory_space<vmem>>, vector<1x10x5x8xbf16>
    tpu.vector_store %arg16[%c0_56, %c0_57, %c0_58, %c16], %61 {strides = array<i32>} : memref<1x10x8x200xbf16, #tpu.memory_space<vmem>>, vector<1x10x5x8xbf16>,
    %c1_59 = arith.constant 1 : index
    %c0_60 = arith.constant 0 : index
    %c0_61 = arith.constant 0 : index
    %c1_62 = arith.constant 1 : index
    %c0_63 = arith.constant 0 : index
    %63 = vector.load %arg15[%c1_59, %c0_60, %c0_61, %c1_62, %c0_63] : memref<2x1x14x8x8xbf16, #tpu.memory_space<vmem>>, vector<1x1x10x5x8xbf16>
    %64 = vector.shape_cast %63 : vector<1x1x10x5x8xbf16> to vector<1x10x5x8xbf16>
    %c0_64 = arith.constant 0 : index
    %c0_65 = arith.constant 0 : index
    %c0_66 = arith.constant 0 : index
    %c24 = arith.constant 24 : index
    %65 = vector.load %arg16[%c0_64, %c0_65, %c0_66, %c24] : memref<1x10x8x200xbf16, #tpu.memory_space<vmem>>, vector<1x10x5x8xbf16>
    tpu.vector_store %arg16[%c0_64, %c0_65, %c0_66, %c24], %64 {strides = array<i32>} : memref<1x10x8x200xbf16, #tpu.memory_space<vmem>>, vector<1x10x5x8xbf16>,
    %c0_67 = arith.constant 0 : index
    %c0_68 = arith.constant 0 : index
    %c0_69 = arith.constant 0 : index
    %c2_70 = arith.constant 2 : index
    %c0_71 = arith.constant 0 : index
    %66 = vector.load %arg15[%c0_67, %c0_68, %c0_69, %c2_70, %c0_71] : memref<2x1x14x8x8xbf16, #tpu.memory_space<vmem>>, vector<1x1x10x5x8xbf16>
    %67 = vector.shape_cast %66 : vector<1x1x10x5x8xbf16> to vector<1x10x5x8xbf16>
    %c0_72 = arith.constant 0 : index
    %c0_73 = arith.constant 0 : index
    %c0_74 = arith.constant 0 : index
    %c32 = arith.constant 32 : index
    %68 = vector.load %arg16[%c0_72, %c0_73, %c0_74, %c32] : memref<1x10x8x200xbf16, #tpu.memory_space<vmem>>, vector<1x10x5x8xbf16>
    tpu.vector_store %arg16[%c0_72, %c0_73, %c0_74, %c32], %67 {strides = array<i32>} : memref<1x10x8x200xbf16, #tpu.memory_space<vmem>>, vector<1x10x5x8xbf16>,
    %c0_75 = arith.constant 0 : index
    %c0_76 = arith.constant 0 : index
    %c1_77 = arith.constant 1 : index
    %c0_78 = arith.constant 0 : index
    %c0_79 = arith.constant 0 : index
    %69 = vector.load %arg15[%c0_75, %c0_76, %c1_77, %c0_78, %c0_79] : memref<2x1x14x8x8xbf16, #tpu.memory_space<vmem>>, vector<1x1x10x5x8xbf16>
    %70 = vector.shape_cast %69 : vector<1x1x10x5x8xbf16> to vector<1x10x5x8xbf16>
    %c0_80 = arith.constant 0 : index
    %c0_81 = arith.constant 0 : index
    %c0_82 = arith.constant 0 : index
    %c40 = arith.constant 40 : index
    %71 = vector.load %arg16[%c0_80, %c0_81, %c0_82, %c40] : memref<1x10x8x200xbf16, #tpu.memory_space<vmem>>, vector<1x10x5x8xbf16>
    tpu.vector_store %arg16[%c0_80, %c0_81, %c0_82, %c40], %70 {strides = array<i32>} : memref<1x10x8x200xbf16, #tpu.memory_space<vmem>>, vector<1x10x5x8xbf16>,
    %c1_83 = arith.constant 1 : index
    %c0_84 = arith.constant 0 : index
    %c1_85 = arith.constant 1 : index
    %c0_86 = arith.constant 0 : index
    %c0_87 = arith.constant 0 : index
    %72 = vector.load %arg15[%c1_83, %c0_84, %c1_85, %c0_86, %c0_87] : memref<2x1x14x8x8xbf16, #tpu.memory_space<vmem>>, vector<1x1x10x5x8xbf16>
    %73 = vector.shape_cast %72 : vector<1x1x10x5x8xbf16> to vector<1x10x5x8xbf16>
    %c0_88 = arith.constant 0 : index
    %c0_89 = arith.constant 0 : index
    %c0_90 = arith.constant 0 : index
    %c48 = arith.constant 48 : index
    %74 = vector.load %arg16[%c0_88, %c0_89, %c0_90, %c48] : memref<1x10x8x200xbf16, #tpu.memory_space<vmem>>, vector<1x10x5x8xbf16>
    tpu.vector_store %arg16[%c0_88, %c0_89, %c0_90, %c48], %73 {strides = array<i32>} : memref<1x10x8x200xbf16, #tpu.memory_space<vmem>>, vector<1x10x5x8xbf16>,
    %c0_91 = arith.constant 0 : index
    %c0_92 = arith.constant 0 : index
    %c1_93 = arith.constant 1 : index
    %c1_94 = arith.constant 1 : index
    %c0_95 = arith.constant 0 : index
    %75 = vector.load %arg15[%c0_91, %c0_92, %c1_93, %c1_94, %c0_95] : memref<2x1x14x8x8xbf16, #tpu.memory_space<vmem>>, vector<1x1x10x5x8xbf16>
    %76 = vector.shape_cast %75 : vector<1x1x10x5x8xbf16> to vector<1x10x5x8xbf16>
    %c0_96 = arith.constant 0 : index
    %c0_97 = arith.constant 0 : index
    %c0_98 = arith.constant 0 : index
    %c56 = arith.constant 56 : index
    %77 = vector.load %arg16[%c0_96, %c0_97, %c0_98, %c56] : memref<1x10x8x200xbf16, #tpu.memory_space<vmem>>, vector<1x10x5x8xbf16>
    tpu.vector_store %arg16[%c0_96, %c0_97, %c0_98, %c56], %76 {strides = array<i32>} : memref<1x10x8x200xbf16, #tpu.memory_space<vmem>>, vector<1x10x5x8xbf16>,
    %c1_99 = arith.constant 1 : index
    %c0_100 = arith.constant 0 : index
    %c1_101 = arith.constant 1 : index
    %c1_102 = arith.constant 1 : index
    %c0_103 = arith.constant 0 : index
    %78 = vector.load %arg15[%c1_99, %c0_100, %c1_101, %c1_102, %c0_103] : memref<2x1x14x8x8xbf16, #tpu.memory_space<vmem>>, vector<1x1x10x5x8xbf16>
    %79 = vector.shape_cast %78 : vector<1x1x10x5x8xbf16> to vector<1x10x5x8xbf16>
    %c0_104 = arith.constant 0 : index
    %c0_105 = arith.constant 0 : index
    %c0_106 = arith.constant 0 : index
    %c64 = arith.constant 64 : index
    %80 = vector.load %arg16[%c0_104, %c0_105, %c0_106, %c64] : memref<1x10x8x200xbf16, #tpu.memory_space<vmem>>, vector<1x10x5x8xbf16>
    tpu.vector_store %arg16[%c0_104, %c0_105, %c0_106, %c64], %79 {strides = array<i32>} : memref<1x10x8x200xbf16, #tpu.memory_space<vmem>>, vector<1x10x5x8xbf16>,
    %c0_107 = arith.constant 0 : index
    %c0_108 = arith.constant 0 : index
    %c1_109 = arith.constant 1 : index
    %c2_110 = arith.constant 2 : index
    %c0_111 = arith.constant 0 : index
    %81 = vector.load %arg15[%c0_107, %c0_108, %c1_109, %c2_110, %c0_111] : memref<2x1x14x8x8xbf16, #tpu.memory_space<vmem>>, vector<1x1x10x5x8xbf16>
    %82 = vector.shape_cast %81 : vector<1x1x10x5x8xbf16> to vector<1x10x5x8xbf16>
    %c0_112 = arith.constant 0 : index
    %c0_113 = arith.constant 0 : index
    %c0_114 = arith.constant 0 : index
    %c72 = arith.constant 72 : index
    %83 = vector.load %arg16[%c0_112, %c0_113, %c0_114, %c72] : memref<1x10x8x200xbf16, #tpu.memory_space<vmem>>, vector<1x10x5x8xbf16>
    tpu.vector_store %arg16[%c0_112, %c0_113, %c0_114, %c72], %82 {strides = array<i32>} : memref<1x10x8x200xbf16, #tpu.memory_space<vmem>>, vector<1x10x5x8xbf16>,
    %c0_115 = arith.constant 0 : index
    %c0_116 = arith.constant 0 : index
    %c2_117 = arith.constant 2 : index
    %c0_118 = arith.constant 0 : index
    %c0_119 = arith.constant 0 : index
    %84 = vector.load %arg15[%c0_115, %c0_116, %c2_117, %c0_118, %c0_119] : memref<2x1x14x8x8xbf16, #tpu.memory_space<vmem>>, vector<1x1x10x5x8xbf16>
    %85 = vector.shape_cast %84 : vector<1x1x10x5x8xbf16> to vector<1x10x5x8xbf16>
    %c0_120 = arith.constant 0 : index
    %c0_121 = arith.constant 0 : index
    %c0_122 = arith.constant 0 : index
    %c80 = arith.constant 80 : index
    %86 = vector.load %arg16[%c0_120, %c0_121, %c0_122, %c80] : memref<1x10x8x200xbf16, #tpu.memory_space<vmem>>, vector<1x10x5x8xbf16>
    tpu.vector_store %arg16[%c0_120, %c0_121, %c0_122, %c80], %85 {strides = array<i32>} : memref<1x10x8x200xbf16, #tpu.memory_space<vmem>>, vector<1x10x5x8xbf16>,
    %c1_123 = arith.constant 1 : index
    %c0_124 = arith.constant 0 : index
    %c2_125 = arith.constant 2 : index
    %c0_126 = arith.constant 0 : index
    %c0_127 = arith.constant 0 : index
    %87 = vector.load %arg15[%c1_123, %c0_124, %c2_125, %c0_126, %c0_127] : memref<2x1x14x8x8xbf16, #tpu.memory_space<vmem>>, vector<1x1x10x5x8xbf16>
    %88 = vector.shape_cast %87 : vector<1x1x10x5x8xbf16> to vector<1x10x5x8xbf16>
    %c0_128 = arith.constant 0 : index
    %c0_129 = arith.constant 0 : index
    %c0_130 = arith.constant 0 : index
    %c88 = arith.constant 88 : index
    %89 = vector.load %arg16[%c0_128, %c0_129, %c0_130, %c88] : memref<1x10x8x200xbf16, #tpu.memory_space<vmem>>, vector<1x10x5x8xbf16>
    tpu.vector_store %arg16[%c0_128, %c0_129, %c0_130, %c88], %88 {strides = array<i32>} : memref<1x10x8x200xbf16, #tpu.memory_space<vmem>>, vector<1x10x5x8xbf16>,
    %c0_131 = arith.constant 0 : index
    %c0_132 = arith.constant 0 : index
    %c2_133 = arith.constant 2 : index
    %c1_134 = arith.constant 1 : index
    %c0_135 = arith.constant 0 : index
    %90 = vector.load %arg15[%c0_131, %c0_132, %c2_133, %c1_134, %c0_135] : memref<2x1x14x8x8xbf16, #tpu.memory_space<vmem>>, vector<1x1x10x5x8xbf16>
    %91 = vector.shape_cast %90 : vector<1x1x10x5x8xbf16> to vector<1x10x5x8xbf16>
    %c0_136 = arith.constant 0 : index
    %c0_137 = arith.constant 0 : index
    %c0_138 = arith.constant 0 : index
    %c96 = arith.constant 96 : index
    %92 = vector.load %arg16[%c0_136, %c0_137, %c0_138, %c96] : memref<1x10x8x200xbf16, #tpu.memory_space<vmem>>, vector<1x10x5x8xbf16>
    tpu.vector_store %arg16[%c0_136, %c0_137, %c0_138, %c96], %91 {strides = array<i32>} : memref<1x10x8x200xbf16, #tpu.memory_space<vmem>>, vector<1x10x5x8xbf16>,
    %c1_139 = arith.constant 1 : index
    %c0_140 = arith.constant 0 : index
    %c2_141 = arith.constant 2 : index
    %c1_142 = arith.constant 1 : index
    %c0_143 = arith.constant 0 : index
    %93 = vector.load %arg15[%c1_139, %c0_140, %c2_141, %c1_142, %c0_143] : memref<2x1x14x8x8xbf16, #tpu.memory_space<vmem>>, vector<1x1x10x5x8xbf16>
    %94 = vector.shape_cast %93 : vector<1x1x10x5x8xbf16> to vector<1x10x5x8xbf16>
    %c0_144 = arith.constant 0 : index
    %c0_145 = arith.constant 0 : index
    %c0_146 = arith.constant 0 : index
    %c104 = arith.constant 104 : index
    %95 = vector.load %arg16[%c0_144, %c0_145, %c0_146, %c104] : memref<1x10x8x200xbf16, #tpu.memory_space<vmem>>, vector<1x10x5x8xbf16>
    tpu.vector_store %arg16[%c0_144, %c0_145, %c0_146, %c104], %94 {strides = array<i32>} : memref<1x10x8x200xbf16, #tpu.memory_space<vmem>>, vector<1x10x5x8xbf16>,
    %c0_147 = arith.constant 0 : index
    %c0_148 = arith.constant 0 : index
    %c2_149 = arith.constant 2 : index
    %c2_150 = arith.constant 2 : index
    %c0_151 = arith.constant 0 : index
    %96 = vector.load %arg15[%c0_147, %c0_148, %c2_149, %c2_150, %c0_151] : memref<2x1x14x8x8xbf16, #tpu.memory_space<vmem>>, vector<1x1x10x5x8xbf16>
    %97 = vector.shape_cast %96 : vector<1x1x10x5x8xbf16> to vector<1x10x5x8xbf16>
    %c0_152 = arith.constant 0 : index
    %c0_153 = arith.constant 0 : index
    %c0_154 = arith.constant 0 : index
    %c112 = arith.constant 112 : index
    %98 = vector.load %arg16[%c0_152, %c0_153, %c0_154, %c112] : memref<1x10x8x200xbf16, #tpu.memory_space<vmem>>, vector<1x10x5x8xbf16>
    tpu.vector_store %arg16[%c0_152, %c0_153, %c0_154, %c112], %97 {strides = array<i32>} : memref<1x10x8x200xbf16, #tpu.memory_space<vmem>>, vector<1x10x5x8xbf16>,
    %c0_155 = arith.constant 0 : index
    %c0_156 = arith.constant 0 : index
    %c3 = arith.constant 3 : index
    %c0_157 = arith.constant 0 : index
    %c0_158 = arith.constant 0 : index
    %99 = vector.load %arg15[%c0_155, %c0_156, %c3, %c0_157, %c0_158] : memref<2x1x14x8x8xbf16, #tpu.memory_space<vmem>>, vector<1x1x10x5x8xbf16>
    %100 = vector.shape_cast %99 : vector<1x1x10x5x8xbf16> to vector<1x10x5x8xbf16>
    %c0_159 = arith.constant 0 : index
    %c0_160 = arith.constant 0 : index
    %c0_161 = arith.constant 0 : index
    %c120 = arith.constant 120 : index
    %101 = vector.load %arg16[%c0_159, %c0_160, %c0_161, %c120] : memref<1x10x8x200xbf16, #tpu.memory_space<vmem>>, vector<1x10x5x8xbf16>
    tpu.vector_store %arg16[%c0_159, %c0_160, %c0_161, %c120], %100 {strides = array<i32>} : memref<1x10x8x200xbf16, #tpu.memory_space<vmem>>, vector<1x10x5x8xbf16>,
    %c1_162 = arith.constant 1 : index
    %c0_163 = arith.constant 0 : index
    %c3_164 = arith.constant 3 : index
    %c0_165 = arith.constant 0 : index
    %c0_166 = arith.constant 0 : index
    %102 = vector.load %arg15[%c1_162, %c0_163, %c3_164, %c0_165, %c0_166] : memref<2x1x14x8x8xbf16, #tpu.memory_space<vmem>>, vector<1x1x10x5x8xbf16>
    %103 = vector.shape_cast %102 : vector<1x1x10x5x8xbf16> to vector<1x10x5x8xbf16>
    %c0_167 = arith.constant 0 : index
    %c0_168 = arith.constant 0 : index
    %c0_169 = arith.constant 0 : index
    %c128 = arith.constant 128 : index
    %104 = vector.load %arg16[%c0_167, %c0_168, %c0_169, %c128] : memref<1x10x8x200xbf16, #tpu.memory_space<vmem>>, vector<1x10x5x8xbf16>
    tpu.vector_store %arg16[%c0_167, %c0_168, %c0_169, %c128], %103 {strides = array<i32>} : memref<1x10x8x200xbf16, #tpu.memory_space<vmem>>, vector<1x10x5x8xbf16>,
    %c0_170 = arith.constant 0 : index
    %c0_171 = arith.constant 0 : index
    %c3_172 = arith.constant 3 : index
    %c1_173 = arith.constant 1 : index
    %c0_174 = arith.constant 0 : index
    %105 = vector.load %arg15[%c0_170, %c0_171, %c3_172, %c1_173, %c0_174] : memref<2x1x14x8x8xbf16, #tpu.memory_space<vmem>>, vector<1x1x10x5x8xbf16>
    %106 = vector.shape_cast %105 : vector<1x1x10x5x8xbf16> to vector<1x10x5x8xbf16>
    %c0_175 = arith.constant 0 : index
    %c0_176 = arith.constant 0 : index
    %c0_177 = arith.constant 0 : index
    %c136 = arith.constant 136 : index
    %107 = vector.load %arg16[%c0_175, %c0_176, %c0_177, %c136] : memref<1x10x8x200xbf16, #tpu.memory_space<vmem>>, vector<1x10x5x8xbf16>
    tpu.vector_store %arg16[%c0_175, %c0_176, %c0_177, %c136], %106 {strides = array<i32>} : memref<1x10x8x200xbf16, #tpu.memory_space<vmem>>, vector<1x10x5x8xbf16>,
    %c1_178 = arith.constant 1 : index
    %c0_179 = arith.constant 0 : index
    %c3_180 = arith.constant 3 : index
    %c1_181 = arith.constant 1 : index
    %c0_182 = arith.constant 0 : index
    %108 = vector.load %arg15[%c1_178, %c0_179, %c3_180, %c1_181, %c0_182] : memref<2x1x14x8x8xbf16, #tpu.memory_space<vmem>>, vector<1x1x10x5x8xbf16>
    %109 = vector.shape_cast %108 : vector<1x1x10x5x8xbf16> to vector<1x10x5x8xbf16>
    %c0_183 = arith.constant 0 : index
    %c0_184 = arith.constant 0 : index
    %c0_185 = arith.constant 0 : index
    %c144 = arith.constant 144 : index
    %110 = vector.load %arg16[%c0_183, %c0_184, %c0_185, %c144] : memref<1x10x8x200xbf16, #tpu.memory_space<vmem>>, vector<1x10x5x8xbf16>
    tpu.vector_store %arg16[%c0_183, %c0_184, %c0_185, %c144], %109 {strides = array<i32>} : memref<1x10x8x200xbf16, #tpu.memory_space<vmem>>, vector<1x10x5x8xbf16>,
    %c0_186 = arith.constant 0 : index
    %c0_187 = arith.constant 0 : index
    %c3_188 = arith.constant 3 : index
    %c2_189 = arith.constant 2 : index
    %c0_190 = arith.constant 0 : index
    %111 = vector.load %arg15[%c0_186, %c0_187, %c3_188, %c2_189, %c0_190] : memref<2x1x14x8x8xbf16, #tpu.memory_space<vmem>>, vector<1x1x10x5x8xbf16>
    %112 = vector.shape_cast %111 : vector<1x1x10x5x8xbf16> to vector<1x10x5x8xbf16>
    %c0_191 = arith.constant 0 : index
    %c0_192 = arith.constant 0 : index
    %c0_193 = arith.constant 0 : index
    %c152 = arith.constant 152 : index
    %113 = vector.load %arg16[%c0_191, %c0_192, %c0_193, %c152] : memref<1x10x8x200xbf16, #tpu.memory_space<vmem>>, vector<1x10x5x8xbf16>
    tpu.vector_store %arg16[%c0_191, %c0_192, %c0_193, %c152], %112 {strides = array<i32>} : memref<1x10x8x200xbf16, #tpu.memory_space<vmem>>, vector<1x10x5x8xbf16>,
    %c0_194 = arith.constant 0 : index
    %c0_195 = arith.constant 0 : index
    %c4 = arith.constant 4 : index
    %c0_196 = arith.constant 0 : index
    %c0_197 = arith.constant 0 : index
    %114 = vector.load %arg15[%c0_194, %c0_195, %c4, %c0_196, %c0_197] : memref<2x1x14x8x8xbf16, #tpu.memory_space<vmem>>, vector<1x1x10x5x8xbf16>
    %115 = vector.shape_cast %114 : vector<1x1x10x5x8xbf16> to vector<1x10x5x8xbf16>
    %c0_198 = arith.constant 0 : index
    %c0_199 = arith.constant 0 : index
    %c0_200 = arith.constant 0 : index
    %c160 = arith.constant 160 : index
    %116 = vector.load %arg16[%c0_198, %c0_199, %c0_200, %c160] : memref<1x10x8x200xbf16, #tpu.memory_space<vmem>>, vector<1x10x5x8xbf16>
    tpu.vector_store %arg16[%c0_198, %c0_199, %c0_200, %c160], %115 {strides = array<i32>} : memref<1x10x8x200xbf16, #tpu.memory_space<vmem>>, vector<1x10x5x8xbf16>,
    %c1_201 = arith.constant 1 : index
    %c0_202 = arith.constant 0 : index
    %c4_203 = arith.constant 4 : index
    %c0_204 = arith.constant 0 : index
    %c0_205 = arith.constant 0 : index
    %117 = vector.load %arg15[%c1_201, %c0_202, %c4_203, %c0_204, %c0_205] : memref<2x1x14x8x8xbf16, #tpu.memory_space<vmem>>, vector<1x1x10x5x8xbf16>
    %118 = vector.shape_cast %117 : vector<1x1x10x5x8xbf16> to vector<1x10x5x8xbf16>
    %c0_206 = arith.constant 0 : index
    %c0_207 = arith.constant 0 : index
    %c0_208 = arith.constant 0 : index
    %c168 = arith.constant 168 : index
    %119 = vector.load %arg16[%c0_206, %c0_207, %c0_208, %c168] : memref<1x10x8x200xbf16, #tpu.memory_space<vmem>>, vector<1x10x5x8xbf16>
    tpu.vector_store %arg16[%c0_206, %c0_207, %c0_208, %c168], %118 {strides = array<i32>} : memref<1x10x8x200xbf16, #tpu.memory_space<vmem>>, vector<1x10x5x8xbf16>,
    %c0_209 = arith.constant 0 : index
    %c0_210 = arith.constant 0 : index
    %c4_211 = arith.constant 4 : index
    %c1_212 = arith.constant 1 : index
    %c0_213 = arith.constant 0 : index
    %120 = vector.load %arg15[%c0_209, %c0_210, %c4_211, %c1_212, %c0_213] : memref<2x1x14x8x8xbf16, #tpu.memory_space<vmem>>, vector<1x1x10x5x8xbf16>
    %121 = vector.shape_cast %120 : vector<1x1x10x5x8xbf16> to vector<1x10x5x8xbf16>
    %c0_214 = arith.constant 0 : index
    %c0_215 = arith.constant 0 : index
    %c0_216 = arith.constant 0 : index
    %c176 = arith.constant 176 : index
    %122 = vector.load %arg16[%c0_214, %c0_215, %c0_216, %c176] : memref<1x10x8x200xbf16, #tpu.memory_space<vmem>>, vector<1x10x5x8xbf16>
    tpu.vector_store %arg16[%c0_214, %c0_215, %c0_216, %c176], %121 {strides = array<i32>} : memref<1x10x8x200xbf16, #tpu.memory_space<vmem>>, vector<1x10x5x8xbf16>,
    %c1_217 = arith.constant 1 : index
    %c0_218 = arith.constant 0 : index
    %c4_219 = arith.constant 4 : index
    %c1_220 = arith.constant 1 : index
    %c0_221 = arith.constant 0 : index
    %123 = vector.load %arg15[%c1_217, %c0_218, %c4_219, %c1_220, %c0_221] : memref<2x1x14x8x8xbf16, #tpu.memory_space<vmem>>, vector<1x1x10x5x8xbf16>
    %124 = vector.shape_cast %123 : vector<1x1x10x5x8xbf16> to vector<1x10x5x8xbf16>
    %c0_222 = arith.constant 0 : index
    %c0_223 = arith.constant 0 : index
    %c0_224 = arith.constant 0 : index
    %c184 = arith.constant 184 : index
    %125 = vector.load %arg16[%c0_222, %c0_223, %c0_224, %c184] : memref<1x10x8x200xbf16, #tpu.memory_space<vmem>>, vector<1x10x5x8xbf16>
    tpu.vector_store %arg16[%c0_222, %c0_223, %c0_224, %c184], %124 {strides = array<i32>} : memref<1x10x8x200xbf16, #tpu.memory_space<vmem>>, vector<1x10x5x8xbf16>,
    %c0_225 = arith.constant 0 : index
    %c0_226 = arith.constant 0 : index
    %c4_227 = arith.constant 4 : index
    %c2_228 = arith.constant 2 : index
    %c0_229 = arith.constant 0 : index
    %126 = vector.load %arg15[%c0_225, %c0_226, %c4_227, %c2_228, %c0_229] : memref<2x1x14x8x8xbf16, #tpu.memory_space<vmem>>, vector<1x1x10x5x8xbf16>
    %127 = vector.shape_cast %126 : vector<1x1x10x5x8xbf16> to vector<1x10x5x8xbf16>
    %c0_230 = arith.constant 0 : index
    %c0_231 = arith.constant 0 : index
    %c0_232 = arith.constant 0 : index
    %c192 = arith.constant 192 : index
    %128 = vector.load %arg16[%c0_230, %c0_231, %c0_232, %c192] : memref<1x10x8x200xbf16, #tpu.memory_space<vmem>>, vector<1x10x5x8xbf16>
    tpu.vector_store %arg16[%c0_230, %c0_231, %c0_232, %c192], %127 {strides = array<i32>} : memref<1x10x8x200xbf16, #tpu.memory_space<vmem>>, vector<1x10x5x8xbf16>,
    %c0_233 = arith.constant 0 : index
    %c0_234 = arith.constant 0 : index
    %c0_235 = arith.constant 0 : index
    %c0_236 = arith.constant 0 : index
    %129 = vector.load %arg16[%c0_233, %c0_234, %c0_235, %c0_236] : memref<1x10x8x200xbf16, #tpu.memory_space<vmem>>, vector<1x10x8x200xbf16>
    %130 = vector.shape_cast %129 : vector<1x10x8x200xbf16> to vector<80x200xbf16>
    %c0_237 = arith.constant 0 : index
    %c0_238 = arith.constant 0 : index
    %131 = vector.load %arg4[%c0_237, %c0_238] : memref<200x16xbf16, #tpu.memory_space<vmem>>, vector<200x16xbf16>
    %cst_239 = arith.constant dense<0.000000e+00> : vector<80x16xf32>
    %132 = tpu.matmul %130, %131, %cst_239 {dimension_numbers = #tpu.dot_dimension_numbers<[1], [0], [0], [1], [0, 0, 1, 1], [], []>} : vector<80x200xbf16>, vector<200x16xbf16>, vector<80x16xf32> -> vector<80x16xf32>
    %133 = vector.broadcast %51 : vector<1x16xf32> to vector<80x16xf32>
    %134 = arith.addf %132, %133 : vector<80x16xf32>
    %cst_240 = arith.constant 0.000000e+00 : f32
    %135 = vector.broadcast %cst_240 : f32 to vector<80x16xf32>
    %136 = arith.maximumf %134, %135 : vector<80x16xf32>
    %137 = vector.shape_cast %136 : vector<80x16xf32> to vector<1x10x8x16xf32>
    %c1_241 = arith.constant 1 : index
    %c0_242 = arith.constant 0 : index
    %c0_243 = arith.constant 0 : index
    %c0_244 = arith.constant 0 : index
    %c0_245 = arith.constant 0 : index
    %138 = vector.load %arg15[%c1_241, %c0_242, %c0_243, %c0_244, %c0_245] : memref<2x1x14x8x8xbf16, #tpu.memory_space<vmem>>, vector<1x1x10x5x8xbf16>
    %139 = vector.shape_cast %138 : vector<1x1x10x5x8xbf16> to vector<1x10x5x8xbf16>
    %c0_246 = arith.constant 0 : index
    %c0_247 = arith.constant 0 : index
    %c0_248 = arith.constant 0 : index
    %c0_249 = arith.constant 0 : index
    %140 = vector.load %arg16[%c0_246, %c0_247, %c0_248, %c0_249] : memref<1x10x8x200xbf16, #tpu.memory_space<vmem>>, vector<1x10x5x8xbf16>
    tpu.vector_store %arg16[%c0_246, %c0_247, %c0_248, %c0_249], %139 {strides = array<i32>} : memref<1x10x8x200xbf16, #tpu.memory_space<vmem>>, vector<1x10x5x8xbf16>,
    %c0_250 = arith.constant 0 : index
    %c0_251 = arith.constant 0 : index
    %c0_252 = arith.constant 0 : index
    %c1_253 = arith.constant 1 : index
    %c0_254 = arith.constant 0 : index
    %141 = vector.load %arg15[%c0_250, %c0_251, %c0_252, %c1_253, %c0_254] : memref<2x1x14x8x8xbf16, #tpu.memory_space<vmem>>, vector<1x1x10x5x8xbf16>
    %142 = vector.shape_cast %141 : vector<1x1x10x5x8xbf16> to vector<1x10x5x8xbf16>
    %c0_255 = arith.constant 0 : index
    %c0_256 = arith.constant 0 : index
    %c0_257 = arith.constant 0 : index
    %c8_258 = arith.constant 8 : index
    %143 = vector.load %arg16[%c0_255, %c0_256, %c0_257, %c8_258] : memref<1x10x8x200xbf16, #tpu.memory_space<vmem>>, vector<1x10x5x8xbf16>
    tpu.vector_store %arg16[%c0_255, %c0_256, %c0_257, %c8_258], %142 {strides = array<i32>} : memref<1x10x8x200xbf16, #tpu.memory_space<vmem>>, vector<1x10x5x8xbf16>,
    %c1_259 = arith.constant 1 : index
    %c0_260 = arith.constant 0 : index
    %c0_261 = arith.constant 0 : index
    %c1_262 = arith.constant 1 : index
    %c0_263 = arith.constant 0 : index
    %144 = vector.load %arg15[%c1_259, %c0_260, %c0_261, %c1_262, %c0_263] : memref<2x1x14x8x8xbf16, #tpu.memory_space<vmem>>, vector<1x1x10x5x8xbf16>
    %145 = vector.shape_cast %144 : vector<1x1x10x5x8xbf16> to vector<1x10x5x8xbf16>
    %c0_264 = arith.constant 0 : index
    %c0_265 = arith.constant 0 : index
    %c0_266 = arith.constant 0 : index
    %c16_267 = arith.constant 16 : index
    %146 = vector.load %arg16[%c0_264, %c0_265, %c0_266, %c16_267] : memref<1x10x8x200xbf16, #tpu.memory_space<vmem>>, vector<1x10x5x8xbf16>
    tpu.vector_store %arg16[%c0_264, %c0_265, %c0_266, %c16_267], %145 {strides = array<i32>} : memref<1x10x8x200xbf16, #tpu.memory_space<vmem>>, vector<1x10x5x8xbf16>,
    %c0_268 = arith.constant 0 : index
    %c0_269 = arith.constant 0 : index
    %c0_270 = arith.constant 0 : index
    %c2_271 = arith.constant 2 : index
    %c0_272 = arith.constant 0 : index
    %147 = vector.load %arg15[%c0_268, %c0_269, %c0_270, %c2_271, %c0_272] : memref<2x1x14x8x8xbf16, #tpu.memory_space<vmem>>, vector<1x1x10x5x8xbf16>
    %148 = vector.shape_cast %147 : vector<1x1x10x5x8xbf16> to vector<1x10x5x8xbf16>
    %c0_273 = arith.constant 0 : index
    %c0_274 = arith.constant 0 : index
    %c0_275 = arith.constant 0 : index
    %c24_276 = arith.constant 24 : index
    %149 = vector.load %arg16[%c0_273, %c0_274, %c0_275, %c24_276] : memref<1x10x8x200xbf16, #tpu.memory_space<vmem>>, vector<1x10x5x8xbf16>
    tpu.vector_store %arg16[%c0_273, %c0_274, %c0_275, %c24_276], %148 {strides = array<i32>} : memref<1x10x8x200xbf16, #tpu.memory_space<vmem>>, vector<1x10x5x8xbf16>,
    %c1_277 = arith.constant 1 : index
    %c0_278 = arith.constant 0 : index
    %c0_279 = arith.constant 0 : index
    %c2_280 = arith.constant 2 : index
    %c0_281 = arith.constant 0 : index
    %150 = vector.load %arg15[%c1_277, %c0_278, %c0_279, %c2_280, %c0_281] : memref<2x1x14x8x8xbf16, #tpu.memory_space<vmem>>, vector<1x1x10x5x8xbf16>
    %151 = vector.shape_cast %150 : vector<1x1x10x5x8xbf16> to vector<1x10x5x8xbf16>
    %c0_282 = arith.constant 0 : index
    %c0_283 = arith.constant 0 : index
    %c0_284 = arith.constant 0 : index
    %c32_285 = arith.constant 32 : index
    %152 = vector.load %arg16[%c0_282, %c0_283, %c0_284, %c32_285] : memref<1x10x8x200xbf16, #tpu.memory_space<vmem>>, vector<1x10x5x8xbf16>
    tpu.vector_store %arg16[%c0_282, %c0_283, %c0_284, %c32_285], %151 {strides = array<i32>} : memref<1x10x8x200xbf16, #tpu.memory_space<vmem>>, vector<1x10x5x8xbf16>,
    %c1_286 = arith.constant 1 : index
    %c0_287 = arith.constant 0 : index
    %c1_288 = arith.constant 1 : index
    %c0_289 = arith.constant 0 : index
    %c0_290 = arith.constant 0 : index
    %153 = vector.load %arg15[%c1_286, %c0_287, %c1_288, %c0_289, %c0_290] : memref<2x1x14x8x8xbf16, #tpu.memory_space<vmem>>, vector<1x1x10x5x8xbf16>
    %154 = vector.shape_cast %153 : vector<1x1x10x5x8xbf16> to vector<1x10x5x8xbf16>
    %c0_291 = arith.constant 0 : index
    %c0_292 = arith.constant 0 : index
    %c0_293 = arith.constant 0 : index
    %c40_294 = arith.constant 40 : index
    %155 = vector.load %arg16[%c0_291, %c0_292, %c0_293, %c40_294] : memref<1x10x8x200xbf16, #tpu.memory_space<vmem>>, vector<1x10x5x8xbf16>
    tpu.vector_store %arg16[%c0_291, %c0_292, %c0_293, %c40_294], %154 {strides = array<i32>} : memref<1x10x8x200xbf16, #tpu.memory_space<vmem>>, vector<1x10x5x8xbf16>,
    %c0_295 = arith.constant 0 : index
    %c0_296 = arith.constant 0 : index
    %c1_297 = arith.constant 1 : index
    %c1_298 = arith.constant 1 : index
    %c0_299 = arith.constant 0 : index
    %156 = vector.load %arg15[%c0_295, %c0_296, %c1_297, %c1_298, %c0_299] : memref<2x1x14x8x8xbf16, #tpu.memory_space<vmem>>, vector<1x1x10x5x8xbf16>
    %157 = vector.shape_cast %156 : vector<1x1x10x5x8xbf16> to vector<1x10x5x8xbf16>
    %c0_300 = arith.constant 0 : index
    %c0_301 = arith.constant 0 : index
    %c0_302 = arith.constant 0 : index
    %c48_303 = arith.constant 48 : index
    %158 = vector.load %arg16[%c0_300, %c0_301, %c0_302, %c48_303] : memref<1x10x8x200xbf16, #tpu.memory_space<vmem>>, vector<1x10x5x8xbf16>
    tpu.vector_store %arg16[%c0_300, %c0_301, %c0_302, %c48_303], %157 {strides = array<i32>} : memref<1x10x8x200xbf16, #tpu.memory_space<vmem>>, vector<1x10x5x8xbf16>,
    %c1_304 = arith.constant 1 : index
    %c0_305 = arith.constant 0 : index
    %c1_306 = arith.constant 1 : index
    %c1_307 = arith.constant 1 : index
    %c0_308 = arith.constant 0 : index
    %159 = vector.load %arg15[%c1_304, %c0_305, %c1_306, %c1_307, %c0_308] : memref<2x1x14x8x8xbf16, #tpu.memory_space<vmem>>, vector<1x1x10x5x8xbf16>
    %160 = vector.shape_cast %159 : vector<1x1x10x5x8xbf16> to vector<1x10x5x8xbf16>
    %c0_309 = arith.constant 0 : index
    %c0_310 = arith.constant 0 : index
    %c0_311 = arith.constant 0 : index
    %c56_312 = arith.constant 56 : index
    %161 = vector.load %arg16[%c0_309, %c0_310, %c0_311, %c56_312] : memref<1x10x8x200xbf16, #tpu.memory_space<vmem>>, vector<1x10x5x8xbf16>
    tpu.vector_store %arg16[%c0_309, %c0_310, %c0_311, %c56_312], %160 {strides = array<i32>} : memref<1x10x8x200xbf16, #tpu.memory_space<vmem>>, vector<1x10x5x8xbf16>,
    %c0_313 = arith.constant 0 : index
    %c0_314 = arith.constant 0 : index
    %c1_315 = arith.constant 1 : index
    %c2_316 = arith.constant 2 : index
    %c0_317 = arith.constant 0 : index
    %162 = vector.load %arg15[%c0_313, %c0_314, %c1_315, %c2_316, %c0_317] : memref<2x1x14x8x8xbf16, #tpu.memory_space<vmem>>, vector<1x1x10x5x8xbf16>
    %163 = vector.shape_cast %162 : vector<1x1x10x5x8xbf16> to vector<1x10x5x8xbf16>
    %c0_318 = arith.constant 0 : index
    %c0_319 = arith.constant 0 : index
    %c0_320 = arith.constant 0 : index
    %c64_321 = arith.constant 64 : index
    %164 = vector.load %arg16[%c0_318, %c0_319, %c0_320, %c64_321] : memref<1x10x8x200xbf16, #tpu.memory_space<vmem>>, vector<1x10x5x8xbf16>
    tpu.vector_store %arg16[%c0_318, %c0_319, %c0_320, %c64_321], %163 {strides = array<i32>} : memref<1x10x8x200xbf16, #tpu.memory_space<vmem>>, vector<1x10x5x8xbf16>,
    %c1_322 = arith.constant 1 : index
    %c0_323 = arith.constant 0 : index
    %c1_324 = arith.constant 1 : index
    %c2_325 = arith.constant 2 : index
    %c0_326 = arith.constant 0 : index
    %165 = vector.load %arg15[%c1_322, %c0_323, %c1_324, %c2_325, %c0_326] : memref<2x1x14x8x8xbf16, #tpu.memory_space<vmem>>, vector<1x1x10x5x8xbf16>
    %166 = vector.shape_cast %165 : vector<1x1x10x5x8xbf16> to vector<1x10x5x8xbf16>
    %c0_327 = arith.constant 0 : index
    %c0_328 = arith.constant 0 : index
    %c0_329 = arith.constant 0 : index
    %c72_330 = arith.constant 72 : index
    %167 = vector.load %arg16[%c0_327, %c0_328, %c0_329, %c72_330] : memref<1x10x8x200xbf16, #tpu.memory_space<vmem>>, vector<1x10x5x8xbf16>
    tpu.vector_store %arg16[%c0_327, %c0_328, %c0_329, %c72_330], %166 {strides = array<i32>} : memref<1x10x8x200xbf16, #tpu.memory_space<vmem>>, vector<1x10x5x8xbf16>,
    %c1_331 = arith.constant 1 : index
    %c0_332 = arith.constant 0 : index
    %c2_333 = arith.constant 2 : index
    %c0_334 = arith.constant 0 : index
    %c0_335 = arith.constant 0 : index
    %168 = vector.load %arg15[%c1_331, %c0_332, %c2_333, %c0_334, %c0_335] : memref<2x1x14x8x8xbf16, #tpu.memory_space<vmem>>, vector<1x1x10x5x8xbf16>
    %169 = vector.shape_cast %168 : vector<1x1x10x5x8xbf16> to vector<1x10x5x8xbf16>
    %c0_336 = arith.constant 0 : index
    %c0_337 = arith.constant 0 : index
    %c0_338 = arith.constant 0 : index
    %c80_339 = arith.constant 80 : index
    %170 = vector.load %arg16[%c0_336, %c0_337, %c0_338, %c80_339] : memref<1x10x8x200xbf16, #tpu.memory_space<vmem>>, vector<1x10x5x8xbf16>
    tpu.vector_store %arg16[%c0_336, %c0_337, %c0_338, %c80_339], %169 {strides = array<i32>} : memref<1x10x8x200xbf16, #tpu.memory_space<vmem>>, vector<1x10x5x8xbf16>,
    %c0_340 = arith.constant 0 : index
    %c0_341 = arith.constant 0 : index
    %c2_342 = arith.constant 2 : index
    %c1_343 = arith.constant 1 : index
    %c0_344 = arith.constant 0 : index
    %171 = vector.load %arg15[%c0_340, %c0_341, %c2_342, %c1_343, %c0_344] : memref<2x1x14x8x8xbf16, #tpu.memory_space<vmem>>, vector<1x1x10x5x8xbf16>
    %172 = vector.shape_cast %171 : vector<1x1x10x5x8xbf16> to vector<1x10x5x8xbf16>
    %c0_345 = arith.constant 0 : index
    %c0_346 = arith.constant 0 : index
    %c0_347 = arith.constant 0 : index
    %c88_348 = arith.constant 88 : index
    %173 = vector.load %arg16[%c0_345, %c0_346, %c0_347, %c88_348] : memref<1x10x8x200xbf16, #tpu.memory_space<vmem>>, vector<1x10x5x8xbf16>
    tpu.vector_store %arg16[%c0_345, %c0_346, %c0_347, %c88_348], %172 {strides = array<i32>} : memref<1x10x8x200xbf16, #tpu.memory_space<vmem>>, vector<1x10x5x8xbf16>,
    %c1_349 = arith.constant 1 : index
    %c0_350 = arith.constant 0 : index
    %c2_351 = arith.constant 2 : index
    %c1_352 = arith.constant 1 : index
    %c0_353 = arith.constant 0 : index
    %174 = vector.load %arg15[%c1_349, %c0_350, %c2_351, %c1_352, %c0_353] : memref<2x1x14x8x8xbf16, #tpu.memory_space<vmem>>, vector<1x1x10x5x8xbf16>
    %175 = vector.shape_cast %174 : vector<1x1x10x5x8xbf16> to vector<1x10x5x8xbf16>
    %c0_354 = arith.constant 0 : index
    %c0_355 = arith.constant 0 : index
    %c0_356 = arith.constant 0 : index
    %c96_357 = arith.constant 96 : index
    %176 = vector.load %arg16[%c0_354, %c0_355, %c0_356, %c96_357] : memref<1x10x8x200xbf16, #tpu.memory_space<vmem>>, vector<1x10x5x8xbf16>
    tpu.vector_store %arg16[%c0_354, %c0_355, %c0_356, %c96_357], %175 {strides = array<i32>} : memref<1x10x8x200xbf16, #tpu.memory_space<vmem>>, vector<1x10x5x8xbf16>,
    %c0_358 = arith.constant 0 : index
    %c0_359 = arith.constant 0 : index
    %c2_360 = arith.constant 2 : index
    %c2_361 = arith.constant 2 : index
    %c0_362 = arith.constant 0 : index
    %177 = vector.load %arg15[%c0_358, %c0_359, %c2_360, %c2_361, %c0_362] : memref<2x1x14x8x8xbf16, #tpu.memory_space<vmem>>, vector<1x1x10x5x8xbf16>
    %178 = vector.shape_cast %177 : vector<1x1x10x5x8xbf16> to vector<1x10x5x8xbf16>
    %c0_363 = arith.constant 0 : index
    %c0_364 = arith.constant 0 : index
    %c0_365 = arith.constant 0 : index
    %c104_366 = arith.constant 104 : index
    %179 = vector.load %arg16[%c0_363, %c0_364, %c0_365, %c104_366] : memref<1x10x8x200xbf16, #tpu.memory_space<vmem>>, vector<1x10x5x8xbf16>
    tpu.vector_store %arg16[%c0_363, %c0_364, %c0_365, %c104_366], %178 {strides = array<i32>} : memref<1x10x8x200xbf16, #tpu.memory_space<vmem>>, vector<1x10x5x8xbf16>,
    %c1_367 = arith.constant 1 : index
    %c0_368 = arith.constant 0 : index
    %c2_369 = arith.constant 2 : index
    %c2_370 = arith.constant 2 : index
    %c0_371 = arith.constant 0 : index
    %180 = vector.load %arg15[%c1_367, %c0_368, %c2_369, %c2_370, %c0_371] : memref<2x1x14x8x8xbf16, #tpu.memory_space<vmem>>, vector<1x1x10x5x8xbf16>
    %181 = vector.shape_cast %180 : vector<1x1x10x5x8xbf16> to vector<1x10x5x8xbf16>
    %c0_372 = arith.constant 0 : index
    %c0_373 = arith.constant 0 : index
    %c0_374 = arith.constant 0 : index
    %c112_375 = arith.constant 112 : index
    %182 = vector.load %arg16[%c0_372, %c0_373, %c0_374, %c112_375] : memref<1x10x8x200xbf16, #tpu.memory_space<vmem>>, vector<1x10x5x8xbf16>
    tpu.vector_store %arg16[%c0_372, %c0_373, %c0_374, %c112_375], %181 {strides = array<i32>} : memref<1x10x8x200xbf16, #tpu.memory_space<vmem>>, vector<1x10x5x8xbf16>,
    %c1_376 = arith.constant 1 : index
    %c0_377 = arith.constant 0 : index
    %c3_378 = arith.constant 3 : index
    %c0_379 = arith.constant 0 : index
    %c0_380 = arith.constant 0 : index
    %183 = vector.load %arg15[%c1_376, %c0_377, %c3_378, %c0_379, %c0_380] : memref<2x1x14x8x8xbf16, #tpu.memory_space<vmem>>, vector<1x1x10x5x8xbf16>
    %184 = vector.shape_cast %183 : vector<1x1x10x5x8xbf16> to vector<1x10x5x8xbf16>
    %c0_381 = arith.constant 0 : index
    %c0_382 = arith.constant 0 : index
    %c0_383 = arith.constant 0 : index
    %c120_384 = arith.constant 120 : index
    %185 = vector.load %arg16[%c0_381, %c0_382, %c0_383, %c120_384] : memref<1x10x8x200xbf16, #tpu.memory_space<vmem>>, vector<1x10x5x8xbf16>
    tpu.vector_store %arg16[%c0_381, %c0_382, %c0_383, %c120_384], %184 {strides = array<i32>} : memref<1x10x8x200xbf16, #tpu.memory_space<vmem>>, vector<1x10x5x8xbf16>,
    %c0_385 = arith.constant 0 : index
    %c0_386 = arith.constant 0 : index
    %c3_387 = arith.constant 3 : index
    %c1_388 = arith.constant 1 : index
    %c0_389 = arith.constant 0 : index
    %186 = vector.load %arg15[%c0_385, %c0_386, %c3_387, %c1_388, %c0_389] : memref<2x1x14x8x8xbf16, #tpu.memory_space<vmem>>, vector<1x1x10x5x8xbf16>
    %187 = vector.shape_cast %186 : vector<1x1x10x5x8xbf16> to vector<1x10x5x8xbf16>
    %c0_390 = arith.constant 0 : index
    %c0_391 = arith.constant 0 : index
    %c0_392 = arith.constant 0 : index
    %c128_393 = arith.constant 128 : index
    %188 = vector.load %arg16[%c0_390, %c0_391, %c0_392, %c128_393] : memref<1x10x8x200xbf16, #tpu.memory_space<vmem>>, vector<1x10x5x8xbf16>
    tpu.vector_store %arg16[%c0_390, %c0_391, %c0_392, %c128_393], %187 {strides = array<i32>} : memref<1x10x8x200xbf16, #tpu.memory_space<vmem>>, vector<1x10x5x8xbf16>,
    %c1_394 = arith.constant 1 : index
    %c0_395 = arith.constant 0 : index
    %c3_396 = arith.constant 3 : index
    %c1_397 = arith.constant 1 : index
    %c0_398 = arith.constant 0 : index
    %189 = vector.load %arg15[%c1_394, %c0_395, %c3_396, %c1_397, %c0_398] : memref<2x1x14x8x8xbf16, #tpu.memory_space<vmem>>, vector<1x1x10x5x8xbf16>
    %190 = vector.shape_cast %189 : vector<1x1x10x5x8xbf16> to vector<1x10x5x8xbf16>
    %c0_399 = arith.constant 0 : index
    %c0_400 = arith.constant 0 : index
    %c0_401 = arith.constant 0 : index
    %c136_402 = arith.constant 136 : index
    %191 = vector.load %arg16[%c0_399, %c0_400, %c0_401, %c136_402] : memref<1x10x8x200xbf16, #tpu.memory_space<vmem>>, vector<1x10x5x8xbf16>
    tpu.vector_store %arg16[%c0_399, %c0_400, %c0_401, %c136_402], %190 {strides = array<i32>} : memref<1x10x8x200xbf16, #tpu.memory_space<vmem>>, vector<1x10x5x8xbf16>,
    %c0_403 = arith.constant 0 : index
    %c0_404 = arith.constant 0 : index
    %c3_405 = arith.constant 3 : index
    %c2_406 = arith.constant 2 : index
    %c0_407 = arith.constant 0 : index
    %192 = vector.load %arg15[%c0_403, %c0_404, %c3_405, %c2_406, %c0_407] : memref<2x1x14x8x8xbf16, #tpu.memory_space<vmem>>, vector<1x1x10x5x8xbf16>
    %193 = vector.shape_cast %192 : vector<1x1x10x5x8xbf16> to vector<1x10x5x8xbf16>
    %c0_408 = arith.constant 0 : index
    %c0_409 = arith.constant 0 : index
    %c0_410 = arith.constant 0 : index
    %c144_411 = arith.constant 144 : index
    %194 = vector.load %arg16[%c0_408, %c0_409, %c0_410, %c144_411] : memref<1x10x8x200xbf16, #tpu.memory_space<vmem>>, vector<1x10x5x8xbf16>
    tpu.vector_store %arg16[%c0_408, %c0_409, %c0_410, %c144_411], %193 {strides = array<i32>} : memref<1x10x8x200xbf16, #tpu.memory_space<vmem>>, vector<1x10x5x8xbf16>,
    %c1_412 = arith.constant 1 : index
    %c0_413 = arith.constant 0 : index
    %c3_414 = arith.constant 3 : index
    %c2_415 = arith.constant 2 : index
    %c0_416 = arith.constant 0 : index
    %195 = vector.load %arg15[%c1_412, %c0_413, %c3_414, %c2_415, %c0_416] : memref<2x1x14x8x8xbf16, #tpu.memory_space<vmem>>, vector<1x1x10x5x8xbf16>
    %196 = vector.shape_cast %195 : vector<1x1x10x5x8xbf16> to vector<1x10x5x8xbf16>
    %c0_417 = arith.constant 0 : index
    %c0_418 = arith.constant 0 : index
    %c0_419 = arith.constant 0 : index
    %c152_420 = arith.constant 152 : index
    %197 = vector.load %arg16[%c0_417, %c0_418, %c0_419, %c152_420] : memref<1x10x8x200xbf16, #tpu.memory_space<vmem>>, vector<1x10x5x8xbf16>
    tpu.vector_store %arg16[%c0_417, %c0_418, %c0_419, %c152_420], %196 {strides = array<i32>} : memref<1x10x8x200xbf16, #tpu.memory_space<vmem>>, vector<1x10x5x8xbf16>,
    %c1_421 = arith.constant 1 : index
    %c0_422 = arith.constant 0 : index
    %c4_423 = arith.constant 4 : index
    %c0_424 = arith.constant 0 : index
    %c0_425 = arith.constant 0 : index
    %198 = vector.load %arg15[%c1_421, %c0_422, %c4_423, %c0_424, %c0_425] : memref<2x1x14x8x8xbf16, #tpu.memory_space<vmem>>, vector<1x1x10x5x8xbf16>
    %199 = vector.shape_cast %198 : vector<1x1x10x5x8xbf16> to vector<1x10x5x8xbf16>
    %c0_426 = arith.constant 0 : index
    %c0_427 = arith.constant 0 : index
    %c0_428 = arith.constant 0 : index
    %c160_429 = arith.constant 160 : index
    %200 = vector.load %arg16[%c0_426, %c0_427, %c0_428, %c160_429] : memref<1x10x8x200xbf16, #tpu.memory_space<vmem>>, vector<1x10x5x8xbf16>
    tpu.vector_store %arg16[%c0_426, %c0_427, %c0_428, %c160_429], %199 {strides = array<i32>} : memref<1x10x8x200xbf16, #tpu.memory_space<vmem>>, vector<1x10x5x8xbf16>,
    %c0_430 = arith.constant 0 : index
    %c0_431 = arith.constant 0 : index
    %c4_432 = arith.constant 4 : index
    %c1_433 = arith.constant 1 : index
    %c0_434 = arith.constant 0 : index
    %201 = vector.load %arg15[%c0_430, %c0_431, %c4_432, %c1_433, %c0_434] : memref<2x1x14x8x8xbf16, #tpu.memory_space<vmem>>, vector<1x1x10x5x8xbf16>
    %202 = vector.shape_cast %201 : vector<1x1x10x5x8xbf16> to vector<1x10x5x8xbf16>
    %c0_435 = arith.constant 0 : index
    %c0_436 = arith.constant 0 : index
    %c0_437 = arith.constant 0 : index
    %c168_438 = arith.constant 168 : index
    %203 = vector.load %arg16[%c0_435, %c0_436, %c0_437, %c168_438] : memref<1x10x8x200xbf16, #tpu.memory_space<vmem>>, vector<1x10x5x8xbf16>
    tpu.vector_store %arg16[%c0_435, %c0_436, %c0_437, %c168_438], %202 {strides = array<i32>} : memref<1x10x8x200xbf16, #tpu.memory_space<vmem>>, vector<1x10x5x8xbf16>,
    %c1_439 = arith.constant 1 : index
    %c0_440 = arith.constant 0 : index
    %c4_441 = arith.constant 4 : index
    %c1_442 = arith.constant 1 : index
    %c0_443 = arith.constant 0 : index
    %204 = vector.load %arg15[%c1_439, %c0_440, %c4_441, %c1_442, %c0_443] : memref<2x1x14x8x8xbf16, #tpu.memory_space<vmem>>, vector<1x1x10x5x8xbf16>
    %205 = vector.shape_cast %204 : vector<1x1x10x5x8xbf16> to vector<1x10x5x8xbf16>
    %c0_444 = arith.constant 0 : index
    %c0_445 = arith.constant 0 : index
    %c0_446 = arith.constant 0 : index
    %c176_447 = arith.constant 176 : index
    %206 = vector.load %arg16[%c0_444, %c0_445, %c0_446, %c176_447] : memref<1x10x8x200xbf16, #tpu.memory_space<vmem>>, vector<1x10x5x8xbf16>
    tpu.vector_store %arg16[%c0_444, %c0_445, %c0_446, %c176_447], %205 {strides = array<i32>} : memref<1x10x8x200xbf16, #tpu.memory_space<vmem>>, vector<1x10x5x8xbf16>,
    %c0_448 = arith.constant 0 : index
    %c0_449 = arith.constant 0 : index
    %c4_450 = arith.constant 4 : index
    %c2_451 = arith.constant 2 : index
    %c0_452 = arith.constant 0 : index
    %207 = vector.load %arg15[%c0_448, %c0_449, %c4_450, %c2_451, %c0_452] : memref<2x1x14x8x8xbf16, #tpu.memory_space<vmem>>, vector<1x1x10x5x8xbf16>
    %208 = vector.shape_cast %207 : vector<1x1x10x5x8xbf16> to vector<1x10x5x8xbf16>
    %c0_453 = arith.constant 0 : index
    %c0_454 = arith.constant 0 : index
    %c0_455 = arith.constant 0 : index
    %c184_456 = arith.constant 184 : index
    %209 = vector.load %arg16[%c0_453, %c0_454, %c0_455, %c184_456] : memref<1x10x8x200xbf16, #tpu.memory_space<vmem>>, vector<1x10x5x8xbf16>
    tpu.vector_store %arg16[%c0_453, %c0_454, %c0_455, %c184_456], %208 {strides = array<i32>} : memref<1x10x8x200xbf16, #tpu.memory_space<vmem>>, vector<1x10x5x8xbf16>,
    %c1_457 = arith.constant 1 : index
    %c0_458 = arith.constant 0 : index
    %c4_459 = arith.constant 4 : index
    %c2_460 = arith.constant 2 : index
    %c0_461 = arith.constant 0 : index
    %210 = vector.load %arg15[%c1_457, %c0_458, %c4_459, %c2_460, %c0_461] : memref<2x1x14x8x8xbf16, #tpu.memory_space<vmem>>, vector<1x1x10x5x8xbf16>
    %211 = vector.shape_cast %210 : vector<1x1x10x5x8xbf16> to vector<1x10x5x8xbf16>
    %c0_462 = arith.constant 0 : index
    %c0_463 = arith.constant 0 : index
    %c0_464 = arith.constant 0 : index
    %c192_465 = arith.constant 192 : index
    %212 = vector.load %arg16[%c0_462, %c0_463, %c0_464, %c192_465] : memref<1x10x8x200xbf16, #tpu.memory_space<vmem>>, vector<1x10x5x8xbf16>
    tpu.vector_store %arg16[%c0_462, %c0_463, %c0_464, %c192_465], %211 {strides = array<i32>} : memref<1x10x8x200xbf16, #tpu.memory_space<vmem>>, vector<1x10x5x8xbf16>,
    %c0_466 = arith.constant 0 : index
    %c0_467 = arith.constant 0 : index
    %c0_468 = arith.constant 0 : index
    %c0_469 = arith.constant 0 : index
    %213 = vector.load %arg16[%c0_466, %c0_467, %c0_468, %c0_469] : memref<1x10x8x200xbf16, #tpu.memory_space<vmem>>, vector<1x10x8x200xbf16>
    %214 = vector.shape_cast %213 : vector<1x10x8x200xbf16> to vector<80x200xbf16>
    %c0_470 = arith.constant 0 : index
    %c0_471 = arith.constant 0 : index
    %215 = vector.load %arg4[%c0_470, %c0_471] : memref<200x16xbf16, #tpu.memory_space<vmem>>, vector<200x16xbf16>
    %cst_472 = arith.constant dense<0.000000e+00> : vector<80x16xf32>
    %216 = tpu.matmul %214, %215, %cst_472 {dimension_numbers = #tpu.dot_dimension_numbers<[1], [0], [0], [1], [0, 0, 1, 1], [], []>} : vector<80x200xbf16>, vector<200x16xbf16>, vector<80x16xf32> -> vector<80x16xf32>
    %217 = vector.broadcast %51 : vector<1x16xf32> to vector<80x16xf32>
    %218 = arith.addf %216, %217 : vector<80x16xf32>
    %cst_473 = arith.constant 0.000000e+00 : f32
    %219 = vector.broadcast %cst_473 : f32 to vector<80x16xf32>
    %220 = arith.maximumf %218, %219 : vector<80x16xf32>
    %221 = vector.shape_cast %220 : vector<80x16xf32> to vector<1x10x8x16xf32>
    %222 = arith.maximumf %137, %221 : vector<1x10x8x16xf32>
    %223 = vector.shape_cast %222 : vector<1x10x8x16xf32> to vector<1x5x2x8x16xf32>
    %224 = vector.extract_strided_slice %223 {offsets = [0, 0, 0, 0, 0], sizes = [1, 5, 1, 8, 16], strides = [1, 1, 1, 1, 1]} : vector<1x5x2x8x16xf32> to vector<1x5x1x8x16xf32>
    %225 = vector.shape_cast %224 : vector<1x5x1x8x16xf32> to vector<1x5x8x16xf32>
    %226 = vector.extract_strided_slice %223 {offsets = [0, 0, 1, 0, 0], sizes = [1, 5, 1, 8, 16], strides = [1, 1, 1, 1, 1]} : vector<1x5x2x8x16xf32> to vector<1x5x1x8x16xf32>
    %227 = vector.shape_cast %226 : vector<1x5x1x8x16xf32> to vector<1x5x8x16xf32>
    %228 = arith.maximumf %225, %227 : vector<1x5x8x16xf32>
    %229 = vector.extract_strided_slice %228 {offsets = [0, 0, 0, 0], sizes = [1, 1, 1, 16], strides = [1, 1, 1, 1]} : vector<1x5x8x16xf32> to vector<1x1x1x16xf32>
    %230 = vector.shape_cast %229 : vector<1x1x1x16xf32> to vector<1x16xf32>
    %231 = arith.truncf %230 : vector<1x16xf32> to vector<1x16xbf16>
    %c0_474 = arith.constant 0 : index
    %c0_475 = arith.constant 0 : index
    %232 = vector.load %arg17[%c0_474, %c0_475] : memref<1x400xbf16, #tpu.memory_space<vmem>>, vector<1x16xbf16>
    tpu.vector_store %arg17[%c0_474, %c0_475], %231 {strides = array<i32>} : memref<1x400xbf16, #tpu.memory_space<vmem>>, vector<1x16xbf16>,
    %233 = vector.extract_strided_slice %228 {offsets = [0, 0, 1, 0], sizes = [1, 1, 1, 16], strides = [1, 1, 1, 1]} : vector<1x5x8x16xf32> to vector<1x1x1x16xf32>
    %234 = vector.shape_cast %233 : vector<1x1x1x16xf32> to vector<1x16xf32>
    %235 = arith.truncf %234 : vector<1x16xf32> to vector<1x16xbf16>
    %c0_476 = arith.constant 0 : index
    %c16_477 = arith.constant 16 : index
    %236 = vector.load %arg17[%c0_476, %c16_477] : memref<1x400xbf16, #tpu.memory_space<vmem>>, vector<1x16xbf16>
    tpu.vector_store %arg17[%c0_476, %c16_477], %235 {strides = array<i32>} : memref<1x400xbf16, #tpu.memory_space<vmem>>, vector<1x16xbf16>,
    %237 = vector.extract_strided_slice %228 {offsets = [0, 0, 2, 0], sizes = [1, 1, 1, 16], strides = [1, 1, 1, 1]} : vector<1x5x8x16xf32> to vector<1x1x1x16xf32>
    %238 = vector.shape_cast %237 : vector<1x1x1x16xf32> to vector<1x16xf32>
    %239 = arith.truncf %238 : vector<1x16xf32> to vector<1x16xbf16>
    %c0_478 = arith.constant 0 : index
    %c32_479 = arith.constant 32 : index
    %240 = vector.load %arg17[%c0_478, %c32_479] : memref<1x400xbf16, #tpu.memory_space<vmem>>, vector<1x16xbf16>
    tpu.vector_store %arg17[%c0_478, %c32_479], %239 {strides = array<i32>} : memref<1x400xbf16, #tpu.memory_space<vmem>>, vector<1x16xbf16>,
    %241 = vector.extract_strided_slice %228 {offsets = [0, 0, 3, 0], sizes = [1, 1, 1, 16], strides = [1, 1, 1, 1]} : vector<1x5x8x16xf32> to vector<1x1x1x16xf32>
    %242 = vector.shape_cast %241 : vector<1x1x1x16xf32> to vector<1x16xf32>
    %243 = arith.truncf %242 : vector<1x16xf32> to vector<1x16xbf16>
    %c0_480 = arith.constant 0 : index
    %c48_481 = arith.constant 48 : index
    %244 = vector.load %arg17[%c0_480, %c48_481] : memref<1x400xbf16, #tpu.memory_space<vmem>>, vector<1x16xbf16>
    tpu.vector_store %arg17[%c0_480, %c48_481], %243 {strides = array<i32>} : memref<1x400xbf16, #tpu.memory_space<vmem>>, vector<1x16xbf16>,
    %245 = vector.extract_strided_slice %228 {offsets = [0, 0, 4, 0], sizes = [1, 1, 1, 16], strides = [1, 1, 1, 1]} : vector<1x5x8x16xf32> to vector<1x1x1x16xf32>
    %246 = vector.shape_cast %245 : vector<1x1x1x16xf32> to vector<1x16xf32>
    %247 = arith.truncf %246 : vector<1x16xf32> to vector<1x16xbf16>
    %c0_482 = arith.constant 0 : index
    %c64_483 = arith.constant 64 : index
    %248 = vector.load %arg17[%c0_482, %c64_483] : memref<1x400xbf16, #tpu.memory_space<vmem>>, vector<1x16xbf16>
    tpu.vector_store %arg17[%c0_482, %c64_483], %247 {strides = array<i32>} : memref<1x400xbf16, #tpu.memory_space<vmem>>, vector<1x16xbf16>,
    %249 = vector.extract_strided_slice %228 {offsets = [0, 1, 0, 0], sizes = [1, 1, 1, 16], strides = [1, 1, 1, 1]} : vector<1x5x8x16xf32> to vector<1x1x1x16xf32>
    %250 = vector.shape_cast %249 : vector<1x1x1x16xf32> to vector<1x16xf32>
    %251 = arith.truncf %250 : vector<1x16xf32> to vector<1x16xbf16>
    %c0_484 = arith.constant 0 : index
    %c80_485 = arith.constant 80 : index
    %252 = vector.load %arg17[%c0_484, %c80_485] : memref<1x400xbf16, #tpu.memory_space<vmem>>, vector<1x16xbf16>
    tpu.vector_store %arg17[%c0_484, %c80_485], %251 {strides = array<i32>} : memref<1x400xbf16, #tpu.memory_space<vmem>>, vector<1x16xbf16>,
    %253 = vector.extract_strided_slice %228 {offsets = [0, 1, 1, 0], sizes = [1, 1, 1, 16], strides = [1, 1, 1, 1]} : vector<1x5x8x16xf32> to vector<1x1x1x16xf32>
    %254 = vector.shape_cast %253 : vector<1x1x1x16xf32> to vector<1x16xf32>
    %255 = arith.truncf %254 : vector<1x16xf32> to vector<1x16xbf16>
    %c0_486 = arith.constant 0 : index
    %c96_487 = arith.constant 96 : index
    %256 = vector.load %arg17[%c0_486, %c96_487] : memref<1x400xbf16, #tpu.memory_space<vmem>>, vector<1x16xbf16>
    tpu.vector_store %arg17[%c0_486, %c96_487], %255 {strides = array<i32>} : memref<1x400xbf16, #tpu.memory_space<vmem>>, vector<1x16xbf16>,
    %257 = vector.extract_strided_slice %228 {offsets = [0, 1, 2, 0], sizes = [1, 1, 1, 16], strides = [1, 1, 1, 1]} : vector<1x5x8x16xf32> to vector<1x1x1x16xf32>
    %258 = vector.shape_cast %257 : vector<1x1x1x16xf32> to vector<1x16xf32>
    %259 = arith.truncf %258 : vector<1x16xf32> to vector<1x16xbf16>
    %c0_488 = arith.constant 0 : index
    %c112_489 = arith.constant 112 : index
    %260 = vector.load %arg17[%c0_488, %c112_489] : memref<1x400xbf16, #tpu.memory_space<vmem>>, vector<1x16xbf16>
    tpu.vector_store %arg17[%c0_488, %c112_489], %259 {strides = array<i32>} : memref<1x400xbf16, #tpu.memory_space<vmem>>, vector<1x16xbf16>,
    %261 = vector.extract_strided_slice %228 {offsets = [0, 1, 3, 0], sizes = [1, 1, 1, 16], strides = [1, 1, 1, 1]} : vector<1x5x8x16xf32> to vector<1x1x1x16xf32>
    %262 = vector.shape_cast %261 : vector<1x1x1x16xf32> to vector<1x16xf32>
    %263 = arith.truncf %262 : vector<1x16xf32> to vector<1x16xbf16>
    %c0_490 = arith.constant 0 : index
    %c128_491 = arith.constant 128 : index
    %264 = vector.load %arg17[%c0_490, %c128_491] : memref<1x400xbf16, #tpu.memory_space<vmem>>, vector<1x16xbf16>
    tpu.vector_store %arg17[%c0_490, %c128_491], %263 {strides = array<i32>} : memref<1x400xbf16, #tpu.memory_space<vmem>>, vector<1x16xbf16>,
    %265 = vector.extract_strided_slice %228 {offsets = [0, 1, 4, 0], sizes = [1, 1, 1, 16], strides = [1, 1, 1, 1]} : vector<1x5x8x16xf32> to vector<1x1x1x16xf32>
    %266 = vector.shape_cast %265 : vector<1x1x1x16xf32> to vector<1x16xf32>
    %267 = arith.truncf %266 : vector<1x16xf32> to vector<1x16xbf16>
    %c0_492 = arith.constant 0 : index
    %c144_493 = arith.constant 144 : index
    %268 = vector.load %arg17[%c0_492, %c144_493] : memref<1x400xbf16, #tpu.memory_space<vmem>>, vector<1x16xbf16>
    tpu.vector_store %arg17[%c0_492, %c144_493], %267 {strides = array<i32>} : memref<1x400xbf16, #tpu.memory_space<vmem>>, vector<1x16xbf16>,
    %269 = vector.extract_strided_slice %228 {offsets = [0, 2, 0, 0], sizes = [1, 1, 1, 16], strides = [1, 1, 1, 1]} : vector<1x5x8x16xf32> to vector<1x1x1x16xf32>
    %270 = vector.shape_cast %269 : vector<1x1x1x16xf32> to vector<1x16xf32>
    %271 = arith.truncf %270 : vector<1x16xf32> to vector<1x16xbf16>
    %c0_494 = arith.constant 0 : index
    %c160_495 = arith.constant 160 : index
    %272 = vector.load %arg17[%c0_494, %c160_495] : memref<1x400xbf16, #tpu.memory_space<vmem>>, vector<1x16xbf16>
    tpu.vector_store %arg17[%c0_494, %c160_495], %271 {strides = array<i32>} : memref<1x400xbf16, #tpu.memory_space<vmem>>, vector<1x16xbf16>,
    %273 = vector.extract_strided_slice %228 {offsets = [0, 2, 1, 0], sizes = [1, 1, 1, 16], strides = [1, 1, 1, 1]} : vector<1x5x8x16xf32> to vector<1x1x1x16xf32>
    %274 = vector.shape_cast %273 : vector<1x1x1x16xf32> to vector<1x16xf32>
    %275 = arith.truncf %274 : vector<1x16xf32> to vector<1x16xbf16>
    %c0_496 = arith.constant 0 : index
    %c176_497 = arith.constant 176 : index
    %276 = vector.load %arg17[%c0_496, %c176_497] : memref<1x400xbf16, #tpu.memory_space<vmem>>, vector<1x16xbf16>
    tpu.vector_store %arg17[%c0_496, %c176_497], %275 {strides = array<i32>} : memref<1x400xbf16, #tpu.memory_space<vmem>>, vector<1x16xbf16>,
    %277 = vector.extract_strided_slice %228 {offsets = [0, 2, 2, 0], sizes = [1, 1, 1, 16], strides = [1, 1, 1, 1]} : vector<1x5x8x16xf32> to vector<1x1x1x16xf32>
    %278 = vector.shape_cast %277 : vector<1x1x1x16xf32> to vector<1x16xf32>
    %279 = arith.truncf %278 : vector<1x16xf32> to vector<1x16xbf16>
    %c0_498 = arith.constant 0 : index
    %c192_499 = arith.constant 192 : index
    %280 = vector.load %arg17[%c0_498, %c192_499] : memref<1x400xbf16, #tpu.memory_space<vmem>>, vector<1x16xbf16>
    tpu.vector_store %arg17[%c0_498, %c192_499], %279 {strides = array<i32>} : memref<1x400xbf16, #tpu.memory_space<vmem>>, vector<1x16xbf16>,
    %281 = vector.extract_strided_slice %228 {offsets = [0, 2, 3, 0], sizes = [1, 1, 1, 16], strides = [1, 1, 1, 1]} : vector<1x5x8x16xf32> to vector<1x1x1x16xf32>
    %282 = vector.shape_cast %281 : vector<1x1x1x16xf32> to vector<1x16xf32>
    %283 = arith.truncf %282 : vector<1x16xf32> to vector<1x16xbf16>
    %c0_500 = arith.constant 0 : index
    %c208 = arith.constant 208 : index
    %284 = vector.load %arg17[%c0_500, %c208] : memref<1x400xbf16, #tpu.memory_space<vmem>>, vector<1x16xbf16>
    tpu.vector_store %arg17[%c0_500, %c208], %283 {strides = array<i32>} : memref<1x400xbf16, #tpu.memory_space<vmem>>, vector<1x16xbf16>,
    %285 = vector.extract_strided_slice %228 {offsets = [0, 2, 4, 0], sizes = [1, 1, 1, 16], strides = [1, 1, 1, 1]} : vector<1x5x8x16xf32> to vector<1x1x1x16xf32>
    %286 = vector.shape_cast %285 : vector<1x1x1x16xf32> to vector<1x16xf32>
    %287 = arith.truncf %286 : vector<1x16xf32> to vector<1x16xbf16>
    %c0_501 = arith.constant 0 : index
    %c224 = arith.constant 224 : index
    %288 = vector.load %arg17[%c0_501, %c224] : memref<1x400xbf16, #tpu.memory_space<vmem>>, vector<1x16xbf16>
    tpu.vector_store %arg17[%c0_501, %c224], %287 {strides = array<i32>} : memref<1x400xbf16, #tpu.memory_space<vmem>>, vector<1x16xbf16>,
    %289 = vector.extract_strided_slice %228 {offsets = [0, 3, 0, 0], sizes = [1, 1, 1, 16], strides = [1, 1, 1, 1]} : vector<1x5x8x16xf32> to vector<1x1x1x16xf32>
    %290 = vector.shape_cast %289 : vector<1x1x1x16xf32> to vector<1x16xf32>
    %291 = arith.truncf %290 : vector<1x16xf32> to vector<1x16xbf16>
    %c0_502 = arith.constant 0 : index
    %c240 = arith.constant 240 : index
    %292 = vector.load %arg17[%c0_502, %c240] : memref<1x400xbf16, #tpu.memory_space<vmem>>, vector<1x16xbf16>
    tpu.vector_store %arg17[%c0_502, %c240], %291 {strides = array<i32>} : memref<1x400xbf16, #tpu.memory_space<vmem>>, vector<1x16xbf16>,
    %293 = vector.extract_strided_slice %228 {offsets = [0, 3, 1, 0], sizes = [1, 1, 1, 16], strides = [1, 1, 1, 1]} : vector<1x5x8x16xf32> to vector<1x1x1x16xf32>
    %294 = vector.shape_cast %293 : vector<1x1x1x16xf32> to vector<1x16xf32>
    %295 = arith.truncf %294 : vector<1x16xf32> to vector<1x16xbf16>
    %c0_503 = arith.constant 0 : index
    %c256 = arith.constant 256 : index
    %296 = vector.load %arg17[%c0_503, %c256] : memref<1x400xbf16, #tpu.memory_space<vmem>>, vector<1x16xbf16>
    tpu.vector_store %arg17[%c0_503, %c256], %295 {strides = array<i32>} : memref<1x400xbf16, #tpu.memory_space<vmem>>, vector<1x16xbf16>,
    %297 = vector.extract_strided_slice %228 {offsets = [0, 3, 2, 0], sizes = [1, 1, 1, 16], strides = [1, 1, 1, 1]} : vector<1x5x8x16xf32> to vector<1x1x1x16xf32>
    %298 = vector.shape_cast %297 : vector<1x1x1x16xf32> to vector<1x16xf32>
    %299 = arith.truncf %298 : vector<1x16xf32> to vector<1x16xbf16>
    %c0_504 = arith.constant 0 : index
    %c272 = arith.constant 272 : index
    %300 = vector.load %arg17[%c0_504, %c272] : memref<1x400xbf16, #tpu.memory_space<vmem>>, vector<1x16xbf16>
    tpu.vector_store %arg17[%c0_504, %c272], %299 {strides = array<i32>} : memref<1x400xbf16, #tpu.memory_space<vmem>>, vector<1x16xbf16>,
    %301 = vector.extract_strided_slice %228 {offsets = [0, 3, 3, 0], sizes = [1, 1, 1, 16], strides = [1, 1, 1, 1]} : vector<1x5x8x16xf32> to vector<1x1x1x16xf32>
    %302 = vector.shape_cast %301 : vector<1x1x1x16xf32> to vector<1x16xf32>
    %303 = arith.truncf %302 : vector<1x16xf32> to vector<1x16xbf16>
    %c0_505 = arith.constant 0 : index
    %c288 = arith.constant 288 : index
    %304 = vector.load %arg17[%c0_505, %c288] : memref<1x400xbf16, #tpu.memory_space<vmem>>, vector<1x16xbf16>
    tpu.vector_store %arg17[%c0_505, %c288], %303 {strides = array<i32>} : memref<1x400xbf16, #tpu.memory_space<vmem>>, vector<1x16xbf16>,
    %305 = vector.extract_strided_slice %228 {offsets = [0, 3, 4, 0], sizes = [1, 1, 1, 16], strides = [1, 1, 1, 1]} : vector<1x5x8x16xf32> to vector<1x1x1x16xf32>
    %306 = vector.shape_cast %305 : vector<1x1x1x16xf32> to vector<1x16xf32>
    %307 = arith.truncf %306 : vector<1x16xf32> to vector<1x16xbf16>
    %c0_506 = arith.constant 0 : index
    %c304 = arith.constant 304 : index
    %308 = vector.load %arg17[%c0_506, %c304] : memref<1x400xbf16, #tpu.memory_space<vmem>>, vector<1x16xbf16>
    tpu.vector_store %arg17[%c0_506, %c304], %307 {strides = array<i32>} : memref<1x400xbf16, #tpu.memory_space<vmem>>, vector<1x16xbf16>,
    %309 = vector.extract_strided_slice %228 {offsets = [0, 4, 0, 0], sizes = [1, 1, 1, 16], strides = [1, 1, 1, 1]} : vector<1x5x8x16xf32> to vector<1x1x1x16xf32>
    %310 = vector.shape_cast %309 : vector<1x1x1x16xf32> to vector<1x16xf32>
    %311 = arith.truncf %310 : vector<1x16xf32> to vector<1x16xbf16>
    %c0_507 = arith.constant 0 : index
    %c320 = arith.constant 320 : index
    %312 = vector.load %arg17[%c0_507, %c320] : memref<1x400xbf16, #tpu.memory_space<vmem>>, vector<1x16xbf16>
    tpu.vector_store %arg17[%c0_507, %c320], %311 {strides = array<i32>} : memref<1x400xbf16, #tpu.memory_space<vmem>>, vector<1x16xbf16>,
    %313 = vector.extract_strided_slice %228 {offsets = [0, 4, 1, 0], sizes = [1, 1, 1, 16], strides = [1, 1, 1, 1]} : vector<1x5x8x16xf32> to vector<1x1x1x16xf32>
    %314 = vector.shape_cast %313 : vector<1x1x1x16xf32> to vector<1x16xf32>
    %315 = arith.truncf %314 : vector<1x16xf32> to vector<1x16xbf16>
    %c0_508 = arith.constant 0 : index
    %c336 = arith.constant 336 : index
    %316 = vector.load %arg17[%c0_508, %c336] : memref<1x400xbf16, #tpu.memory_space<vmem>>, vector<1x16xbf16>
    tpu.vector_store %arg17[%c0_508, %c336], %315 {strides = array<i32>} : memref<1x400xbf16, #tpu.memory_space<vmem>>, vector<1x16xbf16>,
    %317 = vector.extract_strided_slice %228 {offsets = [0, 4, 2, 0], sizes = [1, 1, 1, 16], strides = [1, 1, 1, 1]} : vector<1x5x8x16xf32> to vector<1x1x1x16xf32>
    %318 = vector.shape_cast %317 : vector<1x1x1x16xf32> to vector<1x16xf32>
    %319 = arith.truncf %318 : vector<1x16xf32> to vector<1x16xbf16>
    %c0_509 = arith.constant 0 : index
    %c352 = arith.constant 352 : index
    %320 = vector.load %arg17[%c0_509, %c352] : memref<1x400xbf16, #tpu.memory_space<vmem>>, vector<1x16xbf16>
    tpu.vector_store %arg17[%c0_509, %c352], %319 {strides = array<i32>} : memref<1x400xbf16, #tpu.memory_space<vmem>>, vector<1x16xbf16>,
    %321 = vector.extract_strided_slice %228 {offsets = [0, 4, 3, 0], sizes = [1, 1, 1, 16], strides = [1, 1, 1, 1]} : vector<1x5x8x16xf32> to vector<1x1x1x16xf32>
    %322 = vector.shape_cast %321 : vector<1x1x1x16xf32> to vector<1x16xf32>
    %323 = arith.truncf %322 : vector<1x16xf32> to vector<1x16xbf16>
    %c0_510 = arith.constant 0 : index
    %c368 = arith.constant 368 : index
    %324 = vector.load %arg17[%c0_510, %c368] : memref<1x400xbf16, #tpu.memory_space<vmem>>, vector<1x16xbf16>
    tpu.vector_store %arg17[%c0_510, %c368], %323 {strides = array<i32>} : memref<1x400xbf16, #tpu.memory_space<vmem>>, vector<1x16xbf16>,
    %325 = vector.extract_strided_slice %228 {offsets = [0, 4, 4, 0], sizes = [1, 1, 1, 16], strides = [1, 1, 1, 1]} : vector<1x5x8x16xf32> to vector<1x1x1x16xf32>
    %326 = vector.shape_cast %325 : vector<1x1x1x16xf32> to vector<1x16xf32>
    %327 = arith.truncf %326 : vector<1x16xf32> to vector<1x16xbf16>
    %c0_511 = arith.constant 0 : index
    %c384 = arith.constant 384 : index
    %328 = vector.load %arg17[%c0_511, %c384] : memref<1x400xbf16, #tpu.memory_space<vmem>>, vector<1x16xbf16>
    tpu.vector_store %arg17[%c0_511, %c384], %327 {strides = array<i32>} : memref<1x400xbf16, #tpu.memory_space<vmem>>, vector<1x16xbf16>,
    %c0_512 = arith.constant 0 : index
    %c0_513 = arith.constant 0 : index
    %329 = vector.load %arg17[%c0_512, %c0_513] : memref<1x400xbf16, #tpu.memory_space<vmem>>, vector<1x400xbf16>
    %c0_514 = arith.constant 0 : index
    %c0_515 = arith.constant 0 : index
    %330 = vector.load %arg6[%c0_514, %c0_515] : memref<400x128xbf16, #tpu.memory_space<vmem>>, vector<400x128xbf16>
    %cst_516 = arith.constant dense<0.000000e+00> : vector<1x128xf32>
    %331 = tpu.matmul %329, %330, %cst_516 {dimension_numbers = #tpu.dot_dimension_numbers<[1], [0], [0], [1], [0, 0, 1, 1], [], []>} : vector<1x400xbf16>, vector<400x128xbf16>, vector<1x128xf32> -> vector<1x128xf32>
    %c0_517 = arith.constant 0 : index
    %c0_518 = arith.constant 0 : index
    %332 = vector.load %arg7[%c0_517, %c0_518] : memref<1x128xf32, #tpu.memory_space<vmem>>, vector<1x128xf32>
    %333 = arith.addf %331, %332 : vector<1x128xf32>
    %cst_519 = arith.constant 0.000000e+00 : f32
    %334 = vector.broadcast %cst_519 : f32 to vector<1x128xf32>
    %335 = arith.maximumf %333, %334 : vector<1x128xf32>
    %336 = arith.truncf %335 : vector<1x128xf32> to vector<1x128xbf16>
    %c0_520 = arith.constant 0 : index
    %c0_521 = arith.constant 0 : index
    %337 = vector.load %arg8[%c0_520, %c0_521] : memref<128x128xbf16, #tpu.memory_space<vmem>>, vector<128x128xbf16>
    %cst_522 = arith.constant dense<0.000000e+00> : vector<1x128xf32>
    %338 = tpu.matmul %336, %337, %cst_522 {dimension_numbers = #tpu.dot_dimension_numbers<[1], [0], [0], [1], [0, 0, 1, 1], [], []>} : vector<1x128xbf16>, vector<128x128xbf16>, vector<1x128xf32> -> vector<1x128xf32>
    %c0_523 = arith.constant 0 : index
    %c0_524 = arith.constant 0 : index
    %339 = vector.load %arg9[%c0_523, %c0_524] : memref<1x128xf32, #tpu.memory_space<vmem>>, vector<1x128xf32>
    %340 = arith.addf %338, %339 : vector<1x128xf32>
    %cst_525 = arith.constant 0.000000e+00 : f32
    %341 = vector.broadcast %cst_525 : f32 to vector<1x128xf32>
    %342 = arith.maximumf %340, %341 : vector<1x128xf32>
    %343 = arith.truncf %342 : vector<1x128xf32> to vector<1x128xbf16>
    %c0_526 = arith.constant 0 : index
    %c0_527 = arith.constant 0 : index
    %344 = vector.load %arg10[%c0_526, %c0_527] : memref<128x128xbf16, #tpu.memory_space<vmem>>, vector<128x128xbf16>
    %cst_528 = arith.constant dense<0.000000e+00> : vector<1x128xf32>
    %345 = tpu.matmul %343, %344, %cst_528 {dimension_numbers = #tpu.dot_dimension_numbers<[1], [0], [0], [1], [0, 0, 1, 1], [], []>} : vector<1x128xbf16>, vector<128x128xbf16>, vector<1x128xf32> -> vector<1x128xf32>
    %c0_529 = arith.constant 0 : index
    %c0_530 = arith.constant 0 : index
    %346 = vector.load %arg11[%c0_529, %c0_530] : memref<1x128xf32, #tpu.memory_space<vmem>>, vector<1x128xf32>
    %347 = arith.addf %345, %346 : vector<1x128xf32>
    %cst_531 = arith.constant 0.000000e+00 : f32
    %348 = vector.broadcast %cst_531 : f32 to vector<1x128xf32>
    %349 = arith.maximumf %347, %348 : vector<1x128xf32>
    %350 = arith.truncf %349 : vector<1x128xf32> to vector<1x128xbf16>
    %c0_532 = arith.constant 0 : index
    %c0_533 = arith.constant 0 : index
    %351 = vector.load %arg12[%c0_532, %c0_533] : memref<128x128xbf16, #tpu.memory_space<vmem>>, vector<128x128xbf16>
    %cst_534 = arith.constant dense<0.000000e+00> : vector<1x128xf32>
    %352 = tpu.matmul %350, %351, %cst_534 {dimension_numbers = #tpu.dot_dimension_numbers<[1], [0], [0], [1], [0, 0, 1, 1], [], []>} : vector<1x128xbf16>, vector<128x128xbf16>, vector<1x128xf32> -> vector<1x128xf32>
    %c0_535 = arith.constant 0 : index
    %c0_536 = arith.constant 0 : index
    %353 = vector.load %arg13[%c0_535, %c0_536] : memref<1x128xf32, #tpu.memory_space<vmem>>, vector<1x128xf32>
    %354 = arith.addf %352, %353 : vector<1x128xf32>
    %c0_537 = arith.constant 0 : index
    %c0_538 = arith.constant 0 : index
    %c0_539 = arith.constant 0 : index
    %355 = vector.load %arg14[%c0_537, %c0_538, %c0_539] : memref<1x1x128xf32, #tpu.memory_space<vmem>>, vector<1x1x128xf32>
    %356 = vector.shape_cast %355 : vector<1x1x128xf32> to vector<1x128xf32>
    %357 = vector.shape_cast %354 : vector<1x128xf32> to vector<1x1x128xf32>
    tpu.vector_store %arg14[%c0_537, %c0_538, %c0_539], %357 {strides = array<i32>} : memref<1x1x128xf32, #tpu.memory_space<vmem>>, vector<1x1x128xf32>,
    return
  }
  func.func @transform_0(%arg0: i32) -> (i32, i32, i32, i32, i32, i32) {
    %c0_i32 = arith.constant 0 : i32
    %c0_i32_0 = arith.constant 0 : i32
    %c0_i32_1 = arith.constant 0 : i32
    %c0_i32_2 = arith.constant 0 : i32
    %c0_i32_3 = arith.constant 0 : i32
    %c0_i32_4 = arith.constant 0 : i32
    return %arg0, %c0_i32, %c0_i32_0, %c0_i32_1, %c0_i32_2, %c0_i32_3 : i32, i32, i32, i32, i32, i32
  }
  func.func @transform_1(%arg0: i32) -> (i32, i32) {
    %c0_i32 = arith.constant 0 : i32
    %c0_i32_0 = arith.constant 0 : i32
    %c0_i32_1 = arith.constant 0 : i32
    return %c0_i32, %c0_i32_0 : i32, i32
  }
  func.func @transform_2(%arg0: i32) -> (i32, i32) {
    %c0_i32 = arith.constant 0 : i32
    %c0_i32_0 = arith.constant 0 : i32
    %c0_i32_1 = arith.constant 0 : i32
    return %c0_i32, %c0_i32_0 : i32, i32
  }
  func.func @transform_3(%arg0: i32) -> (i32, i32) {
    %c0_i32 = arith.constant 0 : i32
    %c0_i32_0 = arith.constant 0 : i32
    %c0_i32_1 = arith.constant 0 : i32
    return %c0_i32, %c0_i32_0 : i32, i32
  }
  func.func @transform_4(%arg0: i32) -> (i32, i32) {
    %c0_i32 = arith.constant 0 : i32
    %c0_i32_0 = arith.constant 0 : i32
    %c0_i32_1 = arith.constant 0 : i32
    return %c0_i32, %c0_i32_0 : i32, i32
  }
  func.func @transform_5(%arg0: i32) -> (i32, i32) {
    %c0_i32 = arith.constant 0 : i32
    %c0_i32_0 = arith.constant 0 : i32
    %c0_i32_1 = arith.constant 0 : i32
    return %c0_i32, %c0_i32_0 : i32, i32
  }
  func.func @transform_6(%arg0: i32) -> (i32, i32) {
    %c0_i32 = arith.constant 0 : i32
    %c0_i32_0 = arith.constant 0 : i32
    %c0_i32_1 = arith.constant 0 : i32
    return %c0_i32, %c0_i32_0 : i32, i32
  }
  func.func @transform_7(%arg0: i32) -> (i32, i32) {
    %c0_i32 = arith.constant 0 : i32
    %c0_i32_0 = arith.constant 0 : i32
    %c0_i32_1 = arith.constant 0 : i32
    return %c0_i32, %c0_i32_0 : i32, i32
  }
  func.func @transform_8(%arg0: i32) -> (i32, i32) {
    %c0_i32 = arith.constant 0 : i32
    %c0_i32_0 = arith.constant 0 : i32
    %c0_i32_1 = arith.constant 0 : i32
    return %c0_i32, %c0_i32_0 : i32, i32
  }
  func.func @transform_9(%arg0: i32) -> (i32, i32) {
    %c0_i32 = arith.constant 0 : i32
    %c0_i32_0 = arith.constant 0 : i32
    %c0_i32_1 = arith.constant 0 : i32
    return %c0_i32, %c0_i32_0 : i32, i32
  }
  func.func @transform_10(%arg0: i32) -> (i32, i32) {
    %c0_i32 = arith.constant 0 : i32
    %c0_i32_0 = arith.constant 0 : i32
    %c0_i32_1 = arith.constant 0 : i32
    return %c0_i32, %c0_i32_0 : i32, i32
  }
  func.func @transform_11(%arg0: i32) -> (i32, i32) {
    %c0_i32 = arith.constant 0 : i32
    %c0_i32_0 = arith.constant 0 : i32
    %c0_i32_1 = arith.constant 0 : i32
    return %c0_i32, %c0_i32_0 : i32, i32
  }
  func.func @transform_12(%arg0: i32) -> (i32, i32) {
    %c0_i32 = arith.constant 0 : i32
    %c0_i32_0 = arith.constant 0 : i32
    %c0_i32_1 = arith.constant 0 : i32
    return %c0_i32, %c0_i32_0 : i32, i32
  }
  func.func @transform_13(%arg0: i32) -> (i32, i32, i32) {
    %c0_i32 = arith.constant 0 : i32
    %c0_i32_0 = arith.constant 0 : i32
    %c0_i32_1 = arith.constant 0 : i32
    return %arg0, %c0_i32, %c0_i32_0 : i32, i32, i32
  }
}

</mosaic_0001>

<llo_original>
// kernel: lenet_forward.1
$region0: #{lenet_forward.1}
  #allocation0 [shape = 'u32[]', space=smem, size = 0x4, offset = 0x4, fixed_abs, tag = 'smem constant byte address 0x4 - core index']
  #allocation1 [shape = 'u32[144,128]{1,0:T(1,128)}', space=vmem, size = 0x12000, scoped, tag = 'internal scratch']
  #allocation2 [shape = 'bf16[2,1,14,8,8]{4,3,2,1,0:T(8,128)(2,1)}', space=vmem, size = 0xe000, scoped, tag = 'scratch operand']
  #allocation3 [shape = 'bf16[1,10,8,200]{3,2,1,0:T(8,128)(2,1)}', space=vmem, size = 0xa000, scoped, tag = 'scratch operand']
  #allocation4 [shape = 'bf16[1,400]{1,0:T(2,128)(2,1)}', space=vmem, size = 0x800, scoped, tag = 'scratch operand']
  %s0 = inlined_call_operand.vmem [shape: bf16[2,1,4,28,8,75], index: 0, kind: input, shape index: {}]
  %s1 = inlined_call_operand.vmem [shape: bf16[75,8], index: 1, kind: input, shape index: {}]
  %s2 = inlined_call_operand.vmem [shape: f32[1,8], index: 2, kind: input, shape index: {}]
  %s3 = inlined_call_operand.vmem [shape: bf16[200,16], index: 3, kind: input, shape index: {}]
  %s4 = inlined_call_operand.vmem [shape: f32[1,16], index: 4, kind: input, shape index: {}]
  %s5 = inlined_call_operand.vmem [shape: bf16[400,128], index: 5, kind: input, shape index: {}]
  %s6 = inlined_call_operand.vmem [shape: f32[1,128], index: 6, kind: input, shape index: {}]
  %s7 = inlined_call_operand.vmem [shape: bf16[128,128], index: 7, kind: input, shape index: {}]
  %s8 = inlined_call_operand.vmem [shape: f32[1,128], index: 8, kind: input, shape index: {}]
  %s9 = inlined_call_operand.vmem [shape: bf16[128,128], index: 9, kind: input, shape index: {}]
  %s10 = inlined_call_operand.vmem [shape: f32[1,128], index: 10, kind: input, shape index: {}]
  %s11 = inlined_call_operand.vmem [shape: bf16[128,128], index: 11, kind: input, shape index: {}]
  %s12 = inlined_call_operand.vmem [shape: f32[1,128], index: 12, kind: input, shape index: {}]
  %s13 = inlined_call_operand.hbm [shape: f32[2,1,128], index: 13, kind: output, shape index: {}]
  %s14 = sld [smem:[#allocation0]]
  $region85: #{lenet_forward.1} parent=0
    _
  %s16 = ssub.s32 1, %s14
  %s17 = scalar_select 0, %s16, %s14
  $region1: #{lenet_forward.1} parent=0
    #allocation5 [shape = 'u8[1024]{0}', space=vmem, size = 0x400, scoped, tag = 'output window, operand 0']
    #allocation6 [shape = 's32[2]{0}', space=sflag, size = 0x8, scoped, tag = 'scoped memory for lenet_forward.1']
    %18 = vsyncpa [#allocation6], 0
    %s19 = scalar_lea.sflag [#allocation6], 1
    %20 = vsyncpa %s19, 0
    loop: start=0, step=1, limit=4
    $region2: #{lenet_forward.1} parent=1 // loop_pre_header
      _
    $region3: #{lenet_forward.1} parent=1 // loop_header
      %s22 = sphi 0, %s26
      %p23 = scmp.ge.s32.totalorder %s22, 4
      %s32 = sphi 0, %s34
      %s35 = sphi 0, %s32
      %s36 = sphi 0, %s35
      %s52 = sphi 0, %s36
      %s56 = sphi 0, %s56
      %s58 = sphi 0, %s56
      %s59 = sphi 0, %s58
      %s73 = sphi 0, %s59
      %s77 = sphi 0, %s77
      %s79 = sphi 0, %s77
      %s80 = sphi 0, %s79
      %s94 = sphi 0, %s80
      %s98 = sphi 0, %s98
      %s100 = sphi 0, %s98
      %s101 = sphi 0, %s100
      %s115 = sphi 0, %s101
      %s119 = sphi 0, %s119
      %s121 = sphi 0, %s119
      %s122 = sphi 0, %s121
      %s136 = sphi 0, %s122
      %s140 = sphi 0, %s140
      %s142 = sphi 0, %s140
      %s143 = sphi 0, %s142
      %s157 = sphi 0, %s143
      %s161 = sphi 0, %s161
      %s163 = sphi 0, %s161
      %s164 = sphi 0, %s163
      %s178 = sphi 0, %s164
      %s182 = sphi 0, %s182
      %s184 = sphi 0, %s182
      %s185 = sphi 0, %s184
      %s199 = sphi 0, %s185
      %s203 = sphi 0, %s203
      %s205 = sphi 0, %s203
      %s206 = sphi 0, %s205
      %s220 = sphi 0, %s206
      %s224 = sphi 0, %s224
      %s226 = sphi 0, %s224
      %s227 = sphi 0, %s226
      %s241 = sphi 0, %s227
      %s245 = sphi 0, %s245
      %s247 = sphi 0, %s245
      %s248 = sphi 0, %s247
      %s262 = sphi 0, %s248
      %s266 = sphi 0, %s266
      %s268 = sphi 0, %s266
      %s269 = sphi 0, %s268
      %s283 = sphi 0, %s269
      %s287 = sphi 0, %s287
      %s289 = sphi 0, %s287
      %s290 = sphi 0, %s289
      %s304 = sphi 0, %s290
      %s310 = sphi 0, %s312
      %s313 = sphi 0, %s310
      %s314 = sphi 0, %s313
      %s330 = sphi 0, %s314
    $region4: #{lenet_forward.1} parent=1 // loop_header_branch
      %25 = sbr.rel (%p23) target = $region8
    $region5: #{lenet_forward.1} parent=1 // loop_body
      %s27 = ssub.s32 %s22, 1
      %s28 = ssub.s32 %s22, 2
      %s29 = sadd.s32 %s22, 1
      %s30 = ssub.s32 %s22, %s29
      %p31 = scmp.eq.s32.totalorder %s30, 0
      %s33 = sadd.s32 %s32, 1
      %s34 = scalar_select %p31, %s32, %s33
      %p37 = pneg %p31
      %p38 = scmp.eq.s32.totalorder %s22, 1
      %p39 = por %p37, %p38
      %p40 = scmp.ne.s32.totalorder %s32, %s35
      %p41 = scmp.eq.s32.totalorder %s22, 0
      %p42 = por %p40, %p41
      %p43 = scmp.ne.s32.totalorder %s32, %s35
      %p44 = scmp.eq.s32.totalorder %s27, 1
      %p45 = por %p43, %p44
      %p46 = scmp.ne.s32.totalorder %s35, %s36
      %p47 = scmp.eq.s32.totalorder %s27, 0
      %p48 = por %p46, %p47
      %p49 = scmp.ne.s32.totalorder %s35, %s36
      %p50 = scmp.eq.s32.totalorder %s28, 1
      %p51 = por %p49, %p50
      %p53 = scmp.ne.s32.totalorder %s36, %s52
      %p54 = scmp.eq.s32.totalorder %s28, 0
      %p55 = por %p53, %p54
      %s57 = sadd.s32 %s56, 1
      %p60 = scmp.eq.s32.totalorder %s22, 1
      %p61 = scmp.ne.s32.totalorder %s56, %s58
      %p62 = scmp.eq.s32.totalorder %s22, 0
      %p63 = por %p61, %p62
      %p64 = scmp.ne.s32.totalorder %s56, %s58
      %p65 = scmp.eq.s32.totalorder %s27, 1
      %p66 = por %p64, %p65
      %p67 = scmp.ne.s32.totalorder %s58, %s59
      %p68 = scmp.eq.s32.totalorder %s27, 0
      %p69 = por %p67, %p68
      %p70 = scmp.ne.s32.totalorder %s58, %s59
      %p71 = scmp.eq.s32.totalorder %s28, 1
      %p72 = por %p70, %p71
      %p74 = scmp.ne.s32.totalorder %s59, %s73
      %p75 = scmp.eq.s32.totalorder %s28, 0
      %p76 = por %p74, %p75
      %s78 = sadd.s32 %s77, 1
      %p81 = scmp.eq.s32.totalorder %s22, 1
      %p82 = scmp.ne.s32.totalorder %s77, %s79
      %p83 = scmp.eq.s32.totalorder %s22, 0
      %p84 = por %p82, %p83
      %p85 = scmp.ne.s32.totalorder %s77, %s79
      %p86 = scmp.eq.s32.totalorder %s27, 1
      %p87 = por %p85, %p86
      %p88 = scmp.ne.s32.totalorder %s79, %s80
      %p89 = scmp.eq.s32.totalorder %s27, 0
      %p90 = por %p88, %p89
      %p91 = scmp.ne.s32.totalorder %s79, %s80
      %p92 = scmp.eq.s32.totalorder %s28, 1
      %p93 = por %p91, %p92
      %p95 = scmp.ne.s32.totalorder %s80, %s94
      %p96 = scmp.eq.s32.totalorder %s28, 0
      %p97 = por %p95, %p96
      %s99 = sadd.s32 %s98, 1
      %p102 = scmp.eq.s32.totalorder %s22, 1
      %p103 = scmp.ne.s32.totalorder %s98, %s100
      %p104 = scmp.eq.s32.totalorder %s22, 0
      %p105 = por %p103, %p104
      %p106 = scmp.ne.s32.totalorder %s98, %s100
      %p107 = scmp.eq.s32.totalorder %s27, 1
      %p108 = por %p106, %p107
      %p109 = scmp.ne.s32.totalorder %s100, %s101
      %p110 = scmp.eq.s32.totalorder %s27, 0
      %p111 = por %p109, %p110
      %p112 = scmp.ne.s32.totalorder %s100, %s101
      %p113 = scmp.eq.s32.totalorder %s28, 1
      %p114 = por %p112, %p113
      %p116 = scmp.ne.s32.totalorder %s101, %s115
      %p117 = scmp.eq.s32.totalorder %s28, 0
      %p118 = por %p116, %p117
      %s120 = sadd.s32 %s119, 1
      %p123 = scmp.eq.s32.totalorder %s22, 1
      %p124 = scmp.ne.s32.totalorder %s119, %s121
      %p125 = scmp.eq.s32.totalorder %s22, 0
      %p126 = por %p124, %p125
      %p127 = scmp.ne.s32.totalorder %s119, %s121
      %p128 = scmp.eq.s32.totalorder %s27, 1
      %p129 = por %p127, %p128
      %p130 = scmp.ne.s32.totalorder %s121, %s122
      %p131 = scmp.eq.s32.totalorder %s27, 0
      %p132 = por %p130, %p131
      %p133 = scmp.ne.s32.totalorder %s121, %s122
      %p134 = scmp.eq.s32.totalorder %s28, 1
      %p135 = por %p133, %p134
      %p137 = scmp.ne.s32.totalorder %s122, %s136
      %p138 = scmp.eq.s32.totalorder %s28, 0
      %p139 = por %p137, %p138
      %s141 = sadd.s32 %s140, 1
      %p144 = scmp.eq.s32.totalorder %s22, 1
      %p145 = scmp.ne.s32.totalorder %s140, %s142
      %p146 = scmp.eq.s32.totalorder %s22, 0
      %p147 = por %p145, %p146
      %p148 = scmp.ne.s32.totalorder %s140, %s142
      %p149 = scmp.eq.s32.totalorder %s27, 1
      %p150 = por %p148, %p149
      %p151 = scmp.ne.s32.totalorder %s142, %s143
      %p152 = scmp.eq.s32.totalorder %s27, 0
      %p153 = por %p151, %p152
      %p154 = scmp.ne.s32.totalorder %s142, %s143
      %p155 = scmp.eq.s32.totalorder %s28, 1
      %p156 = por %p154, %p155
      %p158 = scmp.ne.s32.totalorder %s143, %s157
      %p159 = scmp.eq.s32.totalorder %s28, 0
      %p160 = por %p158, %p159
      %s162 = sadd.s32 %s161, 1
      %p165 = scmp.eq.s32.totalorder %s22, 1
      %p166 = scmp.ne.s32.totalorder %s161, %s163
      %p167 = scmp.eq.s32.totalorder %s22, 0
      %p168 = por %p166, %p167
      %p169 = scmp.ne.s32.totalorder %s161, %s163
      %p170 = scmp.eq.s32.totalorder %s27, 1
      %p171 = por %p169, %p170
      %p172 = scmp.ne.s32.totalorder %s163, %s164
      %p173 = scmp.eq.s32.totalorder %s27, 0
      %p174 = por %p172, %p173
      %p175 = scmp.ne.s32.totalorder %s163, %s164
      %p176 = scmp.eq.s32.totalorder %s28, 1
      %p177 = por %p175, %p176
      %p179 = scmp.ne.s32.totalorder %s164, %s178
      %p180 = scmp.eq.s32.totalorder %s28, 0
      %p181 = por %p179, %p180
      %s183 = sadd.s32 %s182, 1
      %p186 = scmp.eq.s32.totalorder %s22, 1
      %p187 = scmp.ne.s32.totalorder %s182, %s184
      %p188 = scmp.eq.s32.totalorder %s22, 0
      %p189 = por %p187, %p188
      %p190 = scmp.ne.s32.totalorder %s182, %s184
      %p191 = scmp.eq.s32.totalorder %s27, 1
      %p192 = por %p190, %p191
      %p193 = scmp.ne.s32.totalorder %s184, %s185
      %p194 = scmp.eq.s32.totalorder %s27, 0
      %p195 = por %p193, %p194
      %p196 = scmp.ne.s32.totalorder %s184, %s185
      %p197 = scmp.eq.s32.totalorder %s28, 1
      %p198 = por %p196, %p197
      %p200 = scmp.ne.s32.totalorder %s185, %s199
      %p201 = scmp.eq.s32.totalorder %s28, 0
      %p202 = por %p200, %p201
      %s204 = sadd.s32 %s203, 1
      %p207 = scmp.eq.s32.totalorder %s22, 1
      %p208 = scmp.ne.s32.totalorder %s203, %s205
      %p209 = scmp.eq.s32.totalorder %s22, 0
      %p210 = por %p208, %p209
      %p211 = scmp.ne.s32.totalorder %s203, %s205
      %p212 = scmp.eq.s32.totalorder %s27, 1
      %p213 = por %p211, %p212
      %p214 = scmp.ne.s32.totalorder %s205, %s206
      %p215 = scmp.eq.s32.totalorder %s27, 0
      %p216 = por %p214, %p215
      %p217 = scmp.ne.s32.totalorder %s205, %s206
      %p218 = scmp.eq.s32.totalorder %s28, 1
      %p219 = por %p217, %p218
      %p221 = scmp.ne.s32.totalorder %s206, %s220
      %p222 = scmp.eq.s32.totalorder %s28, 0
      %p223 = por %p221, %p222
      %s225 = sadd.s32 %s224, 1
      %p228 = scmp.eq.s32.totalorder %s22, 1
      %p229 = scmp.ne.s32.totalorder %s224, %s226
      %p230 = scmp.eq.s32.totalorder %s22, 0
      %p231 = por %p229, %p230
      %p232 = scmp.ne.s32.totalorder %s224, %s226
      %p233 = scmp.eq.s32.totalorder %s27, 1
      %p234 = por %p232, %p233
      %p235 = scmp.ne.s32.totalorder %s226, %s227
      %p236 = scmp.eq.s32.totalorder %s27, 0
      %p237 = por %p235, %p236
      %p238 = scmp.ne.s32.totalorder %s226, %s227
      %p239 = scmp.eq.s32.totalorder %s28, 1
      %p240 = por %p238, %p239
      %p242 = scmp.ne.s32.totalorder %s227, %s241
      %p243 = scmp.eq.s32.totalorder %s28, 0
      %p244 = por %p242, %p243
      %s246 = sadd.s32 %s245, 1
      %p249 = scmp.eq.s32.totalorder %s22, 1
      %p250 = scmp.ne.s32.totalorder %s245, %s247
      %p251 = scmp.eq.s32.totalorder %s22, 0
      %p252 = por %p250, %p251
      %p253 = scmp.ne.s32.totalorder %s245, %s247
      %p254 = scmp.eq.s32.totalorder %s27, 1
      %p255 = por %p253, %p254
      %p256 = scmp.ne.s32.totalorder %s247, %s248
      %p257 = scmp.eq.s32.totalorder %s27, 0
      %p258 = por %p256, %p257
      %p259 = scmp.ne.s32.totalorder %s247, %s248
      %p260 = scmp.eq.s32.totalorder %s28, 1
      %p261 = por %p259, %p260
      %p263 = scmp.ne.s32.totalorder %s248, %s262
      %p264 = scmp.eq.s32.totalorder %s28, 0
      %p265 = por %p263, %p264
      %s267 = sadd.s32 %s266, 1
      %p270 = scmp.eq.s32.totalorder %s22, 1
      %p271 = scmp.ne.s32.totalorder %s266, %s268
      %p272 = scmp.eq.s32.totalorder %s22, 0
      %p273 = por %p271, %p272
      %p274 = scmp.ne.s32.totalorder %s266, %s268
      %p275 = scmp.eq.s32.totalorder %s27, 1
      %p276 = por %p274, %p275
      %p277 = scmp.ne.s32.totalorder %s268, %s269
      %p278 = scmp.eq.s32.totalorder %s27, 0
      %p279 = por %p277, %p278
      %p280 = scmp.ne.s32.totalorder %s268, %s269
      %p281 = scmp.eq.s32.totalorder %s28, 1
      %p282 = por %p280, %p281
      %p284 = scmp.ne.s32.totalorder %s269, %s283
      %p285 = scmp.eq.s32.totalorder %s28, 0
      %p286 = por %p284, %p285
      %s288 = sadd.s32 %s287, 1
      %p291 = scmp.eq.s32.totalorder %s22, 1
      %p292 = scmp.ne.s32.totalorder %s287, %s289
      %p293 = scmp.eq.s32.totalorder %s22, 0
      %p294 = por %p292, %p293
      %p295 = scmp.ne.s32.totalorder %s287, %s289
      %p296 = scmp.eq.s32.totalorder %s27, 1
      %p297 = por %p295, %p296
      %p298 = scmp.ne.s32.totalorder %s289, %s290
      %p299 = scmp.eq.s32.totalorder %s27, 0
      %p300 = por %p298, %p299
      %p301 = scmp.ne.s32.totalorder %s289, %s290
      %p302 = scmp.eq.s32.totalorder %s28, 1
      %p303 = por %p301, %p302
      %p305 = scmp.ne.s32.totalorder %s290, %s304
      %p306 = scmp.eq.s32.totalorder %s28, 0
      %p307 = por %p305, %p306
      %s308 = ssub.s32 %s22, %s29
      %p309 = scmp.eq.s32.totalorder %s308, 0
      %s311 = sadd.s32 %s310, 1
      %s312 = scalar_select %p309, %s310, %s311
      %p315 = pneg %p309
      %p316 = scmp.eq.s32.totalorder %s22, 1
      %p317 = por %p315, %p316
      %p318 = scmp.ne.s32.totalorder %s310, %s313
      %p319 = scmp.eq.s32.totalorder %s22, 0
      %p320 = por %p318, %p319
      %p321 = scmp.ne.s32.totalorder %s310, %s313
      %p322 = scmp.eq.s32.totalorder %s27, 1
      %p323 = por %p321, %p322
      %p324 = scmp.ne.s32.totalorder %s313, %s314
      %p325 = scmp.eq.s32.totalorder %s27, 0
      %p326 = por %p324, %p325
      %p327 = scmp.ne.s32.totalorder %s313, %s314
      %p328 = scmp.eq.s32.totalorder %s28, 1
      %p329 = por %p327, %p328
      %p331 = scmp.ne.s32.totalorder %s314, %s330
      %p332 = scmp.eq.s32.totalorder %s28, 0
      %p333 = por %p331, %p332
      %p334 = scmp.le.s32.totalorder 1, %s22
      %p335 = scmp.lt.s32.totalorder %s22, 3
      %p336 = pnand %p334, %p335
      %p337 = pneg %p336
      // Predicated region
      $region9: #{lenet_forward.1} parent=5 // pred_check
        _
      $region10: #{lenet_forward.1} parent=5 // pred_check_branch
        %339 = sbr.rel (%p336) target = $region12
      $region11: #{lenet_forward.1} parent=5 // pred_region
        %s340 = ssub.s32 %s22, 1
        // Predicated region
        $region13: #{lenet_forward.1} parent=11 // pred_check
          %p341 = pneg %p69
        $region14: #{lenet_forward.1} parent=11 // pred_check_branch
          %343 = sbr.rel (%p341) target = $region16
        $region15: #{lenet_forward.1} parent=11 // pred_region
          _
        $region16: #{lenet_forward.1} parent=11 // pred_fallthru
          _
        // Predicated region
        $region17: #{lenet_forward.1} parent=11 // pred_check
          %p344 = pneg %p90
        $region18: #{lenet_forward.1} parent=11 // pred_check_branch
          %346 = sbr.rel (%p344) target = $region20
        $region19: #{lenet_forward.1} parent=11 // pred_region
          _
        $region20: #{lenet_forward.1} parent=11 // pred_fallthru
          _
        // Predicated region
        $region21: #{lenet_forward.1} parent=11 // pred_check
          %p347 = pneg %p111
        $region22: #{lenet_forward.1} parent=11 // pred_check_branch
          %349 = sbr.rel (%p347) target = $region24
        $region23: #{lenet_forward.1} parent=11 // pred_region
          _
        $region24: #{lenet_forward.1} parent=11 // pred_fallthru
          _
        // Predicated region
        $region25: #{lenet_forward.1} parent=11 // pred_check
          %p350 = pneg %p132
        $region26: #{lenet_forward.1} parent=11 // pred_check_branch
          %352 = sbr.rel (%p350) target = $region28
        $region27: #{lenet_forward.1} parent=11 // pred_region
          _
        $region28: #{lenet_forward.1} parent=11 // pred_fallthru
          _
        // Predicated region
        $region29: #{lenet_forward.1} parent=11 // pred_check
          %p353 = pneg %p153
        $region30: #{lenet_forward.1} parent=11 // pred_check_branch
          %355 = sbr.rel (%p353) target = $region32
        $region31: #{lenet_forward.1} parent=11 // pred_region
          _
        $region32: #{lenet_forward.1} parent=11 // pred_fallthru
          _
        // Predicated region
        $region33: #{lenet_forward.1} parent=11 // pred_check
          %p356 = pneg %p174
        $region34: #{lenet_forward.1} parent=11 // pred_check_branch
          %358 = sbr.rel (%p356) target = $region36
        $region35: #{lenet_forward.1} parent=11 // pred_region
          _
        $region36: #{lenet_forward.1} parent=11 // pred_fallthru
          _
        // Predicated region
        $region37: #{lenet_forward.1} parent=11 // pred_check
          %p359 = pneg %p195
        $region38: #{lenet_forward.1} parent=11 // pred_check_branch
          %361 = sbr.rel (%p359) target = $region40
        $region39: #{lenet_forward.1} parent=11 // pred_region
          _
        $region40: #{lenet_forward.1} parent=11 // pred_fallthru
          _
        // Predicated region
        $region41: #{lenet_forward.1} parent=11 // pred_check
          %p362 = pneg %p216
        $region42: #{lenet_forward.1} parent=11 // pred_check_branch
          %364 = sbr.rel (%p362) target = $region44
        $region43: #{lenet_forward.1} parent=11 // pred_region
          _
        $region44: #{lenet_forward.1} parent=11 // pred_fallthru
          _
        // Predicated region
        $region45: #{lenet_forward.1} parent=11 // pred_check
          %p365 = pneg %p237
        $region46: #{lenet_forward.1} parent=11 // pred_check_branch
          %367 = sbr.rel (%p365) target = $region48
        $region47: #{lenet_forward.1} parent=11 // pred_region
          _
        $region48: #{lenet_forward.1} parent=11 // pred_fallthru
          _
        // Predicated region
        $region49: #{lenet_forward.1} parent=11 // pred_check
          %p368 = pneg %p258
        $region50: #{lenet_forward.1} parent=11 // pred_check_branch
          %370 = sbr.rel (%p368) target = $region52
        $region51: #{lenet_forward.1} parent=11 // pred_region
          _
        $region52: #{lenet_forward.1} parent=11 // pred_fallthru
          _
        // Predicated region
        $region53: #{lenet_forward.1} parent=11 // pred_check
          %p371 = pneg %p279
        $region54: #{lenet_forward.1} parent=11 // pred_check_branch
          %373 = sbr.rel (%p371) target = $region56
        $region55: #{lenet_forward.1} parent=11 // pred_region
          _
        $region56: #{lenet_forward.1} parent=11 // pred_fallthru
          _
        // Predicated region
        $region57: #{lenet_forward.1} parent=11 // pred_check
          %p374 = pneg %p300
        $region58: #{lenet_forward.1} parent=11 // pred_check_branch
          %376 = sbr.rel (%p374) target = $region60
        $region59: #{lenet_forward.1} parent=11 // pred_region
          _
        $region60: #{lenet_forward.1} parent=11 // pred_fallthru
          _
      $region12: #{lenet_forward.1} parent=5 // pred_fallthru
        _
      %p377 = scmp.lt.s32.totalorder %s22, 2
      // Predicated region
      $region61: #{lenet_forward.1} parent=5 // pred_check
        %p378 = pneg %p377
      $region62: #{lenet_forward.1} parent=5 // pred_check_branch
        %380 = sbr.rel (%p378) target = $region64
      $region63: #{lenet_forward.1} parent=5 // pred_region
        // Predicated region
        $region65: #{lenet_forward.1} parent=63 // pred_check
          %p381 = pneg %p42
        $region66: #{lenet_forward.1} parent=63 // pred_check_branch
          %383 = sbr.rel (%p381) target = $region68
        $region67: #{lenet_forward.1} parent=63 // pred_region
          %p384 = scmp.lt.s32.totalorder %s22, 1
          %s385 = scalar_select %p384, %s22, 1
          %s386 = smul.addr %s385, 112
          %s387 = smul.addr %s386, 4
          %s388 = scalar_lea.vmem %s0, %s387
        $region68: #{lenet_forward.1} parent=63 // pred_fallthru
          _
      $region64: #{lenet_forward.1} parent=5 // pred_fallthru
        _
      %p389 = scmp.le.s32.totalorder 1, %s22
      %p390 = scmp.lt.s32.totalorder %s22, 3
      %p391 = pnand %p389, %p390
      %p392 = pneg %p391
      // Predicated region
      $region69: #{lenet_forward.1} parent=5 // pred_check
        _
      $region70: #{lenet_forward.1} parent=5 // pred_check_branch
        %394 = sbr.rel (%p391) target = $region72
      $region71: #{lenet_forward.1} parent=5 // pred_region
        %s395 = ssub.s32 %s22, 1
        %p396 = scmp.lt.s32.totalorder %s27, 1
        %s397 = scalar_select %p396, %s27, 1
        %s398 = smul.addr %s397, 112
        %s399 = smul.addr %s398, 4
        %s400 = scalar_lea.vmem %s0, %s399
        %p401 = pneg %p48
        %p402 = pneg %p45
        %p403 = pneg %p69
        %p404 = pneg %p66
        %p405 = pneg %p90
        %p406 = pneg %p87
        %p407 = pneg %p111
        %p408 = pneg %p108
        %p409 = pneg %p132
        %p410 = pneg %p129
        %p411 = pneg %p153
        %p412 = pneg %p150
        %p413 = pneg %p174
        %p414 = pneg %p171
        %p415 = pneg %p195
        %p416 = pneg %p192
        %p417 = pneg %p216
        %p418 = pneg %p213
        %p419 = pneg %p237
        %p420 = pneg %p234
        %p421 = pneg %p258
        %p422 = pneg %p255
        %p423 = pneg %p279
        %p424 = pneg %p276
        %p425 = pneg %p300
        %p426 = pneg %p297
        %p427 = pneg %p326
        %p428 = pneg %p323
        %s429 = sand.u32 %s313, 1
        %s430 = scalar_lea.sflag [#allocation6], %s429
        %s431 = sand.u32 %s313, 1
        %s432 = scalar_lea.vmem [#allocation5], %s431
        %p433 = scmp.lt.s32.totalorder %s27, 1
        %s434 = scalar_select %p433, %s27, 1
        %s435 = smul.addr %s434, 112
        %s436 = smul.addr %s435, 4
        %s437 = scalar_lea.vmem %s0, %s436
        %v439 = vld [vmem:[%s2] sm:$0x1]
        %v440 = vld [vmem:[%s437] sm:$0xf]
        %v441 = vld [vmem:[%s437 + $0x4] sm:$0xf]
        %v442 = vld [vmem:[%s437 + $0x8] sm:$0xf]
        %v443 = vld [vmem:[%s437 + $0xc] sm:$0xf]
        %v444 = vld [vmem:[%s437 + $0x10] sm:$0xf]
        %v445 = vld [vmem:[%s437 + $0x14] sm:$0xf]
        %v446 = vld [vmem:[%s437 + $0x18] sm:$0xf]
        %v447 = vld [vmem:[%s437 + $0x1c] sm:$0xf]
        %v448 = vld [vmem:[%s437 + $0x20] sm:$0xf]
        %v449 = vld [vmem:[%s437 + $0x24] sm:$0xf]
        %v450 = vld [vmem:[%s437 + $0x28] sm:$0xf]
        %v451 = vld [vmem:[%s437 + $0x2c] sm:$0xf]
        %v452 = vld [vmem:[%s437 + $0x30] sm:$0xf]
        %v453 = vld [vmem:[%s437 + $0x34] sm:$0xf]
        %v454 = vld [vmem:[%s437 + $0x38] sm:$0xf]
        %v455 = vld [vmem:[%s437 + $0x3c] sm:$0xf]
        %v456 = vld [vmem:[%s437 + $0x40] sm:$0xf]
        %v457 = vld [vmem:[%s437 + $0x44] sm:$0xf]
        %v458 = vld [vmem:[%s437 + $0x48] sm:$0xf]
        %v459 = vld [vmem:[%s437 + $0x4c] sm:$0xf]
        %v460 = vld [vmem:[%s437 + $0x50] sm:$0xf]
        %v461 = vld [vmem:[%s437 + $0x54] sm:$0xf]
        %v462 = vld [vmem:[%s437 + $0x58] sm:$0xf]
        %v463 = vld [vmem:[%s437 + $0x5c] sm:$0xf]
        %v464 = vld [vmem:[%s437 + $0x60] sm:$0xf]
        %v465 = vld [vmem:[%s437 + $0x64] sm:$0xf]
        %v466 = vld [vmem:[%s437 + $0x68] sm:$0xf]
        %v467 = vld [vmem:[%s437 + $0x6c] sm:$0xf]
        %v468 = vld [vmem:[%s437 + $0x70] sm:$0xf]
        %v469 = vld [vmem:[%s437 + $0x74] sm:$0xf]
        %v470 = vld [vmem:[%s437 + $0x78] sm:$0xf]
        %v471 = vld [vmem:[%s437 + $0x7c] sm:$0xf]
        %v472 = vld [vmem:[%s437 + $0x80] sm:$0xf]
        %v473 = vld [vmem:[%s437 + $0x84] sm:$0xf]
        %v474 = vld [vmem:[%s437 + $0x88] sm:$0xf]
        %v475 = vld [vmem:[%s437 + $0x8c] sm:$0xf]
        %v476 = vld [vmem:[%s437 + $0x90] sm:$0xf]
        %v477 = vld [vmem:[%s437 + $0x94] sm:$0xf]
        %v478 = vld [vmem:[%s437 + $0x98] sm:$0xf]
        %v479 = vld [vmem:[%s437 + $0x9c] sm:$0xf]
        %v480 = vld [vmem:[%s437 + $0xa0] sm:$0xf]
        %v481 = vld [vmem:[%s437 + $0xa4] sm:$0xf]
        %v482 = vld [vmem:[%s437 + $0xa8] sm:$0xf]
        %v483 = vld [vmem:[%s437 + $0xac] sm:$0xf]
        %v484 = vld [vmem:[%s437 + $0xb0] sm:$0xf]
        %v485 = vld [vmem:[%s437 + $0xb4] sm:$0xf]
        %v486 = vld [vmem:[%s437 + $0xb8] sm:$0xf]
        %v487 = vld [vmem:[%s437 + $0xbc] sm:$0xf]
        %v488 = vld [vmem:[%s437 + $0xc0] sm:$0xf]
        %v489 = vld [vmem:[%s437 + $0xc4] sm:$0xf]
        %v490 = vld [vmem:[%s437 + $0xc8] sm:$0xf]
        %v491 = vld [vmem:[%s437 + $0xcc] sm:$0xf]
        %v492 = vld [vmem:[%s437 + $0xd0] sm:$0xf]
        %v493 = vld [vmem:[%s437 + $0xd4] sm:$0xf]
        %v494 = vld [vmem:[%s437 + $0xd8] sm:$0xf]
        %v495 = vld [vmem:[%s437 + $0xdc] sm:$0xf]
        %v496 = vld [vmem:[%s1] sm:$0xf]
        %v497 = vld [vmem:[%s1 + $0x4] sm:$0xf]
        %v498 = vld [vmem:[%s1 + $0x8] sm:$0xf]
        %v499 = vld [vmem:[%s1 + $0xc] sm:$0xf]
        %v500 = vld [vmem:[%s1 + $0x10] sm:$0xf]
        %v501 = vld [vmem:[%s1 + $0x14] sm:$0xf]
        %v502 = vld [vmem:[%s1 + $0x18] sm:$0xf]
        %v503 = vld [vmem:[%s1 + $0x1c] sm:$0xf]
        %v504 = vld [vmem:[%s1 + $0x20] sm:$0xf]
        %v505 = vld [vmem:[%s1 + $0x24] sm:$0x3]
        %v507 = vlaneseq
        %v508 = vshrl.u32 %v507, 7
        %v509 = vsub.s32 0, %v508
        %v510 = vrot.slane %v439, %v509
        %v568 = vunpack.c.l.b16 %v440
        %v569 = vunpack.c.l.b16 %v441
        %v570 = vunpack.c.l.b16 %v442
        %v571 = vunpack.c.l.b16 %v443
        %v572 = vunpack.c.l.b16 %v444
        %v573 = vunpack.c.l.b16 %v445
        %v574 = vunpack.c.l.b16 %v446
        %v575 = vunpack.c.l.b16 %v447
        %v576 = vunpack.c.l.b16 %v448
        %v577 = vunpack.c.l.b16 %v449
        %v578 = vunpack.c.l.b16 %v450
        %v579 = vunpack.c.l.b16 %v451
        %v580 = vunpack.c.l.b16 %v452
        %v581 = vunpack.c.l.b16 %v453
        %v582 = vunpack.c.l.b16 %v454
        %v583 = vunpack.c.l.b16 %v455
        %v584 = vunpack.c.l.b16 %v456
        %v585 = vunpack.c.l.b16 %v457
        %v586 = vunpack.c.l.b16 %v458
        %v587 = vunpack.c.l.b16 %v459
        %v588 = vunpack.c.l.b16 %v460
        %v589 = vunpack.c.l.b16 %v461
        %v590 = vunpack.c.l.b16 %v462
        %v591 = vunpack.c.l.b16 %v463
        %v592 = vunpack.c.l.b16 %v464
        %v593 = vunpack.c.l.b16 %v465
        %v594 = vunpack.c.l.b16 %v466
        %v595 = vunpack.c.l.b16 %v467
        %v596 = vunpack.c.l.b16 %v468
        %v597 = vunpack.c.l.b16 %v469
        %v598 = vunpack.c.l.b16 %v470
        %v599 = vunpack.c.l.b16 %v471
        %v600 = vunpack.c.l.b16 %v472
        %v601 = vunpack.c.l.b16 %v473
        %v602 = vunpack.c.l.b16 %v474
        %v603 = vunpack.c.l.b16 %v475
        %v604 = vunpack.c.l.b16 %v476
        %v605 = vunpack.c.l.b16 %v477
        %v606 = vunpack.c.l.b16 %v478
        %v607 = vunpack.c.l.b16 %v479
        %v608 = vunpack.c.l.b16 %v480
        %v609 = vunpack.c.l.b16 %v481
        %v610 = vunpack.c.l.b16 %v482
        %v611 = vunpack.c.l.b16 %v483
        %v612 = vunpack.c.l.b16 %v484
        %v613 = vunpack.c.l.b16 %v485
        %v614 = vunpack.c.l.b16 %v486
        %v615 = vunpack.c.l.b16 %v487
        %v616 = vunpack.c.l.b16 %v488
        %v617 = vunpack.c.l.b16 %v489
        %v618 = vunpack.c.l.b16 %v490
        %v619 = vunpack.c.l.b16 %v491
        %v620 = vunpack.c.l.b16 %v492
        %v621 = vunpack.c.l.b16 %v493
        %v622 = vunpack.c.l.b16 %v494
        %v623 = vunpack.c.l.b16 %v495
        %v624 = vpack.c.b16 %v569, %v568
        %v625 = vpack.c.b16 %v571, %v570
        %v626 = vpack.c.b16 %v573, %v572
        %v627 = vpack.c.b16 %v575, %v574
        %v628 = vpack.c.b16 %v577, %v576
        %v629 = vpack.c.b16 %v579, %v578
        %v630 = vpack.c.b16 %v581, %v580
        %v631 = vpack.c.b16 %v583, %v582
        %v632 = vpack.c.b16 %v585, %v584
        %v633 = vpack.c.b16 %v587, %v586
        %v634 = vpack.c.b16 %v589, %v588
        %v635 = vpack.c.b16 %v591, %v590
        %v636 = vpack.c.b16 %v593, %v592
        %v637 = vpack.c.b16 %v595, %v594
        %v638 = vpack.c.b16 %v597, %v596
        %v639 = vpack.c.b16 %v599, %v598
        %v640 = vpack.c.b16 %v601, %v600
        %v641 = vpack.c.b16 %v603, %v602
        %v642 = vpack.c.b16 %v605, %v604
        %v643 = vpack.c.b16 %v607, %v606
        %v644 = vpack.c.b16 %v609, %v608
        %v645 = vpack.c.b16 %v611, %v610
        %v646 = vpack.c.b16 %v613, %v612
        %v647 = vpack.c.b16 %v615, %v614
        %v648 = vpack.c.b16 %v617, %v616
        %v649 = vpack.c.b16 %v619, %v618
        %v650 = vpack.c.b16 %v621, %v620
        %v651 = vpack.c.b16 %v623, %v622
        %v662 = vunpack.c.l.b16 %v496
        %v663 = vunpack.c.l.b16 %v497
        %v664 = vunpack.c.l.b16 %v498
        %v665 = vunpack.c.l.b16 %v499
        %v666 = vunpack.c.l.b16 %v500
        %v667 = vunpack.c.l.b16 %v501
        %v668 = vunpack.c.l.b16 %v502
        %v669 = vunpack.c.l.b16 %v503
        %v670 = vunpack.c.l.b16 %v504
        %v671 = vunpack.c.l.b16 %v505
        %v672 = vpack.c.b16 %v663, %v662
        %v673 = vpack.c.b16 %v665, %v664
        %v674 = vpack.c.b16 %v667, %v666
        %v675 = vpack.c.b16 %v669, %v668
        %v676 = vpack.c.b16 %v671, %v670
        %vm681 = vcmask 613376
        %v683 = vsel %vm681, %v624, 0
        %v686 = vsel %vm681, %v625, 0
        %v689 = vsel %vm681, %v626, 0
        %v692 = vsel %vm681, %v627, 0
        %v695 = vsel %vm681, %v628, 0
        %v698 = vsel %vm681, %v629, 0
        %v701 = vsel %vm681, %v630, 0
        %v704 = vsel %vm681, %v631, 0
        %v707 = vsel %vm681, %v632, 0
        %v710 = vsel %vm681, %v633, 0
        %v713 = vsel %vm681, %v634, 0
        %v716 = vsel %vm681, %v635, 0
        %v719 = vsel %vm681, %v636, 0
        %v722 = vsel %vm681, %v637, 0
        %v725 = vsel %vm681, %v638, 0
        %v728 = vsel %vm681, %v639, 0
        %v731 = vsel %vm681, %v640, 0
        %v734 = vsel %vm681, %v641, 0
        %v737 = vsel %vm681, %v642, 0
        %v740 = vsel %vm681, %v643, 0
        %v743 = vsel %vm681, %v644, 0
        %v746 = vsel %vm681, %v645, 0
        %v749 = vsel %vm681, %v646, 0
        %v752 = vsel %vm681, %v647, 0
        %v755 = vsel %vm681, %v648, 0
        %v758 = vsel %vm681, %v649, 0
        %v761 = vsel %vm681, %v650, 0
        %v764 = vsel %vm681, %v651, 0
        %vm766 = vcmask 1044480
        %vm767 = vcmask 1045504
        %v768 = vsel %vm766, 4294967295, 65535
        %v769 = vsel %vm767, %v768, 0
        %v771 = vand.u32 %v676, %v769
        %773 = vmatprep.subr.bf16.mxu0 0
        %774 = vmatpush1.bf16.msra.mxu0 0
        %775 = vmatprep.subr.bf16.mxu0 0
        %776 = vmatpush1.bf16.msra.mxu0 0
        %777 = vmatprep.subr.bf16.mxu0 0
        %778 = vmatpush1.bf16.msra.mxu0 0
        %779 = vmatprep.subr.bf16.mxu0 0
        %780 = vmatpush1.bf16.msra.mxu0 %v771
        %781 = vmatprep.subr.bf16.mxu0 0
        %782 = vmatpush1.bf16.msra.mxu0 %v675
        %783 = vmatprep.subr.bf16.mxu0 0
        %784 = vmatpush1.bf16.msra.mxu0 %v674
        %785 = vmatprep.subr.bf16.mxu0 0
        %786 = vmatpush1.bf16.msra.mxu0 %v673
        %787 = vmatprep.subr.bf16.mxu0 0
        %788 = vmatpush1.bf16.msra.mxu0 %v672
        %789 = vmatprep.subr.bf16.mxu0 0
        %790 = vmatpush2.bf16.msra.mxu0 0
        %791 = vmatprep.subr.bf16.mxu0 0
        %792 = vmatpush2.bf16.msra.mxu0 0
        %793 = vmatprep.subr.bf16.mxu0 0
        %794 = vmatpush2.bf16.msra.mxu0 0
        %795 = vmatprep.subr.bf16.mxu0 0
        %796 = vmatpush2.bf16.msra.mxu0 0
        %797 = vmatprep.subr.bf16.mxu0 0
        %798 = vmatpush2.bf16.msra.mxu0 0
        %799 = vmatprep.subr.bf16.mxu0 0
        %800 = vmatpush2.bf16.msra.mxu0 0
        %801 = vmatprep.subr.bf16.mxu0 0
        %802 = vmatpush2.bf16.msra.mxu0 0
        %803 = vmatprep.subr.bf16.mxu0 0
        %804 = vmatpush2.bf16.msra.mxu0 0
        %805 = vmatprep.mubr.bf16.mxu0 0
        %806 = vmatmul.mubr.bf16.gmra.mxu0 %v683
        %v807 = vpop.f32.mrf.mxu0
        %v808 = vadd.f32 %v510, %v807
        %v809 = vpop.f32.mrf.mxu0
        %v810 = vpop.f32.mrf.mxu0
        %v811 = vadd.f32 %v510, %v810
        %v812 = vpop.f32.mrf.mxu0
        %813 = vmatprep.mubr.bf16.mxu0 0
        %814 = vmatmul.mubr.bf16.gmra.mxu0 %v686
        %v815 = vpop.f32.mrf.mxu0
        %v816 = vadd.f32 %v510, %v815
        %v817 = vpop.f32.mrf.mxu0
        %v818 = vpop.f32.mrf.mxu0
        %v819 = vadd.f32 %v510, %v818
        %v820 = vpop.f32.mrf.mxu0
        %821 = vmatprep.mubr.bf16.mxu0 0
        %822 = vmatmul.mubr.bf16.gmra.mxu0 %v689
        %v823 = vpop.f32.mrf.mxu0
        %v824 = vadd.f32 %v510, %v823
        %v825 = vpop.f32.mrf.mxu0
        %v826 = vpop.f32.mrf.mxu0
        %v827 = vadd.f32 %v510, %v826
        %v828 = vpop.f32.mrf.mxu0
        %829 = vmatprep.mubr.bf16.mxu0 0
        %830 = vmatmul.mubr.bf16.gmra.mxu0 %v692
        %v831 = vpop.f32.mrf.mxu0
        %v832 = vadd.f32 %v510, %v831
        %v833 = vpop.f32.mrf.mxu0
        %v834 = vpop.f32.mrf.mxu0
        %v835 = vadd.f32 %v510, %v834
        %v836 = vpop.f32.mrf.mxu0
        %837 = vmatprep.mubr.bf16.mxu0 0
        %838 = vmatmul.mubr.bf16.gmra.mxu0 %v695
        %v839 = vpop.f32.mrf.mxu0
        %v840 = vadd.f32 %v510, %v839
        %v841 = vpop.f32.mrf.mxu0
        %v842 = vpop.f32.mrf.mxu0
        %v843 = vadd.f32 %v510, %v842
        %v844 = vpop.f32.mrf.mxu0
        %845 = vmatprep.mubr.bf16.mxu0 0
        %846 = vmatmul.mubr.bf16.gmra.mxu0 %v698
        %v847 = vpop.f32.mrf.mxu0
        %v848 = vadd.f32 %v510, %v847
        %v849 = vpop.f32.mrf.mxu0
        %v850 = vpop.f32.mrf.mxu0
        %v851 = vadd.f32 %v510, %v850
        %v852 = vpop.f32.mrf.mxu0
        %853 = vmatprep.mubr.bf16.mxu0 0
        %854 = vmatmul.mubr.bf16.gmra.mxu0 %v701
        %v855 = vpop.f32.mrf.mxu0
        %v856 = vadd.f32 %v510, %v855
        %v857 = vpop.f32.mrf.mxu0
        %v858 = vpop.f32.mrf.mxu0
        %v859 = vadd.f32 %v510, %v858
        %v860 = vpop.f32.mrf.mxu0
        %861 = vmatprep.mubr.bf16.mxu0 0
        %862 = vmatmul.mubr.bf16.gmra.mxu0 %v704
        %v863 = vpop.f32.mrf.mxu0
        %v864 = vadd.f32 %v510, %v863
        %v865 = vpop.f32.mrf.mxu0
        %v866 = vpop.f32.mrf.mxu0
        %v867 = vadd.f32 %v510, %v866
        %v868 = vpop.f32.mrf.mxu0
        %869 = vmatprep.mubr.bf16.mxu0 0
        %870 = vmatmul.mubr.bf16.gmra.mxu0 %v707
        %v871 = vpop.f32.mrf.mxu0
        %v872 = vadd.f32 %v510, %v871
        %v873 = vpop.f32.mrf.mxu0
        %v874 = vpop.f32.mrf.mxu0
        %v875 = vadd.f32 %v510, %v874
        %v876 = vpop.f32.mrf.mxu0
        %877 = vmatprep.mubr.bf16.mxu0 0
        %878 = vmatmul.mubr.bf16.gmra.mxu0 %v710
        %v879 = vpop.f32.mrf.mxu0
        %v880 = vadd.f32 %v510, %v879
        %v881 = vpop.f32.mrf.mxu0
        %v882 = vpop.f32.mrf.mxu0
        %v883 = vadd.f32 %v510, %v882
        %v884 = vpop.f32.mrf.mxu0
        %885 = vmatprep.mubr.bf16.mxu0 0
        %886 = vmatmul.mubr.bf16.gmra.mxu0 %v713
        %v887 = vpop.f32.mrf.mxu0
        %v888 = vadd.f32 %v510, %v887
        %v889 = vpop.f32.mrf.mxu0
        %v890 = vpop.f32.mrf.mxu0
        %v891 = vadd.f32 %v510, %v890
        %v892 = vpop.f32.mrf.mxu0
        %893 = vmatprep.mubr.bf16.mxu0 0
        %894 = vmatmul.mubr.bf16.gmra.mxu0 %v716
        %v895 = vpop.f32.mrf.mxu0
        %v896 = vadd.f32 %v510, %v895
        %v897 = vpop.f32.mrf.mxu0
        %v898 = vpop.f32.mrf.mxu0
        %v899 = vadd.f32 %v510, %v898
        %v900 = vpop.f32.mrf.mxu0
        %901 = vmatprep.mubr.bf16.mxu0 0
        %902 = vmatmul.mubr.bf16.gmra.mxu0 %v719
        %v903 = vpop.f32.mrf.mxu0
        %v904 = vadd.f32 %v510, %v903
        %v905 = vpop.f32.mrf.mxu0
        %v906 = vpop.f32.mrf.mxu0
        %v907 = vadd.f32 %v510, %v906
        %v908 = vpop.f32.mrf.mxu0
        %909 = vmatprep.mubr.bf16.mxu0 0
        %910 = vmatmul.mubr.bf16.gmra.mxu0 %v722
        %v911 = vpop.f32.mrf.mxu0
        %v912 = vadd.f32 %v510, %v911
        %v913 = vpop.f32.mrf.mxu0
        %v914 = vpop.f32.mrf.mxu0
        %v915 = vadd.f32 %v510, %v914
        %v916 = vpop.f32.mrf.mxu0
        %917 = vmatprep.mubr.bf16.mxu0 0
        %918 = vmatmul.mubr.bf16.gmra.mxu0 %v725
        %v919 = vpop.f32.mrf.mxu0
        %v920 = vadd.f32 %v510, %v919
        %v921 = vpop.f32.mrf.mxu0
        %v922 = vpop.f32.mrf.mxu0
        %v923 = vadd.f32 %v510, %v922
        %v924 = vpop.f32.mrf.mxu0
        %925 = vmatprep.mubr.bf16.mxu0 0
        %926 = vmatmul.mubr.bf16.gmra.mxu0 %v728
        %v927 = vpop.f32.mrf.mxu0
        %v928 = vadd.f32 %v510, %v927
        %v929 = vpop.f32.mrf.mxu0
        %v930 = vpop.f32.mrf.mxu0
        %v931 = vadd.f32 %v510, %v930
        %v932 = vpop.f32.mrf.mxu0
        %933 = vmatprep.mubr.bf16.mxu0 0
        %934 = vmatmul.mubr.bf16.gmra.mxu0 %v731
        %v935 = vpop.f32.mrf.mxu0
        %v936 = vadd.f32 %v510, %v935
        %v937 = vpop.f32.mrf.mxu0
        %v938 = vpop.f32.mrf.mxu0
        %v939 = vadd.f32 %v510, %v938
        %v940 = vpop.f32.mrf.mxu0
        %941 = vmatprep.mubr.bf16.mxu0 0
        %942 = vmatmul.mubr.bf16.gmra.mxu0 %v734
        %v943 = vpop.f32.mrf.mxu0
        %v944 = vadd.f32 %v510, %v943
        %v945 = vpop.f32.mrf.mxu0
        %v946 = vpop.f32.mrf.mxu0
        %v947 = vadd.f32 %v510, %v946
        %v948 = vpop.f32.mrf.mxu0
        %949 = vmatprep.mubr.bf16.mxu0 0
        %950 = vmatmul.mubr.bf16.gmra.mxu0 %v737
        %v951 = vpop.f32.mrf.mxu0
        %v952 = vadd.f32 %v510, %v951
        %v953 = vpop.f32.mrf.mxu0
        %v954 = vpop.f32.mrf.mxu0
        %v955 = vadd.f32 %v510, %v954
        %v956 = vpop.f32.mrf.mxu0
        %957 = vmatprep.mubr.bf16.mxu0 0
        %958 = vmatmul.mubr.bf16.gmra.mxu0 %v740
        %v959 = vpop.f32.mrf.mxu0
        %v960 = vadd.f32 %v510, %v959
        %v961 = vpop.f32.mrf.mxu0
        %v962 = vpop.f32.mrf.mxu0
        %v963 = vadd.f32 %v510, %v962
        %v964 = vpop.f32.mrf.mxu0
        %965 = vmatprep.mubr.bf16.mxu0 0
        %966 = vmatmul.mubr.bf16.gmra.mxu0 %v743
        %v967 = vpop.f32.mrf.mxu0
        %v968 = vadd.f32 %v510, %v967
        %v969 = vpop.f32.mrf.mxu0
        %v970 = vpop.f32.mrf.mxu0
        %v971 = vadd.f32 %v510, %v970
        %v972 = vpop.f32.mrf.mxu0
        %973 = vmatprep.mubr.bf16.mxu0 0
        %974 = vmatmul.mubr.bf16.gmra.mxu0 %v746
        %v975 = vpop.f32.mrf.mxu0
        %v976 = vadd.f32 %v510, %v975
        %v977 = vpop.f32.mrf.mxu0
        %v978 = vpop.f32.mrf.mxu0
        %v979 = vadd.f32 %v510, %v978
        %v980 = vpop.f32.mrf.mxu0
        %981 = vmatprep.mubr.bf16.mxu0 0
        %982 = vmatmul.mubr.bf16.gmra.mxu0 %v749
        %v983 = vpop.f32.mrf.mxu0
        %v984 = vadd.f32 %v510, %v983
        %v985 = vpop.f32.mrf.mxu0
        %v986 = vpop.f32.mrf.mxu0
        %v987 = vadd.f32 %v510, %v986
        %v988 = vpop.f32.mrf.mxu0
        %989 = vmatprep.mubr.bf16.mxu0 0
        %990 = vmatmul.mubr.bf16.gmra.mxu0 %v752
        %v991 = vpop.f32.mrf.mxu0
        %v992 = vadd.f32 %v510, %v991
        %v993 = vpop.f32.mrf.mxu0
        %v994 = vpop.f32.mrf.mxu0
        %v995 = vadd.f32 %v510, %v994
        %v996 = vpop.f32.mrf.mxu0
        %997 = vmatprep.mubr.bf16.mxu0 0
        %998 = vmatmul.mubr.bf16.gmra.mxu0 %v755
        %v999 = vpop.f32.mrf.mxu0
        %v1000 = vadd.f32 %v510, %v999
        %v1001 = vpop.f32.mrf.mxu0
        %v1002 = vpop.f32.mrf.mxu0
        %v1003 = vadd.f32 %v510, %v1002
        %v1004 = vpop.f32.mrf.mxu0
        %1005 = vmatprep.mubr.bf16.mxu0 0
        %1006 = vmatmul.mubr.bf16.gmra.mxu0 %v758
        %v1007 = vpop.f32.mrf.mxu0
        %v1008 = vadd.f32 %v510, %v1007
        %v1009 = vpop.f32.mrf.mxu0
        %v1010 = vpop.f32.mrf.mxu0
        %v1011 = vadd.f32 %v510, %v1010
        %v1012 = vpop.f32.mrf.mxu0
        %1013 = vmatprep.mubr.bf16.mxu0 0
        %1014 = vmatmul.mubr.bf16.gmra.mxu0 %v761
        %v1015 = vpop.f32.mrf.mxu0
        %v1016 = vadd.f32 %v510, %v1015
        %v1017 = vpop.f32.mrf.mxu0
        %v1018 = vpop.f32.mrf.mxu0
        %v1019 = vadd.f32 %v510, %v1018
        %v1020 = vpop.f32.mrf.mxu0
        %1021 = vmatprep.mubr.bf16.mxu0 0
        %1022 = vmatmul.mubr.bf16.gmra.mxu0 %v764
        %v1023 = vpop.f32.mrf.mxu0
        %v1024 = vadd.f32 %v510, %v1023
        %v1025 = vpop.f32.mrf.mxu0
        %v1026 = vpop.f32.mrf.mxu0
        %v1027 = vadd.f32 %v510, %v1026
        %v1028 = vpop.f32.mrf.mxu0
        %1029 = vdwg.mxu0
        %v1030 = vmax.f32 %v808, 0.0
        %v1031 = vmax.f32 %v811, 0.0
        %v1032 = vmax.f32 %v816, 0.0
        %v1033 = vmax.f32 %v819, 0.0
        %v1034 = vmax.f32 %v824, 0.0
        %v1035 = vmax.f32 %v827, 0.0
        %v1036 = vmax.f32 %v832, 0.0
        %v1037 = vmax.f32 %v835, 0.0
        %v1038 = vmax.f32 %v840, 0.0
        %v1039 = vmax.f32 %v843, 0.0
        %v1040 = vmax.f32 %v848, 0.0
        %v1041 = vmax.f32 %v851, 0.0
        %v1042 = vmax.f32 %v856, 0.0
        %v1043 = vmax.f32 %v859, 0.0
        %v1044 = vmax.f32 %v864, 0.0
        %v1045 = vmax.f32 %v867, 0.0
        %v1046 = vmax.f32 %v872, 0.0
        %v1047 = vmax.f32 %v875, 0.0
        %v1048 = vmax.f32 %v880, 0.0
        %v1049 = vmax.f32 %v883, 0.0
        %v1050 = vmax.f32 %v888, 0.0
        %v1051 = vmax.f32 %v891, 0.0
        %v1052 = vmax.f32 %v896, 0.0
        %v1053 = vmax.f32 %v899, 0.0
        %v1054 = vmax.f32 %v904, 0.0
        %v1055 = vmax.f32 %v907, 0.0
        %v1056 = vmax.f32 %v912, 0.0
        %v1057 = vmax.f32 %v915, 0.0
        %v1058 = vmax.f32 %v920, 0.0
        %v1059 = vmax.f32 %v923, 0.0
        %v1060 = vmax.f32 %v928, 0.0
        %v1061 = vmax.f32 %v931, 0.0
        %v1062 = vmax.f32 %v936, 0.0
        %v1063 = vmax.f32 %v939, 0.0
        %v1064 = vmax.f32 %v944, 0.0
        %v1065 = vmax.f32 %v947, 0.0
        %v1066 = vmax.f32 %v952, 0.0
        %v1067 = vmax.f32 %v955, 0.0
        %v1068 = vmax.f32 %v960, 0.0
        %v1069 = vmax.f32 %v963, 0.0
        %v1070 = vmax.f32 %v968, 0.0
        %v1071 = vmax.f32 %v971, 0.0
        %v1072 = vmax.f32 %v976, 0.0
        %v1073 = vmax.f32 %v979, 0.0
        %v1074 = vmax.f32 %v984, 0.0
        %v1075 = vmax.f32 %v987, 0.0
        %v1076 = vmax.f32 %v992, 0.0
        %v1077 = vmax.f32 %v995, 0.0
        %v1078 = vmax.f32 %v1000, 0.0
        %v1079 = vmax.f32 %v1003, 0.0
        %v1080 = vmax.f32 %v1008, 0.0
        %v1081 = vmax.f32 %v1011, 0.0
        %v1082 = vmax.f32 %v1016, 0.0
        %v1083 = vmax.f32 %v1019, 0.0
        %v1084 = vmax.f32 %v1024, 0.0
        %v1085 = vmax.f32 %v1027, 0.0
        %v1086 = vmax.f32 %v1030, %v1058
        %v1087 = vmax.f32 %v1031, %v1059
        %v1088 = vmax.f32 %v1032, %v1060
        %v1089 = vmax.f32 %v1033, %v1061
        %v1090 = vmax.f32 %v1034, %v1062
        %v1091 = vmax.f32 %v1035, %v1063
        %v1092 = vmax.f32 %v1036, %v1064
        %v1093 = vmax.f32 %v1037, %v1065
        %v1094 = vmax.f32 %v1038, %v1066
        %v1095 = vmax.f32 %v1039, %v1067
        %v1096 = vmax.f32 %v1040, %v1068
        %v1097 = vmax.f32 %v1041, %v1069
        %v1098 = vmax.f32 %v1042, %v1070
        %v1099 = vmax.f32 %v1043, %v1071
        %v1100 = vmax.f32 %v1044, %v1072
        %v1101 = vmax.f32 %v1045, %v1073
        %v1102 = vmax.f32 %v1046, %v1074
        %v1103 = vmax.f32 %v1047, %v1075
        %v1104 = vmax.f32 %v1048, %v1076
        %v1105 = vmax.f32 %v1049, %v1077
        %v1106 = vmax.f32 %v1050, %v1078
        %v1107 = vmax.f32 %v1051, %v1079
        %v1108 = vmax.f32 %v1052, %v1080
        %v1109 = vmax.f32 %v1053, %v1081
        %v1110 = vmax.f32 %v1054, %v1082
        %v1111 = vmax.f32 %v1055, %v1083
        %v1112 = vmax.f32 %v1056, %v1084
        %v1113 = vmax.f32 %v1057, %v1085
        %v1114 = vmax.f32 %v1086, %v1087
        %v1115 = vmax.f32 %v1088, %v1089
        %v1116 = vmax.f32 %v1090, %v1091
        %v1117 = vmax.f32 %v1092, %v1093
        %v1118 = vmax.f32 %v1094, %v1095
        %v1119 = vmax.f32 %v1096, %v1097
        %v1120 = vmax.f32 %v1098, %v1099
        %v1121 = vmax.f32 %v1100, %v1101
        %v1122 = vmax.f32 %v1102, %v1103
        %v1123 = vmax.f32 %v1104, %v1105
        %v1124 = vmax.f32 %v1106, %v1107
        %v1125 = vmax.f32 %v1108, %v1109
        %v1126 = vmax.f32 %v1110, %v1111
        %v1127 = vmax.f32 %v1112, %v1113
        %v1128 = vpack.c.bf16 %v1114, %v1114
        %v1129 = vpack.c.bf16 %v1115, %v1115
        %v1130 = vpack.c.bf16 %v1116, %v1116
        %v1131 = vpack.c.bf16 %v1117, %v1117
        %v1132 = vpack.c.bf16 %v1118, %v1118
        %v1133 = vpack.c.bf16 %v1119, %v1119
        %v1134 = vpack.c.bf16 %v1120, %v1120
        %v1135 = vpack.c.bf16 %v1121, %v1121
        %v1136 = vpack.c.bf16 %v1122, %v1122
        %v1137 = vpack.c.bf16 %v1123, %v1123
        %v1138 = vpack.c.bf16 %v1124, %v1124
        %v1139 = vpack.c.bf16 %v1125, %v1125
        %v1140 = vpack.c.bf16 %v1126, %v1126
        %v1141 = vpack.c.bf16 %v1127, %v1127
        %vm1142 = vcmask 60416
        %1143 = vst.msk [vmem:[#allocation2] sm:$0xf] %vm1142, %v1128
        %1144 = vst.msk [vmem:[#allocation2 + $0x4] sm:$0xf] %vm1142, %v1129
        %1145 = vst.msk [vmem:[#allocation2 + $0x8] sm:$0xf] %vm1142, %v1130
        %1146 = vst.msk [vmem:[#allocation2 + $0xc] sm:$0xf] %vm1142, %v1131
        %1147 = vst.msk [vmem:[#allocation2 + $0x10] sm:$0xf] %vm1142, %v1132
        %1148 = vst.msk [vmem:[#allocation2 + $0x14] sm:$0xf] %vm1142, %v1133
        %1149 = vst.msk [vmem:[#allocation2 + $0x18] sm:$0xf] %vm1142, %v1134
        %1150 = vst.msk [vmem:[#allocation2 + $0x1c] sm:$0xf] %vm1142, %v1135
        %1151 = vst.msk [vmem:[#allocation2 + $0x20] sm:$0xf] %vm1142, %v1136
        %1152 = vst.msk [vmem:[#allocation2 + $0x24] sm:$0xf] %vm1142, %v1137
        %1153 = vst.msk [vmem:[#allocation2 + $0x28] sm:$0xf] %vm1142, %v1138
        %1154 = vst.msk [vmem:[#allocation2 + $0x2c] sm:$0xf] %vm1142, %v1139
        %1155 = vst.msk [vmem:[#allocation2 + $0x30] sm:$0xf] %vm1142, %v1140
        %1156 = vst.msk [vmem:[#allocation2 + $0x34] sm:$0xf] %vm1142, %v1141
        %s1157 = scalar_lea.vmem %s437, 224
        %v1158 = vld [vmem:[%s1157] sm:$0xf]
        %v1159 = vld [vmem:[%s1157 + $0x4] sm:$0xf]
        %v1160 = vld [vmem:[%s1157 + $0x8] sm:$0xf]
        %v1161 = vld [vmem:[%s1157 + $0xc] sm:$0xf]
        %v1162 = vld [vmem:[%s1157 + $0x10] sm:$0xf]
        %v1163 = vld [vmem:[%s1157 + $0x14] sm:$0xf]
        %v1164 = vld [vmem:[%s1157 + $0x18] sm:$0xf]
        %v1165 = vld [vmem:[%s1157 + $0x1c] sm:$0xf]
        %v1166 = vld [vmem:[%s1157 + $0x20] sm:$0xf]
        %v1167 = vld [vmem:[%s1157 + $0x24] sm:$0xf]
        %v1168 = vld [vmem:[%s1157 + $0x28] sm:$0xf]
        %v1169 = vld [vmem:[%s1157 + $0x2c] sm:$0xf]
        %v1170 = vld [vmem:[%s1157 + $0x30] sm:$0xf]
        %v1171 = vld [vmem:[%s1157 + $0x34] sm:$0xf]
        %v1172 = vld [vmem:[%s1157 + $0x38] sm:$0xf]
        %v1173 = vld [vmem:[%s1157 + $0x3c] sm:$0xf]
        %v1174 = vld [vmem:[%s1157 + $0x40] sm:$0xf]
        %v1175 = vld [vmem:[%s1157 + $0x44] sm:$0xf]
        %v1176 = vld [vmem:[%s1157 + $0x48] sm:$0xf]
        %v1177 = vld [vmem:[%s1157 + $0x4c] sm:$0xf]
        %v1178 = vld [vmem:[%s1157 + $0x50] sm:$0xf]
        %v1179 = vld [vmem:[%s1157 + $0x54] sm:$0xf]
        %v1180 = vld [vmem:[%s1157 + $0x58] sm:$0xf]
        %v1181 = vld [vmem:[%s1157 + $0x5c] sm:$0xf]
        %v1182 = vld [vmem:[%s1157 + $0x60] sm:$0xf]
        %v1183 = vld [vmem:[%s1157 + $0x64] sm:$0xf]
        %v1184 = vld [vmem:[%s1157 + $0x68] sm:$0xf]
        %v1185 = vld [vmem:[%s1157 + $0x6c] sm:$0xf]
        %v1186 = vld [vmem:[%s1157 + $0x70] sm:$0xf]
        %v1187 = vld [vmem:[%s1157 + $0x74] sm:$0xf]
        %v1188 = vld [vmem:[%s1157 + $0x78] sm:$0xf]
        %v1189 = vld [vmem:[%s1157 + $0x7c] sm:$0xf]
        %v1190 = vld [vmem:[%s1157 + $0x80] sm:$0xf]
        %v1191 = vld [vmem:[%s1157 + $0x84] sm:$0xf]
        %v1192 = vld [vmem:[%s1157 + $0x88] sm:$0xf]
        %v1193 = vld [vmem:[%s1157 + $0x8c] sm:$0xf]
        %v1194 = vld [vmem:[%s1157 + $0x90] sm:$0xf]
        %v1195 = vld [vmem:[%s1157 + $0x94] sm:$0xf]
        %v1196 = vld [vmem:[%s1157 + $0x98] sm:$0xf]
        %v1197 = vld [vmem:[%s1157 + $0x9c] sm:$0xf]
        %v1198 = vld [vmem:[%s1157 + $0xa0] sm:$0xf]
        %v1199 = vld [vmem:[%s1157 + $0xa4] sm:$0xf]
        %v1200 = vld [vmem:[%s1157 + $0xa8] sm:$0xf]
        %v1201 = vld [vmem:[%s1157 + $0xac] sm:$0xf]
        %v1202 = vld [vmem:[%s1157 + $0xb0] sm:$0xf]
        %v1203 = vld [vmem:[%s1157 + $0xb4] sm:$0xf]
        %v1204 = vld [vmem:[%s1157 + $0xb8] sm:$0xf]
        %v1205 = vld [vmem:[%s1157 + $0xbc] sm:$0xf]
        %v1206 = vld [vmem:[%s1157 + $0xc0] sm:$0xf]
        %v1207 = vld [vmem:[%s1157 + $0xc4] sm:$0xf]
        %v1208 = vld [vmem:[%s1157 + $0xc8] sm:$0xf]
        %v1209 = vld [vmem:[%s1157 + $0xcc] sm:$0xf]
        %v1210 = vld [vmem:[%s1157 + $0xd0] sm:$0xf]
        %v1211 = vld [vmem:[%s1157 + $0xd4] sm:$0xf]
        %v1212 = vld [vmem:[%s1157 + $0xd8] sm:$0xf]
        %v1213 = vld [vmem:[%s1157 + $0xdc] sm:$0xf]
        %v1214 = vld [vmem:[%s1] sm:$0xf]
        %v1215 = vld [vmem:[%s1 + $0x4] sm:$0xf]
        %v1216 = vld [vmem:[%s1 + $0x8] sm:$0xf]
        %v1217 = vld [vmem:[%s1 + $0xc] sm:$0xf]
        %v1218 = vld [vmem:[%s1 + $0x10] sm:$0xf]
        %v1219 = vld [vmem:[%s1 + $0x14] sm:$0xf]
        %v1220 = vld [vmem:[%s1 + $0x18] sm:$0xf]
        %v1221 = vld [vmem:[%s1 + $0x1c] sm:$0xf]
        %v1222 = vld [vmem:[%s1 + $0x20] sm:$0xf]
        %v1223 = vld [vmem:[%s1 + $0x24] sm:$0x3]
        %v1280 = vunpack.c.l.b16 %v1158
        %v1281 = vunpack.c.l.b16 %v1159
        %v1282 = vunpack.c.l.b16 %v1160
        %v1283 = vunpack.c.l.b16 %v1161
        %v1284 = vunpack.c.l.b16 %v1162
        %v1285 = vunpack.c.l.b16 %v1163
        %v1286 = vunpack.c.l.b16 %v1164
        %v1287 = vunpack.c.l.b16 %v1165
        %v1288 = vunpack.c.l.b16 %v1166
        %v1289 = vunpack.c.l.b16 %v1167
        %v1290 = vunpack.c.l.b16 %v1168
        %v1291 = vunpack.c.l.b16 %v1169
        %v1292 = vunpack.c.l.b16 %v1170
        %v1293 = vunpack.c.l.b16 %v1171
        %v1294 = vunpack.c.l.b16 %v1172
        %v1295 = vunpack.c.l.b16 %v1173
        %v1296 = vunpack.c.l.b16 %v1174
        %v1297 = vunpack.c.l.b16 %v1175
        %v1298 = vunpack.c.l.b16 %v1176
        %v1299 = vunpack.c.l.b16 %v1177
        %v1300 = vunpack.c.l.b16 %v1178
        %v1301 = vunpack.c.l.b16 %v1179
        %v1302 = vunpack.c.l.b16 %v1180
        %v1303 = vunpack.c.l.b16 %v1181
        %v1304 = vunpack.c.l.b16 %v1182
        %v1305 = vunpack.c.l.b16 %v1183
        %v1306 = vunpack.c.l.b16 %v1184
        %v1307 = vunpack.c.l.b16 %v1185
        %v1308 = vunpack.c.l.b16 %v1186
        %v1309 = vunpack.c.l.b16 %v1187
        %v1310 = vunpack.c.l.b16 %v1188
        %v1311 = vunpack.c.l.b16 %v1189
        %v1312 = vunpack.c.l.b16 %v1190
        %v1313 = vunpack.c.l.b16 %v1191
        %v1314 = vunpack.c.l.b16 %v1192
        %v1315 = vunpack.c.l.b16 %v1193
        %v1316 = vunpack.c.l.b16 %v1194
        %v1317 = vunpack.c.l.b16 %v1195
        %v1318 = vunpack.c.l.b16 %v1196
        %v1319 = vunpack.c.l.b16 %v1197
        %v1320 = vunpack.c.l.b16 %v1198
        %v1321 = vunpack.c.l.b16 %v1199
        %v1322 = vunpack.c.l.b16 %v1200
        %v1323 = vunpack.c.l.b16 %v1201
        %v1324 = vunpack.c.l.b16 %v1202
        %v1325 = vunpack.c.l.b16 %v1203
        %v1326 = vunpack.c.l.b16 %v1204
        %v1327 = vunpack.c.l.b16 %v1205
        %v1328 = vunpack.c.l.b16 %v1206
        %v1329 = vunpack.c.l.b16 %v1207
        %v1330 = vunpack.c.l.b16 %v1208
        %v1331 = vunpack.c.l.b16 %v1209
        %v1332 = vunpack.c.l.b16 %v1210
        %v1333 = vunpack.c.l.b16 %v1211
        %v1334 = vunpack.c.l.b16 %v1212
        %v1335 = vunpack.c.l.b16 %v1213
        %v1336 = vpack.c.b16 %v1281, %v1280
        %v1337 = vpack.c.b16 %v1283, %v1282
        %v1338 = vpack.c.b16 %v1285, %v1284
        %v1339 = vpack.c.b16 %v1287, %v1286
        %v1340 = vpack.c.b16 %v1289, %v1288
        %v1341 = vpack.c.b16 %v1291, %v1290
        %v1342 = vpack.c.b16 %v1293, %v1292
        %v1343 = vpack.c.b16 %v1295, %v1294
        %v1344 = vpack.c.b16 %v1297, %v1296
        %v1345 = vpack.c.b16 %v1299, %v1298
        %v1346 = vpack.c.b16 %v1301, %v1300
        %v1347 = vpack.c.b16 %v1303, %v1302
        %v1348 = vpack.c.b16 %v1305, %v1304
        %v1349 = vpack.c.b16 %v1307, %v1306
        %v1350 = vpack.c.b16 %v1309, %v1308
        %v1351 = vpack.c.b16 %v1311, %v1310
        %v1352 = vpack.c.b16 %v1313, %v1312
        %v1353 = vpack.c.b16 %v1315, %v1314
        %v1354 = vpack.c.b16 %v1317, %v1316
        %v1355 = vpack.c.b16 %v1319, %v1318
        %v1356 = vpack.c.b16 %v1321, %v1320
        %v1357 = vpack.c.b16 %v1323, %v1322
        %v1358 = vpack.c.b16 %v1325, %v1324
        %v1359 = vpack.c.b16 %v1327, %v1326
        %v1360 = vpack.c.b16 %v1329, %v1328
        %v1361 = vpack.c.b16 %v1331, %v1330
        %v1362 = vpack.c.b16 %v1333, %v1332
        %v1363 = vpack.c.b16 %v1335, %v1334
        %v1374 = vunpack.c.l.b16 %v1214
        %v1375 = vunpack.c.l.b16 %v1215
        %v1376 = vunpack.c.l.b16 %v1216
        %v1377 = vunpack.c.l.b16 %v1217
        %v1378 = vunpack.c.l.b16 %v1218
        %v1379 = vunpack.c.l.b16 %v1219
        %v1380 = vunpack.c.l.b16 %v1220
        %v1381 = vunpack.c.l.b16 %v1221
        %v1382 = vunpack.c.l.b16 %v1222
        %v1383 = vunpack.c.l.b16 %v1223
        %v1384 = vpack.c.b16 %v1375, %v1374
        %v1385 = vpack.c.b16 %v1377, %v1376
        %v1386 = vpack.c.b16 %v1379, %v1378
        %v1387 = vpack.c.b16 %v1381, %v1380
        %v1388 = vpack.c.b16 %v1383, %v1382
        %v1394 = vsel %vm681, %v1336, 0
        %v1397 = vsel %vm681, %v1337, 0
        %v1400 = vsel %vm681, %v1338, 0
        %v1403 = vsel %vm681, %v1339, 0
        %v1406 = vsel %vm681, %v1340, 0
        %v1409 = vsel %vm681, %v1341, 0
        %v1412 = vsel %vm681, %v1342, 0
        %v1415 = vsel %vm681, %v1343, 0
        %v1418 = vsel %vm681, %v1344, 0
        %v1421 = vsel %vm681, %v1345, 0
        %v1424 = vsel %vm681, %v1346, 0
        %v1427 = vsel %vm681, %v1347, 0
        %v1430 = vsel %vm681, %v1348, 0
        %v1433 = vsel %vm681, %v1349, 0
        %v1436 = vsel %vm681, %v1350, 0
        %v1439 = vsel %vm681, %v1351, 0
        %v1442 = vsel %vm681, %v1352, 0
        %v1445 = vsel %vm681, %v1353, 0
        %v1448 = vsel %vm681, %v1354, 0
        %v1451 = vsel %vm681, %v1355, 0
        %v1454 = vsel %vm681, %v1356, 0
        %v1457 = vsel %vm681, %v1357, 0
        %v1460 = vsel %vm681, %v1358, 0
        %v1463 = vsel %vm681, %v1359, 0
        %v1466 = vsel %vm681, %v1360, 0
        %v1469 = vsel %vm681, %v1361, 0
        %v1472 = vsel %vm681, %v1362, 0
        %v1475 = vsel %vm681, %v1363, 0
        %v1478 = vand.u32 %v1388, %v769
        %1480 = vmatprep.subr.bf16.mxu0 0
        %1481 = vmatpush1.bf16.msra.mxu0 0
        %1482 = vmatprep.subr.bf16.mxu0 0
        %1483 = vmatpush1.bf16.msra.mxu0 0
        %1484 = vmatprep.subr.bf16.mxu0 0
        %1485 = vmatpush1.bf16.msra.mxu0 0
        %1486 = vmatprep.subr.bf16.mxu0 0
        %1487 = vmatpush1.bf16.msra.mxu0 %v1478
        %1488 = vmatprep.subr.bf16.mxu0 0
        %1489 = vmatpush1.bf16.msra.mxu0 %v1387
        %1490 = vmatprep.subr.bf16.mxu0 0
        %1491 = vmatpush1.bf16.msra.mxu0 %v1386
        %1492 = vmatprep.subr.bf16.mxu0 0
        %1493 = vmatpush1.bf16.msra.mxu0 %v1385
        %1494 = vmatprep.subr.bf16.mxu0 0
        %1495 = vmatpush1.bf16.msra.mxu0 %v1384
        %1496 = vmatprep.subr.bf16.mxu0 0
        %1497 = vmatpush2.bf16.msra.mxu0 0
        %1498 = vmatprep.subr.bf16.mxu0 0
        %1499 = vmatpush2.bf16.msra.mxu0 0
        %1500 = vmatprep.subr.bf16.mxu0 0
        %1501 = vmatpush2.bf16.msra.mxu0 0
        %1502 = vmatprep.subr.bf16.mxu0 0
        %1503 = vmatpush2.bf16.msra.mxu0 0
        %1504 = vmatprep.subr.bf16.mxu0 0
        %1505 = vmatpush2.bf16.msra.mxu0 0
        %1506 = vmatprep.subr.bf16.mxu0 0
        %1507 = vmatpush2.bf16.msra.mxu0 0
        %1508 = vmatprep.subr.bf16.mxu0 0
        %1509 = vmatpush2.bf16.msra.mxu0 0
        %1510 = vmatprep.subr.bf16.mxu0 0
        %1511 = vmatpush2.bf16.msra.mxu0 0
        %1512 = vmatprep.mubr.bf16.mxu0 0
        %1513 = vmatmul.mubr.bf16.gmra.mxu0 %v1394
        %v1514 = vpop.f32.mrf.mxu0
        %v1515 = vadd.f32 %v510, %v1514
        %v1516 = vpop.f32.mrf.mxu0
        %v1517 = vpop.f32.mrf.mxu0
        %v1518 = vadd.f32 %v510, %v1517
        %v1519 = vpop.f32.mrf.mxu0
        %1520 = vmatprep.mubr.bf16.mxu0 0
        %1521 = vmatmul.mubr.bf16.gmra.mxu0 %v1397
        %v1522 = vpop.f32.mrf.mxu0
        %v1523 = vadd.f32 %v510, %v1522
        %v1524 = vpop.f32.mrf.mxu0
        %v1525 = vpop.f32.mrf.mxu0
        %v1526 = vadd.f32 %v510, %v1525
        %v1527 = vpop.f32.mrf.mxu0
        %1528 = vmatprep.mubr.bf16.mxu0 0
        %1529 = vmatmul.mubr.bf16.gmra.mxu0 %v1400
        %v1530 = vpop.f32.mrf.mxu0
        %v1531 = vadd.f32 %v510, %v1530
        %v1532 = vpop.f32.mrf.mxu0
        %v1533 = vpop.f32.mrf.mxu0
        %v1534 = vadd.f32 %v510, %v1533
        %v1535 = vpop.f32.mrf.mxu0
        %1536 = vmatprep.mubr.bf16.mxu0 0
        %1537 = vmatmul.mubr.bf16.gmra.mxu0 %v1403
        %v1538 = vpop.f32.mrf.mxu0
        %v1539 = vadd.f32 %v510, %v1538
        %v1540 = vpop.f32.mrf.mxu0
        %v1541 = vpop.f32.mrf.mxu0
        %v1542 = vadd.f32 %v510, %v1541
        %v1543 = vpop.f32.mrf.mxu0
        %1544 = vmatprep.mubr.bf16.mxu0 0
        %1545 = vmatmul.mubr.bf16.gmra.mxu0 %v1406
        %v1546 = vpop.f32.mrf.mxu0
        %v1547 = vadd.f32 %v510, %v1546
        %v1548 = vpop.f32.mrf.mxu0
        %v1549 = vpop.f32.mrf.mxu0
        %v1550 = vadd.f32 %v510, %v1549
        %v1551 = vpop.f32.mrf.mxu0
        %1552 = vmatprep.mubr.bf16.mxu0 0
        %1553 = vmatmul.mubr.bf16.gmra.mxu0 %v1409
        %v1554 = vpop.f32.mrf.mxu0
        %v1555 = vadd.f32 %v510, %v1554
        %v1556 = vpop.f32.mrf.mxu0
        %v1557 = vpop.f32.mrf.mxu0
        %v1558 = vadd.f32 %v510, %v1557
        %v1559 = vpop.f32.mrf.mxu0
        %1560 = vmatprep.mubr.bf16.mxu0 0
        %1561 = vmatmul.mubr.bf16.gmra.mxu0 %v1412
        %v1562 = vpop.f32.mrf.mxu0
        %v1563 = vadd.f32 %v510, %v1562
        %v1564 = vpop.f32.mrf.mxu0
        %v1565 = vpop.f32.mrf.mxu0
        %v1566 = vadd.f32 %v510, %v1565
        %v1567 = vpop.f32.mrf.mxu0
        %1568 = vmatprep.mubr.bf16.mxu0 0
        %1569 = vmatmul.mubr.bf16.gmra.mxu0 %v1415
        %v1570 = vpop.f32.mrf.mxu0
        %v1571 = vadd.f32 %v510, %v1570
        %v1572 = vpop.f32.mrf.mxu0
        %v1573 = vpop.f32.mrf.mxu0
        %v1574 = vadd.f32 %v510, %v1573
        %v1575 = vpop.f32.mrf.mxu0
        %1576 = vmatprep.mubr.bf16.mxu0 0
        %1577 = vmatmul.mubr.bf16.gmra.mxu0 %v1418
        %v1578 = vpop.f32.mrf.mxu0
        %v1579 = vadd.f32 %v510, %v1578
        %v1580 = vpop.f32.mrf.mxu0
        %v1581 = vpop.f32.mrf.mxu0
        %v1582 = vadd.f32 %v510, %v1581
        %v1583 = vpop.f32.mrf.mxu0
        %1584 = vmatprep.mubr.bf16.mxu0 0
        %1585 = vmatmul.mubr.bf16.gmra.mxu0 %v1421
        %v1586 = vpop.f32.mrf.mxu0
        %v1587 = vadd.f32 %v510, %v1586
        %v1588 = vpop.f32.mrf.mxu0
        %v1589 = vpop.f32.mrf.mxu0
        %v1590 = vadd.f32 %v510, %v1589
        %v1591 = vpop.f32.mrf.mxu0
        %1592 = vmatprep.mubr.bf16.mxu0 0
        %1593 = vmatmul.mubr.bf16.gmra.mxu0 %v1424
        %v1594 = vpop.f32.mrf.mxu0
        %v1595 = vadd.f32 %v510, %v1594
        %v1596 = vpop.f32.mrf.mxu0
        %v1597 = vpop.f32.mrf.mxu0
        %v1598 = vadd.f32 %v510, %v1597
        %v1599 = vpop.f32.mrf.mxu0
        %1600 = vmatprep.mubr.bf16.mxu0 0
        %1601 = vmatmul.mubr.bf16.gmra.mxu0 %v1427
        %v1602 = vpop.f32.mrf.mxu0
        %v1603 = vadd.f32 %v510, %v1602
        %v1604 = vpop.f32.mrf.mxu0
        %v1605 = vpop.f32.mrf.mxu0
        %v1606 = vadd.f32 %v510, %v1605
        %v1607 = vpop.f32.mrf.mxu0
        %1608 = vmatprep.mubr.bf16.mxu0 0
        %1609 = vmatmul.mubr.bf16.gmra.mxu0 %v1430
        %v1610 = vpop.f32.mrf.mxu0
        %v1611 = vadd.f32 %v510, %v1610
        %v1612 = vpop.f32.mrf.mxu0
        %v1613 = vpop.f32.mrf.mxu0
        %v1614 = vadd.f32 %v510, %v1613
        %v1615 = vpop.f32.mrf.mxu0
        %1616 = vmatprep.mubr.bf16.mxu0 0
        %1617 = vmatmul.mubr.bf16.gmra.mxu0 %v1433
        %v1618 = vpop.f32.mrf.mxu0
        %v1619 = vadd.f32 %v510, %v1618
        %v1620 = vpop.f32.mrf.mxu0
        %v1621 = vpop.f32.mrf.mxu0
        %v1622 = vadd.f32 %v510, %v1621
        %v1623 = vpop.f32.mrf.mxu0
        %1624 = vmatprep.mubr.bf16.mxu0 0
        %1625 = vmatmul.mubr.bf16.gmra.mxu0 %v1436
        %v1626 = vpop.f32.mrf.mxu0
        %v1627 = vadd.f32 %v510, %v1626
        %v1628 = vpop.f32.mrf.mxu0
        %v1629 = vpop.f32.mrf.mxu0
        %v1630 = vadd.f32 %v510, %v1629
        %v1631 = vpop.f32.mrf.mxu0
        %1632 = vmatprep.mubr.bf16.mxu0 0
        %1633 = vmatmul.mubr.bf16.gmra.mxu0 %v1439
        %v1634 = vpop.f32.mrf.mxu0
        %v1635 = vadd.f32 %v510, %v1634
        %v1636 = vpop.f32.mrf.mxu0
        %v1637 = vpop.f32.mrf.mxu0
        %v1638 = vadd.f32 %v510, %v1637
        %v1639 = vpop.f32.mrf.mxu0
        %1640 = vmatprep.mubr.bf16.mxu0 0
        %1641 = vmatmul.mubr.bf16.gmra.mxu0 %v1442
        %v1642 = vpop.f32.mrf.mxu0
        %v1643 = vadd.f32 %v510, %v1642
        %v1644 = vpop.f32.mrf.mxu0
        %v1645 = vpop.f32.mrf.mxu0
        %v1646 = vadd.f32 %v510, %v1645
        %v1647 = vpop.f32.mrf.mxu0
        %1648 = vmatprep.mubr.bf16.mxu0 0
        %1649 = vmatmul.mubr.bf16.gmra.mxu0 %v1445
        %v1650 = vpop.f32.mrf.mxu0
        %v1651 = vadd.f32 %v510, %v1650
        %v1652 = vpop.f32.mrf.mxu0
        %v1653 = vpop.f32.mrf.mxu0
        %v1654 = vadd.f32 %v510, %v1653
        %v1655 = vpop.f32.mrf.mxu0
        %1656 = vmatprep.mubr.bf16.mxu0 0
        %1657 = vmatmul.mubr.bf16.gmra.mxu0 %v1448
        %v1658 = vpop.f32.mrf.mxu0
        %v1659 = vadd.f32 %v510, %v1658
        %v1660 = vpop.f32.mrf.mxu0
        %v1661 = vpop.f32.mrf.mxu0
        %v1662 = vadd.f32 %v510, %v1661
        %v1663 = vpop.f32.mrf.mxu0
        %1664 = vmatprep.mubr.bf16.mxu0 0
        %1665 = vmatmul.mubr.bf16.gmra.mxu0 %v1451
        %v1666 = vpop.f32.mrf.mxu0
        %v1667 = vadd.f32 %v510, %v1666
        %v1668 = vpop.f32.mrf.mxu0
        %v1669 = vpop.f32.mrf.mxu0
        %v1670 = vadd.f32 %v510, %v1669
        %v1671 = vpop.f32.mrf.mxu0
        %1672 = vmatprep.mubr.bf16.mxu0 0
        %1673 = vmatmul.mubr.bf16.gmra.mxu0 %v1454
        %v1674 = vpop.f32.mrf.mxu0
        %v1675 = vadd.f32 %v510, %v1674
        %v1676 = vpop.f32.mrf.mxu0
        %v1677 = vpop.f32.mrf.mxu0
        %v1678 = vadd.f32 %v510, %v1677
        %v1679 = vpop.f32.mrf.mxu0
        %1680 = vmatprep.mubr.bf16.mxu0 0
        %1681 = vmatmul.mubr.bf16.gmra.mxu0 %v1457
        %v1682 = vpop.f32.mrf.mxu0
        %v1683 = vadd.f32 %v510, %v1682
        %v1684 = vpop.f32.mrf.mxu0
        %v1685 = vpop.f32.mrf.mxu0
        %v1686 = vadd.f32 %v510, %v1685
        %v1687 = vpop.f32.mrf.mxu0
        %1688 = vmatprep.mubr.bf16.mxu0 0
        %1689 = vmatmul.mubr.bf16.gmra.mxu0 %v1460
        %v1690 = vpop.f32.mrf.mxu0
        %v1691 = vadd.f32 %v510, %v1690
        %v1692 = vpop.f32.mrf.mxu0
        %v1693 = vpop.f32.mrf.mxu0
        %v1694 = vadd.f32 %v510, %v1693
        %v1695 = vpop.f32.mrf.mxu0
        %1696 = vmatprep.mubr.bf16.mxu0 0
        %1697 = vmatmul.mubr.bf16.gmra.mxu0 %v1463
        %v1698 = vpop.f32.mrf.mxu0
        %v1699 = vadd.f32 %v510, %v1698
        %v1700 = vpop.f32.mrf.mxu0
        %v1701 = vpop.f32.mrf.mxu0
        %v1702 = vadd.f32 %v510, %v1701
        %v1703 = vpop.f32.mrf.mxu0
        %1704 = vmatprep.mubr.bf16.mxu0 0
        %1705 = vmatmul.mubr.bf16.gmra.mxu0 %v1466
        %v1706 = vpop.f32.mrf.mxu0
        %v1707 = vadd.f32 %v510, %v1706
        %v1708 = vpop.f32.mrf.mxu0
        %v1709 = vpop.f32.mrf.mxu0
        %v1710 = vadd.f32 %v510, %v1709
        %v1711 = vpop.f32.mrf.mxu0
        %1712 = vmatprep.mubr.bf16.mxu0 0
        %1713 = vmatmul.mubr.bf16.gmra.mxu0 %v1469
        %v1714 = vpop.f32.mrf.mxu0
        %v1715 = vadd.f32 %v510, %v1714
        %v1716 = vpop.f32.mrf.mxu0
        %v1717 = vpop.f32.mrf.mxu0
        %v1718 = vadd.f32 %v510, %v1717
        %v1719 = vpop.f32.mrf.mxu0
        %1720 = vmatprep.mubr.bf16.mxu0 0
        %1721 = vmatmul.mubr.bf16.gmra.mxu0 %v1472
        %v1722 = vpop.f32.mrf.mxu0
        %v1723 = vadd.f32 %v510, %v1722
        %v1724 = vpop.f32.mrf.mxu0
        %v1725 = vpop.f32.mrf.mxu0
        %v1726 = vadd.f32 %v510, %v1725
        %v1727 = vpop.f32.mrf.mxu0
        %1728 = vmatprep.mubr.bf16.mxu0 0
        %1729 = vmatmul.mubr.bf16.gmra.mxu0 %v1475
        %v1730 = vpop.f32.mrf.mxu0
        %v1731 = vadd.f32 %v510, %v1730
        %v1732 = vpop.f32.mrf.mxu0
        %v1733 = vpop.f32.mrf.mxu0
        %v1734 = vadd.f32 %v510, %v1733
        %v1735 = vpop.f32.mrf.mxu0
        %1736 = vdwg.mxu0
        %v1737 = vmax.f32 %v1515, 0.0
        %v1738 = vmax.f32 %v1518, 0.0
        %v1739 = vmax.f32 %v1523, 0.0
        %v1740 = vmax.f32 %v1526, 0.0
        %v1741 = vmax.f32 %v1531, 0.0
        %v1742 = vmax.f32 %v1534, 0.0
        %v1743 = vmax.f32 %v1539, 0.0
        %v1744 = vmax.f32 %v1542, 0.0
        %v1745 = vmax.f32 %v1547, 0.0
        %v1746 = vmax.f32 %v1550, 0.0
        %v1747 = vmax.f32 %v1555, 0.0
        %v1748 = vmax.f32 %v1558, 0.0
        %v1749 = vmax.f32 %v1563, 0.0
        %v1750 = vmax.f32 %v1566, 0.0
        %v1751 = vmax.f32 %v1571, 0.0
        %v1752 = vmax.f32 %v1574, 0.0
        %v1753 = vmax.f32 %v1579, 0.0
        %v1754 = vmax.f32 %v1582, 0.0
        %v1755 = vmax.f32 %v1587, 0.0
        %v1756 = vmax.f32 %v1590, 0.0
        %v1757 = vmax.f32 %v1595, 0.0
        %v1758 = vmax.f32 %v1598, 0.0
        %v1759 = vmax.f32 %v1603, 0.0
        %v1760 = vmax.f32 %v1606, 0.0
        %v1761 = vmax.f32 %v1611, 0.0
        %v1762 = vmax.f32 %v1614, 0.0
        %v1763 = vmax.f32 %v1619, 0.0
        %v1764 = vmax.f32 %v1622, 0.0
        %v1765 = vmax.f32 %v1627, 0.0
        %v1766 = vmax.f32 %v1630, 0.0
        %v1767 = vmax.f32 %v1635, 0.0
        %v1768 = vmax.f32 %v1638, 0.0
        %v1769 = vmax.f32 %v1643, 0.0
        %v1770 = vmax.f32 %v1646, 0.0
        %v1771 = vmax.f32 %v1651, 0.0
        %v1772 = vmax.f32 %v1654, 0.0
        %v1773 = vmax.f32 %v1659, 0.0
        %v1774 = vmax.f32 %v1662, 0.0
        %v1775 = vmax.f32 %v1667, 0.0
        %v1776 = vmax.f32 %v1670, 0.0
        %v1777 = vmax.f32 %v1675, 0.0
        %v1778 = vmax.f32 %v1678, 0.0
        %v1779 = vmax.f32 %v1683, 0.0
        %v1780 = vmax.f32 %v1686, 0.0
        %v1781 = vmax.f32 %v1691, 0.0
        %v1782 = vmax.f32 %v1694, 0.0
        %v1783 = vmax.f32 %v1699, 0.0
        %v1784 = vmax.f32 %v1702, 0.0
        %v1785 = vmax.f32 %v1707, 0.0
        %v1786 = vmax.f32 %v1710, 0.0
        %v1787 = vmax.f32 %v1715, 0.0
        %v1788 = vmax.f32 %v1718, 0.0
        %v1789 = vmax.f32 %v1723, 0.0
        %v1790 = vmax.f32 %v1726, 0.0
        %v1791 = vmax.f32 %v1731, 0.0
        %v1792 = vmax.f32 %v1734, 0.0
        %v1793 = vmax.f32 %v1737, %v1765
        %v1794 = vmax.f32 %v1738, %v1766
        %v1795 = vmax.f32 %v1739, %v1767
        %v1796 = vmax.f32 %v1740, %v1768
        %v1797 = vmax.f32 %v1741, %v1769
        %v1798 = vmax.f32 %v1742, %v1770
        %v1799 = vmax.f32 %v1743, %v1771
        %v1800 = vmax.f32 %v1744, %v1772
        %v1801 = vmax.f32 %v1745, %v1773
        %v1802 = vmax.f32 %v1746, %v1774
        %v1803 = vmax.f32 %v1747, %v1775
        %v1804 = vmax.f32 %v1748, %v1776
        %v1805 = vmax.f32 %v1749, %v1777
        %v1806 = vmax.f32 %v1750, %v1778
        %v1807 = vmax.f32 %v1751, %v1779
        %v1808 = vmax.f32 %v1752, %v1780
        %v1809 = vmax.f32 %v1753, %v1781
        %v1810 = vmax.f32 %v1754, %v1782
        %v1811 = vmax.f32 %v1755, %v1783
        %v1812 = vmax.f32 %v1756, %v1784
        %v1813 = vmax.f32 %v1757, %v1785
        %v1814 = vmax.f32 %v1758, %v1786
        %v1815 = vmax.f32 %v1759, %v1787
        %v1816 = vmax.f32 %v1760, %v1788
        %v1817 = vmax.f32 %v1761, %v1789
        %v1818 = vmax.f32 %v1762, %v1790
        %v1819 = vmax.f32 %v1763, %v1791
        %v1820 = vmax.f32 %v1764, %v1792
        %v1821 = vmax.f32 %v1793, %v1794
        %v1822 = vmax.f32 %v1795, %v1796
        %v1823 = vmax.f32 %v1797, %v1798
        %v1824 = vmax.f32 %v1799, %v1800
        %v1825 = vmax.f32 %v1801, %v1802
        %v1826 = vmax.f32 %v1803, %v1804
        %v1827 = vmax.f32 %v1805, %v1806
        %v1828 = vmax.f32 %v1807, %v1808
        %v1829 = vmax.f32 %v1809, %v1810
        %v1830 = vmax.f32 %v1811, %v1812
        %v1831 = vmax.f32 %v1813, %v1814
        %v1832 = vmax.f32 %v1815, %v1816
        %v1833 = vmax.f32 %v1817, %v1818
        %v1834 = vmax.f32 %v1819, %v1820
        %v1835 = vpack.c.bf16 %v1821, %v1821
        %v1836 = vpack.c.bf16 %v1822, %v1822
        %v1837 = vpack.c.bf16 %v1823, %v1823
        %v1838 = vpack.c.bf16 %v1824, %v1824
        %v1839 = vpack.c.bf16 %v1825, %v1825
        %v1840 = vpack.c.bf16 %v1826, %v1826
        %v1841 = vpack.c.bf16 %v1827, %v1827
        %v1842 = vpack.c.bf16 %v1828, %v1828
        %v1843 = vpack.c.bf16 %v1829, %v1829
        %v1844 = vpack.c.bf16 %v1830, %v1830
        %v1845 = vpack.c.bf16 %v1831, %v1831
        %v1846 = vpack.c.bf16 %v1832, %v1832
        %v1847 = vpack.c.bf16 %v1833, %v1833
        %v1848 = vpack.c.bf16 %v1834, %v1834
        %s1849 = scalar_lea.vmem [#allocation2], 56
        %1850 = vst.msk [vmem:[%s1849] sm:$0xf] %vm1142, %v1835
        %1851 = vst.msk [vmem:[%s1849 + $0x4] sm:$0xf] %vm1142, %v1836
        %1852 = vst.msk [vmem:[%s1849 + $0x8] sm:$0xf] %vm1142, %v1837
        %1853 = vst.msk [vmem:[%s1849 + $0xc] sm:$0xf] %vm1142, %v1838
        %1854 = vst.msk [vmem:[%s1849 + $0x10] sm:$0xf] %vm1142, %v1839
        %1855 = vst.msk [vmem:[%s1849 + $0x14] sm:$0xf] %vm1142, %v1840
        %1856 = vst.msk [vmem:[%s1849 + $0x18] sm:$0xf] %vm1142, %v1841
        %1857 = vst.msk [vmem:[%s1849 + $0x1c] sm:$0xf] %vm1142, %v1842
        %1858 = vst.msk [vmem:[%s1849 + $0x20] sm:$0xf] %vm1142, %v1843
        %1859 = vst.msk [vmem:[%s1849 + $0x24] sm:$0xf] %vm1142, %v1844
        %1860 = vst.msk [vmem:[%s1849 + $0x28] sm:$0xf] %vm1142, %v1845
        %1861 = vst.msk [vmem:[%s1849 + $0x2c] sm:$0xf] %vm1142, %v1846
        %1862 = vst.msk [vmem:[%s1849 + $0x30] sm:$0xf] %vm1142, %v1847
        %1863 = vst.msk [vmem:[%s1849 + $0x34] sm:$0xf] %vm1142, %v1848
        %v1864 = vld [vmem:[%s4] sm:$0x1]
        %vm1865 = vcmask 1043458
        %vm1866 = vsmask.f32 7946
        %vm1867 = vmand %vm1865, %vm1866
        %vm1868 = vcmask 588806
        %vm1869 = vsmask.f32 7962
        %vm1870 = vmand %vm1868, %vm1869
        %vm1871 = vmor %vm1870, %vm1867
        %v1872 = vld [vmem:[#allocation3] sm:$0xcc]
        %v1873 = vsel %vm1871, 0, %v1872
        %1874 = vst [vmem:[#allocation3] sm:$0xcc] %v1873
        %v1875 = vld [vmem:[#allocation3 + $0x8] sm:$0xcc]
        %v1876 = vsel %vm1871, 0, %v1875
        %1877 = vst [vmem:[#allocation3 + $0x8] sm:$0xcc] %v1876
        %v1878 = vld [vmem:[#allocation3 + $0x10] sm:$0xcc]
        %v1879 = vsel %vm1871, 0, %v1878
        %1880 = vst [vmem:[#allocation3 + $0x10] sm:$0xcc] %v1879
        %v1881 = vld [vmem:[#allocation3 + $0x18] sm:$0xcc]
        %v1882 = vsel %vm1871, 0, %v1881
        %1883 = vst [vmem:[#allocation3 + $0x18] sm:$0xcc] %v1882
        %v1884 = vld [vmem:[#allocation3 + $0x20] sm:$0xcc]
        %v1885 = vsel %vm1871, 0, %v1884
        %1886 = vst [vmem:[#allocation3 + $0x20] sm:$0xcc] %v1885
        %v1887 = vld [vmem:[#allocation3 + $0x28] sm:$0xcc]
        %v1888 = vsel %vm1871, 0, %v1887
        %1889 = vst [vmem:[#allocation3 + $0x28] sm:$0xcc] %v1888
        %v1890 = vld [vmem:[#allocation3 + $0x30] sm:$0xcc]
        %v1891 = vsel %vm1871, 0, %v1890
        %1892 = vst [vmem:[#allocation3 + $0x30] sm:$0xcc] %v1891
        %v1893 = vld [vmem:[#allocation3 + $0x38] sm:$0xcc]
        %v1894 = vsel %vm1871, 0, %v1893
        %1895 = vst [vmem:[#allocation3 + $0x38] sm:$0xcc] %v1894
        %v1896 = vld [vmem:[#allocation3 + $0x40] sm:$0xcc]
        %v1897 = vsel %vm1871, 0, %v1896
        %1898 = vst [vmem:[#allocation3 + $0x40] sm:$0xcc] %v1897
        %v1899 = vld [vmem:[#allocation3 + $0x48] sm:$0xcc]
        %v1900 = vsel %vm1871, 0, %v1899
        %1901 = vst [vmem:[#allocation3 + $0x48] sm:$0xcc] %v1900
        %v1902 = vld [vmem:[#allocation2] sm:$0x7]
        %v1903 = vld [vmem:[#allocation2 + $0x4] sm:$0x7]
        %v1904 = vld [vmem:[#allocation2 + $0x8] sm:$0x7]
        %v1905 = vld [vmem:[#allocation2 + $0xc] sm:$0x7]
        %v1906 = vld [vmem:[#allocation2 + $0x10] sm:$0x7]
        %v1907 = vld [vmem:[#allocation2 + $0x14] sm:$0x7]
        %v1908 = vld [vmem:[#allocation2 + $0x18] sm:$0x7]
        %v1909 = vld [vmem:[#allocation2 + $0x1c] sm:$0x7]
        %v1910 = vld [vmem:[#allocation2 + $0x20] sm:$0x7]
        %v1911 = vld [vmem:[#allocation2 + $0x24] sm:$0x7]
        %vm1912 = vcmask 59392
        %vm1913 = vsmask.f32 2304
        %vm1914 = vmand %vm1912, %vm1913
        %v1915 = vld [vmem:[#allocation3] sm:$0x7]
        %v1916 = vsel %vm1914, %v1902, %v1915
        %1917 = vst [vmem:[#allocation3] sm:$0x7] %v1916
        %v1918 = vld [vmem:[#allocation3 + $0x8] sm:$0x7]
        %v1919 = vsel %vm1914, %v1903, %v1918
        %1920 = vst [vmem:[#allocation3 + $0x8] sm:$0x7] %v1919
        %v1921 = vld [vmem:[#allocation3 + $0x10] sm:$0x7]
        %v1922 = vsel %vm1914, %v1904, %v1921
        %1923 = vst [vmem:[#allocation3 + $0x10] sm:$0x7] %v1922
        %v1924 = vld [vmem:[#allocation3 + $0x18] sm:$0x7]
        %v1925 = vsel %vm1914, %v1905, %v1924
        %1926 = vst [vmem:[#allocation3 + $0x18] sm:$0x7] %v1925
        %v1927 = vld [vmem:[#allocation3 + $0x20] sm:$0x7]
        %v1928 = vsel %vm1914, %v1906, %v1927
        %1929 = vst [vmem:[#allocation3 + $0x20] sm:$0x7] %v1928
        %v1930 = vld [vmem:[#allocation3 + $0x28] sm:$0x7]
        %v1931 = vsel %vm1914, %v1907, %v1930
        %1932 = vst [vmem:[#allocation3 + $0x28] sm:$0x7] %v1931
        %v1933 = vld [vmem:[#allocation3 + $0x30] sm:$0x7]
        %v1934 = vsel %vm1914, %v1908, %v1933
        %1935 = vst [vmem:[#allocation3 + $0x30] sm:$0x7] %v1934
        %v1936 = vld [vmem:[#allocation3 + $0x38] sm:$0x7]
        %v1937 = vsel %vm1914, %v1909, %v1936
        %1938 = vst [vmem:[#allocation3 + $0x38] sm:$0x7] %v1937
        %v1939 = vld [vmem:[#allocation3 + $0x40] sm:$0x7]
        %v1940 = vsel %vm1914, %v1910, %v1939
        %1941 = vst [vmem:[#allocation3 + $0x40] sm:$0x7] %v1940
        %v1942 = vld [vmem:[#allocation3 + $0x48] sm:$0x7]
        %v1943 = vsel %vm1914, %v1911, %v1942
        %1944 = vst [vmem:[#allocation3 + $0x48] sm:$0x7] %v1943
        %v1945 = vld [vmem:[%s1849] sm:$0x7]
        %v1946 = vld [vmem:[%s1849 + $0x4] sm:$0x7]
        %v1947 = vld [vmem:[%s1849 + $0x8] sm:$0x7]
        %v1948 = vld [vmem:[%s1849 + $0xc] sm:$0x7]
        %v1949 = vld [vmem:[%s1849 + $0x10] sm:$0x7]
        %v1950 = vld [vmem:[%s1849 + $0x14] sm:$0x7]
        %v1951 = vld [vmem:[%s1849 + $0x18] sm:$0x7]
        %v1952 = vld [vmem:[%s1849 + $0x1c] sm:$0x7]
        %v1953 = vld [vmem:[%s1849 + $0x20] sm:$0x7]
        %v1954 = vld [vmem:[%s1849 + $0x24] sm:$0x7]
        %1965 = vrot.lane.b32.xlu0 %v1945, 8
        %v1966 = vpop.permute.xlu0 %1965
        %1967 = vrot.lane.b32.xlu0 %v1946, 8
        %v1968 = vpop.permute.xlu0 %1967
        %1969 = vrot.lane.b32.xlu0 %v1947, 8
        %v1970 = vpop.permute.xlu0 %1969
        %1971 = vrot.lane.b32.xlu0 %v1948, 8
        %v1972 = vpop.permute.xlu0 %1971
        %1973 = vrot.lane.b32.xlu0 %v1949, 8
        %v1974 = vpop.permute.xlu0 %1973
        %1975 = vrot.lane.b32.xlu0 %v1950, 8
        %v1976 = vpop.permute.xlu0 %1975
        %1977 = vrot.lane.b32.xlu0 %v1951, 8
        %v1978 = vpop.permute.xlu0 %1977
        %1979 = vrot.lane.b32.xlu0 %v1952, 8
        %v1980 = vpop.permute.xlu0 %1979
        %1981 = vrot.lane.b32.xlu0 %v1953, 8
        %v1982 = vpop.permute.xlu0 %1981
        %1983 = vrot.lane.b32.xlu0 %v1954, 8
        %v1984 = vpop.permute.xlu0 %1983
        %vm1995 = vcmask 124992
        %vm1996 = vmand %vm1995, %vm1913
        %v1997 = vld [vmem:[#allocation3] sm:$0x7]
        %v1998 = vsel %vm1996, %v1966, %v1997
        %1999 = vst [vmem:[#allocation3] sm:$0x7] %v1998
        %v2000 = vld [vmem:[#allocation3 + $0x8] sm:$0x7]
        %v2001 = vsel %vm1996, %v1968, %v2000
        %2002 = vst [vmem:[#allocation3 + $0x8] sm:$0x7] %v2001
        %v2003 = vld [vmem:[#allocation3 + $0x10] sm:$0x7]
        %v2004 = vsel %vm1996, %v1970, %v2003
        %2005 = vst [vmem:[#allocation3 + $0x10] sm:$0x7] %v2004
        %v2006 = vld [vmem:[#allocation3 + $0x18] sm:$0x7]
        %v2007 = vsel %vm1996, %v1972, %v2006
        %2008 = vst [vmem:[#allocation3 + $0x18] sm:$0x7] %v2007
        %v2009 = vld [vmem:[#allocation3 + $0x20] sm:$0x7]
        %v2010 = vsel %vm1996, %v1974, %v2009
        %2011 = vst [vmem:[#allocation3 + $0x20] sm:$0x7] %v2010
        %v2012 = vld [vmem:[#allocation3 + $0x28] sm:$0x7]
        %v2013 = vsel %vm1996, %v1976, %v2012
        %2014 = vst [vmem:[#allocation3 + $0x28] sm:$0x7] %v2013
        %v2015 = vld [vmem:[#allocation3 + $0x30] sm:$0x7]
        %v2016 = vsel %vm1996, %v1978, %v2015
        %2017 = vst [vmem:[#allocation3 + $0x30] sm:$0x7] %v2016
        %v2018 = vld [vmem:[#allocation3 + $0x38] sm:$0x7]
        %v2019 = vsel %vm1996, %v1980, %v2018
        %2020 = vst [vmem:[#allocation3 + $0x38] sm:$0x7] %v2019
        %v2021 = vld [vmem:[#allocation3 + $0x40] sm:$0x7]
        %v2022 = vsel %vm1996, %v1982, %v2021
        %2023 = vst [vmem:[#allocation3 + $0x40] sm:$0x7] %v2022
        %v2024 = vld [vmem:[#allocation3 + $0x48] sm:$0x7]
        %v2025 = vsel %vm1996, %v1984, %v2024
        %2026 = vst [vmem:[#allocation3 + $0x48] sm:$0x7] %v2025
        %v2027 = vld [vmem:[#allocation2] sm:$0x7]
        %v2028 = vld [vmem:[#allocation2 + $0x4] sm:$0x7]
        %v2029 = vld [vmem:[#allocation2 + $0x8] sm:$0x7]
        %v2030 = vld [vmem:[#allocation2 + $0xc] sm:$0x7]
        %v2031 = vld [vmem:[#allocation2 + $0x10] sm:$0x7]
        %v2032 = vld [vmem:[#allocation2 + $0x14] sm:$0x7]
        %v2033 = vld [vmem:[#allocation2 + $0x18] sm:$0x7]
        %v2034 = vld [vmem:[#allocation2 + $0x1c] sm:$0x7]
        %v2035 = vld [vmem:[#allocation2 + $0x20] sm:$0x7]
        %v2036 = vld [vmem:[#allocation2 + $0x24] sm:$0x7]
        %v2038 = vshrl.u32 %v2027, 16
        %v2040 = vrot.slane %v2038, 4
        %v2041 = vshll.u32 %v2027, 16
        %v2043 = vrot.slane %v2041, 5
        %v2044 = vor.u32 %v2040, %v2043
        %v2045 = vrot.slane %v2044, 4
        %v2047 = vshrl.u32 %v2028, 16
        %v2049 = vrot.slane %v2047, 4
        %v2050 = vshll.u32 %v2028, 16
        %v2052 = vrot.slane %v2050, 5
        %v2053 = vor.u32 %v2049, %v2052
        %v2054 = vrot.slane %v2053, 4
        %v2056 = vshrl.u32 %v2029, 16
        %v2058 = vrot.slane %v2056, 4
        %v2059 = vshll.u32 %v2029, 16
        %v2061 = vrot.slane %v2059, 5
        %v2062 = vor.u32 %v2058, %v2061
        %v2063 = vrot.slane %v2062, 4
        %v2065 = vshrl.u32 %v2030, 16
        %v2067 = vrot.slane %v2065, 4
        %v2068 = vshll.u32 %v2030, 16
        %v2070 = vrot.slane %v2068, 5
        %v2071 = vor.u32 %v2067, %v2070
        %v2072 = vrot.slane %v2071, 4
        %v2074 = vshrl.u32 %v2031, 16
        %v2076 = vrot.slane %v2074, 4
        %v2077 = vshll.u32 %v2031, 16
        %v2079 = vrot.slane %v2077, 5
        %v2080 = vor.u32 %v2076, %v2079
        %v2081 = vrot.slane %v2080, 4
        %v2083 = vshrl.u32 %v2032, 16
        %v2085 = vrot.slane %v2083, 4
        %v2086 = vshll.u32 %v2032, 16
        %v2088 = vrot.slane %v2086, 5
        %v2089 = vor.u32 %v2085, %v2088
        %v2090 = vrot.slane %v2089, 4
        %v2092 = vshrl.u32 %v2033, 16
        %v2094 = vrot.slane %v2092, 4
        %v2095 = vshll.u32 %v2033, 16
        %v2097 = vrot.slane %v2095, 5
        %v2098 = vor.u32 %v2094, %v2097
        %v2099 = vrot.slane %v2098, 4
        %v2101 = vshrl.u32 %v2034, 16
        %v2103 = vrot.slane %v2101, 4
        %v2104 = vshll.u32 %v2034, 16
        %v2106 = vrot.slane %v2104, 5
        %v2107 = vor.u32 %v2103, %v2106
        %v2108 = vrot.slane %v2107, 4
        %v2110 = vshrl.u32 %v2035, 16
        %v2112 = vrot.slane %v2110, 4
        %v2113 = vshll.u32 %v2035, 16
        %v2115 = vrot.slane %v2113, 5
        %v2116 = vor.u32 %v2112, %v2115
        %v2117 = vrot.slane %v2116, 4
        %v2119 = vshrl.u32 %v2036, 16
        %v2121 = vrot.slane %v2119, 4
        %v2122 = vshll.u32 %v2036, 16
        %v2124 = vrot.slane %v2122, 5
        %v2125 = vor.u32 %v2121, %v2124
        %v2126 = vrot.slane %v2125, 4
        %2127 = vrot.lane.b32.xlu0 %v2045, 16
        %v2128 = vpop.permute.xlu0 %2127
        %2129 = vrot.lane.b32.xlu0 %v2054, 16
        %v2130 = vpop.permute.xlu0 %2129
        %2131 = vrot.lane.b32.xlu0 %v2063, 16
        %v2132 = vpop.permute.xlu0 %2131
        %2133 = vrot.lane.b32.xlu0 %v2072, 16
        %v2134 = vpop.permute.xlu0 %2133
        %2135 = vrot.lane.b32.xlu0 %v2081, 16
        %v2136 = vpop.permute.xlu0 %2135
        %2137 = vrot.lane.b32.xlu0 %v2090, 16
        %v2138 = vpop.permute.xlu0 %2137
        %2139 = vrot.lane.b32.xlu0 %v2099, 16
        %v2140 = vpop.permute.xlu0 %2139
        %2141 = vrot.lane.b32.xlu0 %v2108, 16
        %v2142 = vpop.permute.xlu0 %2141
        %2143 = vrot.lane.b32.xlu0 %v2117, 16
        %v2144 = vpop.permute.xlu0 %2143
        %2145 = vrot.lane.b32.xlu0 %v2126, 16
        %v2146 = vpop.permute.xlu0 %2145
        %vm2157 = vcmask 190592
        %vm2158 = vmand %vm2157, %vm1913
        %v2159 = vld [vmem:[#allocation3] sm:$0x7]
        %v2160 = vsel %vm2158, %v2128, %v2159
        %2161 = vst [vmem:[#allocation3] sm:$0x7] %v2160
        %v2162 = vld [vmem:[#allocation3 + $0x8] sm:$0x7]
        %v2163 = vsel %vm2158, %v2130, %v2162
        %2164 = vst [vmem:[#allocation3 + $0x8] sm:$0x7] %v2163
        %v2165 = vld [vmem:[#allocation3 + $0x10] sm:$0x7]
        %v2166 = vsel %vm2158, %v2132, %v2165
        %2167 = vst [vmem:[#allocation3 + $0x10] sm:$0x7] %v2166
        %v2168 = vld [vmem:[#allocation3 + $0x18] sm:$0x7]
        %v2169 = vsel %vm2158, %v2134, %v2168
        %2170 = vst [vmem:[#allocation3 + $0x18] sm:$0x7] %v2169
        %v2171 = vld [vmem:[#allocation3 + $0x20] sm:$0x7]
        %v2172 = vsel %vm2158, %v2136, %v2171
        %2173 = vst [vmem:[#allocation3 + $0x20] sm:$0x7] %v2172
        %v2174 = vld [vmem:[#allocation3 + $0x28] sm:$0x7]
        %v2175 = vsel %vm2158, %v2138, %v2174
        %2176 = vst [vmem:[#allocation3 + $0x28] sm:$0x7] %v2175
        %v2177 = vld [vmem:[#allocation3 + $0x30] sm:$0x7]
        %v2178 = vsel %vm2158, %v2140, %v2177
        %2179 = vst [vmem:[#allocation3 + $0x30] sm:$0x7] %v2178
        %v2180 = vld [vmem:[#allocation3 + $0x38] sm:$0x7]
        %v2181 = vsel %vm2158, %v2142, %v2180
        %2182 = vst [vmem:[#allocation3 + $0x38] sm:$0x7] %v2181
        %v2183 = vld [vmem:[#allocation3 + $0x40] sm:$0x7]
        %v2184 = vsel %vm2158, %v2144, %v2183
        %2185 = vst [vmem:[#allocation3 + $0x40] sm:$0x7] %v2184
        %v2186 = vld [vmem:[#allocation3 + $0x48] sm:$0x7]
        %v2187 = vsel %vm2158, %v2146, %v2186
        %2188 = vst [vmem:[#allocation3 + $0x48] sm:$0x7] %v2187
        %v2189 = vld [vmem:[%s1849] sm:$0x7]
        %v2190 = vld [vmem:[%s1849 + $0x4] sm:$0x7]
        %v2191 = vld [vmem:[%s1849 + $0x8] sm:$0x7]
        %v2192 = vld [vmem:[%s1849 + $0xc] sm:$0x7]
        %v2193 = vld [vmem:[%s1849 + $0x10] sm:$0x7]
        %v2194 = vld [vmem:[%s1849 + $0x14] sm:$0x7]
        %v2195 = vld [vmem:[%s1849 + $0x18] sm:$0x7]
        %v2196 = vld [vmem:[%s1849 + $0x1c] sm:$0x7]
        %v2197 = vld [vmem:[%s1849 + $0x20] sm:$0x7]
        %v2198 = vld [vmem:[%s1849 + $0x24] sm:$0x7]
        %v2200 = vshrl.u32 %v2189, 16
        %v2202 = vrot.slane %v2200, 4
        %v2203 = vshll.u32 %v2189, 16
        %v2205 = vrot.slane %v2203, 5
        %v2206 = vor.u32 %v2202, %v2205
        %v2207 = vrot.slane %v2206, 4
        %v2209 = vshrl.u32 %v2190, 16
        %v2211 = vrot.slane %v2209, 4
        %v2212 = vshll.u32 %v2190, 16
        %v2214 = vrot.slane %v2212, 5
        %v2215 = vor.u32 %v2211, %v2214
        %v2216 = vrot.slane %v2215, 4
        %v2218 = vshrl.u32 %v2191, 16
        %v2220 = vrot.slane %v2218, 4
        %v2221 = vshll.u32 %v2191, 16
        %v2223 = vrot.slane %v2221, 5
        %v2224 = vor.u32 %v2220, %v2223
        %v2225 = vrot.slane %v2224, 4
        %v2227 = vshrl.u32 %v2192, 16
        %v2229 = vrot.slane %v2227, 4
        %v2230 = vshll.u32 %v2192, 16
        %v2232 = vrot.slane %v2230, 5
        %v2233 = vor.u32 %v2229, %v2232
        %v2234 = vrot.slane %v2233, 4
        %v2236 = vshrl.u32 %v2193, 16
        %v2238 = vrot.slane %v2236, 4
        %v2239 = vshll.u32 %v2193, 16
        %v2241 = vrot.slane %v2239, 5
        %v2242 = vor.u32 %v2238, %v2241
        %v2243 = vrot.slane %v2242, 4
        %v2245 = vshrl.u32 %v2194, 16
        %v2247 = vrot.slane %v2245, 4
        %v2248 = vshll.u32 %v2194, 16
        %v2250 = vrot.slane %v2248, 5
        %v2251 = vor.u32 %v2247, %v2250
        %v2252 = vrot.slane %v2251, 4
        %v2254 = vshrl.u32 %v2195, 16
        %v2256 = vrot.slane %v2254, 4
        %v2257 = vshll.u32 %v2195, 16
        %v2259 = vrot.slane %v2257, 5
        %v2260 = vor.u32 %v2256, %v2259
        %v2261 = vrot.slane %v2260, 4
        %v2263 = vshrl.u32 %v2196, 16
        %v2265 = vrot.slane %v2263, 4
        %v2266 = vshll.u32 %v2196, 16
        %v2268 = vrot.slane %v2266, 5
        %v2269 = vor.u32 %v2265, %v2268
        %v2270 = vrot.slane %v2269, 4
        %v2272 = vshrl.u32 %v2197, 16
        %v2274 = vrot.slane %v2272, 4
        %v2275 = vshll.u32 %v2197, 16
        %v2277 = vrot.slane %v2275, 5
        %v2278 = vor.u32 %v2274, %v2277
        %v2279 = vrot.slane %v2278, 4
        %v2281 = vshrl.u32 %v2198, 16
        %v2283 = vrot.slane %v2281, 4
        %v2284 = vshll.u32 %v2198, 16
        %v2286 = vrot.slane %v2284, 5
        %v2287 = vor.u32 %v2283, %v2286
        %v2288 = vrot.slane %v2287, 4
        %2289 = vrot.lane.b32.xlu0 %v2207, 24
        %v2290 = vpop.permute.xlu0 %2289
        %2291 = vrot.lane.b32.xlu0 %v2216, 24
        %v2292 = vpop.permute.xlu0 %2291
        %2293 = vrot.lane.b32.xlu0 %v2225, 24
        %v2294 = vpop.permute.xlu0 %2293
        %2295 = vrot.lane.b32.xlu0 %v2234, 24
        %v2296 = vpop.permute.xlu0 %2295
        %2297 = vrot.lane.b32.xlu0 %v2243, 24
        %v2298 = vpop.permute.xlu0 %2297
        %2299 = vrot.lane.b32.xlu0 %v2252, 24
        %v2300 = vpop.permute.xlu0 %2299
        %2301 = vrot.lane.b32.xlu0 %v2261, 24
        %v2302 = vpop.permute.xlu0 %2301
        %2303 = vrot.lane.b32.xlu0 %v2270, 24
        %v2304 = vpop.permute.xlu0 %2303
        %2305 = vrot.lane.b32.xlu0 %v2279, 24
        %v2306 = vpop.permute.xlu0 %2305
        %2307 = vrot.lane.b32.xlu0 %v2288, 24
        %v2308 = vpop.permute.xlu0 %2307
        %vm2319 = vcmask 256192
        %vm2320 = vmand %vm2319, %vm1913
        %v2321 = vld [vmem:[#allocation3] sm:$0x7]
        %v2322 = vsel %vm2320, %v2290, %v2321
        %2323 = vst [vmem:[#allocation3] sm:$0x7] %v2322
        %v2324 = vld [vmem:[#allocation3 + $0x8] sm:$0x7]
        %v2325 = vsel %vm2320, %v2292, %v2324
        %2326 = vst [vmem:[#allocation3 + $0x8] sm:$0x7] %v2325
        %v2327 = vld [vmem:[#allocation3 + $0x10] sm:$0x7]
        %v2328 = vsel %vm2320, %v2294, %v2327
        %2329 = vst [vmem:[#allocation3 + $0x10] sm:$0x7] %v2328
        %v2330 = vld [vmem:[#allocation3 + $0x18] sm:$0x7]
        %v2331 = vsel %vm2320, %v2296, %v2330
        %2332 = vst [vmem:[#allocation3 + $0x18] sm:$0x7] %v2331
        %v2333 = vld [vmem:[#allocation3 + $0x20] sm:$0x7]
        %v2334 = vsel %vm2320, %v2298, %v2333
        %2335 = vst [vmem:[#allocation3 + $0x20] sm:$0x7] %v2334
        %v2336 = vld [vmem:[#allocation3 + $0x28] sm:$0x7]
        %v2337 = vsel %vm2320, %v2300, %v2336
        %2338 = vst [vmem:[#allocation3 + $0x28] sm:$0x7] %v2337
        %v2339 = vld [vmem:[#allocation3 + $0x30] sm:$0x7]
        %v2340 = vsel %vm2320, %v2302, %v2339
        %2341 = vst [vmem:[#allocation3 + $0x30] sm:$0x7] %v2340
        %v2342 = vld [vmem:[#allocation3 + $0x38] sm:$0x7]
        %v2343 = vsel %vm2320, %v2304, %v2342
        %2344 = vst [vmem:[#allocation3 + $0x38] sm:$0x7] %v2343
        %v2345 = vld [vmem:[#allocation3 + $0x40] sm:$0x7]
        %v2346 = vsel %vm2320, %v2306, %v2345
        %2347 = vst [vmem:[#allocation3 + $0x40] sm:$0x7] %v2346
        %v2348 = vld [vmem:[#allocation3 + $0x48] sm:$0x7]
        %v2349 = vsel %vm2320, %v2308, %v2348
        %2350 = vst [vmem:[#allocation3 + $0x48] sm:$0x7] %v2349
        %v2351 = vld [vmem:[#allocation2] sm:$0xe]
        %v2352 = vld [vmem:[#allocation2 + $0x4] sm:$0xe]
        %v2353 = vld [vmem:[#allocation2 + $0x8] sm:$0xe]
        %v2354 = vld [vmem:[#allocation2 + $0xc] sm:$0xe]
        %v2355 = vld [vmem:[#allocation2 + $0x10] sm:$0xe]
        %v2356 = vld [vmem:[#allocation2 + $0x14] sm:$0xe]
        %v2357 = vld [vmem:[#allocation2 + $0x18] sm:$0xe]
        %v2358 = vld [vmem:[#allocation2 + $0x1c] sm:$0xe]
        %v2359 = vld [vmem:[#allocation2 + $0x20] sm:$0xe]
        %v2360 = vld [vmem:[#allocation2 + $0x24] sm:$0xe]
        %v2371 = vrot.slane %v2351, 5
        %v2372 = vrot.slane %v2371, 4
        %v2373 = vrot.slane %v2352, 5
        %v2374 = vrot.slane %v2373, 4
        %v2375 = vrot.slane %v2353, 5
        %v2376 = vrot.slane %v2375, 4
        %v2377 = vrot.slane %v2354, 5
        %v2378 = vrot.slane %v2377, 4
        %v2379 = vrot.slane %v2355, 5
        %v2380 = vrot.slane %v2379, 4
        %v2381 = vrot.slane %v2356, 5
        %v2382 = vrot.slane %v2381, 4
        %v2383 = vrot.slane %v2357, 5
        %v2384 = vrot.slane %v2383, 4
        %v2385 = vrot.slane %v2358, 5
        %v2386 = vrot.slane %v2385, 4
        %v2387 = vrot.slane %v2359, 5
        %v2388 = vrot.slane %v2387, 4
        %v2389 = vrot.slane %v2360, 5
        %v2390 = vrot.slane %v2389, 4
        %2391 = vrot.lane.b32.xlu0 %v2372, 32
        %v2392 = vpop.permute.xlu0 %2391
        %2393 = vrot.lane.b32.xlu0 %v2374, 32
        %v2394 = vpop.permute.xlu0 %2393
        %2395 = vrot.lane.b32.xlu0 %v2376, 32
        %v2396 = vpop.permute.xlu0 %2395
        %2397 = vrot.lane.b32.xlu0 %v2378, 32
        %v2398 = vpop.permute.xlu0 %2397
        %2399 = vrot.lane.b32.xlu0 %v2380, 32
        %v2400 = vpop.permute.xlu0 %2399
        %2401 = vrot.lane.b32.xlu0 %v2382, 32
        %v2402 = vpop.permute.xlu0 %2401
        %2403 = vrot.lane.b32.xlu0 %v2384, 32
        %v2404 = vpop.permute.xlu0 %2403
        %2405 = vrot.lane.b32.xlu0 %v2386, 32
        %v2406 = vpop.permute.xlu0 %2405
        %2407 = vrot.lane.b32.xlu0 %v2388, 32
        %v2408 = vpop.permute.xlu0 %2407
        %2409 = vrot.lane.b32.xlu0 %v2390, 32
        %v2410 = vpop.permute.xlu0 %2409
        %vm2421 = vcmask 321792
        %vm2422 = vmand %vm2421, %vm1913
        %v2423 = vld [vmem:[#allocation3] sm:$0x7]
        %v2424 = vsel %vm2422, %v2392, %v2423
        %2425 = vst [vmem:[#allocation3] sm:$0x7] %v2424
        %v2426 = vld [vmem:[#allocation3 + $0x8] sm:$0x7]
        %v2427 = vsel %vm2422, %v2394, %v2426
        %2428 = vst [vmem:[#allocation3 + $0x8] sm:$0x7] %v2427
        %v2429 = vld [vmem:[#allocation3 + $0x10] sm:$0x7]
        %v2430 = vsel %vm2422, %v2396, %v2429
        %2431 = vst [vmem:[#allocation3 + $0x10] sm:$0x7] %v2430
        %v2432 = vld [vmem:[#allocation3 + $0x18] sm:$0x7]
        %v2433 = vsel %vm2422, %v2398, %v2432
        %2434 = vst [vmem:[#allocation3 + $0x18] sm:$0x7] %v2433
        %v2435 = vld [vmem:[#allocation3 + $0x20] sm:$0x7]
        %v2436 = vsel %vm2422, %v2400, %v2435
        %2437 = vst [vmem:[#allocation3 + $0x20] sm:$0x7] %v2436
        %v2438 = vld [vmem:[#allocation3 + $0x28] sm:$0x7]
        %v2439 = vsel %vm2422, %v2402, %v2438
        %2440 = vst [vmem:[#allocation3 + $0x28] sm:$0x7] %v2439
        %v2441 = vld [vmem:[#allocation3 + $0x30] sm:$0x7]
        %v2442 = vsel %vm2422, %v2404, %v2441
        %2443 = vst [vmem:[#allocation3 + $0x30] sm:$0x7] %v2442
        %v2444 = vld [vmem:[#allocation3 + $0x38] sm:$0x7]
        %v2445 = vsel %vm2422, %v2406, %v2444
        %2446 = vst [vmem:[#allocation3 + $0x38] sm:$0x7] %v2445
        %v2447 = vld [vmem:[#allocation3 + $0x40] sm:$0x7]
        %v2448 = vsel %vm2422, %v2408, %v2447
        %2449 = vst [vmem:[#allocation3 + $0x40] sm:$0x7] %v2448
        %v2450 = vld [vmem:[#allocation3 + $0x48] sm:$0x7]
        %v2451 = vsel %vm2422, %v2410, %v2450
        %2452 = vst [vmem:[#allocation3 + $0x48] sm:$0x7] %v2451
        %s2453 = scalar_lea.vmem [#allocation2], 4
        %v2454 = vld [vmem:[%s2453] sm:$0x7]
        %v2455 = vld [vmem:[%s2453 + $0x4] sm:$0x7]
        %v2456 = vld [vmem:[%s2453 + $0x8] sm:$0x7]
        %v2457 = vld [vmem:[%s2453 + $0xc] sm:$0x7]
        %v2458 = vld [vmem:[%s2453 + $0x10] sm:$0x7]
        %v2459 = vld [vmem:[%s2453 + $0x14] sm:$0x7]
        %v2460 = vld [vmem:[%s2453 + $0x18] sm:$0x7]
        %v2461 = vld [vmem:[%s2453 + $0x1c] sm:$0x7]
        %v2462 = vld [vmem:[%s2453 + $0x20] sm:$0x7]
        %v2463 = vld [vmem:[%s2453 + $0x24] sm:$0x7]
        %2474 = vrot.lane.b32.xlu0 %v2454, 40
        %v2475 = vpop.permute.xlu0 %2474
        %2476 = vrot.lane.b32.xlu0 %v2455, 40
        %v2477 = vpop.permute.xlu0 %2476
        %2478 = vrot.lane.b32.xlu0 %v2456, 40
        %v2479 = vpop.permute.xlu0 %2478
        %2480 = vrot.lane.b32.xlu0 %v2457, 40
        %v2481 = vpop.permute.xlu0 %2480
        %2482 = vrot.lane.b32.xlu0 %v2458, 40
        %v2483 = vpop.permute.xlu0 %2482
        %2484 = vrot.lane.b32.xlu0 %v2459, 40
        %v2485 = vpop.permute.xlu0 %2484
        %2486 = vrot.lane.b32.xlu0 %v2460, 40
        %v2487 = vpop.permute.xlu0 %2486
        %2488 = vrot.lane.b32.xlu0 %v2461, 40
        %v2489 = vpop.permute.xlu0 %2488
        %2490 = vrot.lane.b32.xlu0 %v2462, 40
        %v2491 = vpop.permute.xlu0 %2490
        %2492 = vrot.lane.b32.xlu0 %v2463, 40
        %v2493 = vpop.permute.xlu0 %2492
        %vm2504 = vcmask 387392
        %vm2505 = vmand %vm2504, %vm1913
        %v2506 = vld [vmem:[#allocation3] sm:$0x7]
        %v2507 = vsel %vm2505, %v2475, %v2506
        %2508 = vst [vmem:[#allocation3] sm:$0x7] %v2507
        %v2509 = vld [vmem:[#allocation3 + $0x8] sm:$0x7]
        %v2510 = vsel %vm2505, %v2477, %v2509
        %2511 = vst [vmem:[#allocation3 + $0x8] sm:$0x7] %v2510
        %v2512 = vld [vmem:[#allocation3 + $0x10] sm:$0x7]
        %v2513 = vsel %vm2505, %v2479, %v2512
        %2514 = vst [vmem:[#allocation3 + $0x10] sm:$0x7] %v2513
        %v2515 = vld [vmem:[#allocation3 + $0x18] sm:$0x7]
        %v2516 = vsel %vm2505, %v2481, %v2515
        %2517 = vst [vmem:[#allocation3 + $0x18] sm:$0x7] %v2516
        %v2518 = vld [vmem:[#allocation3 + $0x20] sm:$0x7]
        %v2519 = vsel %vm2505, %v2483, %v2518
        %2520 = vst [vmem:[#allocation3 + $0x20] sm:$0x7] %v2519
        %v2521 = vld [vmem:[#allocation3 + $0x28] sm:$0x7]
        %v2522 = vsel %vm2505, %v2485, %v2521
        %2523 = vst [vmem:[#allocation3 + $0x28] sm:$0x7] %v2522
        %v2524 = vld [vmem:[#allocation3 + $0x30] sm:$0x7]
        %v2525 = vsel %vm2505, %v2487, %v2524
        %2526 = vst [vmem:[#allocation3 + $0x30] sm:$0x7] %v2525
        %v2527 = vld [vmem:[#allocation3 + $0x38] sm:$0x7]
        %v2528 = vsel %vm2505, %v2489, %v2527
        %2529 = vst [vmem:[#allocation3 + $0x38] sm:$0x7] %v2528
        %v2530 = vld [vmem:[#allocation3 + $0x40] sm:$0x7]
        %v2531 = vsel %vm2505, %v2491, %v2530
        %2532 = vst [vmem:[#allocation3 + $0x40] sm:$0x7] %v2531
        %v2533 = vld [vmem:[#allocation3 + $0x48] sm:$0x7]
        %v2534 = vsel %vm2505, %v2493, %v2533
        %2535 = vst [vmem:[#allocation3 + $0x48] sm:$0x7] %v2534
        %s2536 = scalar_lea.vmem [#allocation2], 60
        %v2537 = vld [vmem:[%s2536] sm:$0x7]
        %v2538 = vld [vmem:[%s2536 + $0x4] sm:$0x7]
        %v2539 = vld [vmem:[%s2536 + $0x8] sm:$0x7]
        %v2540 = vld [vmem:[%s2536 + $0xc] sm:$0x7]
        %v2541 = vld [vmem:[%s2536 + $0x10] sm:$0x7]
        %v2542 = vld [vmem:[%s2536 + $0x14] sm:$0x7]
        %v2543 = vld [vmem:[%s2536 + $0x18] sm:$0x7]
        %v2544 = vld [vmem:[%s2536 + $0x1c] sm:$0x7]
        %v2545 = vld [vmem:[%s2536 + $0x20] sm:$0x7]
        %v2546 = vld [vmem:[%s2536 + $0x24] sm:$0x7]
        %2557 = vrot.lane.b32.xlu0 %v2537, 48
        %v2558 = vpop.permute.xlu0 %2557
        %2559 = vrot.lane.b32.xlu0 %v2538, 48
        %v2560 = vpop.permute.xlu0 %2559
        %2561 = vrot.lane.b32.xlu0 %v2539, 48
        %v2562 = vpop.permute.xlu0 %2561
        %2563 = vrot.lane.b32.xlu0 %v2540, 48
        %v2564 = vpop.permute.xlu0 %2563
        %2565 = vrot.lane.b32.xlu0 %v2541, 48
        %v2566 = vpop.permute.xlu0 %2565
        %2567 = vrot.lane.b32.xlu0 %v2542, 48
        %v2568 = vpop.permute.xlu0 %2567
        %2569 = vrot.lane.b32.xlu0 %v2543, 48
        %v2570 = vpop.permute.xlu0 %2569
        %2571 = vrot.lane.b32.xlu0 %v2544, 48
        %v2572 = vpop.permute.xlu0 %2571
        %2573 = vrot.lane.b32.xlu0 %v2545, 48
        %v2574 = vpop.permute.xlu0 %2573
        %2575 = vrot.lane.b32.xlu0 %v2546, 48
        %v2576 = vpop.permute.xlu0 %2575
        %vm2587 = vcmask 452992
        %vm2588 = vmand %vm2587, %vm1913
        %v2589 = vld [vmem:[#allocation3] sm:$0x7]
        %v2590 = vsel %vm2588, %v2558, %v2589
        %2591 = vst [vmem:[#allocation3] sm:$0x7] %v2590
        %v2592 = vld [vmem:[#allocation3 + $0x8] sm:$0x7]
        %v2593 = vsel %vm2588, %v2560, %v2592
        %2594 = vst [vmem:[#allocation3 + $0x8] sm:$0x7] %v2593
        %v2595 = vld [vmem:[#allocation3 + $0x10] sm:$0x7]
        %v2596 = vsel %vm2588, %v2562, %v2595
        %2597 = vst [vmem:[#allocation3 + $0x10] sm:$0x7] %v2596
        %v2598 = vld [vmem:[#allocation3 + $0x18] sm:$0x7]
        %v2599 = vsel %vm2588, %v2564, %v2598
        %2600 = vst [vmem:[#allocation3 + $0x18] sm:$0x7] %v2599
        %v2601 = vld [vmem:[#allocation3 + $0x20] sm:$0x7]
        %v2602 = vsel %vm2588, %v2566, %v2601
        %2603 = vst [vmem:[#allocation3 + $0x20] sm:$0x7] %v2602
        %v2604 = vld [vmem:[#allocation3 + $0x28] sm:$0x7]
        %v2605 = vsel %vm2588, %v2568, %v2604
        %2606 = vst [vmem:[#allocation3 + $0x28] sm:$0x7] %v2605
        %v2607 = vld [vmem:[#allocation3 + $0x30] sm:$0x7]
        %v2608 = vsel %vm2588, %v2570, %v2607
        %2609 = vst [vmem:[#allocation3 + $0x30] sm:$0x7] %v2608
        %v2610 = vld [vmem:[#allocation3 + $0x38] sm:$0x7]
        %v2611 = vsel %vm2588, %v2572, %v2610
        %2612 = vst [vmem:[#allocation3 + $0x38] sm:$0x7] %v2611
        %v2613 = vld [vmem:[#allocation3 + $0x40] sm:$0x7]
        %v2614 = vsel %vm2588, %v2574, %v2613
        %2615 = vst [vmem:[#allocation3 + $0x40] sm:$0x7] %v2614
        %v2616 = vld [vmem:[#allocation3 + $0x48] sm:$0x7]
        %v2617 = vsel %vm2588, %v2576, %v2616
        %2618 = vst [vmem:[#allocation3 + $0x48] sm:$0x7] %v2617
        %v2619 = vld [vmem:[%s2453] sm:$0x7]
        %v2620 = vld [vmem:[%s2453 + $0x4] sm:$0x7]
        %v2621 = vld [vmem:[%s2453 + $0x8] sm:$0x7]
        %v2622 = vld [vmem:[%s2453 + $0xc] sm:$0x7]
        %v2623 = vld [vmem:[%s2453 + $0x10] sm:$0x7]
        %v2624 = vld [vmem:[%s2453 + $0x14] sm:$0x7]
        %v2625 = vld [vmem:[%s2453 + $0x18] sm:$0x7]
        %v2626 = vld [vmem:[%s2453 + $0x1c] sm:$0x7]
        %v2627 = vld [vmem:[%s2453 + $0x20] sm:$0x7]
        %v2628 = vld [vmem:[%s2453 + $0x24] sm:$0x7]
        %v2630 = vshrl.u32 %v2619, 16
        %v2632 = vrot.slane %v2630, 4
        %v2633 = vshll.u32 %v2619, 16
        %v2635 = vrot.slane %v2633, 5
        %v2636 = vor.u32 %v2632, %v2635
        %v2637 = vrot.slane %v2636, 4
        %v2639 = vshrl.u32 %v2620, 16
        %v2641 = vrot.slane %v2639, 4
        %v2642 = vshll.u32 %v2620, 16
        %v2644 = vrot.slane %v2642, 5
        %v2645 = vor.u32 %v2641, %v2644
        %v2646 = vrot.slane %v2645, 4
        %v2648 = vshrl.u32 %v2621, 16
        %v2650 = vrot.slane %v2648, 4
        %v2651 = vshll.u32 %v2621, 16
        %v2653 = vrot.slane %v2651, 5
        %v2654 = vor.u32 %v2650, %v2653
        %v2655 = vrot.slane %v2654, 4
        %v2657 = vshrl.u32 %v2622, 16
        %v2659 = vrot.slane %v2657, 4
        %v2660 = vshll.u32 %v2622, 16
        %v2662 = vrot.slane %v2660, 5
        %v2663 = vor.u32 %v2659, %v2662
        %v2664 = vrot.slane %v2663, 4
        %v2666 = vshrl.u32 %v2623, 16
        %v2668 = vrot.slane %v2666, 4
        %v2669 = vshll.u32 %v2623, 16
        %v2671 = vrot.slane %v2669, 5
        %v2672 = vor.u32 %v2668, %v2671
        %v2673 = vrot.slane %v2672, 4
        %v2675 = vshrl.u32 %v2624, 16
        %v2677 = vrot.slane %v2675, 4
        %v2678 = vshll.u32 %v2624, 16
        %v2680 = vrot.slane %v2678, 5
        %v2681 = vor.u32 %v2677, %v2680
        %v2682 = vrot.slane %v2681, 4
        %v2684 = vshrl.u32 %v2625, 16
        %v2686 = vrot.slane %v2684, 4
        %v2687 = vshll.u32 %v2625, 16
        %v2689 = vrot.slane %v2687, 5
        %v2690 = vor.u32 %v2686, %v2689
        %v2691 = vrot.slane %v2690, 4
        %v2693 = vshrl.u32 %v2626, 16
        %v2695 = vrot.slane %v2693, 4
        %v2696 = vshll.u32 %v2626, 16
        %v2698 = vrot.slane %v2696, 5
        %v2699 = vor.u32 %v2695, %v2698
        %v2700 = vrot.slane %v2699, 4
        %v2702 = vshrl.u32 %v2627, 16
        %v2704 = vrot.slane %v2702, 4
        %v2705 = vshll.u32 %v2627, 16
        %v2707 = vrot.slane %v2705, 5
        %v2708 = vor.u32 %v2704, %v2707
        %v2709 = vrot.slane %v2708, 4
        %v2711 = vshrl.u32 %v2628, 16
        %v2713 = vrot.slane %v2711, 4
        %v2714 = vshll.u32 %v2628, 16
        %v2716 = vrot.slane %v2714, 5
        %v2717 = vor.u32 %v2713, %v2716
        %v2718 = vrot.slane %v2717, 4
        %2719 = vrot.lane.b32.xlu0 %v2637, 56
        %v2720 = vpop.permute.xlu0 %2719
        %2721 = vrot.lane.b32.xlu0 %v2646, 56
        %v2722 = vpop.permute.xlu0 %2721
        %2723 = vrot.lane.b32.xlu0 %v2655, 56
        %v2724 = vpop.permute.xlu0 %2723
        %2725 = vrot.lane.b32.xlu0 %v2664, 56
        %v2726 = vpop.permute.xlu0 %2725
        %2727 = vrot.lane.b32.xlu0 %v2673, 56
        %v2728 = vpop.permute.xlu0 %2727
        %2729 = vrot.lane.b32.xlu0 %v2682, 56
        %v2730 = vpop.permute.xlu0 %2729
        %2731 = vrot.lane.b32.xlu0 %v2691, 56
        %v2732 = vpop.permute.xlu0 %2731
        %2733 = vrot.lane.b32.xlu0 %v2700, 56
        %v2734 = vpop.permute.xlu0 %2733
        %2735 = vrot.lane.b32.xlu0 %v2709, 56
        %v2736 = vpop.permute.xlu0 %2735
        %2737 = vrot.lane.b32.xlu0 %v2718, 56
        %v2738 = vpop.permute.xlu0 %2737
        %vm2749 = vcmask 518592
        %vm2750 = vmand %vm2749, %vm1913
        %v2751 = vld [vmem:[#allocation3] sm:$0x7]
        %v2752 = vsel %vm2750, %v2720, %v2751
        %2753 = vst [vmem:[#allocation3] sm:$0x7] %v2752
        %v2754 = vld [vmem:[#allocation3 + $0x8] sm:$0x7]
        %v2755 = vsel %vm2750, %v2722, %v2754
        %2756 = vst [vmem:[#allocation3 + $0x8] sm:$0x7] %v2755
        %v2757 = vld [vmem:[#allocation3 + $0x10] sm:$0x7]
        %v2758 = vsel %vm2750, %v2724, %v2757
        %2759 = vst [vmem:[#allocation3 + $0x10] sm:$0x7] %v2758
        %v2760 = vld [vmem:[#allocation3 + $0x18] sm:$0x7]
        %v2761 = vsel %vm2750, %v2726, %v2760
        %2762 = vst [vmem:[#allocation3 + $0x18] sm:$0x7] %v2761
        %v2763 = vld [vmem:[#allocation3 + $0x20] sm:$0x7]
        %v2764 = vsel %vm2750, %v2728, %v2763
        %2765 = vst [vmem:[#allocation3 + $0x20] sm:$0x7] %v2764
        %v2766 = vld [vmem:[#allocation3 + $0x28] sm:$0x7]
        %v2767 = vsel %vm2750, %v2730, %v2766
        %2768 = vst [vmem:[#allocation3 + $0x28] sm:$0x7] %v2767
        %v2769 = vld [vmem:[#allocation3 + $0x30] sm:$0x7]
        %v2770 = vsel %vm2750, %v2732, %v2769
        %2771 = vst [vmem:[#allocation3 + $0x30] sm:$0x7] %v2770
        %v2772 = vld [vmem:[#allocation3 + $0x38] sm:$0x7]
        %v2773 = vsel %vm2750, %v2734, %v2772
        %2774 = vst [vmem:[#allocation3 + $0x38] sm:$0x7] %v2773
        %v2775 = vld [vmem:[#allocation3 + $0x40] sm:$0x7]
        %v2776 = vsel %vm2750, %v2736, %v2775
        %2777 = vst [vmem:[#allocation3 + $0x40] sm:$0x7] %v2776
        %v2778 = vld [vmem:[#allocation3 + $0x48] sm:$0x7]
        %v2779 = vsel %vm2750, %v2738, %v2778
        %2780 = vst [vmem:[#allocation3 + $0x48] sm:$0x7] %v2779
        %v2781 = vld [vmem:[%s2536] sm:$0x7]
        %v2782 = vld [vmem:[%s2536 + $0x4] sm:$0x7]
        %v2783 = vld [vmem:[%s2536 + $0x8] sm:$0x7]
        %v2784 = vld [vmem:[%s2536 + $0xc] sm:$0x7]
        %v2785 = vld [vmem:[%s2536 + $0x10] sm:$0x7]
        %v2786 = vld [vmem:[%s2536 + $0x14] sm:$0x7]
        %v2787 = vld [vmem:[%s2536 + $0x18] sm:$0x7]
        %v2788 = vld [vmem:[%s2536 + $0x1c] sm:$0x7]
        %v2789 = vld [vmem:[%s2536 + $0x20] sm:$0x7]
        %v2790 = vld [vmem:[%s2536 + $0x24] sm:$0x7]
        %v2792 = vshrl.u32 %v2781, 16
        %v2794 = vrot.slane %v2792, 4
        %v2795 = vshll.u32 %v2781, 16
        %v2797 = vrot.slane %v2795, 5
        %v2798 = vor.u32 %v2794, %v2797
        %v2799 = vrot.slane %v2798, 4
        %v2801 = vshrl.u32 %v2782, 16
        %v2803 = vrot.slane %v2801, 4
        %v2804 = vshll.u32 %v2782, 16
        %v2806 = vrot.slane %v2804, 5
        %v2807 = vor.u32 %v2803, %v2806
        %v2808 = vrot.slane %v2807, 4
        %v2810 = vshrl.u32 %v2783, 16
        %v2812 = vrot.slane %v2810, 4
        %v2813 = vshll.u32 %v2783, 16
        %v2815 = vrot.slane %v2813, 5
        %v2816 = vor.u32 %v2812, %v2815
        %v2817 = vrot.slane %v2816, 4
        %v2819 = vshrl.u32 %v2784, 16
        %v2821 = vrot.slane %v2819, 4
        %v2822 = vshll.u32 %v2784, 16
        %v2824 = vrot.slane %v2822, 5
        %v2825 = vor.u32 %v2821, %v2824
        %v2826 = vrot.slane %v2825, 4
        %v2828 = vshrl.u32 %v2785, 16
        %v2830 = vrot.slane %v2828, 4
        %v2831 = vshll.u32 %v2785, 16
        %v2833 = vrot.slane %v2831, 5
        %v2834 = vor.u32 %v2830, %v2833
        %v2835 = vrot.slane %v2834, 4
        %v2837 = vshrl.u32 %v2786, 16
        %v2839 = vrot.slane %v2837, 4
        %v2840 = vshll.u32 %v2786, 16
        %v2842 = vrot.slane %v2840, 5
        %v2843 = vor.u32 %v2839, %v2842
        %v2844 = vrot.slane %v2843, 4
        %v2846 = vshrl.u32 %v2787, 16
        %v2848 = vrot.slane %v2846, 4
        %v2849 = vshll.u32 %v2787, 16
        %v2851 = vrot.slane %v2849, 5
        %v2852 = vor.u32 %v2848, %v2851
        %v2853 = vrot.slane %v2852, 4
        %v2855 = vshrl.u32 %v2788, 16
        %v2857 = vrot.slane %v2855, 4
        %v2858 = vshll.u32 %v2788, 16
        %v2860 = vrot.slane %v2858, 5
        %v2861 = vor.u32 %v2857, %v2860
        %v2862 = vrot.slane %v2861, 4
        %v2864 = vshrl.u32 %v2789, 16
        %v2866 = vrot.slane %v2864, 4
        %v2867 = vshll.u32 %v2789, 16
        %v2869 = vrot.slane %v2867, 5
        %v2870 = vor.u32 %v2866, %v2869
        %v2871 = vrot.slane %v2870, 4
        %v2873 = vshrl.u32 %v2790, 16
        %v2875 = vrot.slane %v2873, 4
        %v2876 = vshll.u32 %v2790, 16
        %v2878 = vrot.slane %v2876, 5
        %v2879 = vor.u32 %v2875, %v2878
        %v2880 = vrot.slane %v2879, 4
        %2881 = vrot.lane.b32.xlu0 %v2799, 64
        %v2882 = vpop.permute.xlu0 %2881
        %2883 = vrot.lane.b32.xlu0 %v2808, 64
        %v2884 = vpop.permute.xlu0 %2883
        %2885 = vrot.lane.b32.xlu0 %v2817, 64
        %v2886 = vpop.permute.xlu0 %2885
        %2887 = vrot.lane.b32.xlu0 %v2826, 64
        %v2888 = vpop.permute.xlu0 %2887
        %2889 = vrot.lane.b32.xlu0 %v2835, 64
        %v2890 = vpop.permute.xlu0 %2889
        %2891 = vrot.lane.b32.xlu0 %v2844, 64
        %v2892 = vpop.permute.xlu0 %2891
        %2893 = vrot.lane.b32.xlu0 %v2853, 64
        %v2894 = vpop.permute.xlu0 %2893
        %2895 = vrot.lane.b32.xlu0 %v2862, 64
        %v2896 = vpop.permute.xlu0 %2895
        %2897 = vrot.lane.b32.xlu0 %v2871, 64
        %v2898 = vpop.permute.xlu0 %2897
        %2899 = vrot.lane.b32.xlu0 %v2880, 64
        %v2900 = vpop.permute.xlu0 %2899
        %vm2911 = vcmask 584192
        %vm2912 = vmand %vm2911, %vm1913
        %v2913 = vld [vmem:[#allocation3] sm:$0x7]
        %v2914 = vsel %vm2912, %v2882, %v2913
        %2915 = vst [vmem:[#allocation3] sm:$0x7] %v2914
        %v2916 = vld [vmem:[#allocation3 + $0x8] sm:$0x7]
        %v2917 = vsel %vm2912, %v2884, %v2916
        %2918 = vst [vmem:[#allocation3 + $0x8] sm:$0x7] %v2917
        %v2919 = vld [vmem:[#allocation3 + $0x10] sm:$0x7]
        %v2920 = vsel %vm2912, %v2886, %v2919
        %2921 = vst [vmem:[#allocation3 + $0x10] sm:$0x7] %v2920
        %v2922 = vld [vmem:[#allocation3 + $0x18] sm:$0x7]
        %v2923 = vsel %vm2912, %v2888, %v2922
        %2924 = vst [vmem:[#allocation3 + $0x18] sm:$0x7] %v2923
        %v2925 = vld [vmem:[#allocation3 + $0x20] sm:$0x7]
        %v2926 = vsel %vm2912, %v2890, %v2925
        %2927 = vst [vmem:[#allocation3 + $0x20] sm:$0x7] %v2926
        %v2928 = vld [vmem:[#allocation3 + $0x28] sm:$0x7]
        %v2929 = vsel %vm2912, %v2892, %v2928
        %2930 = vst [vmem:[#allocation3 + $0x28] sm:$0x7] %v2929
        %v2931 = vld [vmem:[#allocation3 + $0x30] sm:$0x7]
        %v2932 = vsel %vm2912, %v2894, %v2931
        %2933 = vst [vmem:[#allocation3 + $0x30] sm:$0x7] %v2932
        %v2934 = vld [vmem:[#allocation3 + $0x38] sm:$0x7]
        %v2935 = vsel %vm2912, %v2896, %v2934
        %2936 = vst [vmem:[#allocation3 + $0x38] sm:$0x7] %v2935
        %v2937 = vld [vmem:[#allocation3 + $0x40] sm:$0x7]
        %v2938 = vsel %vm2912, %v2898, %v2937
        %2939 = vst [vmem:[#allocation3 + $0x40] sm:$0x7] %v2938
        %v2940 = vld [vmem:[#allocation3 + $0x48] sm:$0x7]
        %v2941 = vsel %vm2912, %v2900, %v2940
        %2942 = vst [vmem:[#allocation3 + $0x48] sm:$0x7] %v2941
        %v2943 = vld [vmem:[%s2453] sm:$0xe]
        %v2944 = vld [vmem:[%s2453 + $0x4] sm:$0xe]
        %v2945 = vld [vmem:[%s2453 + $0x8] sm:$0xe]
        %v2946 = vld [vmem:[%s2453 + $0xc] sm:$0xe]
        %v2947 = vld [vmem:[%s2453 + $0x10] sm:$0xe]
        %v2948 = vld [vmem:[%s2453 + $0x14] sm:$0xe]
        %v2949 = vld [vmem:[%s2453 + $0x18] sm:$0xe]
        %v2950 = vld [vmem:[%s2453 + $0x1c] sm:$0xe]
        %v2951 = vld [vmem:[%s2453 + $0x20] sm:$0xe]
        %v2952 = vld [vmem:[%s2453 + $0x24] sm:$0xe]
        %v2963 = vrot.slane %v2943, 5
        %v2964 = vrot.slane %v2963, 4
        %v2965 = vrot.slane %v2944, 5
        %v2966 = vrot.slane %v2965, 4
        %v2967 = vrot.slane %v2945, 5
        %v2968 = vrot.slane %v2967, 4
        %v2969 = vrot.slane %v2946, 5
        %v2970 = vrot.slane %v2969, 4
        %v2971 = vrot.slane %v2947, 5
        %v2972 = vrot.slane %v2971, 4
        %v2973 = vrot.slane %v2948, 5
        %v2974 = vrot.slane %v2973, 4
        %v2975 = vrot.slane %v2949, 5
        %v2976 = vrot.slane %v2975, 4
        %v2977 = vrot.slane %v2950, 5
        %v2978 = vrot.slane %v2977, 4
        %v2979 = vrot.slane %v2951, 5
        %v2980 = vrot.slane %v2979, 4
        %v2981 = vrot.slane %v2952, 5
        %v2982 = vrot.slane %v2981, 4
        %2983 = vrot.lane.b32.xlu0 %v2964, 72
        %v2984 = vpop.permute.xlu0 %2983
        %2985 = vrot.lane.b32.xlu0 %v2966, 72
        %v2986 = vpop.permute.xlu0 %2985
        %2987 = vrot.lane.b32.xlu0 %v2968, 72
        %v2988 = vpop.permute.xlu0 %2987
        %2989 = vrot.lane.b32.xlu0 %v2970, 72
        %v2990 = vpop.permute.xlu0 %2989
        %2991 = vrot.lane.b32.xlu0 %v2972, 72
        %v2992 = vpop.permute.xlu0 %2991
        %2993 = vrot.lane.b32.xlu0 %v2974, 72
        %v2994 = vpop.permute.xlu0 %2993
        %2995 = vrot.lane.b32.xlu0 %v2976, 72
        %v2996 = vpop.permute.xlu0 %2995
        %2997 = vrot.lane.b32.xlu0 %v2978, 72
        %v2998 = vpop.permute.xlu0 %2997
        %2999 = vrot.lane.b32.xlu0 %v2980, 72
        %v3000 = vpop.permute.xlu0 %2999
        %3001 = vrot.lane.b32.xlu0 %v2982, 72
        %v3002 = vpop.permute.xlu0 %3001
        %vm3013 = vcmask 649792
        %vm3014 = vmand %vm3013, %vm1913
        %v3015 = vld [vmem:[#allocation3] sm:$0x7]
        %v3016 = vsel %vm3014, %v2984, %v3015
        %3017 = vst [vmem:[#allocation3] sm:$0x7] %v3016
        %v3018 = vld [vmem:[#allocation3 + $0x8] sm:$0x7]
        %v3019 = vsel %vm3014, %v2986, %v3018
        %3020 = vst [vmem:[#allocation3 + $0x8] sm:$0x7] %v3019
        %v3021 = vld [vmem:[#allocation3 + $0x10] sm:$0x7]
        %v3022 = vsel %vm3014, %v2988, %v3021
        %3023 = vst [vmem:[#allocation3 + $0x10] sm:$0x7] %v3022
        %v3024 = vld [vmem:[#allocation3 + $0x18] sm:$0x7]
        %v3025 = vsel %vm3014, %v2990, %v3024
        %3026 = vst [vmem:[#allocation3 + $0x18] sm:$0x7] %v3025
        %v3027 = vld [vmem:[#allocation3 + $0x20] sm:$0x7]
        %v3028 = vsel %vm3014, %v2992, %v3027
        %3029 = vst [vmem:[#allocation3 + $0x20] sm:$0x7] %v3028
        %v3030 = vld [vmem:[#allocation3 + $0x28] sm:$0x7]
        %v3031 = vsel %vm3014, %v2994, %v3030
        %3032 = vst [vmem:[#allocation3 + $0x28] sm:$0x7] %v3031
        %v3033 = vld [vmem:[#allocation3 + $0x30] sm:$0x7]
        %v3034 = vsel %vm3014, %v2996, %v3033
        %3035 = vst [vmem:[#allocation3 + $0x30] sm:$0x7] %v3034
        %v3036 = vld [vmem:[#allocation3 + $0x38] sm:$0x7]
        %v3037 = vsel %vm3014, %v2998, %v3036
        %3038 = vst [vmem:[#allocation3 + $0x38] sm:$0x7] %v3037
        %v3039 = vld [vmem:[#allocation3 + $0x40] sm:$0x7]
        %v3040 = vsel %vm3014, %v3000, %v3039
        %3041 = vst [vmem:[#allocation3 + $0x40] sm:$0x7] %v3040
        %v3042 = vld [vmem:[#allocation3 + $0x48] sm:$0x7]
        %v3043 = vsel %vm3014, %v3002, %v3042
        %3044 = vst [vmem:[#allocation3 + $0x48] sm:$0x7] %v3043
        %s3045 = scalar_lea.vmem [#allocation2], 8
        %v3046 = vld [vmem:[%s3045] sm:$0x7]
        %v3047 = vld [vmem:[%s3045 + $0x4] sm:$0x7]
        %v3048 = vld [vmem:[%s3045 + $0x8] sm:$0x7]
        %v3049 = vld [vmem:[%s3045 + $0xc] sm:$0x7]
        %v3050 = vld [vmem:[%s3045 + $0x10] sm:$0x7]
        %v3051 = vld [vmem:[%s3045 + $0x14] sm:$0x7]
        %v3052 = vld [vmem:[%s3045 + $0x18] sm:$0x7]
        %v3053 = vld [vmem:[%s3045 + $0x1c] sm:$0x7]
        %v3054 = vld [vmem:[%s3045 + $0x20] sm:$0x7]
        %v3055 = vld [vmem:[%s3045 + $0x24] sm:$0x7]
        %3066 = vrot.lane.b32.xlu0 %v3046, 80
        %v3067 = vpop.permute.xlu0 %3066
        %3068 = vrot.lane.b32.xlu0 %v3047, 80
        %v3069 = vpop.permute.xlu0 %3068
        %3070 = vrot.lane.b32.xlu0 %v3048, 80
        %v3071 = vpop.permute.xlu0 %3070
        %3072 = vrot.lane.b32.xlu0 %v3049, 80
        %v3073 = vpop.permute.xlu0 %3072
        %3074 = vrot.lane.b32.xlu0 %v3050, 80
        %v3075 = vpop.permute.xlu0 %3074
        %3076 = vrot.lane.b32.xlu0 %v3051, 80
        %v3077 = vpop.permute.xlu0 %3076
        %3078 = vrot.lane.b32.xlu0 %v3052, 80
        %v3079 = vpop.permute.xlu0 %3078
        %3080 = vrot.lane.b32.xlu0 %v3053, 80
        %v3081 = vpop.permute.xlu0 %3080
        %3082 = vrot.lane.b32.xlu0 %v3054, 80
        %v3083 = vpop.permute.xlu0 %3082
        %3084 = vrot.lane.b32.xlu0 %v3055, 80
        %v3085 = vpop.permute.xlu0 %3084
        %vm3096 = vcmask 715392
        %vm3097 = vmand %vm3096, %vm1913
        %v3098 = vld [vmem:[#allocation3] sm:$0x7]
        %v3099 = vsel %vm3097, %v3067, %v3098
        %3100 = vst [vmem:[#allocation3] sm:$0x7] %v3099
        %v3101 = vld [vmem:[#allocation3 + $0x8] sm:$0x7]
        %v3102 = vsel %vm3097, %v3069, %v3101
        %3103 = vst [vmem:[#allocation3 + $0x8] sm:$0x7] %v3102
        %v3104 = vld [vmem:[#allocation3 + $0x10] sm:$0x7]
        %v3105 = vsel %vm3097, %v3071, %v3104
        %3106 = vst [vmem:[#allocation3 + $0x10] sm:$0x7] %v3105
        %v3107 = vld [vmem:[#allocation3 + $0x18] sm:$0x7]
        %v3108 = vsel %vm3097, %v3073, %v3107
        %3109 = vst [vmem:[#allocation3 + $0x18] sm:$0x7] %v3108
        %v3110 = vld [vmem:[#allocation3 + $0x20] sm:$0x7]
        %v3111 = vsel %vm3097, %v3075, %v3110
        %3112 = vst [vmem:[#allocation3 + $0x20] sm:$0x7] %v3111
        %v3113 = vld [vmem:[#allocation3 + $0x28] sm:$0x7]
        %v3114 = vsel %vm3097, %v3077, %v3113
        %3115 = vst [vmem:[#allocation3 + $0x28] sm:$0x7] %v3114
        %v3116 = vld [vmem:[#allocation3 + $0x30] sm:$0x7]
        %v3117 = vsel %vm3097, %v3079, %v3116
        %3118 = vst [vmem:[#allocation3 + $0x30] sm:$0x7] %v3117
        %v3119 = vld [vmem:[#allocation3 + $0x38] sm:$0x7]
        %v3120 = vsel %vm3097, %v3081, %v3119
        %3121 = vst [vmem:[#allocation3 + $0x38] sm:$0x7] %v3120
        %v3122 = vld [vmem:[#allocation3 + $0x40] sm:$0x7]
        %v3123 = vsel %vm3097, %v3083, %v3122
        %3124 = vst [vmem:[#allocation3 + $0x40] sm:$0x7] %v3123
        %v3125 = vld [vmem:[#allocation3 + $0x48] sm:$0x7]
        %v3126 = vsel %vm3097, %v3085, %v3125
        %3127 = vst [vmem:[#allocation3 + $0x48] sm:$0x7] %v3126
        %s3128 = scalar_lea.vmem [#allocation2], 64
        %v3129 = vld [vmem:[%s3128] sm:$0x7]
        %v3130 = vld [vmem:[%s3128 + $0x4] sm:$0x7]
        %v3131 = vld [vmem:[%s3128 + $0x8] sm:$0x7]
        %v3132 = vld [vmem:[%s3128 + $0xc] sm:$0x7]
        %v3133 = vld [vmem:[%s3128 + $0x10] sm:$0x7]
        %v3134 = vld [vmem:[%s3128 + $0x14] sm:$0x7]
        %v3135 = vld [vmem:[%s3128 + $0x18] sm:$0x7]
        %v3136 = vld [vmem:[%s3128 + $0x1c] sm:$0x7]
        %v3137 = vld [vmem:[%s3128 + $0x20] sm:$0x7]
        %v3138 = vld [vmem:[%s3128 + $0x24] sm:$0x7]
        %3149 = vrot.lane.b32.xlu0 %v3129, 88
        %v3150 = vpop.permute.xlu0 %3149
        %3151 = vrot.lane.b32.xlu0 %v3130, 88
        %v3152 = vpop.permute.xlu0 %3151
        %3153 = vrot.lane.b32.xlu0 %v3131, 88
        %v3154 = vpop.permute.xlu0 %3153
        %3155 = vrot.lane.b32.xlu0 %v3132, 88
        %v3156 = vpop.permute.xlu0 %3155
        %3157 = vrot.lane.b32.xlu0 %v3133, 88
        %v3158 = vpop.permute.xlu0 %3157
        %3159 = vrot.lane.b32.xlu0 %v3134, 88
        %v3160 = vpop.permute.xlu0 %3159
        %3161 = vrot.lane.b32.xlu0 %v3135, 88
        %v3162 = vpop.permute.xlu0 %3161
        %3163 = vrot.lane.b32.xlu0 %v3136, 88
        %v3164 = vpop.permute.xlu0 %3163
        %3165 = vrot.lane.b32.xlu0 %v3137, 88
        %v3166 = vpop.permute.xlu0 %3165
        %3167 = vrot.lane.b32.xlu0 %v3138, 88
        %v3168 = vpop.permute.xlu0 %3167
        %vm3179 = vcmask 780992
        %vm3180 = vmand %vm3179, %vm1913
        %v3181 = vld [vmem:[#allocation3] sm:$0x7]
        %v3182 = vsel %vm3180, %v3150, %v3181
        %3183 = vst [vmem:[#allocation3] sm:$0x7] %v3182
        %v3184 = vld [vmem:[#allocation3 + $0x8] sm:$0x7]
        %v3185 = vsel %vm3180, %v3152, %v3184
        %3186 = vst [vmem:[#allocation3 + $0x8] sm:$0x7] %v3185
        %v3187 = vld [vmem:[#allocation3 + $0x10] sm:$0x7]
        %v3188 = vsel %vm3180, %v3154, %v3187
        %3189 = vst [vmem:[#allocation3 + $0x10] sm:$0x7] %v3188
        %v3190 = vld [vmem:[#allocation3 + $0x18] sm:$0x7]
        %v3191 = vsel %vm3180, %v3156, %v3190
        %3192 = vst [vmem:[#allocation3 + $0x18] sm:$0x7] %v3191
        %v3193 = vld [vmem:[#allocation3 + $0x20] sm:$0x7]
        %v3194 = vsel %vm3180, %v3158, %v3193
        %3195 = vst [vmem:[#allocation3 + $0x20] sm:$0x7] %v3194
        %v3196 = vld [vmem:[#allocation3 + $0x28] sm:$0x7]
        %v3197 = vsel %vm3180, %v3160, %v3196
        %3198 = vst [vmem:[#allocation3 + $0x28] sm:$0x7] %v3197
        %v3199 = vld [vmem:[#allocation3 + $0x30] sm:$0x7]
        %v3200 = vsel %vm3180, %v3162, %v3199
        %3201 = vst [vmem:[#allocation3 + $0x30] sm:$0x7] %v3200
        %v3202 = vld [vmem:[#allocation3 + $0x38] sm:$0x7]
        %v3203 = vsel %vm3180, %v3164, %v3202
        %3204 = vst [vmem:[#allocation3 + $0x38] sm:$0x7] %v3203
        %v3205 = vld [vmem:[#allocation3 + $0x40] sm:$0x7]
        %v3206 = vsel %vm3180, %v3166, %v3205
        %3207 = vst [vmem:[#allocation3 + $0x40] sm:$0x7] %v3206
        %v3208 = vld [vmem:[#allocation3 + $0x48] sm:$0x7]
        %v3209 = vsel %vm3180, %v3168, %v3208
        %3210 = vst [vmem:[#allocation3 + $0x48] sm:$0x7] %v3209
        %v3211 = vld [vmem:[%s3045] sm:$0x7]
        %v3212 = vld [vmem:[%s3045 + $0x4] sm:$0x7]
        %v3213 = vld [vmem:[%s3045 + $0x8] sm:$0x7]
        %v3214 = vld [vmem:[%s3045 + $0xc] sm:$0x7]
        %v3215 = vld [vmem:[%s3045 + $0x10] sm:$0x7]
        %v3216 = vld [vmem:[%s3045 + $0x14] sm:$0x7]
        %v3217 = vld [vmem:[%s3045 + $0x18] sm:$0x7]
        %v3218 = vld [vmem:[%s3045 + $0x1c] sm:$0x7]
        %v3219 = vld [vmem:[%s3045 + $0x20] sm:$0x7]
        %v3220 = vld [vmem:[%s3045 + $0x24] sm:$0x7]
        %v3222 = vshrl.u32 %v3211, 16
        %v3224 = vrot.slane %v3222, 4
        %v3225 = vshll.u32 %v3211, 16
        %v3227 = vrot.slane %v3225, 5
        %v3228 = vor.u32 %v3224, %v3227
        %v3229 = vrot.slane %v3228, 4
        %v3231 = vshrl.u32 %v3212, 16
        %v3233 = vrot.slane %v3231, 4
        %v3234 = vshll.u32 %v3212, 16
        %v3236 = vrot.slane %v3234, 5
        %v3237 = vor.u32 %v3233, %v3236
        %v3238 = vrot.slane %v3237, 4
        %v3240 = vshrl.u32 %v3213, 16
        %v3242 = vrot.slane %v3240, 4
        %v3243 = vshll.u32 %v3213, 16
        %v3245 = vrot.slane %v3243, 5
        %v3246 = vor.u32 %v3242, %v3245
        %v3247 = vrot.slane %v3246, 4
        %v3249 = vshrl.u32 %v3214, 16
        %v3251 = vrot.slane %v3249, 4
        %v3252 = vshll.u32 %v3214, 16
        %v3254 = vrot.slane %v3252, 5
        %v3255 = vor.u32 %v3251, %v3254
        %v3256 = vrot.slane %v3255, 4
        %v3258 = vshrl.u32 %v3215, 16
        %v3260 = vrot.slane %v3258, 4
        %v3261 = vshll.u32 %v3215, 16
        %v3263 = vrot.slane %v3261, 5
        %v3264 = vor.u32 %v3260, %v3263
        %v3265 = vrot.slane %v3264, 4
        %v3267 = vshrl.u32 %v3216, 16
        %v3269 = vrot.slane %v3267, 4
        %v3270 = vshll.u32 %v3216, 16
        %v3272 = vrot.slane %v3270, 5
        %v3273 = vor.u32 %v3269, %v3272
        %v3274 = vrot.slane %v3273, 4
        %v3276 = vshrl.u32 %v3217, 16
        %v3278 = vrot.slane %v3276, 4
        %v3279 = vshll.u32 %v3217, 16
        %v3281 = vrot.slane %v3279, 5
        %v3282 = vor.u32 %v3278, %v3281
        %v3283 = vrot.slane %v3282, 4
        %v3285 = vshrl.u32 %v3218, 16
        %v3287 = vrot.slane %v3285, 4
        %v3288 = vshll.u32 %v3218, 16
        %v3290 = vrot.slane %v3288, 5
        %v3291 = vor.u32 %v3287, %v3290
        %v3292 = vrot.slane %v3291, 4
        %v3294 = vshrl.u32 %v3219, 16
        %v3296 = vrot.slane %v3294, 4
        %v3297 = vshll.u32 %v3219, 16
        %v3299 = vrot.slane %v3297, 5
        %v3300 = vor.u32 %v3296, %v3299
        %v3301 = vrot.slane %v3300, 4
        %v3303 = vshrl.u32 %v3220, 16
        %v3305 = vrot.slane %v3303, 4
        %v3306 = vshll.u32 %v3220, 16
        %v3308 = vrot.slane %v3306, 5
        %v3309 = vor.u32 %v3305, %v3308
        %v3310 = vrot.slane %v3309, 4
        %3311 = vrot.lane.b32.xlu0 %v3229, 96
        %v3312 = vpop.permute.xlu0 %3311
        %3313 = vrot.lane.b32.xlu0 %v3238, 96
        %v3314 = vpop.permute.xlu0 %3313
        %3315 = vrot.lane.b32.xlu0 %v3247, 96
        %v3316 = vpop.permute.xlu0 %3315
        %3317 = vrot.lane.b32.xlu0 %v3256, 96
        %v3318 = vpop.permute.xlu0 %3317
        %3319 = vrot.lane.b32.xlu0 %v3265, 96
        %v3320 = vpop.permute.xlu0 %3319
        %3321 = vrot.lane.b32.xlu0 %v3274, 96
        %v3322 = vpop.permute.xlu0 %3321
        %3323 = vrot.lane.b32.xlu0 %v3283, 96
        %v3324 = vpop.permute.xlu0 %3323
        %3325 = vrot.lane.b32.xlu0 %v3292, 96
        %v3326 = vpop.permute.xlu0 %3325
        %3327 = vrot.lane.b32.xlu0 %v3301, 96
        %v3328 = vpop.permute.xlu0 %3327
        %3329 = vrot.lane.b32.xlu0 %v3310, 96
        %v3330 = vpop.permute.xlu0 %3329
        %vm3341 = vcmask 846592
        %vm3342 = vmand %vm3341, %vm1913
        %v3343 = vld [vmem:[#allocation3] sm:$0x7]
        %v3344 = vsel %vm3342, %v3312, %v3343
        %3345 = vst [vmem:[#allocation3] sm:$0x7] %v3344
        %v3346 = vld [vmem:[#allocation3 + $0x8] sm:$0x7]
        %v3347 = vsel %vm3342, %v3314, %v3346
        %3348 = vst [vmem:[#allocation3 + $0x8] sm:$0x7] %v3347
        %v3349 = vld [vmem:[#allocation3 + $0x10] sm:$0x7]
        %v3350 = vsel %vm3342, %v3316, %v3349
        %3351 = vst [vmem:[#allocation3 + $0x10] sm:$0x7] %v3350
        %v3352 = vld [vmem:[#allocation3 + $0x18] sm:$0x7]
        %v3353 = vsel %vm3342, %v3318, %v3352
        %3354 = vst [vmem:[#allocation3 + $0x18] sm:$0x7] %v3353
        %v3355 = vld [vmem:[#allocation3 + $0x20] sm:$0x7]
        %v3356 = vsel %vm3342, %v3320, %v3355
        %3357 = vst [vmem:[#allocation3 + $0x20] sm:$0x7] %v3356
        %v3358 = vld [vmem:[#allocation3 + $0x28] sm:$0x7]
        %v3359 = vsel %vm3342, %v3322, %v3358
        %3360 = vst [vmem:[#allocation3 + $0x28] sm:$0x7] %v3359
        %v3361 = vld [vmem:[#allocation3 + $0x30] sm:$0x7]
        %v3362 = vsel %vm3342, %v3324, %v3361
        %3363 = vst [vmem:[#allocation3 + $0x30] sm:$0x7] %v3362
        %v3364 = vld [vmem:[#allocation3 + $0x38] sm:$0x7]
        %v3365 = vsel %vm3342, %v3326, %v3364
        %3366 = vst [vmem:[#allocation3 + $0x38] sm:$0x7] %v3365
        %v3367 = vld [vmem:[#allocation3 + $0x40] sm:$0x7]
        %v3368 = vsel %vm3342, %v3328, %v3367
        %3369 = vst [vmem:[#allocation3 + $0x40] sm:$0x7] %v3368
        %v3370 = vld [vmem:[#allocation3 + $0x48] sm:$0x7]
        %v3371 = vsel %vm3342, %v3330, %v3370
        %3372 = vst [vmem:[#allocation3 + $0x48] sm:$0x7] %v3371
        %v3373 = vld [vmem:[%s3128] sm:$0x7]
        %v3374 = vld [vmem:[%s3128 + $0x4] sm:$0x7]
        %v3375 = vld [vmem:[%s3128 + $0x8] sm:$0x7]
        %v3376 = vld [vmem:[%s3128 + $0xc] sm:$0x7]
        %v3377 = vld [vmem:[%s3128 + $0x10] sm:$0x7]
        %v3378 = vld [vmem:[%s3128 + $0x14] sm:$0x7]
        %v3379 = vld [vmem:[%s3128 + $0x18] sm:$0x7]
        %v3380 = vld [vmem:[%s3128 + $0x1c] sm:$0x7]
        %v3381 = vld [vmem:[%s3128 + $0x20] sm:$0x7]
        %v3382 = vld [vmem:[%s3128 + $0x24] sm:$0x7]
        %v3384 = vshrl.u32 %v3373, 16
        %v3386 = vrot.slane %v3384, 4
        %v3387 = vshll.u32 %v3373, 16
        %v3389 = vrot.slane %v3387, 5
        %v3390 = vor.u32 %v3386, %v3389
        %v3391 = vrot.slane %v3390, 4
        %v3393 = vshrl.u32 %v3374, 16
        %v3395 = vrot.slane %v3393, 4
        %v3396 = vshll.u32 %v3374, 16
        %v3398 = vrot.slane %v3396, 5
        %v3399 = vor.u32 %v3395, %v3398
        %v3400 = vrot.slane %v3399, 4
        %v3402 = vshrl.u32 %v3375, 16
        %v3404 = vrot.slane %v3402, 4
        %v3405 = vshll.u32 %v3375, 16
        %v3407 = vrot.slane %v3405, 5
        %v3408 = vor.u32 %v3404, %v3407
        %v3409 = vrot.slane %v3408, 4
        %v3411 = vshrl.u32 %v3376, 16
        %v3413 = vrot.slane %v3411, 4
        %v3414 = vshll.u32 %v3376, 16
        %v3416 = vrot.slane %v3414, 5
        %v3417 = vor.u32 %v3413, %v3416
        %v3418 = vrot.slane %v3417, 4
        %v3420 = vshrl.u32 %v3377, 16
        %v3422 = vrot.slane %v3420, 4
        %v3423 = vshll.u32 %v3377, 16
        %v3425 = vrot.slane %v3423, 5
        %v3426 = vor.u32 %v3422, %v3425
        %v3427 = vrot.slane %v3426, 4
        %v3429 = vshrl.u32 %v3378, 16
        %v3431 = vrot.slane %v3429, 4
        %v3432 = vshll.u32 %v3378, 16
        %v3434 = vrot.slane %v3432, 5
        %v3435 = vor.u32 %v3431, %v3434
        %v3436 = vrot.slane %v3435, 4
        %v3438 = vshrl.u32 %v3379, 16
        %v3440 = vrot.slane %v3438, 4
        %v3441 = vshll.u32 %v3379, 16
        %v3443 = vrot.slane %v3441, 5
        %v3444 = vor.u32 %v3440, %v3443
        %v3445 = vrot.slane %v3444, 4
        %v3447 = vshrl.u32 %v3380, 16
        %v3449 = vrot.slane %v3447, 4
        %v3450 = vshll.u32 %v3380, 16
        %v3452 = vrot.slane %v3450, 5
        %v3453 = vor.u32 %v3449, %v3452
        %v3454 = vrot.slane %v3453, 4
        %v3456 = vshrl.u32 %v3381, 16
        %v3458 = vrot.slane %v3456, 4
        %v3459 = vshll.u32 %v3381, 16
        %v3461 = vrot.slane %v3459, 5
        %v3462 = vor.u32 %v3458, %v3461
        %v3463 = vrot.slane %v3462, 4
        %v3465 = vshrl.u32 %v3382, 16
        %v3467 = vrot.slane %v3465, 4
        %v3468 = vshll.u32 %v3382, 16
        %v3470 = vrot.slane %v3468, 5
        %v3471 = vor.u32 %v3467, %v3470
        %v3472 = vrot.slane %v3471, 4
        %3473 = vrot.lane.b32.xlu0 %v3391, 104
        %v3474 = vpop.permute.xlu0 %3473
        %3475 = vrot.lane.b32.xlu0 %v3400, 104
        %v3476 = vpop.permute.xlu0 %3475
        %3477 = vrot.lane.b32.xlu0 %v3409, 104
        %v3478 = vpop.permute.xlu0 %3477
        %3479 = vrot.lane.b32.xlu0 %v3418, 104
        %v3480 = vpop.permute.xlu0 %3479
        %3481 = vrot.lane.b32.xlu0 %v3427, 104
        %v3482 = vpop.permute.xlu0 %3481
        %3483 = vrot.lane.b32.xlu0 %v3436, 104
        %v3484 = vpop.permute.xlu0 %3483
        %3485 = vrot.lane.b32.xlu0 %v3445, 104
        %v3486 = vpop.permute.xlu0 %3485
        %3487 = vrot.lane.b32.xlu0 %v3454, 104
        %v3488 = vpop.permute.xlu0 %3487
        %3489 = vrot.lane.b32.xlu0 %v3463, 104
        %v3490 = vpop.permute.xlu0 %3489
        %3491 = vrot.lane.b32.xlu0 %v3472, 104
        %v3492 = vpop.permute.xlu0 %3491
        %vm3503 = vcmask 912192
        %vm3504 = vmand %vm3503, %vm1913
        %v3505 = vld [vmem:[#allocation3] sm:$0x7]
        %v3506 = vsel %vm3504, %v3474, %v3505
        %3507 = vst [vmem:[#allocation3] sm:$0x7] %v3506
        %v3508 = vld [vmem:[#allocation3 + $0x8] sm:$0x7]
        %v3509 = vsel %vm3504, %v3476, %v3508
        %3510 = vst [vmem:[#allocation3 + $0x8] sm:$0x7] %v3509
        %v3511 = vld [vmem:[#allocation3 + $0x10] sm:$0x7]
        %v3512 = vsel %vm3504, %v3478, %v3511
        %3513 = vst [vmem:[#allocation3 + $0x10] sm:$0x7] %v3512
        %v3514 = vld [vmem:[#allocation3 + $0x18] sm:$0x7]
        %v3515 = vsel %vm3504, %v3480, %v3514
        %3516 = vst [vmem:[#allocation3 + $0x18] sm:$0x7] %v3515
        %v3517 = vld [vmem:[#allocation3 + $0x20] sm:$0x7]
        %v3518 = vsel %vm3504, %v3482, %v3517
        %3519 = vst [vmem:[#allocation3 + $0x20] sm:$0x7] %v3518
        %v3520 = vld [vmem:[#allocation3 + $0x28] sm:$0x7]
        %v3521 = vsel %vm3504, %v3484, %v3520
        %3522 = vst [vmem:[#allocation3 + $0x28] sm:$0x7] %v3521
        %v3523 = vld [vmem:[#allocation3 + $0x30] sm:$0x7]
        %v3524 = vsel %vm3504, %v3486, %v3523
        %3525 = vst [vmem:[#allocation3 + $0x30] sm:$0x7] %v3524
        %v3526 = vld [vmem:[#allocation3 + $0x38] sm:$0x7]
        %v3527 = vsel %vm3504, %v3488, %v3526
        %3528 = vst [vmem:[#allocation3 + $0x38] sm:$0x7] %v3527
        %v3529 = vld [vmem:[#allocation3 + $0x40] sm:$0x7]
        %v3530 = vsel %vm3504, %v3490, %v3529
        %3531 = vst [vmem:[#allocation3 + $0x40] sm:$0x7] %v3530
        %v3532 = vld [vmem:[#allocation3 + $0x48] sm:$0x7]
        %v3533 = vsel %vm3504, %v3492, %v3532
        %3534 = vst [vmem:[#allocation3 + $0x48] sm:$0x7] %v3533
        %v3535 = vld [vmem:[%s3045] sm:$0xe]
        %v3536 = vld [vmem:[%s3045 + $0x4] sm:$0xe]
        %v3537 = vld [vmem:[%s3045 + $0x8] sm:$0xe]
        %v3538 = vld [vmem:[%s3045 + $0xc] sm:$0xe]
        %v3539 = vld [vmem:[%s3045 + $0x10] sm:$0xe]
        %v3540 = vld [vmem:[%s3045 + $0x14] sm:$0xe]
        %v3541 = vld [vmem:[%s3045 + $0x18] sm:$0xe]
        %v3542 = vld [vmem:[%s3045 + $0x1c] sm:$0xe]
        %v3543 = vld [vmem:[%s3045 + $0x20] sm:$0xe]
        %v3544 = vld [vmem:[%s3045 + $0x24] sm:$0xe]
        %v3555 = vrot.slane %v3535, 5
        %v3556 = vrot.slane %v3555, 4
        %v3557 = vrot.slane %v3536, 5
        %v3558 = vrot.slane %v3557, 4
        %v3559 = vrot.slane %v3537, 5
        %v3560 = vrot.slane %v3559, 4
        %v3561 = vrot.slane %v3538, 5
        %v3562 = vrot.slane %v3561, 4
        %v3563 = vrot.slane %v3539, 5
        %v3564 = vrot.slane %v3563, 4
        %v3565 = vrot.slane %v3540, 5
        %v3566 = vrot.slane %v3565, 4
        %v3567 = vrot.slane %v3541, 5
        %v3568 = vrot.slane %v3567, 4
        %v3569 = vrot.slane %v3542, 5
        %v3570 = vrot.slane %v3569, 4
        %v3571 = vrot.slane %v3543, 5
        %v3572 = vrot.slane %v3571, 4
        %v3573 = vrot.slane %v3544, 5
        %v3574 = vrot.slane %v3573, 4
        %3575 = vrot.lane.b32.xlu0 %v3556, 112
        %v3576 = vpop.permute.xlu0 %3575
        %3577 = vrot.lane.b32.xlu0 %v3558, 112
        %v3578 = vpop.permute.xlu0 %3577
        %3579 = vrot.lane.b32.xlu0 %v3560, 112
        %v3580 = vpop.permute.xlu0 %3579
        %3581 = vrot.lane.b32.xlu0 %v3562, 112
        %v3582 = vpop.permute.xlu0 %3581
        %3583 = vrot.lane.b32.xlu0 %v3564, 112
        %v3584 = vpop.permute.xlu0 %3583
        %3585 = vrot.lane.b32.xlu0 %v3566, 112
        %v3586 = vpop.permute.xlu0 %3585
        %3587 = vrot.lane.b32.xlu0 %v3568, 112
        %v3588 = vpop.permute.xlu0 %3587
        %3589 = vrot.lane.b32.xlu0 %v3570, 112
        %v3590 = vpop.permute.xlu0 %3589
        %3591 = vrot.lane.b32.xlu0 %v3572, 112
        %v3592 = vpop.permute.xlu0 %3591
        %3593 = vrot.lane.b32.xlu0 %v3574, 112
        %v3594 = vpop.permute.xlu0 %3593
        %vm3605 = vcmask 977792
        %vm3606 = vmand %vm3605, %vm1913
        %v3607 = vld [vmem:[#allocation3] sm:$0x7]
        %v3608 = vsel %vm3606, %v3576, %v3607
        %3609 = vst [vmem:[#allocation3] sm:$0x7] %v3608
        %v3610 = vld [vmem:[#allocation3 + $0x8] sm:$0x7]
        %v3611 = vsel %vm3606, %v3578, %v3610
        %3612 = vst [vmem:[#allocation3 + $0x8] sm:$0x7] %v3611
        %v3613 = vld [vmem:[#allocation3 + $0x10] sm:$0x7]
        %v3614 = vsel %vm3606, %v3580, %v3613
        %3615 = vst [vmem:[#allocation3 + $0x10] sm:$0x7] %v3614
        %v3616 = vld [vmem:[#allocation3 + $0x18] sm:$0x7]
        %v3617 = vsel %vm3606, %v3582, %v3616
        %3618 = vst [vmem:[#allocation3 + $0x18] sm:$0x7] %v3617
        %v3619 = vld [vmem:[#allocation3 + $0x20] sm:$0x7]
        %v3620 = vsel %vm3606, %v3584, %v3619
        %3621 = vst [vmem:[#allocation3 + $0x20] sm:$0x7] %v3620
        %v3622 = vld [vmem:[#allocation3 + $0x28] sm:$0x7]
        %v3623 = vsel %vm3606, %v3586, %v3622
        %3624 = vst [vmem:[#allocation3 + $0x28] sm:$0x7] %v3623
        %v3625 = vld [vmem:[#allocation3 + $0x30] sm:$0x7]
        %v3626 = vsel %vm3606, %v3588, %v3625
        %3627 = vst [vmem:[#allocation3 + $0x30] sm:$0x7] %v3626
        %v3628 = vld [vmem:[#allocation3 + $0x38] sm:$0x7]
        %v3629 = vsel %vm3606, %v3590, %v3628
        %3630 = vst [vmem:[#allocation3 + $0x38] sm:$0x7] %v3629
        %v3631 = vld [vmem:[#allocation3 + $0x40] sm:$0x7]
        %v3632 = vsel %vm3606, %v3592, %v3631
        %3633 = vst [vmem:[#allocation3 + $0x40] sm:$0x7] %v3632
        %v3634 = vld [vmem:[#allocation3 + $0x48] sm:$0x7]
        %v3635 = vsel %vm3606, %v3594, %v3634
        %3636 = vst [vmem:[#allocation3 + $0x48] sm:$0x7] %v3635
        %s3637 = scalar_lea.vmem [#allocation2], 12
        %v3638 = vld [vmem:[%s3637] sm:$0x7]
        %v3639 = vld [vmem:[%s3637 + $0x4] sm:$0x7]
        %v3640 = vld [vmem:[%s3637 + $0x8] sm:$0x7]
        %v3641 = vld [vmem:[%s3637 + $0xc] sm:$0x7]
        %v3642 = vld [vmem:[%s3637 + $0x10] sm:$0x7]
        %v3643 = vld [vmem:[%s3637 + $0x14] sm:$0x7]
        %v3644 = vld [vmem:[%s3637 + $0x18] sm:$0x7]
        %v3645 = vld [vmem:[%s3637 + $0x1c] sm:$0x7]
        %v3646 = vld [vmem:[%s3637 + $0x20] sm:$0x7]
        %v3647 = vld [vmem:[%s3637 + $0x24] sm:$0x7]
        %3658 = vrot.lane.b32.xlu0 %v3638, 120
        %v3659 = vpop.permute.xlu0 %3658
        %3660 = vrot.lane.b32.xlu0 %v3639, 120
        %v3661 = vpop.permute.xlu0 %3660
        %3662 = vrot.lane.b32.xlu0 %v3640, 120
        %v3663 = vpop.permute.xlu0 %3662
        %3664 = vrot.lane.b32.xlu0 %v3641, 120
        %v3665 = vpop.permute.xlu0 %3664
        %3666 = vrot.lane.b32.xlu0 %v3642, 120
        %v3667 = vpop.permute.xlu0 %3666
        %3668 = vrot.lane.b32.xlu0 %v3643, 120
        %v3669 = vpop.permute.xlu0 %3668
        %3670 = vrot.lane.b32.xlu0 %v3644, 120
        %v3671 = vpop.permute.xlu0 %3670
        %3672 = vrot.lane.b32.xlu0 %v3645, 120
        %v3673 = vpop.permute.xlu0 %3672
        %3674 = vrot.lane.b32.xlu0 %v3646, 120
        %v3675 = vpop.permute.xlu0 %3674
        %3676 = vrot.lane.b32.xlu0 %v3647, 120
        %v3677 = vpop.permute.xlu0 %3676
        %vm3688 = vcmask 1043392
        %vm3689 = vmand %vm3688, %vm1913
        %v3690 = vld [vmem:[#allocation3] sm:$0x7]
        %v3691 = vsel %vm3689, %v3659, %v3690
        %3692 = vst [vmem:[#allocation3] sm:$0x7] %v3691
        %v3693 = vld [vmem:[#allocation3 + $0x8] sm:$0x7]
        %v3694 = vsel %vm3689, %v3661, %v3693
        %3695 = vst [vmem:[#allocation3 + $0x8] sm:$0x7] %v3694
        %v3696 = vld [vmem:[#allocation3 + $0x10] sm:$0x7]
        %v3697 = vsel %vm3689, %v3663, %v3696
        %3698 = vst [vmem:[#allocation3 + $0x10] sm:$0x7] %v3697
        %v3699 = vld [vmem:[#allocation3 + $0x18] sm:$0x7]
        %v3700 = vsel %vm3689, %v3665, %v3699
        %3701 = vst [vmem:[#allocation3 + $0x18] sm:$0x7] %v3700
        %v3702 = vld [vmem:[#allocation3 + $0x20] sm:$0x7]
        %v3703 = vsel %vm3689, %v3667, %v3702
        %3704 = vst [vmem:[#allocation3 + $0x20] sm:$0x7] %v3703
        %v3705 = vld [vmem:[#allocation3 + $0x28] sm:$0x7]
        %v3706 = vsel %vm3689, %v3669, %v3705
        %3707 = vst [vmem:[#allocation3 + $0x28] sm:$0x7] %v3706
        %v3708 = vld [vmem:[#allocation3 + $0x30] sm:$0x7]
        %v3709 = vsel %vm3689, %v3671, %v3708
        %3710 = vst [vmem:[#allocation3 + $0x30] sm:$0x7] %v3709
        %v3711 = vld [vmem:[#allocation3 + $0x38] sm:$0x7]
        %v3712 = vsel %vm3689, %v3673, %v3711
        %3713 = vst [vmem:[#allocation3 + $0x38] sm:$0x7] %v3712
        %v3714 = vld [vmem:[#allocation3 + $0x40] sm:$0x7]
        %v3715 = vsel %vm3689, %v3675, %v3714
        %3716 = vst [vmem:[#allocation3 + $0x40] sm:$0x7] %v3715
        %v3717 = vld [vmem:[#allocation3 + $0x48] sm:$0x7]
        %v3718 = vsel %vm3689, %v3677, %v3717
        %3719 = vst [vmem:[#allocation3 + $0x48] sm:$0x7] %v3718
        %s3720 = scalar_lea.vmem [#allocation2], 68
        %v3721 = vld [vmem:[%s3720] sm:$0x7]
        %v3722 = vld [vmem:[%s3720 + $0x4] sm:$0x7]
        %v3723 = vld [vmem:[%s3720 + $0x8] sm:$0x7]
        %v3724 = vld [vmem:[%s3720 + $0xc] sm:$0x7]
        %v3725 = vld [vmem:[%s3720 + $0x10] sm:$0x7]
        %v3726 = vld [vmem:[%s3720 + $0x14] sm:$0x7]
        %v3727 = vld [vmem:[%s3720 + $0x18] sm:$0x7]
        %v3728 = vld [vmem:[%s3720 + $0x1c] sm:$0x7]
        %v3729 = vld [vmem:[%s3720 + $0x20] sm:$0x7]
        %v3730 = vld [vmem:[%s3720 + $0x24] sm:$0x7]
        %v3731 = vld [vmem:[#allocation3 + $0x4] sm:$0x7]
        %v3732 = vsel %vm1914, %v3721, %v3731
        %3733 = vst [vmem:[#allocation3 + $0x4] sm:$0x7] %v3732
        %v3734 = vld [vmem:[#allocation3 + $0xc] sm:$0x7]
        %v3735 = vsel %vm1914, %v3722, %v3734
        %3736 = vst [vmem:[#allocation3 + $0xc] sm:$0x7] %v3735
        %v3737 = vld [vmem:[#allocation3 + $0x14] sm:$0x7]
        %v3738 = vsel %vm1914, %v3723, %v3737
        %3739 = vst [vmem:[#allocation3 + $0x14] sm:$0x7] %v3738
        %v3740 = vld [vmem:[#allocation3 + $0x1c] sm:$0x7]
        %v3741 = vsel %vm1914, %v3724, %v3740
        %3742 = vst [vmem:[#allocation3 + $0x1c] sm:$0x7] %v3741
        %v3743 = vld [vmem:[#allocation3 + $0x24] sm:$0x7]
        %v3744 = vsel %vm1914, %v3725, %v3743
        %3745 = vst [vmem:[#allocation3 + $0x24] sm:$0x7] %v3744
        %v3746 = vld [vmem:[#allocation3 + $0x2c] sm:$0x7]
        %v3747 = vsel %vm1914, %v3726, %v3746
        %3748 = vst [vmem:[#allocation3 + $0x2c] sm:$0x7] %v3747
        %v3749 = vld [vmem:[#allocation3 + $0x34] sm:$0x7]
        %v3750 = vsel %vm1914, %v3727, %v3749
        %3751 = vst [vmem:[#allocation3 + $0x34] sm:$0x7] %v3750
        %v3752 = vld [vmem:[#allocation3 + $0x3c] sm:$0x7]
        %v3753 = vsel %vm1914, %v3728, %v3752
        %3754 = vst [vmem:[#allocation3 + $0x3c] sm:$0x7] %v3753
        %v3755 = vld [vmem:[#allocation3 + $0x44] sm:$0x7]
        %v3756 = vsel %vm1914, %v3729, %v3755
        %3757 = vst [vmem:[#allocation3 + $0x44] sm:$0x7] %v3756
        %v3758 = vld [vmem:[#allocation3 + $0x4c] sm:$0x7]
        %v3759 = vsel %vm1914, %v3730, %v3758
        %3760 = vst [vmem:[#allocation3 + $0x4c] sm:$0x7] %v3759
        %v3761 = vld [vmem:[%s3637] sm:$0x7]
        %v3762 = vld [vmem:[%s3637 + $0x4] sm:$0x7]
        %v3763 = vld [vmem:[%s3637 + $0x8] sm:$0x7]
        %v3764 = vld [vmem:[%s3637 + $0xc] sm:$0x7]
        %v3765 = vld [vmem:[%s3637 + $0x10] sm:$0x7]
        %v3766 = vld [vmem:[%s3637 + $0x14] sm:$0x7]
        %v3767 = vld [vmem:[%s3637 + $0x18] sm:$0x7]
        %v3768 = vld [vmem:[%s3637 + $0x1c] sm:$0x7]
        %v3769 = vld [vmem:[%s3637 + $0x20] sm:$0x7]
        %v3770 = vld [vmem:[%s3637 + $0x24] sm:$0x7]
        %v3772 = vshrl.u32 %v3761, 16
        %v3774 = vrot.slane %v3772, 4
        %v3775 = vshll.u32 %v3761, 16
        %v3777 = vrot.slane %v3775, 5
        %v3778 = vor.u32 %v3774, %v3777
        %v3779 = vrot.slane %v3778, 4
        %v3781 = vshrl.u32 %v3762, 16
        %v3783 = vrot.slane %v3781, 4
        %v3784 = vshll.u32 %v3762, 16
        %v3786 = vrot.slane %v3784, 5
        %v3787 = vor.u32 %v3783, %v3786
        %v3788 = vrot.slane %v3787, 4
        %v3790 = vshrl.u32 %v3763, 16
        %v3792 = vrot.slane %v3790, 4
        %v3793 = vshll.u32 %v3763, 16
        %v3795 = vrot.slane %v3793, 5
        %v3796 = vor.u32 %v3792, %v3795
        %v3797 = vrot.slane %v3796, 4
        %v3799 = vshrl.u32 %v3764, 16
        %v3801 = vrot.slane %v3799, 4
        %v3802 = vshll.u32 %v3764, 16
        %v3804 = vrot.slane %v3802, 5
        %v3805 = vor.u32 %v3801, %v3804
        %v3806 = vrot.slane %v3805, 4
        %v3808 = vshrl.u32 %v3765, 16
        %v3810 = vrot.slane %v3808, 4
        %v3811 = vshll.u32 %v3765, 16
        %v3813 = vrot.slane %v3811, 5
        %v3814 = vor.u32 %v3810, %v3813
        %v3815 = vrot.slane %v3814, 4
        %v3817 = vshrl.u32 %v3766, 16
        %v3819 = vrot.slane %v3817, 4
        %v3820 = vshll.u32 %v3766, 16
        %v3822 = vrot.slane %v3820, 5
        %v3823 = vor.u32 %v3819, %v3822
        %v3824 = vrot.slane %v3823, 4
        %v3826 = vshrl.u32 %v3767, 16
        %v3828 = vrot.slane %v3826, 4
        %v3829 = vshll.u32 %v3767, 16
        %v3831 = vrot.slane %v3829, 5
        %v3832 = vor.u32 %v3828, %v3831
        %v3833 = vrot.slane %v3832, 4
        %v3835 = vshrl.u32 %v3768, 16
        %v3837 = vrot.slane %v3835, 4
        %v3838 = vshll.u32 %v3768, 16
        %v3840 = vrot.slane %v3838, 5
        %v3841 = vor.u32 %v3837, %v3840
        %v3842 = vrot.slane %v3841, 4
        %v3844 = vshrl.u32 %v3769, 16
        %v3846 = vrot.slane %v3844, 4
        %v3847 = vshll.u32 %v3769, 16
        %v3849 = vrot.slane %v3847, 5
        %v3850 = vor.u32 %v3846, %v3849
        %v3851 = vrot.slane %v3850, 4
        %v3853 = vshrl.u32 %v3770, 16
        %v3855 = vrot.slane %v3853, 4
        %v3856 = vshll.u32 %v3770, 16
        %v3858 = vrot.slane %v3856, 5
        %v3859 = vor.u32 %v3855, %v3858
        %v3860 = vrot.slane %v3859, 4
        %3861 = vrot.lane.b32.xlu0 %v3779, 8
        %v3862 = vpop.permute.xlu0 %3861
        %3863 = vrot.lane.b32.xlu0 %v3788, 8
        %v3864 = vpop.permute.xlu0 %3863
        %3865 = vrot.lane.b32.xlu0 %v3797, 8
        %v3866 = vpop.permute.xlu0 %3865
        %3867 = vrot.lane.b32.xlu0 %v3806, 8
        %v3868 = vpop.permute.xlu0 %3867
        %3869 = vrot.lane.b32.xlu0 %v3815, 8
        %v3870 = vpop.permute.xlu0 %3869
        %3871 = vrot.lane.b32.xlu0 %v3824, 8
        %v3872 = vpop.permute.xlu0 %3871
        %3873 = vrot.lane.b32.xlu0 %v3833, 8
        %v3874 = vpop.permute.xlu0 %3873
        %3875 = vrot.lane.b32.xlu0 %v3842, 8
        %v3876 = vpop.permute.xlu0 %3875
        %3877 = vrot.lane.b32.xlu0 %v3851, 8
        %v3878 = vpop.permute.xlu0 %3877
        %3879 = vrot.lane.b32.xlu0 %v3860, 8
        %v3880 = vpop.permute.xlu0 %3879
        %v3891 = vld [vmem:[#allocation3 + $0x4] sm:$0x7]
        %v3892 = vsel %vm1996, %v3862, %v3891
        %3893 = vst [vmem:[#allocation3 + $0x4] sm:$0x7] %v3892
        %v3894 = vld [vmem:[#allocation3 + $0xc] sm:$0x7]
        %v3895 = vsel %vm1996, %v3864, %v3894
        %3896 = vst [vmem:[#allocation3 + $0xc] sm:$0x7] %v3895
        %v3897 = vld [vmem:[#allocation3 + $0x14] sm:$0x7]
        %v3898 = vsel %vm1996, %v3866, %v3897
        %3899 = vst [vmem:[#allocation3 + $0x14] sm:$0x7] %v3898
        %v3900 = vld [vmem:[#allocation3 + $0x1c] sm:$0x7]
        %v3901 = vsel %vm1996, %v3868, %v3900
        %3902 = vst [vmem:[#allocation3 + $0x1c] sm:$0x7] %v3901
        %v3903 = vld [vmem:[#allocation3 + $0x24] sm:$0x7]
        %v3904 = vsel %vm1996, %v3870, %v3903
        %3905 = vst [vmem:[#allocation3 + $0x24] sm:$0x7] %v3904
        %v3906 = vld [vmem:[#allocation3 + $0x2c] sm:$0x7]
        %v3907 = vsel %vm1996, %v3872, %v3906
        %3908 = vst [vmem:[#allocation3 + $0x2c] sm:$0x7] %v3907
        %v3909 = vld [vmem:[#allocation3 + $0x34] sm:$0x7]
        %v3910 = vsel %vm1996, %v3874, %v3909
        %3911 = vst [vmem:[#allocation3 + $0x34] sm:$0x7] %v3910
        %v3912 = vld [vmem:[#allocation3 + $0x3c] sm:$0x7]
        %v3913 = vsel %vm1996, %v3876, %v3912
        %3914 = vst [vmem:[#allocation3 + $0x3c] sm:$0x7] %v3913
        %v3915 = vld [vmem:[#allocation3 + $0x44] sm:$0x7]
        %v3916 = vsel %vm1996, %v3878, %v3915
        %3917 = vst [vmem:[#allocation3 + $0x44] sm:$0x7] %v3916
        %v3918 = vld [vmem:[#allocation3 + $0x4c] sm:$0x7]
        %v3919 = vsel %vm1996, %v3880, %v3918
        %3920 = vst [vmem:[#allocation3 + $0x4c] sm:$0x7] %v3919
        %v3921 = vld [vmem:[%s3720] sm:$0x7]
        %v3922 = vld [vmem:[%s3720 + $0x4] sm:$0x7]
        %v3923 = vld [vmem:[%s3720 + $0x8] sm:$0x7]
        %v3924 = vld [vmem:[%s3720 + $0xc] sm:$0x7]
        %v3925 = vld [vmem:[%s3720 + $0x10] sm:$0x7]
        %v3926 = vld [vmem:[%s3720 + $0x14] sm:$0x7]
        %v3927 = vld [vmem:[%s3720 + $0x18] sm:$0x7]
        %v3928 = vld [vmem:[%s3720 + $0x1c] sm:$0x7]
        %v3929 = vld [vmem:[%s3720 + $0x20] sm:$0x7]
        %v3930 = vld [vmem:[%s3720 + $0x24] sm:$0x7]
        %v3932 = vshrl.u32 %v3921, 16
        %v3934 = vrot.slane %v3932, 4
        %v3935 = vshll.u32 %v3921, 16
        %v3937 = vrot.slane %v3935, 5
        %v3938 = vor.u32 %v3934, %v3937
        %v3939 = vrot.slane %v3938, 4
        %v3941 = vshrl.u32 %v3922, 16
        %v3943 = vrot.slane %v3941, 4
        %v3944 = vshll.u32 %v3922, 16
        %v3946 = vrot.slane %v3944, 5
        %v3947 = vor.u32 %v3943, %v3946
        %v3948 = vrot.slane %v3947, 4
        %v3950 = vshrl.u32 %v3923, 16
        %v3952 = vrot.slane %v3950, 4
        %v3953 = vshll.u32 %v3923, 16
        %v3955 = vrot.slane %v3953, 5
        %v3956 = vor.u32 %v3952, %v3955
        %v3957 = vrot.slane %v3956, 4
        %v3959 = vshrl.u32 %v3924, 16
        %v3961 = vrot.slane %v3959, 4
        %v3962 = vshll.u32 %v3924, 16
        %v3964 = vrot.slane %v3962, 5
        %v3965 = vor.u32 %v3961, %v3964
        %v3966 = vrot.slane %v3965, 4
        %v3968 = vshrl.u32 %v3925, 16
        %v3970 = vrot.slane %v3968, 4
        %v3971 = vshll.u32 %v3925, 16
        %v3973 = vrot.slane %v3971, 5
        %v3974 = vor.u32 %v3970, %v3973
        %v3975 = vrot.slane %v3974, 4
        %v3977 = vshrl.u32 %v3926, 16
        %v3979 = vrot.slane %v3977, 4
        %v3980 = vshll.u32 %v3926, 16
        %v3982 = vrot.slane %v3980, 5
        %v3983 = vor.u32 %v3979, %v3982
        %v3984 = vrot.slane %v3983, 4
        %v3986 = vshrl.u32 %v3927, 16
        %v3988 = vrot.slane %v3986, 4
        %v3989 = vshll.u32 %v3927, 16
        %v3991 = vrot.slane %v3989, 5
        %v3992 = vor.u32 %v3988, %v3991
        %v3993 = vrot.slane %v3992, 4
        %v3995 = vshrl.u32 %v3928, 16
        %v3997 = vrot.slane %v3995, 4
        %v3998 = vshll.u32 %v3928, 16
        %v4000 = vrot.slane %v3998, 5
        %v4001 = vor.u32 %v3997, %v4000
        %v4002 = vrot.slane %v4001, 4
        %v4004 = vshrl.u32 %v3929, 16
        %v4006 = vrot.slane %v4004, 4
        %v4007 = vshll.u32 %v3929, 16
        %v4009 = vrot.slane %v4007, 5
        %v4010 = vor.u32 %v4006, %v4009
        %v4011 = vrot.slane %v4010, 4
        %v4013 = vshrl.u32 %v3930, 16
        %v4015 = vrot.slane %v4013, 4
        %v4016 = vshll.u32 %v3930, 16
        %v4018 = vrot.slane %v4016, 5
        %v4019 = vor.u32 %v4015, %v4018
        %v4020 = vrot.slane %v4019, 4
        %4021 = vrot.lane.b32.xlu0 %v3939, 16
        %v4022 = vpop.permute.xlu0 %4021
        %4023 = vrot.lane.b32.xlu0 %v3948, 16
        %v4024 = vpop.permute.xlu0 %4023
        %4025 = vrot.lane.b32.xlu0 %v3957, 16
        %v4026 = vpop.permute.xlu0 %4025
        %4027 = vrot.lane.b32.xlu0 %v3966, 16
        %v4028 = vpop.permute.xlu0 %4027
        %4029 = vrot.lane.b32.xlu0 %v3975, 16
        %v4030 = vpop.permute.xlu0 %4029
        %4031 = vrot.lane.b32.xlu0 %v3984, 16
        %v4032 = vpop.permute.xlu0 %4031
        %4033 = vrot.lane.b32.xlu0 %v3993, 16
        %v4034 = vpop.permute.xlu0 %4033
        %4035 = vrot.lane.b32.xlu0 %v4002, 16
        %v4036 = vpop.permute.xlu0 %4035
        %4037 = vrot.lane.b32.xlu0 %v4011, 16
        %v4038 = vpop.permute.xlu0 %4037
        %4039 = vrot.lane.b32.xlu0 %v4020, 16
        %v4040 = vpop.permute.xlu0 %4039
        %v4051 = vld [vmem:[#allocation3 + $0x4] sm:$0x7]
        %v4052 = vsel %vm2158, %v4022, %v4051
        %4053 = vst [vmem:[#allocation3 + $0x4] sm:$0x7] %v4052
        %v4054 = vld [vmem:[#allocation3 + $0xc] sm:$0x7]
        %v4055 = vsel %vm2158, %v4024, %v4054
        %4056 = vst [vmem:[#allocation3 + $0xc] sm:$0x7] %v4055
        %v4057 = vld [vmem:[#allocation3 + $0x14] sm:$0x7]
        %v4058 = vsel %vm2158, %v4026, %v4057
        %4059 = vst [vmem:[#allocation3 + $0x14] sm:$0x7] %v4058
        %v4060 = vld [vmem:[#allocation3 + $0x1c] sm:$0x7]
        %v4061 = vsel %vm2158, %v4028, %v4060
        %4062 = vst [vmem:[#allocation3 + $0x1c] sm:$0x7] %v4061
        %v4063 = vld [vmem:[#allocation3 + $0x24] sm:$0x7]
        %v4064 = vsel %vm2158, %v4030, %v4063
        %4065 = vst [vmem:[#allocation3 + $0x24] sm:$0x7] %v4064
        %v4066 = vld [vmem:[#allocation3 + $0x2c] sm:$0x7]
        %v4067 = vsel %vm2158, %v4032, %v4066
        %4068 = vst [vmem:[#allocation3 + $0x2c] sm:$0x7] %v4067
        %v4069 = vld [vmem:[#allocation3 + $0x34] sm:$0x7]
        %v4070 = vsel %vm2158, %v4034, %v4069
        %4071 = vst [vmem:[#allocation3 + $0x34] sm:$0x7] %v4070
        %v4072 = vld [vmem:[#allocation3 + $0x3c] sm:$0x7]
        %v4073 = vsel %vm2158, %v4036, %v4072
        %4074 = vst [vmem:[#allocation3 + $0x3c] sm:$0x7] %v4073
        %v4075 = vld [vmem:[#allocation3 + $0x44] sm:$0x7]
        %v4076 = vsel %vm2158, %v4038, %v4075
        %4077 = vst [vmem:[#allocation3 + $0x44] sm:$0x7] %v4076
        %v4078 = vld [vmem:[#allocation3 + $0x4c] sm:$0x7]
        %v4079 = vsel %vm2158, %v4040, %v4078
        %4080 = vst [vmem:[#allocation3 + $0x4c] sm:$0x7] %v4079
        %v4081 = vld [vmem:[%s3637] sm:$0xe]
        %v4082 = vld [vmem:[%s3637 + $0x4] sm:$0xe]
        %v4083 = vld [vmem:[%s3637 + $0x8] sm:$0xe]
        %v4084 = vld [vmem:[%s3637 + $0xc] sm:$0xe]
        %v4085 = vld [vmem:[%s3637 + $0x10] sm:$0xe]
        %v4086 = vld [vmem:[%s3637 + $0x14] sm:$0xe]
        %v4087 = vld [vmem:[%s3637 + $0x18] sm:$0xe]
        %v4088 = vld [vmem:[%s3637 + $0x1c] sm:$0xe]
        %v4089 = vld [vmem:[%s3637 + $0x20] sm:$0xe]
        %v4090 = vld [vmem:[%s3637 + $0x24] sm:$0xe]
        %v4101 = vrot.slane %v4081, 5
        %v4102 = vrot.slane %v4101, 4
        %v4103 = vrot.slane %v4082, 5
        %v4104 = vrot.slane %v4103, 4
        %v4105 = vrot.slane %v4083, 5
        %v4106 = vrot.slane %v4105, 4
        %v4107 = vrot.slane %v4084, 5
        %v4108 = vrot.slane %v4107, 4
        %v4109 = vrot.slane %v4085, 5
        %v4110 = vrot.slane %v4109, 4
        %v4111 = vrot.slane %v4086, 5
        %v4112 = vrot.slane %v4111, 4
        %v4113 = vrot.slane %v4087, 5
        %v4114 = vrot.slane %v4113, 4
        %v4115 = vrot.slane %v4088, 5
        %v4116 = vrot.slane %v4115, 4
        %v4117 = vrot.slane %v4089, 5
        %v4118 = vrot.slane %v4117, 4
        %v4119 = vrot.slane %v4090, 5
        %v4120 = vrot.slane %v4119, 4
        %4121 = vrot.lane.b32.xlu0 %v4102, 24
        %v4122 = vpop.permute.xlu0 %4121
        %4123 = vrot.lane.b32.xlu0 %v4104, 24
        %v4124 = vpop.permute.xlu0 %4123
        %4125 = vrot.lane.b32.xlu0 %v4106, 24
        %v4126 = vpop.permute.xlu0 %4125
        %4127 = vrot.lane.b32.xlu0 %v4108, 24
        %v4128 = vpop.permute.xlu0 %4127
        %4129 = vrot.lane.b32.xlu0 %v4110, 24
        %v4130 = vpop.permute.xlu0 %4129
        %4131 = vrot.lane.b32.xlu0 %v4112, 24
        %v4132 = vpop.permute.xlu0 %4131
        %4133 = vrot.lane.b32.xlu0 %v4114, 24
        %v4134 = vpop.permute.xlu0 %4133
        %4135 = vrot.lane.b32.xlu0 %v4116, 24
        %v4136 = vpop.permute.xlu0 %4135
        %4137 = vrot.lane.b32.xlu0 %v4118, 24
        %v4138 = vpop.permute.xlu0 %4137
        %4139 = vrot.lane.b32.xlu0 %v4120, 24
        %v4140 = vpop.permute.xlu0 %4139
        %v4151 = vld [vmem:[#allocation3 + $0x4] sm:$0x7]
        %v4152 = vsel %vm2320, %v4122, %v4151
        %4153 = vst [vmem:[#allocation3 + $0x4] sm:$0x7] %v4152
        %v4154 = vld [vmem:[#allocation3 + $0xc] sm:$0x7]
        %v4155 = vsel %vm2320, %v4124, %v4154
        %4156 = vst [vmem:[#allocation3 + $0xc] sm:$0x7] %v4155
        %v4157 = vld [vmem:[#allocation3 + $0x14] sm:$0x7]
        %v4158 = vsel %vm2320, %v4126, %v4157
        %4159 = vst [vmem:[#allocation3 + $0x14] sm:$0x7] %v4158
        %v4160 = vld [vmem:[#allocation3 + $0x1c] sm:$0x7]
        %v4161 = vsel %vm2320, %v4128, %v4160
        %4162 = vst [vmem:[#allocation3 + $0x1c] sm:$0x7] %v4161
        %v4163 = vld [vmem:[#allocation3 + $0x24] sm:$0x7]
        %v4164 = vsel %vm2320, %v4130, %v4163
        %4165 = vst [vmem:[#allocation3 + $0x24] sm:$0x7] %v4164
        %v4166 = vld [vmem:[#allocation3 + $0x2c] sm:$0x7]
        %v4167 = vsel %vm2320, %v4132, %v4166
        %4168 = vst [vmem:[#allocation3 + $0x2c] sm:$0x7] %v4167
        %v4169 = vld [vmem:[#allocation3 + $0x34] sm:$0x7]
        %v4170 = vsel %vm2320, %v4134, %v4169
        %4171 = vst [vmem:[#allocation3 + $0x34] sm:$0x7] %v4170
        %v4172 = vld [vmem:[#allocation3 + $0x3c] sm:$0x7]
        %v4173 = vsel %vm2320, %v4136, %v4172
        %4174 = vst [vmem:[#allocation3 + $0x3c] sm:$0x7] %v4173
        %v4175 = vld [vmem:[#allocation3 + $0x44] sm:$0x7]
        %v4176 = vsel %vm2320, %v4138, %v4175
        %4177 = vst [vmem:[#allocation3 + $0x44] sm:$0x7] %v4176
        %v4178 = vld [vmem:[#allocation3 + $0x4c] sm:$0x7]
        %v4179 = vsel %vm2320, %v4140, %v4178
        %4180 = vst [vmem:[#allocation3 + $0x4c] sm:$0x7] %v4179
        %s4181 = scalar_lea.vmem [#allocation2], 16
        %v4182 = vld [vmem:[%s4181] sm:$0x7]
        %v4183 = vld [vmem:[%s4181 + $0x4] sm:$0x7]
        %v4184 = vld [vmem:[%s4181 + $0x8] sm:$0x7]
        %v4185 = vld [vmem:[%s4181 + $0xc] sm:$0x7]
        %v4186 = vld [vmem:[%s4181 + $0x10] sm:$0x7]
        %v4187 = vld [vmem:[%s4181 + $0x14] sm:$0x7]
        %v4188 = vld [vmem:[%s4181 + $0x18] sm:$0x7]
        %v4189 = vld [vmem:[%s4181 + $0x1c] sm:$0x7]
        %v4190 = vld [vmem:[%s4181 + $0x20] sm:$0x7]
        %v4191 = vld [vmem:[%s4181 + $0x24] sm:$0x7]
        %4202 = vrot.lane.b32.xlu0 %v4182, 32
        %v4203 = vpop.permute.xlu0 %4202
        %4204 = vrot.lane.b32.xlu0 %v4183, 32
        %v4205 = vpop.permute.xlu0 %4204
        %4206 = vrot.lane.b32.xlu0 %v4184, 32
        %v4207 = vpop.permute.xlu0 %4206
        %4208 = vrot.lane.b32.xlu0 %v4185, 32
        %v4209 = vpop.permute.xlu0 %4208
        %4210 = vrot.lane.b32.xlu0 %v4186, 32
        %v4211 = vpop.permute.xlu0 %4210
        %4212 = vrot.lane.b32.xlu0 %v4187, 32
        %v4213 = vpop.permute.xlu0 %4212
        %4214 = vrot.lane.b32.xlu0 %v4188, 32
        %v4215 = vpop.permute.xlu0 %4214
        %4216 = vrot.lane.b32.xlu0 %v4189, 32
        %v4217 = vpop.permute.xlu0 %4216
        %4218 = vrot.lane.b32.xlu0 %v4190, 32
        %v4219 = vpop.permute.xlu0 %4218
        %4220 = vrot.lane.b32.xlu0 %v4191, 32
        %v4221 = vpop.permute.xlu0 %4220
        %v4232 = vld [vmem:[#allocation3 + $0x4] sm:$0x7]
        %v4233 = vsel %vm2422, %v4203, %v4232
        %4234 = vst [vmem:[#allocation3 + $0x4] sm:$0x7] %v4233
        %v4235 = vld [vmem:[#allocation3 + $0xc] sm:$0x7]
        %v4236 = vsel %vm2422, %v4205, %v4235
        %4237 = vst [vmem:[#allocation3 + $0xc] sm:$0x7] %v4236
        %v4238 = vld [vmem:[#allocation3 + $0x14] sm:$0x7]
        %v4239 = vsel %vm2422, %v4207, %v4238
        %4240 = vst [vmem:[#allocation3 + $0x14] sm:$0x7] %v4239
        %v4241 = vld [vmem:[#allocation3 + $0x1c] sm:$0x7]
        %v4242 = vsel %vm2422, %v4209, %v4241
        %4243 = vst [vmem:[#allocation3 + $0x1c] sm:$0x7] %v4242
        %v4244 = vld [vmem:[#allocation3 + $0x24] sm:$0x7]
        %v4245 = vsel %vm2422, %v4211, %v4244
        %4246 = vst [vmem:[#allocation3 + $0x24] sm:$0x7] %v4245
        %v4247 = vld [vmem:[#allocation3 + $0x2c] sm:$0x7]
        %v4248 = vsel %vm2422, %v4213, %v4247
        %4249 = vst [vmem:[#allocation3 + $0x2c] sm:$0x7] %v4248
        %v4250 = vld [vmem:[#allocation3 + $0x34] sm:$0x7]
        %v4251 = vsel %vm2422, %v4215, %v4250
        %4252 = vst [vmem:[#allocation3 + $0x34] sm:$0x7] %v4251
        %v4253 = vld [vmem:[#allocation3 + $0x3c] sm:$0x7]
        %v4254 = vsel %vm2422, %v4217, %v4253
        %4255 = vst [vmem:[#allocation3 + $0x3c] sm:$0x7] %v4254
        %v4256 = vld [vmem:[#allocation3 + $0x44] sm:$0x7]
        %v4257 = vsel %vm2422, %v4219, %v4256
        %4258 = vst [vmem:[#allocation3 + $0x44] sm:$0x7] %v4257
        %v4259 = vld [vmem:[#allocation3 + $0x4c] sm:$0x7]
        %v4260 = vsel %vm2422, %v4221, %v4259
        %4261 = vst [vmem:[#allocation3 + $0x4c] sm:$0x7] %v4260
        %s4262 = scalar_lea.vmem [#allocation2], 72
        %v4263 = vld [vmem:[%s4262] sm:$0x7]
        %v4264 = vld [vmem:[%s4262 + $0x4] sm:$0x7]
        %v4265 = vld [vmem:[%s4262 + $0x8] sm:$0x7]
        %v4266 = vld [vmem:[%s4262 + $0xc] sm:$0x7]
        %v4267 = vld [vmem:[%s4262 + $0x10] sm:$0x7]
        %v4268 = vld [vmem:[%s4262 + $0x14] sm:$0x7]
        %v4269 = vld [vmem:[%s4262 + $0x18] sm:$0x7]
        %v4270 = vld [vmem:[%s4262 + $0x1c] sm:$0x7]
        %v4271 = vld [vmem:[%s4262 + $0x20] sm:$0x7]
        %v4272 = vld [vmem:[%s4262 + $0x24] sm:$0x7]
        %4283 = vrot.lane.b32.xlu0 %v4263, 40
        %v4284 = vpop.permute.xlu0 %4283
        %4285 = vrot.lane.b32.xlu0 %v4264, 40
        %v4286 = vpop.permute.xlu0 %4285
        %4287 = vrot.lane.b32.xlu0 %v4265, 40
        %v4288 = vpop.permute.xlu0 %4287
        %4289 = vrot.lane.b32.xlu0 %v4266, 40
        %v4290 = vpop.permute.xlu0 %4289
        %4291 = vrot.lane.b32.xlu0 %v4267, 40
        %v4292 = vpop.permute.xlu0 %4291
        %4293 = vrot.lane.b32.xlu0 %v4268, 40
        %v4294 = vpop.permute.xlu0 %4293
        %4295 = vrot.lane.b32.xlu0 %v4269, 40
        %v4296 = vpop.permute.xlu0 %4295
        %4297 = vrot.lane.b32.xlu0 %v4270, 40
        %v4298 = vpop.permute.xlu0 %4297
        %4299 = vrot.lane.b32.xlu0 %v4271, 40
        %v4300 = vpop.permute.xlu0 %4299
        %4301 = vrot.lane.b32.xlu0 %v4272, 40
        %v4302 = vpop.permute.xlu0 %4301
        %v4313 = vld [vmem:[#allocation3 + $0x4] sm:$0x7]
        %v4314 = vsel %vm2505, %v4284, %v4313
        %4315 = vst [vmem:[#allocation3 + $0x4] sm:$0x7] %v4314
        %v4316 = vld [vmem:[#allocation3 + $0xc] sm:$0x7]
        %v4317 = vsel %vm2505, %v4286, %v4316
        %4318 = vst [vmem:[#allocation3 + $0xc] sm:$0x7] %v4317
        %v4319 = vld [vmem:[#allocation3 + $0x14] sm:$0x7]
        %v4320 = vsel %vm2505, %v4288, %v4319
        %4321 = vst [vmem:[#allocation3 + $0x14] sm:$0x7] %v4320
        %v4322 = vld [vmem:[#allocation3 + $0x1c] sm:$0x7]
        %v4323 = vsel %vm2505, %v4290, %v4322
        %4324 = vst [vmem:[#allocation3 + $0x1c] sm:$0x7] %v4323
        %v4325 = vld [vmem:[#allocation3 + $0x24] sm:$0x7]
        %v4326 = vsel %vm2505, %v4292, %v4325
        %4327 = vst [vmem:[#allocation3 + $0x24] sm:$0x7] %v4326
        %v4328 = vld [vmem:[#allocation3 + $0x2c] sm:$0x7]
        %v4329 = vsel %vm2505, %v4294, %v4328
        %4330 = vst [vmem:[#allocation3 + $0x2c] sm:$0x7] %v4329
        %v4331 = vld [vmem:[#allocation3 + $0x34] sm:$0x7]
        %v4332 = vsel %vm2505, %v4296, %v4331
        %4333 = vst [vmem:[#allocation3 + $0x34] sm:$0x7] %v4332
        %v4334 = vld [vmem:[#allocation3 + $0x3c] sm:$0x7]
        %v4335 = vsel %vm2505, %v4298, %v4334
        %4336 = vst [vmem:[#allocation3 + $0x3c] sm:$0x7] %v4335
        %v4337 = vld [vmem:[#allocation3 + $0x44] sm:$0x7]
        %v4338 = vsel %vm2505, %v4300, %v4337
        %4339 = vst [vmem:[#allocation3 + $0x44] sm:$0x7] %v4338
        %v4340 = vld [vmem:[#allocation3 + $0x4c] sm:$0x7]
        %v4341 = vsel %vm2505, %v4302, %v4340
        %4342 = vst [vmem:[#allocation3 + $0x4c] sm:$0x7] %v4341
        %v4343 = vld [vmem:[%s4181] sm:$0x7]
        %v4344 = vld [vmem:[%s4181 + $0x4] sm:$0x7]
        %v4345 = vld [vmem:[%s4181 + $0x8] sm:$0x7]
        %v4346 = vld [vmem:[%s4181 + $0xc] sm:$0x7]
        %v4347 = vld [vmem:[%s4181 + $0x10] sm:$0x7]
        %v4348 = vld [vmem:[%s4181 + $0x14] sm:$0x7]
        %v4349 = vld [vmem:[%s4181 + $0x18] sm:$0x7]
        %v4350 = vld [vmem:[%s4181 + $0x1c] sm:$0x7]
        %v4351 = vld [vmem:[%s4181 + $0x20] sm:$0x7]
        %v4352 = vld [vmem:[%s4181 + $0x24] sm:$0x7]
        %v4354 = vshrl.u32 %v4343, 16
        %v4356 = vrot.slane %v4354, 4
        %v4357 = vshll.u32 %v4343, 16
        %v4359 = vrot.slane %v4357, 5
        %v4360 = vor.u32 %v4356, %v4359
        %v4361 = vrot.slane %v4360, 4
        %v4363 = vshrl.u32 %v4344, 16
        %v4365 = vrot.slane %v4363, 4
        %v4366 = vshll.u32 %v4344, 16
        %v4368 = vrot.slane %v4366, 5
        %v4369 = vor.u32 %v4365, %v4368
        %v4370 = vrot.slane %v4369, 4
        %v4372 = vshrl.u32 %v4345, 16
        %v4374 = vrot.slane %v4372, 4
        %v4375 = vshll.u32 %v4345, 16
        %v4377 = vrot.slane %v4375, 5
        %v4378 = vor.u32 %v4374, %v4377
        %v4379 = vrot.slane %v4378, 4
        %v4381 = vshrl.u32 %v4346, 16
        %v4383 = vrot.slane %v4381, 4
        %v4384 = vshll.u32 %v4346, 16
        %v4386 = vrot.slane %v4384, 5
        %v4387 = vor.u32 %v4383, %v4386
        %v4388 = vrot.slane %v4387, 4
        %v4390 = vshrl.u32 %v4347, 16
        %v4392 = vrot.slane %v4390, 4
        %v4393 = vshll.u32 %v4347, 16
        %v4395 = vrot.slane %v4393, 5
        %v4396 = vor.u32 %v4392, %v4395
        %v4397 = vrot.slane %v4396, 4
        %v4399 = vshrl.u32 %v4348, 16
        %v4401 = vrot.slane %v4399, 4
        %v4402 = vshll.u32 %v4348, 16
        %v4404 = vrot.slane %v4402, 5
        %v4405 = vor.u32 %v4401, %v4404
        %v4406 = vrot.slane %v4405, 4
        %v4408 = vshrl.u32 %v4349, 16
        %v4410 = vrot.slane %v4408, 4
        %v4411 = vshll.u32 %v4349, 16
        %v4413 = vrot.slane %v4411, 5
        %v4414 = vor.u32 %v4410, %v4413
        %v4415 = vrot.slane %v4414, 4
        %v4417 = vshrl.u32 %v4350, 16
        %v4419 = vrot.slane %v4417, 4
        %v4420 = vshll.u32 %v4350, 16
        %v4422 = vrot.slane %v4420, 5
        %v4423 = vor.u32 %v4419, %v4422
        %v4424 = vrot.slane %v4423, 4
        %v4426 = vshrl.u32 %v4351, 16
        %v4428 = vrot.slane %v4426, 4
        %v4429 = vshll.u32 %v4351, 16
        %v4431 = vrot.slane %v4429, 5
        %v4432 = vor.u32 %v4428, %v4431
        %v4433 = vrot.slane %v4432, 4
        %v4435 = vshrl.u32 %v4352, 16
        %v4437 = vrot.slane %v4435, 4
        %v4438 = vshll.u32 %v4352, 16
        %v4440 = vrot.slane %v4438, 5
        %v4441 = vor.u32 %v4437, %v4440
        %v4442 = vrot.slane %v4441, 4
        %4443 = vrot.lane.b32.xlu0 %v4361, 48
        %v4444 = vpop.permute.xlu0 %4443
        %4445 = vrot.lane.b32.xlu0 %v4370, 48
        %v4446 = vpop.permute.xlu0 %4445
        %4447 = vrot.lane.b32.xlu0 %v4379, 48
        %v4448 = vpop.permute.xlu0 %4447
        %4449 = vrot.lane.b32.xlu0 %v4388, 48
        %v4450 = vpop.permute.xlu0 %4449
        %4451 = vrot.lane.b32.xlu0 %v4397, 48
        %v4452 = vpop.permute.xlu0 %4451
        %4453 = vrot.lane.b32.xlu0 %v4406, 48
        %v4454 = vpop.permute.xlu0 %4453
        %4455 = vrot.lane.b32.xlu0 %v4415, 48
        %v4456 = vpop.permute.xlu0 %4455
        %4457 = vrot.lane.b32.xlu0 %v4424, 48
        %v4458 = vpop.permute.xlu0 %4457
        %4459 = vrot.lane.b32.xlu0 %v4433, 48
        %v4460 = vpop.permute.xlu0 %4459
        %4461 = vrot.lane.b32.xlu0 %v4442, 48
        %v4462 = vpop.permute.xlu0 %4461
        %v4473 = vld [vmem:[#allocation3 + $0x4] sm:$0x7]
        %v4474 = vsel %vm2588, %v4444, %v4473
        %4475 = vst [vmem:[#allocation3 + $0x4] sm:$0x7] %v4474
        %v4476 = vld [vmem:[#allocation3 + $0xc] sm:$0x7]
        %v4477 = vsel %vm2588, %v4446, %v4476
        %4478 = vst [vmem:[#allocation3 + $0xc] sm:$0x7] %v4477
        %v4479 = vld [vmem:[#allocation3 + $0x14] sm:$0x7]
        %v4480 = vsel %vm2588, %v4448, %v4479
        %4481 = vst [vmem:[#allocation3 + $0x14] sm:$0x7] %v4480
        %v4482 = vld [vmem:[#allocation3 + $0x1c] sm:$0x7]
        %v4483 = vsel %vm2588, %v4450, %v4482
        %4484 = vst [vmem:[#allocation3 + $0x1c] sm:$0x7] %v4483
        %v4485 = vld [vmem:[#allocation3 + $0x24] sm:$0x7]
        %v4486 = vsel %vm2588, %v4452, %v4485
        %4487 = vst [vmem:[#allocation3 + $0x24] sm:$0x7] %v4486
        %v4488 = vld [vmem:[#allocation3 + $0x2c] sm:$0x7]
        %v4489 = vsel %vm2588, %v4454, %v4488
        %4490 = vst [vmem:[#allocation3 + $0x2c] sm:$0x7] %v4489
        %v4491 = vld [vmem:[#allocation3 + $0x34] sm:$0x7]
        %v4492 = vsel %vm2588, %v4456, %v4491
        %4493 = vst [vmem:[#allocation3 + $0x34] sm:$0x7] %v4492
        %v4494 = vld [vmem:[#allocation3 + $0x3c] sm:$0x7]
        %v4495 = vsel %vm2588, %v4458, %v4494
        %4496 = vst [vmem:[#allocation3 + $0x3c] sm:$0x7] %v4495
        %v4497 = vld [vmem:[#allocation3 + $0x44] sm:$0x7]
        %v4498 = vsel %vm2588, %v4460, %v4497
        %4499 = vst [vmem:[#allocation3 + $0x44] sm:$0x7] %v4498
        %v4500 = vld [vmem:[#allocation3 + $0x4c] sm:$0x7]
        %v4501 = vsel %vm2588, %v4462, %v4500
        %4502 = vst [vmem:[#allocation3 + $0x4c] sm:$0x7] %v4501
        %v4503 = vld [vmem:[%s4262] sm:$0x7]
        %v4504 = vld [vmem:[%s4262 + $0x4] sm:$0x7]
        %v4505 = vld [vmem:[%s4262 + $0x8] sm:$0x7]
        %v4506 = vld [vmem:[%s4262 + $0xc] sm:$0x7]
        %v4507 = vld [vmem:[%s4262 + $0x10] sm:$0x7]
        %v4508 = vld [vmem:[%s4262 + $0x14] sm:$0x7]
        %v4509 = vld [vmem:[%s4262 + $0x18] sm:$0x7]
        %v4510 = vld [vmem:[%s4262 + $0x1c] sm:$0x7]
        %v4511 = vld [vmem:[%s4262 + $0x20] sm:$0x7]
        %v4512 = vld [vmem:[%s4262 + $0x24] sm:$0x7]
        %v4514 = vshrl.u32 %v4503, 16
        %v4516 = vrot.slane %v4514, 4
        %v4517 = vshll.u32 %v4503, 16
        %v4519 = vrot.slane %v4517, 5
        %v4520 = vor.u32 %v4516, %v4519
        %v4521 = vrot.slane %v4520, 4
        %v4523 = vshrl.u32 %v4504, 16
        %v4525 = vrot.slane %v4523, 4
        %v4526 = vshll.u32 %v4504, 16
        %v4528 = vrot.slane %v4526, 5
        %v4529 = vor.u32 %v4525, %v4528
        %v4530 = vrot.slane %v4529, 4
        %v4532 = vshrl.u32 %v4505, 16
        %v4534 = vrot.slane %v4532, 4
        %v4535 = vshll.u32 %v4505, 16
        %v4537 = vrot.slane %v4535, 5
        %v4538 = vor.u32 %v4534, %v4537
        %v4539 = vrot.slane %v4538, 4
        %v4541 = vshrl.u32 %v4506, 16
        %v4543 = vrot.slane %v4541, 4
        %v4544 = vshll.u32 %v4506, 16
        %v4546 = vrot.slane %v4544, 5
        %v4547 = vor.u32 %v4543, %v4546
        %v4548 = vrot.slane %v4547, 4
        %v4550 = vshrl.u32 %v4507, 16
        %v4552 = vrot.slane %v4550, 4
        %v4553 = vshll.u32 %v4507, 16
        %v4555 = vrot.slane %v4553, 5
        %v4556 = vor.u32 %v4552, %v4555
        %v4557 = vrot.slane %v4556, 4
        %v4559 = vshrl.u32 %v4508, 16
        %v4561 = vrot.slane %v4559, 4
        %v4562 = vshll.u32 %v4508, 16
        %v4564 = vrot.slane %v4562, 5
        %v4565 = vor.u32 %v4561, %v4564
        %v4566 = vrot.slane %v4565, 4
        %v4568 = vshrl.u32 %v4509, 16
        %v4570 = vrot.slane %v4568, 4
        %v4571 = vshll.u32 %v4509, 16
        %v4573 = vrot.slane %v4571, 5
        %v4574 = vor.u32 %v4570, %v4573
        %v4575 = vrot.slane %v4574, 4
        %v4577 = vshrl.u32 %v4510, 16
        %v4579 = vrot.slane %v4577, 4
        %v4580 = vshll.u32 %v4510, 16
        %v4582 = vrot.slane %v4580, 5
        %v4583 = vor.u32 %v4579, %v4582
        %v4584 = vrot.slane %v4583, 4
        %v4586 = vshrl.u32 %v4511, 16
        %v4588 = vrot.slane %v4586, 4
        %v4589 = vshll.u32 %v4511, 16
        %v4591 = vrot.slane %v4589, 5
        %v4592 = vor.u32 %v4588, %v4591
        %v4593 = vrot.slane %v4592, 4
        %v4595 = vshrl.u32 %v4512, 16
        %v4597 = vrot.slane %v4595, 4
        %v4598 = vshll.u32 %v4512, 16
        %v4600 = vrot.slane %v4598, 5
        %v4601 = vor.u32 %v4597, %v4600
        %v4602 = vrot.slane %v4601, 4
        %4603 = vrot.lane.b32.xlu0 %v4521, 56
        %v4604 = vpop.permute.xlu0 %4603
        %4605 = vrot.lane.b32.xlu0 %v4530, 56
        %v4606 = vpop.permute.xlu0 %4605
        %4607 = vrot.lane.b32.xlu0 %v4539, 56
        %v4608 = vpop.permute.xlu0 %4607
        %4609 = vrot.lane.b32.xlu0 %v4548, 56
        %v4610 = vpop.permute.xlu0 %4609
        %4611 = vrot.lane.b32.xlu0 %v4557, 56
        %v4612 = vpop.permute.xlu0 %4611
        %4613 = vrot.lane.b32.xlu0 %v4566, 56
        %v4614 = vpop.permute.xlu0 %4613
        %4615 = vrot.lane.b32.xlu0 %v4575, 56
        %v4616 = vpop.permute.xlu0 %4615
        %4617 = vrot.lane.b32.xlu0 %v4584, 56
        %v4618 = vpop.permute.xlu0 %4617
        %4619 = vrot.lane.b32.xlu0 %v4593, 56
        %v4620 = vpop.permute.xlu0 %4619
        %4621 = vrot.lane.b32.xlu0 %v4602, 56
        %v4622 = vpop.permute.xlu0 %4621
        %v4633 = vld [vmem:[#allocation3 + $0x4] sm:$0x7]
        %v4634 = vsel %vm2750, %v4604, %v4633
        %4635 = vst [vmem:[#allocation3 + $0x4] sm:$0x7] %v4634
        %v4636 = vld [vmem:[#allocation3 + $0xc] sm:$0x7]
        %v4637 = vsel %vm2750, %v4606, %v4636
        %4638 = vst [vmem:[#allocation3 + $0xc] sm:$0x7] %v4637
        %v4639 = vld [vmem:[#allocation3 + $0x14] sm:$0x7]
        %v4640 = vsel %vm2750, %v4608, %v4639
        %4641 = vst [vmem:[#allocation3 + $0x14] sm:$0x7] %v4640
        %v4642 = vld [vmem:[#allocation3 + $0x1c] sm:$0x7]
        %v4643 = vsel %vm2750, %v4610, %v4642
        %4644 = vst [vmem:[#allocation3 + $0x1c] sm:$0x7] %v4643
        %v4645 = vld [vmem:[#allocation3 + $0x24] sm:$0x7]
        %v4646 = vsel %vm2750, %v4612, %v4645
        %4647 = vst [vmem:[#allocation3 + $0x24] sm:$0x7] %v4646
        %v4648 = vld [vmem:[#allocation3 + $0x2c] sm:$0x7]
        %v4649 = vsel %vm2750, %v4614, %v4648
        %4650 = vst [vmem:[#allocation3 + $0x2c] sm:$0x7] %v4649
        %v4651 = vld [vmem:[#allocation3 + $0x34] sm:$0x7]
        %v4652 = vsel %vm2750, %v4616, %v4651
        %4653 = vst [vmem:[#allocation3 + $0x34] sm:$0x7] %v4652
        %v4654 = vld [vmem:[#allocation3 + $0x3c] sm:$0x7]
        %v4655 = vsel %vm2750, %v4618, %v4654
        %4656 = vst [vmem:[#allocation3 + $0x3c] sm:$0x7] %v4655
        %v4657 = vld [vmem:[#allocation3 + $0x44] sm:$0x7]
        %v4658 = vsel %vm2750, %v4620, %v4657
        %4659 = vst [vmem:[#allocation3 + $0x44] sm:$0x7] %v4658
        %v4660 = vld [vmem:[#allocation3 + $0x4c] sm:$0x7]
        %v4661 = vsel %vm2750, %v4622, %v4660
        %4662 = vst [vmem:[#allocation3 + $0x4c] sm:$0x7] %v4661
        %v4663 = vld [vmem:[%s4181] sm:$0xe]
        %v4664 = vld [vmem:[%s4181 + $0x4] sm:$0xe]
        %v4665 = vld [vmem:[%s4181 + $0x8] sm:$0xe]
        %v4666 = vld [vmem:[%s4181 + $0xc] sm:$0xe]
        %v4667 = vld [vmem:[%s4181 + $0x10] sm:$0xe]
        %v4668 = vld [vmem:[%s4181 + $0x14] sm:$0xe]
        %v4669 = vld [vmem:[%s4181 + $0x18] sm:$0xe]
        %v4670 = vld [vmem:[%s4181 + $0x1c] sm:$0xe]
        %v4671 = vld [vmem:[%s4181 + $0x20] sm:$0xe]
        %v4672 = vld [vmem:[%s4181 + $0x24] sm:$0xe]
        %v4683 = vrot.slane %v4663, 5
        %v4684 = vrot.slane %v4683, 4
        %v4685 = vrot.slane %v4664, 5
        %v4686 = vrot.slane %v4685, 4
        %v4687 = vrot.slane %v4665, 5
        %v4688 = vrot.slane %v4687, 4
        %v4689 = vrot.slane %v4666, 5
        %v4690 = vrot.slane %v4689, 4
        %v4691 = vrot.slane %v4667, 5
        %v4692 = vrot.slane %v4691, 4
        %v4693 = vrot.slane %v4668, 5
        %v4694 = vrot.slane %v4693, 4
        %v4695 = vrot.slane %v4669, 5
        %v4696 = vrot.slane %v4695, 4
        %v4697 = vrot.slane %v4670, 5
        %v4698 = vrot.slane %v4697, 4
        %v4699 = vrot.slane %v4671, 5
        %v4700 = vrot.slane %v4699, 4
        %v4701 = vrot.slane %v4672, 5
        %v4702 = vrot.slane %v4701, 4
        %4703 = vrot.lane.b32.xlu0 %v4684, 64
        %v4704 = vpop.permute.xlu0 %4703
        %4705 = vrot.lane.b32.xlu0 %v4686, 64
        %v4706 = vpop.permute.xlu0 %4705
        %4707 = vrot.lane.b32.xlu0 %v4688, 64
        %v4708 = vpop.permute.xlu0 %4707
        %4709 = vrot.lane.b32.xlu0 %v4690, 64
        %v4710 = vpop.permute.xlu0 %4709
        %4711 = vrot.lane.b32.xlu0 %v4692, 64
        %v4712 = vpop.permute.xlu0 %4711
        %4713 = vrot.lane.b32.xlu0 %v4694, 64
        %v4714 = vpop.permute.xlu0 %4713
        %4715 = vrot.lane.b32.xlu0 %v4696, 64
        %v4716 = vpop.permute.xlu0 %4715
        %4717 = vrot.lane.b32.xlu0 %v4698, 64
        %v4718 = vpop.permute.xlu0 %4717
        %4719 = vrot.lane.b32.xlu0 %v4700, 64
        %v4720 = vpop.permute.xlu0 %4719
        %4721 = vrot.lane.b32.xlu0 %v4702, 64
        %v4722 = vpop.permute.xlu0 %4721
        %v4733 = vld [vmem:[#allocation3 + $0x4] sm:$0x7]
        %v4734 = vsel %vm2912, %v4704, %v4733
        %4735 = vst [vmem:[#allocation3 + $0x4] sm:$0x7] %v4734
        %v4736 = vld [vmem:[#allocation3 + $0xc] sm:$0x7]
        %v4737 = vsel %vm2912, %v4706, %v4736
        %4738 = vst [vmem:[#allocation3 + $0xc] sm:$0x7] %v4737
        %v4739 = vld [vmem:[#allocation3 + $0x14] sm:$0x7]
        %v4740 = vsel %vm2912, %v4708, %v4739
        %4741 = vst [vmem:[#allocation3 + $0x14] sm:$0x7] %v4740
        %v4742 = vld [vmem:[#allocation3 + $0x1c] sm:$0x7]
        %v4743 = vsel %vm2912, %v4710, %v4742
        %4744 = vst [vmem:[#allocation3 + $0x1c] sm:$0x7] %v4743
        %v4745 = vld [vmem:[#allocation3 + $0x24] sm:$0x7]
        %v4746 = vsel %vm2912, %v4712, %v4745
        %4747 = vst [vmem:[#allocation3 + $0x24] sm:$0x7] %v4746
        %v4748 = vld [vmem:[#allocation3 + $0x2c] sm:$0x7]
        %v4749 = vsel %vm2912, %v4714, %v4748
        %4750 = vst [vmem:[#allocation3 + $0x2c] sm:$0x7] %v4749
        %v4751 = vld [vmem:[#allocation3 + $0x34] sm:$0x7]
        %v4752 = vsel %vm2912, %v4716, %v4751
        %4753 = vst [vmem:[#allocation3 + $0x34] sm:$0x7] %v4752
        %v4754 = vld [vmem:[#allocation3 + $0x3c] sm:$0x7]
        %v4755 = vsel %vm2912, %v4718, %v4754
        %4756 = vst [vmem:[#allocation3 + $0x3c] sm:$0x7] %v4755
        %v4757 = vld [vmem:[#allocation3 + $0x44] sm:$0x7]
        %v4758 = vsel %vm2912, %v4720, %v4757
        %4759 = vst [vmem:[#allocation3 + $0x44] sm:$0x7] %v4758
        %v4760 = vld [vmem:[#allocation3 + $0x4c] sm:$0x7]
        %v4761 = vsel %vm2912, %v4722, %v4760
        %4762 = vst [vmem:[#allocation3 + $0x4c] sm:$0x7] %v4761
        %v4763 = vld [vmem:[#allocation3] sm:$0xff]
        %v4764 = vld [vmem:[#allocation3 + $0x8] sm:$0xff]
        %v4765 = vld [vmem:[#allocation3 + $0x10] sm:$0xff]
        %v4766 = vld [vmem:[#allocation3 + $0x18] sm:$0xff]
        %v4767 = vld [vmem:[#allocation3 + $0x20] sm:$0xff]
        %v4768 = vld [vmem:[#allocation3 + $0x28] sm:$0xff]
        %v4769 = vld [vmem:[#allocation3 + $0x30] sm:$0xff]
        %v4770 = vld [vmem:[#allocation3 + $0x38] sm:$0xff]
        %v4771 = vld [vmem:[#allocation3 + $0x40] sm:$0xff]
        %v4772 = vld [vmem:[#allocation3 + $0x48] sm:$0xff]
        %v4773 = vld [vmem:[%s3] sm:$0xf]
        %v4774 = vld [vmem:[%s3 + $0x4] sm:$0xf]
        %v4775 = vld [vmem:[%s3 + $0x8] sm:$0xf]
        %v4776 = vld [vmem:[%s3 + $0xc] sm:$0xf]
        %v4777 = vld [vmem:[%s3 + $0x10] sm:$0xf]
        %v4778 = vld [vmem:[%s3 + $0x14] sm:$0xf]
        %v4779 = vld [vmem:[%s3 + $0x18] sm:$0xf]
        %v4780 = vld [vmem:[%s3 + $0x1c] sm:$0xf]
        %v4781 = vld [vmem:[%s3 + $0x20] sm:$0xf]
        %v4782 = vld [vmem:[%s3 + $0x24] sm:$0xf]
        %v4783 = vld [vmem:[%s3 + $0x28] sm:$0xf]
        %v4784 = vld [vmem:[%s3 + $0x2c] sm:$0xf]
        %v4785 = vld [vmem:[%s3 + $0x30] sm:$0xf]
        %v4786 = vld [vmem:[%s3 + $0x34] sm:$0xf]
        %v4787 = vld [vmem:[%s3 + $0x38] sm:$0xf]
        %v4788 = vld [vmem:[%s3 + $0x3c] sm:$0xf]
        %v4789 = vld [vmem:[%s3 + $0x40] sm:$0xf]
        %v4790 = vld [vmem:[%s3 + $0x44] sm:$0xf]
        %v4791 = vld [vmem:[%s3 + $0x48] sm:$0xf]
        %v4792 = vld [vmem:[%s3 + $0x4c] sm:$0xf]
        %v4793 = vld [vmem:[%s3 + $0x50] sm:$0xf]
        %v4794 = vld [vmem:[%s3 + $0x54] sm:$0xf]
        %v4795 = vld [vmem:[%s3 + $0x58] sm:$0xf]
        %v4796 = vld [vmem:[%s3 + $0x5c] sm:$0xf]
        %v4797 = vld [vmem:[%s3 + $0x60] sm:$0xf]
        %v4799 = vlaneseq
        %v4800 = vshrl.u32 %v4799, 7
        %v4801 = vsub.s32 0, %v4800
        %v4802 = vrot.slane %v1864, %v4801
        %v4814 = vunpack.c.l.b16 %v4763
        %v4815 = vunpack.c.h.b16 %v4763
        %v4816 = vunpack.c.l.b16 %v4764
        %v4817 = vunpack.c.h.b16 %v4764
        %v4818 = vunpack.c.l.b16 %v4765
        %v4819 = vunpack.c.h.b16 %v4765
        %v4820 = vunpack.c.l.b16 %v4766
        %v4821 = vunpack.c.h.b16 %v4766
        %v4822 = vunpack.c.l.b16 %v4767
        %v4823 = vunpack.c.h.b16 %v4767
        %v4824 = vunpack.c.l.b16 %v4768
        %v4825 = vunpack.c.h.b16 %v4768
        %v4826 = vunpack.c.l.b16 %v4769
        %v4827 = vunpack.c.h.b16 %v4769
        %v4828 = vunpack.c.l.b16 %v4770
        %v4829 = vunpack.c.h.b16 %v4770
        %v4830 = vunpack.c.l.b16 %v4771
        %v4831 = vunpack.c.h.b16 %v4771
        %v4832 = vunpack.c.l.b16 %v4772
        %v4833 = vunpack.c.h.b16 %v4772
        %v4834 = vpack.c.b16 %v4816, %v4814
        %v4835 = vpack.c.b16 %v4817, %v4815
        %v4836 = vpack.c.b16 %v4820, %v4818
        %v4837 = vpack.c.b16 %v4821, %v4819
        %v4838 = vpack.c.b16 %v4824, %v4822
        %v4839 = vpack.c.b16 %v4825, %v4823
        %v4840 = vpack.c.b16 %v4828, %v4826
        %v4841 = vpack.c.b16 %v4829, %v4827
        %v4842 = vpack.c.b16 %v4832, %v4830
        %v4843 = vpack.c.b16 %v4833, %v4831
        %v4874 = vunpack.c.l.b16 %v4773
        %v4875 = vunpack.c.l.b16 %v4774
        %v4876 = vunpack.c.l.b16 %v4775
        %v4877 = vunpack.c.l.b16 %v4776
        %v4878 = vunpack.c.l.b16 %v4777
        %v4879 = vunpack.c.l.b16 %v4778
        %v4880 = vunpack.c.l.b16 %v4779
        %v4881 = vunpack.c.l.b16 %v4780
        %v4882 = vunpack.c.l.b16 %v4781
        %v4883 = vunpack.c.l.b16 %v4782
        %v4884 = vunpack.c.l.b16 %v4783
        %v4885 = vunpack.c.l.b16 %v4784
        %v4886 = vunpack.c.l.b16 %v4785
        %v4887 = vunpack.c.l.b16 %v4786
        %v4888 = vunpack.c.l.b16 %v4787
        %v4889 = vunpack.c.l.b16 %v4788
        %v4890 = vunpack.c.l.b16 %v4789
        %v4891 = vunpack.c.l.b16 %v4790
        %v4892 = vunpack.c.l.b16 %v4791
        %v4893 = vunpack.c.l.b16 %v4792
        %v4894 = vunpack.c.l.b16 %v4793
        %v4895 = vunpack.c.l.b16 %v4794
        %v4896 = vunpack.c.l.b16 %v4795
        %v4897 = vunpack.c.l.b16 %v4796
        %v4898 = vunpack.c.l.b16 %v4797
        %v4899 = vpack.c.b16 %v4875, %v4874
        %v4900 = vpack.c.b16 %v4877, %v4876
        %v4901 = vpack.c.b16 %v4879, %v4878
        %v4902 = vpack.c.b16 %v4881, %v4880
        %v4903 = vpack.c.b16 %v4883, %v4882
        %v4904 = vpack.c.b16 %v4885, %v4884
        %v4905 = vpack.c.b16 %v4887, %v4886
        %v4906 = vpack.c.b16 %v4889, %v4888
        %v4907 = vpack.c.b16 %v4891, %v4890
        %v4908 = vpack.c.b16 %v4893, %v4892
        %v4909 = vpack.c.b16 %v4895, %v4894
        %v4910 = vpack.c.b16 %v4897, %v4896
        %v4911 = vpack.c.b16 %v4898, %v4898
        %vm4924 = vcmask 588800
        %v4926 = vsel %vm4924, %v4835, 0
        %v4929 = vsel %vm4924, %v4837, 0
        %v4932 = vsel %vm4924, %v4839, 0
        %v4935 = vsel %vm4924, %v4841, 0
        %v4938 = vsel %vm4924, %v4843, 0
        %vm4940 = vcmask 1043456
        %v4942 = vsel %vm4940, %v4911, 0
        %4944 = vmatprep.subr.bf16.mxu0 0
        %4945 = vmatpush1.bf16.msra.mxu0 %v4906
        %4946 = vmatprep.subr.bf16.mxu0 0
        %4947 = vmatpush1.bf16.msra.mxu0 %v4905
        %4948 = vmatprep.subr.bf16.mxu0 0
        %4949 = vmatpush1.bf16.msra.mxu0 %v4904
        %4950 = vmatprep.subr.bf16.mxu0 0
        %4951 = vmatpush1.bf16.msra.mxu0 %v4903
        %4952 = vmatprep.subr.bf16.mxu0 0
        %4953 = vmatpush1.bf16.msra.mxu0 %v4902
        %4954 = vmatprep.subr.bf16.mxu0 0
        %4955 = vmatpush1.bf16.msra.mxu0 %v4901
        %4956 = vmatprep.subr.bf16.mxu0 0
        %4957 = vmatpush1.bf16.msra.mxu0 %v4900
        %4958 = vmatprep.subr.bf16.mxu0 0
        %4959 = vmatpush1.bf16.msra.mxu0 %v4899
        %4960 = vmatprep.subr.bf16.mxu0 0
        %4961 = vmatpush2.bf16.msra.mxu0 0
        %4962 = vmatprep.subr.bf16.mxu0 0
        %4963 = vmatpush2.bf16.msra.mxu0 0
        %4964 = vmatprep.subr.bf16.mxu0 0
        %4965 = vmatpush2.bf16.msra.mxu0 0
        %4966 = vmatprep.subr.bf16.mxu0 0
        %4967 = vmatpush2.bf16.msra.mxu0 %v4942
        %4968 = vmatprep.subr.bf16.mxu0 0
        %4969 = vmatpush2.bf16.msra.mxu0 %v4910
        %4970 = vmatprep.subr.bf16.mxu0 0
        %4971 = vmatpush2.bf16.msra.mxu0 %v4909
        %4972 = vmatprep.subr.bf16.mxu0 0
        %4973 = vmatpush2.bf16.msra.mxu0 %v4908
        %4974 = vmatprep.subr.bf16.mxu0 0
        %4975 = vmatpush2.bf16.msra.mxu0 %v4907
        %4976 = vmatprep.mubr.bf16.mxu0 %v4926
        %4977 = vmatmul.mubr.bf16.gmra.mxu0 %v4834
        %v4978 = vpop.f32.mrf.mxu0
        %v4979 = vadd.f32 %v4802, %v4978
        %v4980 = vpop.f32.mrf.mxu0
        %v4981 = vpop.f32.mrf.mxu0
        %v4982 = vadd.f32 %v4802, %v4981
        %v4983 = vpop.f32.mrf.mxu0
        %4984 = vmatprep.mubr.bf16.mxu0 %v4929
        %4985 = vmatmul.mubr.bf16.gmra.mxu0 %v4836
        %v4986 = vpop.f32.mrf.mxu0
        %v4987 = vadd.f32 %v4802, %v4986
        %v4988 = vpop.f32.mrf.mxu0
        %v4989 = vpop.f32.mrf.mxu0
        %v4990 = vadd.f32 %v4802, %v4989
        %v4991 = vpop.f32.mrf.mxu0
        %4992 = vmatprep.mubr.bf16.mxu0 %v4932
        %4993 = vmatmul.mubr.bf16.gmra.mxu0 %v4838
        %v4994 = vpop.f32.mrf.mxu0
        %v4995 = vadd.f32 %v4802, %v4994
        %v4996 = vpop.f32.mrf.mxu0
        %v4997 = vpop.f32.mrf.mxu0
        %v4998 = vadd.f32 %v4802, %v4997
        %v4999 = vpop.f32.mrf.mxu0
        %5000 = vmatprep.mubr.bf16.mxu0 %v4935
        %5001 = vmatmul.mubr.bf16.gmra.mxu0 %v4840
        %v5002 = vpop.f32.mrf.mxu0
        %v5003 = vadd.f32 %v4802, %v5002
        %v5004 = vpop.f32.mrf.mxu0
        %v5005 = vpop.f32.mrf.mxu0
        %v5006 = vadd.f32 %v4802, %v5005
        %v5007 = vpop.f32.mrf.mxu0
        %5008 = vmatprep.mubr.bf16.mxu0 %v4938
        %5009 = vmatmul.mubr.bf16.gmra.mxu0 %v4842
        %v5010 = vpop.f32.mrf.mxu0
        %v5011 = vadd.f32 %v4802, %v5010
        %v5012 = vpop.f32.mrf.mxu0
        %v5013 = vpop.f32.mrf.mxu0
        %v5014 = vadd.f32 %v4802, %v5013
        %v5015 = vpop.f32.mrf.mxu0
        %5016 = vdwg.mxu0
        %v5017 = vmax.f32 %v4979, 0.0
        %v5018 = vmax.f32 %v4982, 0.0
        %v5019 = vmax.f32 %v4987, 0.0
        %v5020 = vmax.f32 %v4990, 0.0
        %v5021 = vmax.f32 %v4995, 0.0
        %v5022 = vmax.f32 %v4998, 0.0
        %v5023 = vmax.f32 %v5003, 0.0
        %v5024 = vmax.f32 %v5006, 0.0
        %v5025 = vmax.f32 %v5011, 0.0
        %v5026 = vmax.f32 %v5014, 0.0
        %v5027 = vld [vmem:[%s1849] sm:$0x7]
        %v5028 = vld [vmem:[%s1849 + $0x4] sm:$0x7]
        %v5029 = vld [vmem:[%s1849 + $0x8] sm:$0x7]
        %v5030 = vld [vmem:[%s1849 + $0xc] sm:$0x7]
        %v5031 = vld [vmem:[%s1849 + $0x10] sm:$0x7]
        %v5032 = vld [vmem:[%s1849 + $0x14] sm:$0x7]
        %v5033 = vld [vmem:[%s1849 + $0x18] sm:$0x7]
        %v5034 = vld [vmem:[%s1849 + $0x1c] sm:$0x7]
        %v5035 = vld [vmem:[%s1849 + $0x20] sm:$0x7]
        %v5036 = vld [vmem:[%s1849 + $0x24] sm:$0x7]
        %v5037 = vld [vmem:[#allocation3] sm:$0x7]
        %v5038 = vsel %vm1914, %v5027, %v5037
        %5039 = vst [vmem:[#allocation3] sm:$0x7] %v5038
        %v5040 = vld [vmem:[#allocation3 + $0x8] sm:$0x7]
        %v5041 = vsel %vm1914, %v5028, %v5040
        %5042 = vst [vmem:[#allocation3 + $0x8] sm:$0x7] %v5041
        %v5043 = vld [vmem:[#allocation3 + $0x10] sm:$0x7]
        %v5044 = vsel %vm1914, %v5029, %v5043
        %5045 = vst [vmem:[#allocation3 + $0x10] sm:$0x7] %v5044
        %v5046 = vld [vmem:[#allocation3 + $0x18] sm:$0x7]
        %v5047 = vsel %vm1914, %v5030, %v5046
        %5048 = vst [vmem:[#allocation3 + $0x18] sm:$0x7] %v5047
        %v5049 = vld [vmem:[#allocation3 + $0x20] sm:$0x7]
        %v5050 = vsel %vm1914, %v5031, %v5049
        %5051 = vst [vmem:[#allocation3 + $0x20] sm:$0x7] %v5050
        %v5052 = vld [vmem:[#allocation3 + $0x28] sm:$0x7]
        %v5053 = vsel %vm1914, %v5032, %v5052
        %5054 = vst [vmem:[#allocation3 + $0x28] sm:$0x7] %v5053
        %v5055 = vld [vmem:[#allocation3 + $0x30] sm:$0x7]
        %v5056 = vsel %vm1914, %v5033, %v5055
        %5057 = vst [vmem:[#allocation3 + $0x30] sm:$0x7] %v5056
        %v5058 = vld [vmem:[#allocation3 + $0x38] sm:$0x7]
        %v5059 = vsel %vm1914, %v5034, %v5058
        %5060 = vst [vmem:[#allocation3 + $0x38] sm:$0x7] %v5059
        %v5061 = vld [vmem:[#allocation3 + $0x40] sm:$0x7]
        %v5062 = vsel %vm1914, %v5035, %v5061
        %5063 = vst [vmem:[#allocation3 + $0x40] sm:$0x7] %v5062
        %v5064 = vld [vmem:[#allocation3 + $0x48] sm:$0x7]
        %v5065 = vsel %vm1914, %v5036, %v5064
        %5066 = vst [vmem:[#allocation3 + $0x48] sm:$0x7] %v5065
        %v5067 = vld [vmem:[#allocation2] sm:$0x7]
        %v5068 = vld [vmem:[#allocation2 + $0x4] sm:$0x7]
        %v5069 = vld [vmem:[#allocation2 + $0x8] sm:$0x7]
        %v5070 = vld [vmem:[#allocation2 + $0xc] sm:$0x7]
        %v5071 = vld [vmem:[#allocation2 + $0x10] sm:$0x7]
        %v5072 = vld [vmem:[#allocation2 + $0x14] sm:$0x7]
        %v5073 = vld [vmem:[#allocation2 + $0x18] sm:$0x7]
        %v5074 = vld [vmem:[#allocation2 + $0x1c] sm:$0x7]
        %v5075 = vld [vmem:[#allocation2 + $0x20] sm:$0x7]
        %v5076 = vld [vmem:[#allocation2 + $0x24] sm:$0x7]
        %v5078 = vshrl.u32 %v5067, 16
        %v5080 = vrot.slane %v5078, 4
        %v5081 = vshll.u32 %v5067, 16
        %v5083 = vrot.slane %v5081, 5
        %v5084 = vor.u32 %v5080, %v5083
        %v5085 = vrot.slane %v5084, 4
        %v5087 = vshrl.u32 %v5068, 16
        %v5089 = vrot.slane %v5087, 4
        %v5090 = vshll.u32 %v5068, 16
        %v5092 = vrot.slane %v5090, 5
        %v5093 = vor.u32 %v5089, %v5092
        %v5094 = vrot.slane %v5093, 4
        %v5096 = vshrl.u32 %v5069, 16
        %v5098 = vrot.slane %v5096, 4
        %v5099 = vshll.u32 %v5069, 16
        %v5101 = vrot.slane %v5099, 5
        %v5102 = vor.u32 %v5098, %v5101
        %v5103 = vrot.slane %v5102, 4
        %v5105 = vshrl.u32 %v5070, 16
        %v5107 = vrot.slane %v5105, 4
        %v5108 = vshll.u32 %v5070, 16
        %v5110 = vrot.slane %v5108, 5
        %v5111 = vor.u32 %v5107, %v5110
        %v5112 = vrot.slane %v5111, 4
        %v5114 = vshrl.u32 %v5071, 16
        %v5116 = vrot.slane %v5114, 4
        %v5117 = vshll.u32 %v5071, 16
        %v5119 = vrot.slane %v5117, 5
        %v5120 = vor.u32 %v5116, %v5119
        %v5121 = vrot.slane %v5120, 4
        %v5123 = vshrl.u32 %v5072, 16
        %v5125 = vrot.slane %v5123, 4
        %v5126 = vshll.u32 %v5072, 16
        %v5128 = vrot.slane %v5126, 5
        %v5129 = vor.u32 %v5125, %v5128
        %v5130 = vrot.slane %v5129, 4
        %v5132 = vshrl.u32 %v5073, 16
        %v5134 = vrot.slane %v5132, 4
        %v5135 = vshll.u32 %v5073, 16
        %v5137 = vrot.slane %v5135, 5
        %v5138 = vor.u32 %v5134, %v5137
        %v5139 = vrot.slane %v5138, 4
        %v5141 = vshrl.u32 %v5074, 16
        %v5143 = vrot.slane %v5141, 4
        %v5144 = vshll.u32 %v5074, 16
        %v5146 = vrot.slane %v5144, 5
        %v5147 = vor.u32 %v5143, %v5146
        %v5148 = vrot.slane %v5147, 4
        %v5150 = vshrl.u32 %v5075, 16
        %v5152 = vrot.slane %v5150, 4
        %v5153 = vshll.u32 %v5075, 16
        %v5155 = vrot.slane %v5153, 5
        %v5156 = vor.u32 %v5152, %v5155
        %v5157 = vrot.slane %v5156, 4
        %v5159 = vshrl.u32 %v5076, 16
        %v5161 = vrot.slane %v5159, 4
        %v5162 = vshll.u32 %v5076, 16
        %v5164 = vrot.slane %v5162, 5
        %v5165 = vor.u32 %v5161, %v5164
        %v5166 = vrot.slane %v5165, 4
        %5167 = vrot.lane.b32.xlu0 %v5085, 8
        %v5168 = vpop.permute.xlu0 %5167
        %5169 = vrot.lane.b32.xlu0 %v5094, 8
        %v5170 = vpop.permute.xlu0 %5169
        %5171 = vrot.lane.b32.xlu0 %v5103, 8
        %v5172 = vpop.permute.xlu0 %5171
        %5173 = vrot.lane.b32.xlu0 %v5112, 8
        %v5174 = vpop.permute.xlu0 %5173
        %5175 = vrot.lane.b32.xlu0 %v5121, 8
        %v5176 = vpop.permute.xlu0 %5175
        %5177 = vrot.lane.b32.xlu0 %v5130, 8
        %v5178 = vpop.permute.xlu0 %5177
        %5179 = vrot.lane.b32.xlu0 %v5139, 8
        %v5180 = vpop.permute.xlu0 %5179
        %5181 = vrot.lane.b32.xlu0 %v5148, 8
        %v5182 = vpop.permute.xlu0 %5181
        %5183 = vrot.lane.b32.xlu0 %v5157, 8
        %v5184 = vpop.permute.xlu0 %5183
        %5185 = vrot.lane.b32.xlu0 %v5166, 8
        %v5186 = vpop.permute.xlu0 %5185
        %v5197 = vld [vmem:[#allocation3] sm:$0x7]
        %v5198 = vsel %vm1996, %v5168, %v5197
        %5199 = vst [vmem:[#allocation3] sm:$0x7] %v5198
        %v5200 = vld [vmem:[#allocation3 + $0x8] sm:$0x7]
        %v5201 = vsel %vm1996, %v5170, %v5200
        %5202 = vst [vmem:[#allocation3 + $0x8] sm:$0x7] %v5201
        %v5203 = vld [vmem:[#allocation3 + $0x10] sm:$0x7]
        %v5204 = vsel %vm1996, %v5172, %v5203
        %5205 = vst [vmem:[#allocation3 + $0x10] sm:$0x7] %v5204
        %v5206 = vld [vmem:[#allocation3 + $0x18] sm:$0x7]
        %v5207 = vsel %vm1996, %v5174, %v5206
        %5208 = vst [vmem:[#allocation3 + $0x18] sm:$0x7] %v5207
        %v5209 = vld [vmem:[#allocation3 + $0x20] sm:$0x7]
        %v5210 = vsel %vm1996, %v5176, %v5209
        %5211 = vst [vmem:[#allocation3 + $0x20] sm:$0x7] %v5210
        %v5212 = vld [vmem:[#allocation3 + $0x28] sm:$0x7]
        %v5213 = vsel %vm1996, %v5178, %v5212
        %5214 = vst [vmem:[#allocation3 + $0x28] sm:$0x7] %v5213
        %v5215 = vld [vmem:[#allocation3 + $0x30] sm:$0x7]
        %v5216 = vsel %vm1996, %v5180, %v5215
        %5217 = vst [vmem:[#allocation3 + $0x30] sm:$0x7] %v5216
        %v5218 = vld [vmem:[#allocation3 + $0x38] sm:$0x7]
        %v5219 = vsel %vm1996, %v5182, %v5218
        %5220 = vst [vmem:[#allocation3 + $0x38] sm:$0x7] %v5219
        %v5221 = vld [vmem:[#allocation3 + $0x40] sm:$0x7]
        %v5222 = vsel %vm1996, %v5184, %v5221
        %5223 = vst [vmem:[#allocation3 + $0x40] sm:$0x7] %v5222
        %v5224 = vld [vmem:[#allocation3 + $0x48] sm:$0x7]
        %v5225 = vsel %vm1996, %v5186, %v5224
        %5226 = vst [vmem:[#allocation3 + $0x48] sm:$0x7] %v5225
        %v5227 = vld [vmem:[%s1849] sm:$0x7]
        %v5228 = vld [vmem:[%s1849 + $0x4] sm:$0x7]
        %v5229 = vld [vmem:[%s1849 + $0x8] sm:$0x7]
        %v5230 = vld [vmem:[%s1849 + $0xc] sm:$0x7]
        %v5231 = vld [vmem:[%s1849 + $0x10] sm:$0x7]
        %v5232 = vld [vmem:[%s1849 + $0x14] sm:$0x7]
        %v5233 = vld [vmem:[%s1849 + $0x18] sm:$0x7]
        %v5234 = vld [vmem:[%s1849 + $0x1c] sm:$0x7]
        %v5235 = vld [vmem:[%s1849 + $0x20] sm:$0x7]
        %v5236 = vld [vmem:[%s1849 + $0x24] sm:$0x7]
        %v5238 = vshrl.u32 %v5227, 16
        %v5240 = vrot.slane %v5238, 4
        %v5241 = vshll.u32 %v5227, 16
        %v5243 = vrot.slane %v5241, 5
        %v5244 = vor.u32 %v5240, %v5243
        %v5245 = vrot.slane %v5244, 4
        %v5247 = vshrl.u32 %v5228, 16
        %v5249 = vrot.slane %v5247, 4
        %v5250 = vshll.u32 %v5228, 16
        %v5252 = vrot.slane %v5250, 5
        %v5253 = vor.u32 %v5249, %v5252
        %v5254 = vrot.slane %v5253, 4
        %v5256 = vshrl.u32 %v5229, 16
        %v5258 = vrot.slane %v5256, 4
        %v5259 = vshll.u32 %v5229, 16
        %v5261 = vrot.slane %v5259, 5
        %v5262 = vor.u32 %v5258, %v5261
        %v5263 = vrot.slane %v5262, 4
        %v5265 = vshrl.u32 %v5230, 16
        %v5267 = vrot.slane %v5265, 4
        %v5268 = vshll.u32 %v5230, 16
        %v5270 = vrot.slane %v5268, 5
        %v5271 = vor.u32 %v5267, %v5270
        %v5272 = vrot.slane %v5271, 4
        %v5274 = vshrl.u32 %v5231, 16
        %v5276 = vrot.slane %v5274, 4
        %v5277 = vshll.u32 %v5231, 16
        %v5279 = vrot.slane %v5277, 5
        %v5280 = vor.u32 %v5276, %v5279
        %v5281 = vrot.slane %v5280, 4
        %v5283 = vshrl.u32 %v5232, 16
        %v5285 = vrot.slane %v5283, 4
        %v5286 = vshll.u32 %v5232, 16
        %v5288 = vrot.slane %v5286, 5
        %v5289 = vor.u32 %v5285, %v5288
        %v5290 = vrot.slane %v5289, 4
        %v5292 = vshrl.u32 %v5233, 16
        %v5294 = vrot.slane %v5292, 4
        %v5295 = vshll.u32 %v5233, 16
        %v5297 = vrot.slane %v5295, 5
        %v5298 = vor.u32 %v5294, %v5297
        %v5299 = vrot.slane %v5298, 4
        %v5301 = vshrl.u32 %v5234, 16
        %v5303 = vrot.slane %v5301, 4
        %v5304 = vshll.u32 %v5234, 16
        %v5306 = vrot.slane %v5304, 5
        %v5307 = vor.u32 %v5303, %v5306
        %v5308 = vrot.slane %v5307, 4
        %v5310 = vshrl.u32 %v5235, 16
        %v5312 = vrot.slane %v5310, 4
        %v5313 = vshll.u32 %v5235, 16
        %v5315 = vrot.slane %v5313, 5
        %v5316 = vor.u32 %v5312, %v5315
        %v5317 = vrot.slane %v5316, 4
        %v5319 = vshrl.u32 %v5236, 16
        %v5321 = vrot.slane %v5319, 4
        %v5322 = vshll.u32 %v5236, 16
        %v5324 = vrot.slane %v5322, 5
        %v5325 = vor.u32 %v5321, %v5324
        %v5326 = vrot.slane %v5325, 4
        %5327 = vrot.lane.b32.xlu0 %v5245, 16
        %v5328 = vpop.permute.xlu0 %5327
        %5329 = vrot.lane.b32.xlu0 %v5254, 16
        %v5330 = vpop.permute.xlu0 %5329
        %5331 = vrot.lane.b32.xlu0 %v5263, 16
        %v5332 = vpop.permute.xlu0 %5331
        %5333 = vrot.lane.b32.xlu0 %v5272, 16
        %v5334 = vpop.permute.xlu0 %5333
        %5335 = vrot.lane.b32.xlu0 %v5281, 16
        %v5336 = vpop.permute.xlu0 %5335
        %5337 = vrot.lane.b32.xlu0 %v5290, 16
        %v5338 = vpop.permute.xlu0 %5337
        %5339 = vrot.lane.b32.xlu0 %v5299, 16
        %v5340 = vpop.permute.xlu0 %5339
        %5341 = vrot.lane.b32.xlu0 %v5308, 16
        %v5342 = vpop.permute.xlu0 %5341
        %5343 = vrot.lane.b32.xlu0 %v5317, 16
        %v5344 = vpop.permute.xlu0 %5343
        %5345 = vrot.lane.b32.xlu0 %v5326, 16
        %v5346 = vpop.permute.xlu0 %5345
        %v5357 = vld [vmem:[#allocation3] sm:$0x7]
        %v5358 = vsel %vm2158, %v5328, %v5357
        %5359 = vst [vmem:[#allocation3] sm:$0x7] %v5358
        %v5360 = vld [vmem:[#allocation3 + $0x8] sm:$0x7]
        %v5361 = vsel %vm2158, %v5330, %v5360
        %5362 = vst [vmem:[#allocation3 + $0x8] sm:$0x7] %v5361
        %v5363 = vld [vmem:[#allocation3 + $0x10] sm:$0x7]
        %v5364 = vsel %vm2158, %v5332, %v5363
        %5365 = vst [vmem:[#allocation3 + $0x10] sm:$0x7] %v5364
        %v5366 = vld [vmem:[#allocation3 + $0x18] sm:$0x7]
        %v5367 = vsel %vm2158, %v5334, %v5366
        %5368 = vst [vmem:[#allocation3 + $0x18] sm:$0x7] %v5367
        %v5369 = vld [vmem:[#allocation3 + $0x20] sm:$0x7]
        %v5370 = vsel %vm2158, %v5336, %v5369
        %5371 = vst [vmem:[#allocation3 + $0x20] sm:$0x7] %v5370
        %v5372 = vld [vmem:[#allocation3 + $0x28] sm:$0x7]
        %v5373 = vsel %vm2158, %v5338, %v5372
        %5374 = vst [vmem:[#allocation3 + $0x28] sm:$0x7] %v5373
        %v5375 = vld [vmem:[#allocation3 + $0x30] sm:$0x7]
        %v5376 = vsel %vm2158, %v5340, %v5375
        %5377 = vst [vmem:[#allocation3 + $0x30] sm:$0x7] %v5376
        %v5378 = vld [vmem:[#allocation3 + $0x38] sm:$0x7]
        %v5379 = vsel %vm2158, %v5342, %v5378
        %5380 = vst [vmem:[#allocation3 + $0x38] sm:$0x7] %v5379
        %v5381 = vld [vmem:[#allocation3 + $0x40] sm:$0x7]
        %v5382 = vsel %vm2158, %v5344, %v5381
        %5383 = vst [vmem:[#allocation3 + $0x40] sm:$0x7] %v5382
        %v5384 = vld [vmem:[#allocation3 + $0x48] sm:$0x7]
        %v5385 = vsel %vm2158, %v5346, %v5384
        %5386 = vst [vmem:[#allocation3 + $0x48] sm:$0x7] %v5385
        %v5387 = vld [vmem:[#allocation2] sm:$0xe]
        %v5388 = vld [vmem:[#allocation2 + $0x4] sm:$0xe]
        %v5389 = vld [vmem:[#allocation2 + $0x8] sm:$0xe]
        %v5390 = vld [vmem:[#allocation2 + $0xc] sm:$0xe]
        %v5391 = vld [vmem:[#allocation2 + $0x10] sm:$0xe]
        %v5392 = vld [vmem:[#allocation2 + $0x14] sm:$0xe]
        %v5393 = vld [vmem:[#allocation2 + $0x18] sm:$0xe]
        %v5394 = vld [vmem:[#allocation2 + $0x1c] sm:$0xe]
        %v5395 = vld [vmem:[#allocation2 + $0x20] sm:$0xe]
        %v5396 = vld [vmem:[#allocation2 + $0x24] sm:$0xe]
        %v5407 = vrot.slane %v5387, 5
        %v5408 = vrot.slane %v5407, 4
        %v5409 = vrot.slane %v5388, 5
        %v5410 = vrot.slane %v5409, 4
        %v5411 = vrot.slane %v5389, 5
        %v5412 = vrot.slane %v5411, 4
        %v5413 = vrot.slane %v5390, 5
        %v5414 = vrot.slane %v5413, 4
        %v5415 = vrot.slane %v5391, 5
        %v5416 = vrot.slane %v5415, 4
        %v5417 = vrot.slane %v5392, 5
        %v5418 = vrot.slane %v5417, 4
        %v5419 = vrot.slane %v5393, 5
        %v5420 = vrot.slane %v5419, 4
        %v5421 = vrot.slane %v5394, 5
        %v5422 = vrot.slane %v5421, 4
        %v5423 = vrot.slane %v5395, 5
        %v5424 = vrot.slane %v5423, 4
        %v5425 = vrot.slane %v5396, 5
        %v5426 = vrot.slane %v5425, 4
        %5427 = vrot.lane.b32.xlu0 %v5408, 24
        %v5428 = vpop.permute.xlu0 %5427
        %5429 = vrot.lane.b32.xlu0 %v5410, 24
        %v5430 = vpop.permute.xlu0 %5429
        %5431 = vrot.lane.b32.xlu0 %v5412, 24
        %v5432 = vpop.permute.xlu0 %5431
        %5433 = vrot.lane.b32.xlu0 %v5414, 24
        %v5434 = vpop.permute.xlu0 %5433
        %5435 = vrot.lane.b32.xlu0 %v5416, 24
        %v5436 = vpop.permute.xlu0 %5435
        %5437 = vrot.lane.b32.xlu0 %v5418, 24
        %v5438 = vpop.permute.xlu0 %5437
        %5439 = vrot.lane.b32.xlu0 %v5420, 24
        %v5440 = vpop.permute.xlu0 %5439
        %5441 = vrot.lane.b32.xlu0 %v5422, 24
        %v5442 = vpop.permute.xlu0 %5441
        %5443 = vrot.lane.b32.xlu0 %v5424, 24
        %v5444 = vpop.permute.xlu0 %5443
        %5445 = vrot.lane.b32.xlu0 %v5426, 24
        %v5446 = vpop.permute.xlu0 %5445
        %v5457 = vld [vmem:[#allocation3] sm:$0x7]
        %v5458 = vsel %vm2320, %v5428, %v5457
        %5459 = vst [vmem:[#allocation3] sm:$0x7] %v5458
        %v5460 = vld [vmem:[#allocation3 + $0x8] sm:$0x7]
        %v5461 = vsel %vm2320, %v5430, %v5460
        %5462 = vst [vmem:[#allocation3 + $0x8] sm:$0x7] %v5461
        %v5463 = vld [vmem:[#allocation3 + $0x10] sm:$0x7]
        %v5464 = vsel %vm2320, %v5432, %v5463
        %5465 = vst [vmem:[#allocation3 + $0x10] sm:$0x7] %v5464
        %v5466 = vld [vmem:[#allocation3 + $0x18] sm:$0x7]
        %v5467 = vsel %vm2320, %v5434, %v5466
        %5468 = vst [vmem:[#allocation3 + $0x18] sm:$0x7] %v5467
        %v5469 = vld [vmem:[#allocation3 + $0x20] sm:$0x7]
        %v5470 = vsel %vm2320, %v5436, %v5469
        %5471 = vst [vmem:[#allocation3 + $0x20] sm:$0x7] %v5470
        %v5472 = vld [vmem:[#allocation3 + $0x28] sm:$0x7]
        %v5473 = vsel %vm2320, %v5438, %v5472
        %5474 = vst [vmem:[#allocation3 + $0x28] sm:$0x7] %v5473
        %v5475 = vld [vmem:[#allocation3 + $0x30] sm:$0x7]
        %v5476 = vsel %vm2320, %v5440, %v5475
        %5477 = vst [vmem:[#allocation3 + $0x30] sm:$0x7] %v5476
        %v5478 = vld [vmem:[#allocation3 + $0x38] sm:$0x7]
        %v5479 = vsel %vm2320, %v5442, %v5478
        %5480 = vst [vmem:[#allocation3 + $0x38] sm:$0x7] %v5479
        %v5481 = vld [vmem:[#allocation3 + $0x40] sm:$0x7]
        %v5482 = vsel %vm2320, %v5444, %v5481
        %5483 = vst [vmem:[#allocation3 + $0x40] sm:$0x7] %v5482
        %v5484 = vld [vmem:[#allocation3 + $0x48] sm:$0x7]
        %v5485 = vsel %vm2320, %v5446, %v5484
        %5486 = vst [vmem:[#allocation3 + $0x48] sm:$0x7] %v5485
        %v5487 = vld [vmem:[%s1849] sm:$0xe]
        %v5488 = vld [vmem:[%s1849 + $0x4] sm:$0xe]
        %v5489 = vld [vmem:[%s1849 + $0x8] sm:$0xe]
        %v5490 = vld [vmem:[%s1849 + $0xc] sm:$0xe]
        %v5491 = vld [vmem:[%s1849 + $0x10] sm:$0xe]
        %v5492 = vld [vmem:[%s1849 + $0x14] sm:$0xe]
        %v5493 = vld [vmem:[%s1849 + $0x18] sm:$0xe]
        %v5494 = vld [vmem:[%s1849 + $0x1c] sm:$0xe]
        %v5495 = vld [vmem:[%s1849 + $0x20] sm:$0xe]
        %v5496 = vld [vmem:[%s1849 + $0x24] sm:$0xe]
        %v5507 = vrot.slane %v5487, 5
        %v5508 = vrot.slane %v5507, 4
        %v5509 = vrot.slane %v5488, 5
        %v5510 = vrot.slane %v5509, 4
        %v5511 = vrot.slane %v5489, 5
        %v5512 = vrot.slane %v5511, 4
        %v5513 = vrot.slane %v5490, 5
        %v5514 = vrot.slane %v5513, 4
        %v5515 = vrot.slane %v5491, 5
        %v5516 = vrot.slane %v5515, 4
        %v5517 = vrot.slane %v5492, 5
        %v5518 = vrot.slane %v5517, 4
        %v5519 = vrot.slane %v5493, 5
        %v5520 = vrot.slane %v5519, 4
        %v5521 = vrot.slane %v5494, 5
        %v5522 = vrot.slane %v5521, 4
        %v5523 = vrot.slane %v5495, 5
        %v5524 = vrot.slane %v5523, 4
        %v5525 = vrot.slane %v5496, 5
        %v5526 = vrot.slane %v5525, 4
        %5527 = vrot.lane.b32.xlu0 %v5508, 32
        %v5528 = vpop.permute.xlu0 %5527
        %5529 = vrot.lane.b32.xlu0 %v5510, 32
        %v5530 = vpop.permute.xlu0 %5529
        %5531 = vrot.lane.b32.xlu0 %v5512, 32
        %v5532 = vpop.permute.xlu0 %5531
        %5533 = vrot.lane.b32.xlu0 %v5514, 32
        %v5534 = vpop.permute.xlu0 %5533
        %5535 = vrot.lane.b32.xlu0 %v5516, 32
        %v5536 = vpop.permute.xlu0 %5535
        %5537 = vrot.lane.b32.xlu0 %v5518, 32
        %v5538 = vpop.permute.xlu0 %5537
        %5539 = vrot.lane.b32.xlu0 %v5520, 32
        %v5540 = vpop.permute.xlu0 %5539
        %5541 = vrot.lane.b32.xlu0 %v5522, 32
        %v5542 = vpop.permute.xlu0 %5541
        %5543 = vrot.lane.b32.xlu0 %v5524, 32
        %v5544 = vpop.permute.xlu0 %5543
        %5545 = vrot.lane.b32.xlu0 %v5526, 32
        %v5546 = vpop.permute.xlu0 %5545
        %v5557 = vld [vmem:[#allocation3] sm:$0x7]
        %v5558 = vsel %vm2422, %v5528, %v5557
        %5559 = vst [vmem:[#allocation3] sm:$0x7] %v5558
        %v5560 = vld [vmem:[#allocation3 + $0x8] sm:$0x7]
        %v5561 = vsel %vm2422, %v5530, %v5560
        %5562 = vst [vmem:[#allocation3 + $0x8] sm:$0x7] %v5561
        %v5563 = vld [vmem:[#allocation3 + $0x10] sm:$0x7]
        %v5564 = vsel %vm2422, %v5532, %v5563
        %5565 = vst [vmem:[#allocation3 + $0x10] sm:$0x7] %v5564
        %v5566 = vld [vmem:[#allocation3 + $0x18] sm:$0x7]
        %v5567 = vsel %vm2422, %v5534, %v5566
        %5568 = vst [vmem:[#allocation3 + $0x18] sm:$0x7] %v5567
        %v5569 = vld [vmem:[#allocation3 + $0x20] sm:$0x7]
        %v5570 = vsel %vm2422, %v5536, %v5569
        %5571 = vst [vmem:[#allocation3 + $0x20] sm:$0x7] %v5570
        %v5572 = vld [vmem:[#allocation3 + $0x28] sm:$0x7]
        %v5573 = vsel %vm2422, %v5538, %v5572
        %5574 = vst [vmem:[#allocation3 + $0x28] sm:$0x7] %v5573
        %v5575 = vld [vmem:[#allocation3 + $0x30] sm:$0x7]
        %v5576 = vsel %vm2422, %v5540, %v5575
        %5577 = vst [vmem:[#allocation3 + $0x30] sm:$0x7] %v5576
        %v5578 = vld [vmem:[#allocation3 + $0x38] sm:$0x7]
        %v5579 = vsel %vm2422, %v5542, %v5578
        %5580 = vst [vmem:[#allocation3 + $0x38] sm:$0x7] %v5579
        %v5581 = vld [vmem:[#allocation3 + $0x40] sm:$0x7]
        %v5582 = vsel %vm2422, %v5544, %v5581
        %5583 = vst [vmem:[#allocation3 + $0x40] sm:$0x7] %v5582
        %v5584 = vld [vmem:[#allocation3 + $0x48] sm:$0x7]
        %v5585 = vsel %vm2422, %v5546, %v5584
        %5586 = vst [vmem:[#allocation3 + $0x48] sm:$0x7] %v5585
        %v5587 = vld [vmem:[%s2536] sm:$0x7]
        %v5588 = vld [vmem:[%s2536 + $0x4] sm:$0x7]
        %v5589 = vld [vmem:[%s2536 + $0x8] sm:$0x7]
        %v5590 = vld [vmem:[%s2536 + $0xc] sm:$0x7]
        %v5591 = vld [vmem:[%s2536 + $0x10] sm:$0x7]
        %v5592 = vld [vmem:[%s2536 + $0x14] sm:$0x7]
        %v5593 = vld [vmem:[%s2536 + $0x18] sm:$0x7]
        %v5594 = vld [vmem:[%s2536 + $0x1c] sm:$0x7]
        %v5595 = vld [vmem:[%s2536 + $0x20] sm:$0x7]
        %v5596 = vld [vmem:[%s2536 + $0x24] sm:$0x7]
        %5607 = vrot.lane.b32.xlu0 %v5587, 40
        %v5608 = vpop.permute.xlu0 %5607
        %5609 = vrot.lane.b32.xlu0 %v5588, 40
        %v5610 = vpop.permute.xlu0 %5609
        %5611 = vrot.lane.b32.xlu0 %v5589, 40
        %v5612 = vpop.permute.xlu0 %5611
        %5613 = vrot.lane.b32.xlu0 %v5590, 40
        %v5614 = vpop.permute.xlu0 %5613
        %5615 = vrot.lane.b32.xlu0 %v5591, 40
        %v5616 = vpop.permute.xlu0 %5615
        %5617 = vrot.lane.b32.xlu0 %v5592, 40
        %v5618 = vpop.permute.xlu0 %5617
        %5619 = vrot.lane.b32.xlu0 %v5593, 40
        %v5620 = vpop.permute.xlu0 %5619
        %5621 = vrot.lane.b32.xlu0 %v5594, 40
        %v5622 = vpop.permute.xlu0 %5621
        %5623 = vrot.lane.b32.xlu0 %v5595, 40
        %v5624 = vpop.permute.xlu0 %5623
        %5625 = vrot.lane.b32.xlu0 %v5596, 40
        %v5626 = vpop.permute.xlu0 %5625
        %v5637 = vld [vmem:[#allocation3] sm:$0x7]
        %v5638 = vsel %vm2505, %v5608, %v5637
        %5639 = vst [vmem:[#allocation3] sm:$0x7] %v5638
        %v5640 = vld [vmem:[#allocation3 + $0x8] sm:$0x7]
        %v5641 = vsel %vm2505, %v5610, %v5640
        %5642 = vst [vmem:[#allocation3 + $0x8] sm:$0x7] %v5641
        %v5643 = vld [vmem:[#allocation3 + $0x10] sm:$0x7]
        %v5644 = vsel %vm2505, %v5612, %v5643
        %5645 = vst [vmem:[#allocation3 + $0x10] sm:$0x7] %v5644
        %v5646 = vld [vmem:[#allocation3 + $0x18] sm:$0x7]
        %v5647 = vsel %vm2505, %v5614, %v5646
        %5648 = vst [vmem:[#allocation3 + $0x18] sm:$0x7] %v5647
        %v5649 = vld [vmem:[#allocation3 + $0x20] sm:$0x7]
        %v5650 = vsel %vm2505, %v5616, %v5649
        %5651 = vst [vmem:[#allocation3 + $0x20] sm:$0x7] %v5650
        %v5652 = vld [vmem:[#allocation3 + $0x28] sm:$0x7]
        %v5653 = vsel %vm2505, %v5618, %v5652
        %5654 = vst [vmem:[#allocation3 + $0x28] sm:$0x7] %v5653
        %v5655 = vld [vmem:[#allocation3 + $0x30] sm:$0x7]
        %v5656 = vsel %vm2505, %v5620, %v5655
        %5657 = vst [vmem:[#allocation3 + $0x30] sm:$0x7] %v5656
        %v5658 = vld [vmem:[#allocation3 + $0x38] sm:$0x7]
        %v5659 = vsel %vm2505, %v5622, %v5658
        %5660 = vst [vmem:[#allocation3 + $0x38] sm:$0x7] %v5659
        %v5661 = vld [vmem:[#allocation3 + $0x40] sm:$0x7]
        %v5662 = vsel %vm2505, %v5624, %v5661
        %5663 = vst [vmem:[#allocation3 + $0x40] sm:$0x7] %v5662
        %v5664 = vld [vmem:[#allocation3 + $0x48] sm:$0x7]
        %v5665 = vsel %vm2505, %v5626, %v5664
        %5666 = vst [vmem:[#allocation3 + $0x48] sm:$0x7] %v5665
        %v5667 = vld [vmem:[%s2453] sm:$0x7]
        %v5668 = vld [vmem:[%s2453 + $0x4] sm:$0x7]
        %v5669 = vld [vmem:[%s2453 + $0x8] sm:$0x7]
        %v5670 = vld [vmem:[%s2453 + $0xc] sm:$0x7]
        %v5671 = vld [vmem:[%s2453 + $0x10] sm:$0x7]
        %v5672 = vld [vmem:[%s2453 + $0x14] sm:$0x7]
        %v5673 = vld [vmem:[%s2453 + $0x18] sm:$0x7]
        %v5674 = vld [vmem:[%s2453 + $0x1c] sm:$0x7]
        %v5675 = vld [vmem:[%s2453 + $0x20] sm:$0x7]
        %v5676 = vld [vmem:[%s2453 + $0x24] sm:$0x7]
        %v5678 = vshrl.u32 %v5667, 16
        %v5680 = vrot.slane %v5678, 4
        %v5681 = vshll.u32 %v5667, 16
        %v5683 = vrot.slane %v5681, 5
        %v5684 = vor.u32 %v5680, %v5683
        %v5685 = vrot.slane %v5684, 4
        %v5687 = vshrl.u32 %v5668, 16
        %v5689 = vrot.slane %v5687, 4
        %v5690 = vshll.u32 %v5668, 16
        %v5692 = vrot.slane %v5690, 5
        %v5693 = vor.u32 %v5689, %v5692
        %v5694 = vrot.slane %v5693, 4
        %v5696 = vshrl.u32 %v5669, 16
        %v5698 = vrot.slane %v5696, 4
        %v5699 = vshll.u32 %v5669, 16
        %v5701 = vrot.slane %v5699, 5
        %v5702 = vor.u32 %v5698, %v5701
        %v5703 = vrot.slane %v5702, 4
        %v5705 = vshrl.u32 %v5670, 16
        %v5707 = vrot.slane %v5705, 4
        %v5708 = vshll.u32 %v5670, 16
        %v5710 = vrot.slane %v5708, 5
        %v5711 = vor.u32 %v5707, %v5710
        %v5712 = vrot.slane %v5711, 4
        %v5714 = vshrl.u32 %v5671, 16
        %v5716 = vrot.slane %v5714, 4
        %v5717 = vshll.u32 %v5671, 16
        %v5719 = vrot.slane %v5717, 5
        %v5720 = vor.u32 %v5716, %v5719
        %v5721 = vrot.slane %v5720, 4
        %v5723 = vshrl.u32 %v5672, 16
        %v5725 = vrot.slane %v5723, 4
        %v5726 = vshll.u32 %v5672, 16
        %v5728 = vrot.slane %v5726, 5
        %v5729 = vor.u32 %v5725, %v5728
        %v5730 = vrot.slane %v5729, 4
        %v5732 = vshrl.u32 %v5673, 16
        %v5734 = vrot.slane %v5732, 4
        %v5735 = vshll.u32 %v5673, 16
        %v5737 = vrot.slane %v5735, 5
        %v5738 = vor.u32 %v5734, %v5737
        %v5739 = vrot.slane %v5738, 4
        %v5741 = vshrl.u32 %v5674, 16
        %v5743 = vrot.slane %v5741, 4
        %v5744 = vshll.u32 %v5674, 16
        %v5746 = vrot.slane %v5744, 5
        %v5747 = vor.u32 %v5743, %v5746
        %v5748 = vrot.slane %v5747, 4
        %v5750 = vshrl.u32 %v5675, 16
        %v5752 = vrot.slane %v5750, 4
        %v5753 = vshll.u32 %v5675, 16
        %v5755 = vrot.slane %v5753, 5
        %v5756 = vor.u32 %v5752, %v5755
        %v5757 = vrot.slane %v5756, 4
        %v5759 = vshrl.u32 %v5676, 16
        %v5761 = vrot.slane %v5759, 4
        %v5762 = vshll.u32 %v5676, 16
        %v5764 = vrot.slane %v5762, 5
        %v5765 = vor.u32 %v5761, %v5764
        %v5766 = vrot.slane %v5765, 4
        %5767 = vrot.lane.b32.xlu0 %v5685, 48
        %v5768 = vpop.permute.xlu0 %5767
        %5769 = vrot.lane.b32.xlu0 %v5694, 48
        %v5770 = vpop.permute.xlu0 %5769
        %5771 = vrot.lane.b32.xlu0 %v5703, 48
        %v5772 = vpop.permute.xlu0 %5771
        %5773 = vrot.lane.b32.xlu0 %v5712, 48
        %v5774 = vpop.permute.xlu0 %5773
        %5775 = vrot.lane.b32.xlu0 %v5721, 48
        %v5776 = vpop.permute.xlu0 %5775
        %5777 = vrot.lane.b32.xlu0 %v5730, 48
        %v5778 = vpop.permute.xlu0 %5777
        %5779 = vrot.lane.b32.xlu0 %v5739, 48
        %v5780 = vpop.permute.xlu0 %5779
        %5781 = vrot.lane.b32.xlu0 %v5748, 48
        %v5782 = vpop.permute.xlu0 %5781
        %5783 = vrot.lane.b32.xlu0 %v5757, 48
        %v5784 = vpop.permute.xlu0 %5783
        %5785 = vrot.lane.b32.xlu0 %v5766, 48
        %v5786 = vpop.permute.xlu0 %5785
        %v5797 = vld [vmem:[#allocation3] sm:$0x7]
        %v5798 = vsel %vm2588, %v5768, %v5797
        %5799 = vst [vmem:[#allocation3] sm:$0x7] %v5798
        %v5800 = vld [vmem:[#allocation3 + $0x8] sm:$0x7]
        %v5801 = vsel %vm2588, %v5770, %v5800
        %5802 = vst [vmem:[#allocation3 + $0x8] sm:$0x7] %v5801
        %v5803 = vld [vmem:[#allocation3 + $0x10] sm:$0x7]
        %v5804 = vsel %vm2588, %v5772, %v5803
        %5805 = vst [vmem:[#allocation3 + $0x10] sm:$0x7] %v5804
        %v5806 = vld [vmem:[#allocation3 + $0x18] sm:$0x7]
        %v5807 = vsel %vm2588, %v5774, %v5806
        %5808 = vst [vmem:[#allocation3 + $0x18] sm:$0x7] %v5807
        %v5809 = vld [vmem:[#allocation3 + $0x20] sm:$0x7]
        %v5810 = vsel %vm2588, %v5776, %v5809
        %5811 = vst [vmem:[#allocation3 + $0x20] sm:$0x7] %v5810
        %v5812 = vld [vmem:[#allocation3 + $0x28] sm:$0x7]
        %v5813 = vsel %vm2588, %v5778, %v5812
        %5814 = vst [vmem:[#allocation3 + $0x28] sm:$0x7] %v5813
        %v5815 = vld [vmem:[#allocation3 + $0x30] sm:$0x7]
        %v5816 = vsel %vm2588, %v5780, %v5815
        %5817 = vst [vmem:[#allocation3 + $0x30] sm:$0x7] %v5816
        %v5818 = vld [vmem:[#allocation3 + $0x38] sm:$0x7]
        %v5819 = vsel %vm2588, %v5782, %v5818
        %5820 = vst [vmem:[#allocation3 + $0x38] sm:$0x7] %v5819
        %v5821 = vld [vmem:[#allocation3 + $0x40] sm:$0x7]
        %v5822 = vsel %vm2588, %v5784, %v5821
        %5823 = vst [vmem:[#allocation3 + $0x40] sm:$0x7] %v5822
        %v5824 = vld [vmem:[#allocation3 + $0x48] sm:$0x7]
        %v5825 = vsel %vm2588, %v5786, %v5824
        %5826 = vst [vmem:[#allocation3 + $0x48] sm:$0x7] %v5825
        %v5827 = vld [vmem:[%s2536] sm:$0x7]
        %v5828 = vld [vmem:[%s2536 + $0x4] sm:$0x7]
        %v5829 = vld [vmem:[%s2536 + $0x8] sm:$0x7]
        %v5830 = vld [vmem:[%s2536 + $0xc] sm:$0x7]
        %v5831 = vld [vmem:[%s2536 + $0x10] sm:$0x7]
        %v5832 = vld [vmem:[%s2536 + $0x14] sm:$0x7]
        %v5833 = vld [vmem:[%s2536 + $0x18] sm:$0x7]
        %v5834 = vld [vmem:[%s2536 + $0x1c] sm:$0x7]
        %v5835 = vld [vmem:[%s2536 + $0x20] sm:$0x7]
        %v5836 = vld [vmem:[%s2536 + $0x24] sm:$0x7]
        %v5838 = vshrl.u32 %v5827, 16
        %v5840 = vrot.slane %v5838, 4
        %v5841 = vshll.u32 %v5827, 16
        %v5843 = vrot.slane %v5841, 5
        %v5844 = vor.u32 %v5840, %v5843
        %v5845 = vrot.slane %v5844, 4
        %v5847 = vshrl.u32 %v5828, 16
        %v5849 = vrot.slane %v5847, 4
        %v5850 = vshll.u32 %v5828, 16
        %v5852 = vrot.slane %v5850, 5
        %v5853 = vor.u32 %v5849, %v5852
        %v5854 = vrot.slane %v5853, 4
        %v5856 = vshrl.u32 %v5829, 16
        %v5858 = vrot.slane %v5856, 4
        %v5859 = vshll.u32 %v5829, 16
        %v5861 = vrot.slane %v5859, 5
        %v5862 = vor.u32 %v5858, %v5861
        %v5863 = vrot.slane %v5862, 4
        %v5865 = vshrl.u32 %v5830, 16
        %v5867 = vrot.slane %v5865, 4
        %v5868 = vshll.u32 %v5830, 16
        %v5870 = vrot.slane %v5868, 5
        %v5871 = vor.u32 %v5867, %v5870
        %v5872 = vrot.slane %v5871, 4
        %v5874 = vshrl.u32 %v5831, 16
        %v5876 = vrot.slane %v5874, 4
        %v5877 = vshll.u32 %v5831, 16
        %v5879 = vrot.slane %v5877, 5
        %v5880 = vor.u32 %v5876, %v5879
        %v5881 = vrot.slane %v5880, 4
        %v5883 = vshrl.u32 %v5832, 16
        %v5885 = vrot.slane %v5883, 4
        %v5886 = vshll.u32 %v5832, 16
        %v5888 = vrot.slane %v5886, 5
        %v5889 = vor.u32 %v5885, %v5888
        %v5890 = vrot.slane %v5889, 4
        %v5892 = vshrl.u32 %v5833, 16
        %v5894 = vrot.slane %v5892, 4
        %v5895 = vshll.u32 %v5833, 16
        %v5897 = vrot.slane %v5895, 5
        %v5898 = vor.u32 %v5894, %v5897
        %v5899 = vrot.slane %v5898, 4
        %v5901 = vshrl.u32 %v5834, 16
        %v5903 = vrot.slane %v5901, 4
        %v5904 = vshll.u32 %v5834, 16
        %v5906 = vrot.slane %v5904, 5
        %v5907 = vor.u32 %v5903, %v5906
        %v5908 = vrot.slane %v5907, 4
        %v5910 = vshrl.u32 %v5835, 16
        %v5912 = vrot.slane %v5910, 4
        %v5913 = vshll.u32 %v5835, 16
        %v5915 = vrot.slane %v5913, 5
        %v5916 = vor.u32 %v5912, %v5915
        %v5917 = vrot.slane %v5916, 4
        %v5919 = vshrl.u32 %v5836, 16
        %v5921 = vrot.slane %v5919, 4
        %v5922 = vshll.u32 %v5836, 16
        %v5924 = vrot.slane %v5922, 5
        %v5925 = vor.u32 %v5921, %v5924
        %v5926 = vrot.slane %v5925, 4
        %5927 = vrot.lane.b32.xlu0 %v5845, 56
        %v5928 = vpop.permute.xlu0 %5927
        %5929 = vrot.lane.b32.xlu0 %v5854, 56
        %v5930 = vpop.permute.xlu0 %5929
        %5931 = vrot.lane.b32.xlu0 %v5863, 56
        %v5932 = vpop.permute.xlu0 %5931
        %5933 = vrot.lane.b32.xlu0 %v5872, 56
        %v5934 = vpop.permute.xlu0 %5933
        %5935 = vrot.lane.b32.xlu0 %v5881, 56
        %v5936 = vpop.permute.xlu0 %5935
        %5937 = vrot.lane.b32.xlu0 %v5890, 56
        %v5938 = vpop.permute.xlu0 %5937
        %5939 = vrot.lane.b32.xlu0 %v5899, 56
        %v5940 = vpop.permute.xlu0 %5939
        %5941 = vrot.lane.b32.xlu0 %v5908, 56
        %v5942 = vpop.permute.xlu0 %5941
        %5943 = vrot.lane.b32.xlu0 %v5917, 56
        %v5944 = vpop.permute.xlu0 %5943
        %5945 = vrot.lane.b32.xlu0 %v5926, 56
        %v5946 = vpop.permute.xlu0 %5945
        %v5957 = vld [vmem:[#allocation3] sm:$0x7]
        %v5958 = vsel %vm2750, %v5928, %v5957
        %5959 = vst [vmem:[#allocation3] sm:$0x7] %v5958
        %v5960 = vld [vmem:[#allocation3 + $0x8] sm:$0x7]
        %v5961 = vsel %vm2750, %v5930, %v5960
        %5962 = vst [vmem:[#allocation3 + $0x8] sm:$0x7] %v5961
        %v5963 = vld [vmem:[#allocation3 + $0x10] sm:$0x7]
        %v5964 = vsel %vm2750, %v5932, %v5963
        %5965 = vst [vmem:[#allocation3 + $0x10] sm:$0x7] %v5964
        %v5966 = vld [vmem:[#allocation3 + $0x18] sm:$0x7]
        %v5967 = vsel %vm2750, %v5934, %v5966
        %5968 = vst [vmem:[#allocation3 + $0x18] sm:$0x7] %v5967
        %v5969 = vld [vmem:[#allocation3 + $0x20] sm:$0x7]
        %v5970 = vsel %vm2750, %v5936, %v5969
        %5971 = vst [vmem:[#allocation3 + $0x20] sm:$0x7] %v5970
        %v5972 = vld [vmem:[#allocation3 + $0x28] sm:$0x7]
        %v5973 = vsel %vm2750, %v5938, %v5972
        %5974 = vst [vmem:[#allocation3 + $0x28] sm:$0x7] %v5973
        %v5975 = vld [vmem:[#allocation3 + $0x30] sm:$0x7]
        %v5976 = vsel %vm2750, %v5940, %v5975
        %5977 = vst [vmem:[#allocation3 + $0x30] sm:$0x7] %v5976
        %v5978 = vld [vmem:[#allocation3 + $0x38] sm:$0x7]
        %v5979 = vsel %vm2750, %v5942, %v5978
        %5980 = vst [vmem:[#allocation3 + $0x38] sm:$0x7] %v5979
        %v5981 = vld [vmem:[#allocation3 + $0x40] sm:$0x7]
        %v5982 = vsel %vm2750, %v5944, %v5981
        %5983 = vst [vmem:[#allocation3 + $0x40] sm:$0x7] %v5982
        %v5984 = vld [vmem:[#allocation3 + $0x48] sm:$0x7]
        %v5985 = vsel %vm2750, %v5946, %v5984
        %5986 = vst [vmem:[#allocation3 + $0x48] sm:$0x7] %v5985
        %v5987 = vld [vmem:[%s2453] sm:$0xe]
        %v5988 = vld [vmem:[%s2453 + $0x4] sm:$0xe]
        %v5989 = vld [vmem:[%s2453 + $0x8] sm:$0xe]
        %v5990 = vld [vmem:[%s2453 + $0xc] sm:$0xe]
        %v5991 = vld [vmem:[%s2453 + $0x10] sm:$0xe]
        %v5992 = vld [vmem:[%s2453 + $0x14] sm:$0xe]
        %v5993 = vld [vmem:[%s2453 + $0x18] sm:$0xe]
        %v5994 = vld [vmem:[%s2453 + $0x1c] sm:$0xe]
        %v5995 = vld [vmem:[%s2453 + $0x20] sm:$0xe]
        %v5996 = vld [vmem:[%s2453 + $0x24] sm:$0xe]
        %v6007 = vrot.slane %v5987, 5
        %v6008 = vrot.slane %v6007, 4
        %v6009 = vrot.slane %v5988, 5
        %v6010 = vrot.slane %v6009, 4
        %v6011 = vrot.slane %v5989, 5
        %v6012 = vrot.slane %v6011, 4
        %v6013 = vrot.slane %v5990, 5
        %v6014 = vrot.slane %v6013, 4
        %v6015 = vrot.slane %v5991, 5
        %v6016 = vrot.slane %v6015, 4
        %v6017 = vrot.slane %v5992, 5
        %v6018 = vrot.slane %v6017, 4
        %v6019 = vrot.slane %v5993, 5
        %v6020 = vrot.slane %v6019, 4
        %v6021 = vrot.slane %v5994, 5
        %v6022 = vrot.slane %v6021, 4
        %v6023 = vrot.slane %v5995, 5
        %v6024 = vrot.slane %v6023, 4
        %v6025 = vrot.slane %v5996, 5
        %v6026 = vrot.slane %v6025, 4
        %6027 = vrot.lane.b32.xlu0 %v6008, 64
        %v6028 = vpop.permute.xlu0 %6027
        %6029 = vrot.lane.b32.xlu0 %v6010, 64
        %v6030 = vpop.permute.xlu0 %6029
        %6031 = vrot.lane.b32.xlu0 %v6012, 64
        %v6032 = vpop.permute.xlu0 %6031
        %6033 = vrot.lane.b32.xlu0 %v6014, 64
        %v6034 = vpop.permute.xlu0 %6033
        %6035 = vrot.lane.b32.xlu0 %v6016, 64
        %v6036 = vpop.permute.xlu0 %6035
        %6037 = vrot.lane.b32.xlu0 %v6018, 64
        %v6038 = vpop.permute.xlu0 %6037
        %6039 = vrot.lane.b32.xlu0 %v6020, 64
        %v6040 = vpop.permute.xlu0 %6039
        %6041 = vrot.lane.b32.xlu0 %v6022, 64
        %v6042 = vpop.permute.xlu0 %6041
        %6043 = vrot.lane.b32.xlu0 %v6024, 64
        %v6044 = vpop.permute.xlu0 %6043
        %6045 = vrot.lane.b32.xlu0 %v6026, 64
        %v6046 = vpop.permute.xlu0 %6045
        %v6057 = vld [vmem:[#allocation3] sm:$0x7]
        %v6058 = vsel %vm2912, %v6028, %v6057
        %6059 = vst [vmem:[#allocation3] sm:$0x7] %v6058
        %v6060 = vld [vmem:[#allocation3 + $0x8] sm:$0x7]
        %v6061 = vsel %vm2912, %v6030, %v6060
        %6062 = vst [vmem:[#allocation3 + $0x8] sm:$0x7] %v6061
        %v6063 = vld [vmem:[#allocation3 + $0x10] sm:$0x7]
        %v6064 = vsel %vm2912, %v6032, %v6063
        %6065 = vst [vmem:[#allocation3 + $0x10] sm:$0x7] %v6064
        %v6066 = vld [vmem:[#allocation3 + $0x18] sm:$0x7]
        %v6067 = vsel %vm2912, %v6034, %v6066
        %6068 = vst [vmem:[#allocation3 + $0x18] sm:$0x7] %v6067
        %v6069 = vld [vmem:[#allocation3 + $0x20] sm:$0x7]
        %v6070 = vsel %vm2912, %v6036, %v6069
        %6071 = vst [vmem:[#allocation3 + $0x20] sm:$0x7] %v6070
        %v6072 = vld [vmem:[#allocation3 + $0x28] sm:$0x7]
        %v6073 = vsel %vm2912, %v6038, %v6072
        %6074 = vst [vmem:[#allocation3 + $0x28] sm:$0x7] %v6073
        %v6075 = vld [vmem:[#allocation3 + $0x30] sm:$0x7]
        %v6076 = vsel %vm2912, %v6040, %v6075
        %6077 = vst [vmem:[#allocation3 + $0x30] sm:$0x7] %v6076
        %v6078 = vld [vmem:[#allocation3 + $0x38] sm:$0x7]
        %v6079 = vsel %vm2912, %v6042, %v6078
        %6080 = vst [vmem:[#allocation3 + $0x38] sm:$0x7] %v6079
        %v6081 = vld [vmem:[#allocation3 + $0x40] sm:$0x7]
        %v6082 = vsel %vm2912, %v6044, %v6081
        %6083 = vst [vmem:[#allocation3 + $0x40] sm:$0x7] %v6082
        %v6084 = vld [vmem:[#allocation3 + $0x48] sm:$0x7]
        %v6085 = vsel %vm2912, %v6046, %v6084
        %6086 = vst [vmem:[#allocation3 + $0x48] sm:$0x7] %v6085
        %v6087 = vld [vmem:[%s2536] sm:$0xe]
        %v6088 = vld [vmem:[%s2536 + $0x4] sm:$0xe]
        %v6089 = vld [vmem:[%s2536 + $0x8] sm:$0xe]
        %v6090 = vld [vmem:[%s2536 + $0xc] sm:$0xe]
        %v6091 = vld [vmem:[%s2536 + $0x10] sm:$0xe]
        %v6092 = vld [vmem:[%s2536 + $0x14] sm:$0xe]
        %v6093 = vld [vmem:[%s2536 + $0x18] sm:$0xe]
        %v6094 = vld [vmem:[%s2536 + $0x1c] sm:$0xe]
        %v6095 = vld [vmem:[%s2536 + $0x20] sm:$0xe]
        %v6096 = vld [vmem:[%s2536 + $0x24] sm:$0xe]
        %v6107 = vrot.slane %v6087, 5
        %v6108 = vrot.slane %v6107, 4
        %v6109 = vrot.slane %v6088, 5
        %v6110 = vrot.slane %v6109, 4
        %v6111 = vrot.slane %v6089, 5
        %v6112 = vrot.slane %v6111, 4
        %v6113 = vrot.slane %v6090, 5
        %v6114 = vrot.slane %v6113, 4
        %v6115 = vrot.slane %v6091, 5
        %v6116 = vrot.slane %v6115, 4
        %v6117 = vrot.slane %v6092, 5
        %v6118 = vrot.slane %v6117, 4
        %v6119 = vrot.slane %v6093, 5
        %v6120 = vrot.slane %v6119, 4
        %v6121 = vrot.slane %v6094, 5
        %v6122 = vrot.slane %v6121, 4
        %v6123 = vrot.slane %v6095, 5
        %v6124 = vrot.slane %v6123, 4
        %v6125 = vrot.slane %v6096, 5
        %v6126 = vrot.slane %v6125, 4
        %6127 = vrot.lane.b32.xlu0 %v6108, 72
        %v6128 = vpop.permute.xlu0 %6127
        %6129 = vrot.lane.b32.xlu0 %v6110, 72
        %v6130 = vpop.permute.xlu0 %6129
        %6131 = vrot.lane.b32.xlu0 %v6112, 72
        %v6132 = vpop.permute.xlu0 %6131
        %6133 = vrot.lane.b32.xlu0 %v6114, 72
        %v6134 = vpop.permute.xlu0 %6133
        %6135 = vrot.lane.b32.xlu0 %v6116, 72
        %v6136 = vpop.permute.xlu0 %6135
        %6137 = vrot.lane.b32.xlu0 %v6118, 72
        %v6138 = vpop.permute.xlu0 %6137
        %6139 = vrot.lane.b32.xlu0 %v6120, 72
        %v6140 = vpop.permute.xlu0 %6139
        %6141 = vrot.lane.b32.xlu0 %v6122, 72
        %v6142 = vpop.permute.xlu0 %6141
        %6143 = vrot.lane.b32.xlu0 %v6124, 72
        %v6144 = vpop.permute.xlu0 %6143
        %6145 = vrot.lane.b32.xlu0 %v6126, 72
        %v6146 = vpop.permute.xlu0 %6145
        %v6157 = vld [vmem:[#allocation3] sm:$0x7]
        %v6158 = vsel %vm3014, %v6128, %v6157
        %6159 = vst [vmem:[#allocation3] sm:$0x7] %v6158
        %v6160 = vld [vmem:[#allocation3 + $0x8] sm:$0x7]
        %v6161 = vsel %vm3014, %v6130, %v6160
        %6162 = vst [vmem:[#allocation3 + $0x8] sm:$0x7] %v6161
        %v6163 = vld [vmem:[#allocation3 + $0x10] sm:$0x7]
        %v6164 = vsel %vm3014, %v6132, %v6163
        %6165 = vst [vmem:[#allocation3 + $0x10] sm:$0x7] %v6164
        %v6166 = vld [vmem:[#allocation3 + $0x18] sm:$0x7]
        %v6167 = vsel %vm3014, %v6134, %v6166
        %6168 = vst [vmem:[#allocation3 + $0x18] sm:$0x7] %v6167
        %v6169 = vld [vmem:[#allocation3 + $0x20] sm:$0x7]
        %v6170 = vsel %vm3014, %v6136, %v6169
        %6171 = vst [vmem:[#allocation3 + $0x20] sm:$0x7] %v6170
        %v6172 = vld [vmem:[#allocation3 + $0x28] sm:$0x7]
        %v6173 = vsel %vm3014, %v6138, %v6172
        %6174 = vst [vmem:[#allocation3 + $0x28] sm:$0x7] %v6173
        %v6175 = vld [vmem:[#allocation3 + $0x30] sm:$0x7]
        %v6176 = vsel %vm3014, %v6140, %v6175
        %6177 = vst [vmem:[#allocation3 + $0x30] sm:$0x7] %v6176
        %v6178 = vld [vmem:[#allocation3 + $0x38] sm:$0x7]
        %v6179 = vsel %vm3014, %v6142, %v6178
        %6180 = vst [vmem:[#allocation3 + $0x38] sm:$0x7] %v6179
        %v6181 = vld [vmem:[#allocation3 + $0x40] sm:$0x7]
        %v6182 = vsel %vm3014, %v6144, %v6181
        %6183 = vst [vmem:[#allocation3 + $0x40] sm:$0x7] %v6182
        %v6184 = vld [vmem:[#allocation3 + $0x48] sm:$0x7]
        %v6185 = vsel %vm3014, %v6146, %v6184
        %6186 = vst [vmem:[#allocation3 + $0x48] sm:$0x7] %v6185
        %v6187 = vld [vmem:[%s3128] sm:$0x7]
        %v6188 = vld [vmem:[%s3128 + $0x4] sm:$0x7]
        %v6189 = vld [vmem:[%s3128 + $0x8] sm:$0x7]
        %v6190 = vld [vmem:[%s3128 + $0xc] sm:$0x7]
        %v6191 = vld [vmem:[%s3128 + $0x10] sm:$0x7]
        %v6192 = vld [vmem:[%s3128 + $0x14] sm:$0x7]
        %v6193 = vld [vmem:[%s3128 + $0x18] sm:$0x7]
        %v6194 = vld [vmem:[%s3128 + $0x1c] sm:$0x7]
        %v6195 = vld [vmem:[%s3128 + $0x20] sm:$0x7]
        %v6196 = vld [vmem:[%s3128 + $0x24] sm:$0x7]
        %6207 = vrot.lane.b32.xlu0 %v6187, 80
        %v6208 = vpop.permute.xlu0 %6207
        %6209 = vrot.lane.b32.xlu0 %v6188, 80
        %v6210 = vpop.permute.xlu0 %6209
        %6211 = vrot.lane.b32.xlu0 %v6189, 80
        %v6212 = vpop.permute.xlu0 %6211
        %6213 = vrot.lane.b32.xlu0 %v6190, 80
        %v6214 = vpop.permute.xlu0 %6213
        %6215 = vrot.lane.b32.xlu0 %v6191, 80
        %v6216 = vpop.permute.xlu0 %6215
        %6217 = vrot.lane.b32.xlu0 %v6192, 80
        %v6218 = vpop.permute.xlu0 %6217
        %6219 = vrot.lane.b32.xlu0 %v6193, 80
        %v6220 = vpop.permute.xlu0 %6219
        %6221 = vrot.lane.b32.xlu0 %v6194, 80
        %v6222 = vpop.permute.xlu0 %6221
        %6223 = vrot.lane.b32.xlu0 %v6195, 80
        %v6224 = vpop.permute.xlu0 %6223
        %6225 = vrot.lane.b32.xlu0 %v6196, 80
        %v6226 = vpop.permute.xlu0 %6225
        %v6237 = vld [vmem:[#allocation3] sm:$0x7]
        %v6238 = vsel %vm3097, %v6208, %v6237
        %6239 = vst [vmem:[#allocation3] sm:$0x7] %v6238
        %v6240 = vld [vmem:[#allocation3 + $0x8] sm:$0x7]
        %v6241 = vsel %vm3097, %v6210, %v6240
        %6242 = vst [vmem:[#allocation3 + $0x8] sm:$0x7] %v6241
        %v6243 = vld [vmem:[#allocation3 + $0x10] sm:$0x7]
        %v6244 = vsel %vm3097, %v6212, %v6243
        %6245 = vst [vmem:[#allocation3 + $0x10] sm:$0x7] %v6244
        %v6246 = vld [vmem:[#allocation3 + $0x18] sm:$0x7]
        %v6247 = vsel %vm3097, %v6214, %v6246
        %6248 = vst [vmem:[#allocation3 + $0x18] sm:$0x7] %v6247
        %v6249 = vld [vmem:[#allocation3 + $0x20] sm:$0x7]
        %v6250 = vsel %vm3097, %v6216, %v6249
        %6251 = vst [vmem:[#allocation3 + $0x20] sm:$0x7] %v6250
        %v6252 = vld [vmem:[#allocation3 + $0x28] sm:$0x7]
        %v6253 = vsel %vm3097, %v6218, %v6252
        %6254 = vst [vmem:[#allocation3 + $0x28] sm:$0x7] %v6253
        %v6255 = vld [vmem:[#allocation3 + $0x30] sm:$0x7]
        %v6256 = vsel %vm3097, %v6220, %v6255
        %6257 = vst [vmem:[#allocation3 + $0x30] sm:$0x7] %v6256
        %v6258 = vld [vmem:[#allocation3 + $0x38] sm:$0x7]
        %v6259 = vsel %vm3097, %v6222, %v6258
        %6260 = vst [vmem:[#allocation3 + $0x38] sm:$0x7] %v6259
        %v6261 = vld [vmem:[#allocation3 + $0x40] sm:$0x7]
        %v6262 = vsel %vm3097, %v6224, %v6261
        %6263 = vst [vmem:[#allocation3 + $0x40] sm:$0x7] %v6262
        %v6264 = vld [vmem:[#allocation3 + $0x48] sm:$0x7]
        %v6265 = vsel %vm3097, %v6226, %v6264
        %6266 = vst [vmem:[#allocation3 + $0x48] sm:$0x7] %v6265
        %v6267 = vld [vmem:[%s3045] sm:$0x7]
        %v6268 = vld [vmem:[%s3045 + $0x4] sm:$0x7]
        %v6269 = vld [vmem:[%s3045 + $0x8] sm:$0x7]
        %v6270 = vld [vmem:[%s3045 + $0xc] sm:$0x7]
        %v6271 = vld [vmem:[%s3045 + $0x10] sm:$0x7]
        %v6272 = vld [vmem:[%s3045 + $0x14] sm:$0x7]
        %v6273 = vld [vmem:[%s3045 + $0x18] sm:$0x7]
        %v6274 = vld [vmem:[%s3045 + $0x1c] sm:$0x7]
        %v6275 = vld [vmem:[%s3045 + $0x20] sm:$0x7]
        %v6276 = vld [vmem:[%s3045 + $0x24] sm:$0x7]
        %v6278 = vshrl.u32 %v6267, 16
        %v6280 = vrot.slane %v6278, 4
        %v6281 = vshll.u32 %v6267, 16
        %v6283 = vrot.slane %v6281, 5
        %v6284 = vor.u32 %v6280, %v6283
        %v6285 = vrot.slane %v6284, 4
        %v6287 = vshrl.u32 %v6268, 16
        %v6289 = vrot.slane %v6287, 4
        %v6290 = vshll.u32 %v6268, 16
        %v6292 = vrot.slane %v6290, 5
        %v6293 = vor.u32 %v6289, %v6292
        %v6294 = vrot.slane %v6293, 4
        %v6296 = vshrl.u32 %v6269, 16
        %v6298 = vrot.slane %v6296, 4
        %v6299 = vshll.u32 %v6269, 16
        %v6301 = vrot.slane %v6299, 5
        %v6302 = vor.u32 %v6298, %v6301
        %v6303 = vrot.slane %v6302, 4
        %v6305 = vshrl.u32 %v6270, 16
        %v6307 = vrot.slane %v6305, 4
        %v6308 = vshll.u32 %v6270, 16
        %v6310 = vrot.slane %v6308, 5
        %v6311 = vor.u32 %v6307, %v6310
        %v6312 = vrot.slane %v6311, 4
        %v6314 = vshrl.u32 %v6271, 16
        %v6316 = vrot.slane %v6314, 4
        %v6317 = vshll.u32 %v6271, 16
        %v6319 = vrot.slane %v6317, 5
        %v6320 = vor.u32 %v6316, %v6319
        %v6321 = vrot.slane %v6320, 4
        %v6323 = vshrl.u32 %v6272, 16
        %v6325 = vrot.slane %v6323, 4
        %v6326 = vshll.u32 %v6272, 16
        %v6328 = vrot.slane %v6326, 5
        %v6329 = vor.u32 %v6325, %v6328
        %v6330 = vrot.slane %v6329, 4
        %v6332 = vshrl.u32 %v6273, 16
        %v6334 = vrot.slane %v6332, 4
        %v6335 = vshll.u32 %v6273, 16
        %v6337 = vrot.slane %v6335, 5
        %v6338 = vor.u32 %v6334, %v6337
        %v6339 = vrot.slane %v6338, 4
        %v6341 = vshrl.u32 %v6274, 16
        %v6343 = vrot.slane %v6341, 4
        %v6344 = vshll.u32 %v6274, 16
        %v6346 = vrot.slane %v6344, 5
        %v6347 = vor.u32 %v6343, %v6346
        %v6348 = vrot.slane %v6347, 4
        %v6350 = vshrl.u32 %v6275, 16
        %v6352 = vrot.slane %v6350, 4
        %v6353 = vshll.u32 %v6275, 16
        %v6355 = vrot.slane %v6353, 5
        %v6356 = vor.u32 %v6352, %v6355
        %v6357 = vrot.slane %v6356, 4
        %v6359 = vshrl.u32 %v6276, 16
        %v6361 = vrot.slane %v6359, 4
        %v6362 = vshll.u32 %v6276, 16
        %v6364 = vrot.slane %v6362, 5
        %v6365 = vor.u32 %v6361, %v6364
        %v6366 = vrot.slane %v6365, 4
        %6367 = vrot.lane.b32.xlu0 %v6285, 88
        %v6368 = vpop.permute.xlu0 %6367
        %6369 = vrot.lane.b32.xlu0 %v6294, 88
        %v6370 = vpop.permute.xlu0 %6369
        %6371 = vrot.lane.b32.xlu0 %v6303, 88
        %v6372 = vpop.permute.xlu0 %6371
        %6373 = vrot.lane.b32.xlu0 %v6312, 88
        %v6374 = vpop.permute.xlu0 %6373
        %6375 = vrot.lane.b32.xlu0 %v6321, 88
        %v6376 = vpop.permute.xlu0 %6375
        %6377 = vrot.lane.b32.xlu0 %v6330, 88
        %v6378 = vpop.permute.xlu0 %6377
        %6379 = vrot.lane.b32.xlu0 %v6339, 88
        %v6380 = vpop.permute.xlu0 %6379
        %6381 = vrot.lane.b32.xlu0 %v6348, 88
        %v6382 = vpop.permute.xlu0 %6381
        %6383 = vrot.lane.b32.xlu0 %v6357, 88
        %v6384 = vpop.permute.xlu0 %6383
        %6385 = vrot.lane.b32.xlu0 %v6366, 88
        %v6386 = vpop.permute.xlu0 %6385
        %v6397 = vld [vmem:[#allocation3] sm:$0x7]
        %v6398 = vsel %vm3180, %v6368, %v6397
        %6399 = vst [vmem:[#allocation3] sm:$0x7] %v6398
        %v6400 = vld [vmem:[#allocation3 + $0x8] sm:$0x7]
        %v6401 = vsel %vm3180, %v6370, %v6400
        %6402 = vst [vmem:[#allocation3 + $0x8] sm:$0x7] %v6401
        %v6403 = vld [vmem:[#allocation3 + $0x10] sm:$0x7]
        %v6404 = vsel %vm3180, %v6372, %v6403
        %6405 = vst [vmem:[#allocation3 + $0x10] sm:$0x7] %v6404
        %v6406 = vld [vmem:[#allocation3 + $0x18] sm:$0x7]
        %v6407 = vsel %vm3180, %v6374, %v6406
        %6408 = vst [vmem:[#allocation3 + $0x18] sm:$0x7] %v6407
        %v6409 = vld [vmem:[#allocation3 + $0x20] sm:$0x7]
        %v6410 = vsel %vm3180, %v6376, %v6409
        %6411 = vst [vmem:[#allocation3 + $0x20] sm:$0x7] %v6410
        %v6412 = vld [vmem:[#allocation3 + $0x28] sm:$0x7]
        %v6413 = vsel %vm3180, %v6378, %v6412
        %6414 = vst [vmem:[#allocation3 + $0x28] sm:$0x7] %v6413
        %v6415 = vld [vmem:[#allocation3 + $0x30] sm:$0x7]
        %v6416 = vsel %vm3180, %v6380, %v6415
        %6417 = vst [vmem:[#allocation3 + $0x30] sm:$0x7] %v6416
        %v6418 = vld [vmem:[#allocation3 + $0x38] sm:$0x7]
        %v6419 = vsel %vm3180, %v6382, %v6418
        %6420 = vst [vmem:[#allocation3 + $0x38] sm:$0x7] %v6419
        %v6421 = vld [vmem:[#allocation3 + $0x40] sm:$0x7]
        %v6422 = vsel %vm3180, %v6384, %v6421
        %6423 = vst [vmem:[#allocation3 + $0x40] sm:$0x7] %v6422
        %v6424 = vld [vmem:[#allocation3 + $0x48] sm:$0x7]
        %v6425 = vsel %vm3180, %v6386, %v6424
        %6426 = vst [vmem:[#allocation3 + $0x48] sm:$0x7] %v6425
        %v6427 = vld [vmem:[%s3128] sm:$0x7]
        %v6428 = vld [vmem:[%s3128 + $0x4] sm:$0x7]
        %v6429 = vld [vmem:[%s3128 + $0x8] sm:$0x7]
        %v6430 = vld [vmem:[%s3128 + $0xc] sm:$0x7]
        %v6431 = vld [vmem:[%s3128 + $0x10] sm:$0x7]
        %v6432 = vld [vmem:[%s3128 + $0x14] sm:$0x7]
        %v6433 = vld [vmem:[%s3128 + $0x18] sm:$0x7]
        %v6434 = vld [vmem:[%s3128 + $0x1c] sm:$0x7]
        %v6435 = vld [vmem:[%s3128 + $0x20] sm:$0x7]
        %v6436 = vld [vmem:[%s3128 + $0x24] sm:$0x7]
        %v6438 = vshrl.u32 %v6427, 16
        %v6440 = vrot.slane %v6438, 4
        %v6441 = vshll.u32 %v6427, 16
        %v6443 = vrot.slane %v6441, 5
        %v6444 = vor.u32 %v6440, %v6443
        %v6445 = vrot.slane %v6444, 4
        %v6447 = vshrl.u32 %v6428, 16
        %v6449 = vrot.slane %v6447, 4
        %v6450 = vshll.u32 %v6428, 16
        %v6452 = vrot.slane %v6450, 5
        %v6453 = vor.u32 %v6449, %v6452
        %v6454 = vrot.slane %v6453, 4
        %v6456 = vshrl.u32 %v6429, 16
        %v6458 = vrot.slane %v6456, 4
        %v6459 = vshll.u32 %v6429, 16
        %v6461 = vrot.slane %v6459, 5
        %v6462 = vor.u32 %v6458, %v6461
        %v6463 = vrot.slane %v6462, 4
        %v6465 = vshrl.u32 %v6430, 16
        %v6467 = vrot.slane %v6465, 4
        %v6468 = vshll.u32 %v6430, 16
        %v6470 = vrot.slane %v6468, 5
        %v6471 = vor.u32 %v6467, %v6470
        %v6472 = vrot.slane %v6471, 4
        %v6474 = vshrl.u32 %v6431, 16
        %v6476 = vrot.slane %v6474, 4
        %v6477 = vshll.u32 %v6431, 16
        %v6479 = vrot.slane %v6477, 5
        %v6480 = vor.u32 %v6476, %v6479
        %v6481 = vrot.slane %v6480, 4
        %v6483 = vshrl.u32 %v6432, 16
        %v6485 = vrot.slane %v6483, 4
        %v6486 = vshll.u32 %v6432, 16
        %v6488 = vrot.slane %v6486, 5
        %v6489 = vor.u32 %v6485, %v6488
        %v6490 = vrot.slane %v6489, 4
        %v6492 = vshrl.u32 %v6433, 16
        %v6494 = vrot.slane %v6492, 4
        %v6495 = vshll.u32 %v6433, 16
        %v6497 = vrot.slane %v6495, 5
        %v6498 = vor.u32 %v6494, %v6497
        %v6499 = vrot.slane %v6498, 4
        %v6501 = vshrl.u32 %v6434, 16
        %v6503 = vrot.slane %v6501, 4
        %v6504 = vshll.u32 %v6434, 16
        %v6506 = vrot.slane %v6504, 5
        %v6507 = vor.u32 %v6503, %v6506
        %v6508 = vrot.slane %v6507, 4
        %v6510 = vshrl.u32 %v6435, 16
        %v6512 = vrot.slane %v6510, 4
        %v6513 = vshll.u32 %v6435, 16
        %v6515 = vrot.slane %v6513, 5
        %v6516 = vor.u32 %v6512, %v6515
        %v6517 = vrot.slane %v6516, 4
        %v6519 = vshrl.u32 %v6436, 16
        %v6521 = vrot.slane %v6519, 4
        %v6522 = vshll.u32 %v6436, 16
        %v6524 = vrot.slane %v6522, 5
        %v6525 = vor.u32 %v6521, %v6524
        %v6526 = vrot.slane %v6525, 4
        %6527 = vrot.lane.b32.xlu0 %v6445, 96
        %v6528 = vpop.permute.xlu0 %6527
        %6529 = vrot.lane.b32.xlu0 %v6454, 96
        %v6530 = vpop.permute.xlu0 %6529
        %6531 = vrot.lane.b32.xlu0 %v6463, 96
        %v6532 = vpop.permute.xlu0 %6531
        %6533 = vrot.lane.b32.xlu0 %v6472, 96
        %v6534 = vpop.permute.xlu0 %6533
        %6535 = vrot.lane.b32.xlu0 %v6481, 96
        %v6536 = vpop.permute.xlu0 %6535
        %6537 = vrot.lane.b32.xlu0 %v6490, 96
        %v6538 = vpop.permute.xlu0 %6537
        %6539 = vrot.lane.b32.xlu0 %v6499, 96
        %v6540 = vpop.permute.xlu0 %6539
        %6541 = vrot.lane.b32.xlu0 %v6508, 96
        %v6542 = vpop.permute.xlu0 %6541
        %6543 = vrot.lane.b32.xlu0 %v6517, 96
        %v6544 = vpop.permute.xlu0 %6543
        %6545 = vrot.lane.b32.xlu0 %v6526, 96
        %v6546 = vpop.permute.xlu0 %6545
        %v6557 = vld [vmem:[#allocation3] sm:$0x7]
        %v6558 = vsel %vm3342, %v6528, %v6557
        %6559 = vst [vmem:[#allocation3] sm:$0x7] %v6558
        %v6560 = vld [vmem:[#allocation3 + $0x8] sm:$0x7]
        %v6561 = vsel %vm3342, %v6530, %v6560
        %6562 = vst [vmem:[#allocation3 + $0x8] sm:$0x7] %v6561
        %v6563 = vld [vmem:[#allocation3 + $0x10] sm:$0x7]
        %v6564 = vsel %vm3342, %v6532, %v6563
        %6565 = vst [vmem:[#allocation3 + $0x10] sm:$0x7] %v6564
        %v6566 = vld [vmem:[#allocation3 + $0x18] sm:$0x7]
        %v6567 = vsel %vm3342, %v6534, %v6566
        %6568 = vst [vmem:[#allocation3 + $0x18] sm:$0x7] %v6567
        %v6569 = vld [vmem:[#allocation3 + $0x20] sm:$0x7]
        %v6570 = vsel %vm3342, %v6536, %v6569
        %6571 = vst [vmem:[#allocation3 + $0x20] sm:$0x7] %v6570
        %v6572 = vld [vmem:[#allocation3 + $0x28] sm:$0x7]
        %v6573 = vsel %vm3342, %v6538, %v6572
        %6574 = vst [vmem:[#allocation3 + $0x28] sm:$0x7] %v6573
        %v6575 = vld [vmem:[#allocation3 + $0x30] sm:$0x7]
        %v6576 = vsel %vm3342, %v6540, %v6575
        %6577 = vst [vmem:[#allocation3 + $0x30] sm:$0x7] %v6576
        %v6578 = vld [vmem:[#allocation3 + $0x38] sm:$0x7]
        %v6579 = vsel %vm3342, %v6542, %v6578
        %6580 = vst [vmem:[#allocation3 + $0x38] sm:$0x7] %v6579
        %v6581 = vld [vmem:[#allocation3 + $0x40] sm:$0x7]
        %v6582 = vsel %vm3342, %v6544, %v6581
        %6583 = vst [vmem:[#allocation3 + $0x40] sm:$0x7] %v6582
        %v6584 = vld [vmem:[#allocation3 + $0x48] sm:$0x7]
        %v6585 = vsel %vm3342, %v6546, %v6584
        %6586 = vst [vmem:[#allocation3 + $0x48] sm:$0x7] %v6585
        %v6587 = vld [vmem:[%s3045] sm:$0xe]
        %v6588 = vld [vmem:[%s3045 + $0x4] sm:$0xe]
        %v6589 = vld [vmem:[%s3045 + $0x8] sm:$0xe]
        %v6590 = vld [vmem:[%s3045 + $0xc] sm:$0xe]
        %v6591 = vld [vmem:[%s3045 + $0x10] sm:$0xe]
        %v6592 = vld [vmem:[%s3045 + $0x14] sm:$0xe]
        %v6593 = vld [vmem:[%s3045 + $0x18] sm:$0xe]
        %v6594 = vld [vmem:[%s3045 + $0x1c] sm:$0xe]
        %v6595 = vld [vmem:[%s3045 + $0x20] sm:$0xe]
        %v6596 = vld [vmem:[%s3045 + $0x24] sm:$0xe]
        %v6607 = vrot.slane %v6587, 5
        %v6608 = vrot.slane %v6607, 4
        %v6609 = vrot.slane %v6588, 5
        %v6610 = vrot.slane %v6609, 4
        %v6611 = vrot.slane %v6589, 5
        %v6612 = vrot.slane %v6611, 4
        %v6613 = vrot.slane %v6590, 5
        %v6614 = vrot.slane %v6613, 4
        %v6615 = vrot.slane %v6591, 5
        %v6616 = vrot.slane %v6615, 4
        %v6617 = vrot.slane %v6592, 5
        %v6618 = vrot.slane %v6617, 4
        %v6619 = vrot.slane %v6593, 5
        %v6620 = vrot.slane %v6619, 4
        %v6621 = vrot.slane %v6594, 5
        %v6622 = vrot.slane %v6621, 4
        %v6623 = vrot.slane %v6595, 5
        %v6624 = vrot.slane %v6623, 4
        %v6625 = vrot.slane %v6596, 5
        %v6626 = vrot.slane %v6625, 4
        %6627 = vrot.lane.b32.xlu0 %v6608, 104
        %v6628 = vpop.permute.xlu0 %6627
        %6629 = vrot.lane.b32.xlu0 %v6610, 104
        %v6630 = vpop.permute.xlu0 %6629
        %6631 = vrot.lane.b32.xlu0 %v6612, 104
        %v6632 = vpop.permute.xlu0 %6631
        %6633 = vrot.lane.b32.xlu0 %v6614, 104
        %v6634 = vpop.permute.xlu0 %6633
        %6635 = vrot.lane.b32.xlu0 %v6616, 104
        %v6636 = vpop.permute.xlu0 %6635
        %6637 = vrot.lane.b32.xlu0 %v6618, 104
        %v6638 = vpop.permute.xlu0 %6637
        %6639 = vrot.lane.b32.xlu0 %v6620, 104
        %v6640 = vpop.permute.xlu0 %6639
        %6641 = vrot.lane.b32.xlu0 %v6622, 104
        %v6642 = vpop.permute.xlu0 %6641
        %6643 = vrot.lane.b32.xlu0 %v6624, 104
        %v6644 = vpop.permute.xlu0 %6643
        %6645 = vrot.lane.b32.xlu0 %v6626, 104
        %v6646 = vpop.permute.xlu0 %6645
        %v6657 = vld [vmem:[#allocation3] sm:$0x7]
        %v6658 = vsel %vm3504, %v6628, %v6657
        %6659 = vst [vmem:[#allocation3] sm:$0x7] %v6658
        %v6660 = vld [vmem:[#allocation3 + $0x8] sm:$0x7]
        %v6661 = vsel %vm3504, %v6630, %v6660
        %6662 = vst [vmem:[#allocation3 + $0x8] sm:$0x7] %v6661
        %v6663 = vld [vmem:[#allocation3 + $0x10] sm:$0x7]
        %v6664 = vsel %vm3504, %v6632, %v6663
        %6665 = vst [vmem:[#allocation3 + $0x10] sm:$0x7] %v6664
        %v6666 = vld [vmem:[#allocation3 + $0x18] sm:$0x7]
        %v6667 = vsel %vm3504, %v6634, %v6666
        %6668 = vst [vmem:[#allocation3 + $0x18] sm:$0x7] %v6667
        %v6669 = vld [vmem:[#allocation3 + $0x20] sm:$0x7]
        %v6670 = vsel %vm3504, %v6636, %v6669
        %6671 = vst [vmem:[#allocation3 + $0x20] sm:$0x7] %v6670
        %v6672 = vld [vmem:[#allocation3 + $0x28] sm:$0x7]
        %v6673 = vsel %vm3504, %v6638, %v6672
        %6674 = vst [vmem:[#allocation3 + $0x28] sm:$0x7] %v6673
        %v6675 = vld [vmem:[#allocation3 + $0x30] sm:$0x7]
        %v6676 = vsel %vm3504, %v6640, %v6675
        %6677 = vst [vmem:[#allocation3 + $0x30] sm:$0x7] %v6676
        %v6678 = vld [vmem:[#allocation3 + $0x38] sm:$0x7]
        %v6679 = vsel %vm3504, %v6642, %v6678
        %6680 = vst [vmem:[#allocation3 + $0x38] sm:$0x7] %v6679
        %v6681 = vld [vmem:[#allocation3 + $0x40] sm:$0x7]
        %v6682 = vsel %vm3504, %v6644, %v6681
        %6683 = vst [vmem:[#allocation3 + $0x40] sm:$0x7] %v6682
        %v6684 = vld [vmem:[#allocation3 + $0x48] sm:$0x7]
        %v6685 = vsel %vm3504, %v6646, %v6684
        %6686 = vst [vmem:[#allocation3 + $0x48] sm:$0x7] %v6685
        %v6687 = vld [vmem:[%s3128] sm:$0xe]
        %v6688 = vld [vmem:[%s3128 + $0x4] sm:$0xe]
        %v6689 = vld [vmem:[%s3128 + $0x8] sm:$0xe]
        %v6690 = vld [vmem:[%s3128 + $0xc] sm:$0xe]
        %v6691 = vld [vmem:[%s3128 + $0x10] sm:$0xe]
        %v6692 = vld [vmem:[%s3128 + $0x14] sm:$0xe]
        %v6693 = vld [vmem:[%s3128 + $0x18] sm:$0xe]
        %v6694 = vld [vmem:[%s3128 + $0x1c] sm:$0xe]
        %v6695 = vld [vmem:[%s3128 + $0x20] sm:$0xe]
        %v6696 = vld [vmem:[%s3128 + $0x24] sm:$0xe]
        %v6707 = vrot.slane %v6687, 5
        %v6708 = vrot.slane %v6707, 4
        %v6709 = vrot.slane %v6688, 5
        %v6710 = vrot.slane %v6709, 4
        %v6711 = vrot.slane %v6689, 5
        %v6712 = vrot.slane %v6711, 4
        %v6713 = vrot.slane %v6690, 5
        %v6714 = vrot.slane %v6713, 4
        %v6715 = vrot.slane %v6691, 5
        %v6716 = vrot.slane %v6715, 4
        %v6717 = vrot.slane %v6692, 5
        %v6718 = vrot.slane %v6717, 4
        %v6719 = vrot.slane %v6693, 5
        %v6720 = vrot.slane %v6719, 4
        %v6721 = vrot.slane %v6694, 5
        %v6722 = vrot.slane %v6721, 4
        %v6723 = vrot.slane %v6695, 5
        %v6724 = vrot.slane %v6723, 4
        %v6725 = vrot.slane %v6696, 5
        %v6726 = vrot.slane %v6725, 4
        %6727 = vrot.lane.b32.xlu0 %v6708, 112
        %v6728 = vpop.permute.xlu0 %6727
        %6729 = vrot.lane.b32.xlu0 %v6710, 112
        %v6730 = vpop.permute.xlu0 %6729
        %6731 = vrot.lane.b32.xlu0 %v6712, 112
        %v6732 = vpop.permute.xlu0 %6731
        %6733 = vrot.lane.b32.xlu0 %v6714, 112
        %v6734 = vpop.permute.xlu0 %6733
        %6735 = vrot.lane.b32.xlu0 %v6716, 112
        %v6736 = vpop.permute.xlu0 %6735
        %6737 = vrot.lane.b32.xlu0 %v6718, 112
        %v6738 = vpop.permute.xlu0 %6737
        %6739 = vrot.lane.b32.xlu0 %v6720, 112
        %v6740 = vpop.permute.xlu0 %6739
        %6741 = vrot.lane.b32.xlu0 %v6722, 112
        %v6742 = vpop.permute.xlu0 %6741
        %6743 = vrot.lane.b32.xlu0 %v6724, 112
        %v6744 = vpop.permute.xlu0 %6743
        %6745 = vrot.lane.b32.xlu0 %v6726, 112
        %v6746 = vpop.permute.xlu0 %6745
        %v6757 = vld [vmem:[#allocation3] sm:$0x7]
        %v6758 = vsel %vm3606, %v6728, %v6757
        %6759 = vst [vmem:[#allocation3] sm:$0x7] %v6758
        %v6760 = vld [vmem:[#allocation3 + $0x8] sm:$0x7]
        %v6761 = vsel %vm3606, %v6730, %v6760
        %6762 = vst [vmem:[#allocation3 + $0x8] sm:$0x7] %v6761
        %v6763 = vld [vmem:[#allocation3 + $0x10] sm:$0x7]
        %v6764 = vsel %vm3606, %v6732, %v6763
        %6765 = vst [vmem:[#allocation3 + $0x10] sm:$0x7] %v6764
        %v6766 = vld [vmem:[#allocation3 + $0x18] sm:$0x7]
        %v6767 = vsel %vm3606, %v6734, %v6766
        %6768 = vst [vmem:[#allocation3 + $0x18] sm:$0x7] %v6767
        %v6769 = vld [vmem:[#allocation3 + $0x20] sm:$0x7]
        %v6770 = vsel %vm3606, %v6736, %v6769
        %6771 = vst [vmem:[#allocation3 + $0x20] sm:$0x7] %v6770
        %v6772 = vld [vmem:[#allocation3 + $0x28] sm:$0x7]
        %v6773 = vsel %vm3606, %v6738, %v6772
        %6774 = vst [vmem:[#allocation3 + $0x28] sm:$0x7] %v6773
        %v6775 = vld [vmem:[#allocation3 + $0x30] sm:$0x7]
        %v6776 = vsel %vm3606, %v6740, %v6775
        %6777 = vst [vmem:[#allocation3 + $0x30] sm:$0x7] %v6776
        %v6778 = vld [vmem:[#allocation3 + $0x38] sm:$0x7]
        %v6779 = vsel %vm3606, %v6742, %v6778
        %6780 = vst [vmem:[#allocation3 + $0x38] sm:$0x7] %v6779
        %v6781 = vld [vmem:[#allocation3 + $0x40] sm:$0x7]
        %v6782 = vsel %vm3606, %v6744, %v6781
        %6783 = vst [vmem:[#allocation3 + $0x40] sm:$0x7] %v6782
        %v6784 = vld [vmem:[#allocation3 + $0x48] sm:$0x7]
        %v6785 = vsel %vm3606, %v6746, %v6784
        %6786 = vst [vmem:[#allocation3 + $0x48] sm:$0x7] %v6785
        %v6787 = vld [vmem:[%s3720] sm:$0x7]
        %v6788 = vld [vmem:[%s3720 + $0x4] sm:$0x7]
        %v6789 = vld [vmem:[%s3720 + $0x8] sm:$0x7]
        %v6790 = vld [vmem:[%s3720 + $0xc] sm:$0x7]
        %v6791 = vld [vmem:[%s3720 + $0x10] sm:$0x7]
        %v6792 = vld [vmem:[%s3720 + $0x14] sm:$0x7]
        %v6793 = vld [vmem:[%s3720 + $0x18] sm:$0x7]
        %v6794 = vld [vmem:[%s3720 + $0x1c] sm:$0x7]
        %v6795 = vld [vmem:[%s3720 + $0x20] sm:$0x7]
        %v6796 = vld [vmem:[%s3720 + $0x24] sm:$0x7]
        %6807 = vrot.lane.b32.xlu0 %v6787, 120
        %v6808 = vpop.permute.xlu0 %6807
        %6809 = vrot.lane.b32.xlu0 %v6788, 120
        %v6810 = vpop.permute.xlu0 %6809
        %6811 = vrot.lane.b32.xlu0 %v6789, 120
        %v6812 = vpop.permute.xlu0 %6811
        %6813 = vrot.lane.b32.xlu0 %v6790, 120
        %v6814 = vpop.permute.xlu0 %6813
        %6815 = vrot.lane.b32.xlu0 %v6791, 120
        %v6816 = vpop.permute.xlu0 %6815
        %6817 = vrot.lane.b32.xlu0 %v6792, 120
        %v6818 = vpop.permute.xlu0 %6817
        %6819 = vrot.lane.b32.xlu0 %v6793, 120
        %v6820 = vpop.permute.xlu0 %6819
        %6821 = vrot.lane.b32.xlu0 %v6794, 120
        %v6822 = vpop.permute.xlu0 %6821
        %6823 = vrot.lane.b32.xlu0 %v6795, 120
        %v6824 = vpop.permute.xlu0 %6823
        %6825 = vrot.lane.b32.xlu0 %v6796, 120
        %v6826 = vpop.permute.xlu0 %6825
        %v6837 = vld [vmem:[#allocation3] sm:$0x7]
        %v6838 = vsel %vm3689, %v6808, %v6837
        %6839 = vst [vmem:[#allocation3] sm:$0x7] %v6838
        %v6840 = vld [vmem:[#allocation3 + $0x8] sm:$0x7]
        %v6841 = vsel %vm3689, %v6810, %v6840
        %6842 = vst [vmem:[#allocation3 + $0x8] sm:$0x7] %v6841
        %v6843 = vld [vmem:[#allocation3 + $0x10] sm:$0x7]
        %v6844 = vsel %vm3689, %v6812, %v6843
        %6845 = vst [vmem:[#allocation3 + $0x10] sm:$0x7] %v6844
        %v6846 = vld [vmem:[#allocation3 + $0x18] sm:$0x7]
        %v6847 = vsel %vm3689, %v6814, %v6846
        %6848 = vst [vmem:[#allocation3 + $0x18] sm:$0x7] %v6847
        %v6849 = vld [vmem:[#allocation3 + $0x20] sm:$0x7]
        %v6850 = vsel %vm3689, %v6816, %v6849
        %6851 = vst [vmem:[#allocation3 + $0x20] sm:$0x7] %v6850
        %v6852 = vld [vmem:[#allocation3 + $0x28] sm:$0x7]
        %v6853 = vsel %vm3689, %v6818, %v6852
        %6854 = vst [vmem:[#allocation3 + $0x28] sm:$0x7] %v6853
        %v6855 = vld [vmem:[#allocation3 + $0x30] sm:$0x7]
        %v6856 = vsel %vm3689, %v6820, %v6855
        %6857 = vst [vmem:[#allocation3 + $0x30] sm:$0x7] %v6856
        %v6858 = vld [vmem:[#allocation3 + $0x38] sm:$0x7]
        %v6859 = vsel %vm3689, %v6822, %v6858
        %6860 = vst [vmem:[#allocation3 + $0x38] sm:$0x7] %v6859
        %v6861 = vld [vmem:[#allocation3 + $0x40] sm:$0x7]
        %v6862 = vsel %vm3689, %v6824, %v6861
        %6863 = vst [vmem:[#allocation3 + $0x40] sm:$0x7] %v6862
        %v6864 = vld [vmem:[#allocation3 + $0x48] sm:$0x7]
        %v6865 = vsel %vm3689, %v6826, %v6864
        %6866 = vst [vmem:[#allocation3 + $0x48] sm:$0x7] %v6865
        %v6867 = vld [vmem:[%s3637] sm:$0x7]
        %v6868 = vld [vmem:[%s3637 + $0x4] sm:$0x7]
        %v6869 = vld [vmem:[%s3637 + $0x8] sm:$0x7]
        %v6870 = vld [vmem:[%s3637 + $0xc] sm:$0x7]
        %v6871 = vld [vmem:[%s3637 + $0x10] sm:$0x7]
        %v6872 = vld [vmem:[%s3637 + $0x14] sm:$0x7]
        %v6873 = vld [vmem:[%s3637 + $0x18] sm:$0x7]
        %v6874 = vld [vmem:[%s3637 + $0x1c] sm:$0x7]
        %v6875 = vld [vmem:[%s3637 + $0x20] sm:$0x7]
        %v6876 = vld [vmem:[%s3637 + $0x24] sm:$0x7]
        %v6878 = vshrl.u32 %v6867, 16
        %v6880 = vrot.slane %v6878, 4
        %v6881 = vshll.u32 %v6867, 16
        %v6883 = vrot.slane %v6881, 5
        %v6884 = vor.u32 %v6880, %v6883
        %v6885 = vrot.slane %v6884, 4
        %v6887 = vshrl.u32 %v6868, 16
        %v6889 = vrot.slane %v6887, 4
        %v6890 = vshll.u32 %v6868, 16
        %v6892 = vrot.slane %v6890, 5
        %v6893 = vor.u32 %v6889, %v6892
        %v6894 = vrot.slane %v6893, 4
        %v6896 = vshrl.u32 %v6869, 16
        %v6898 = vrot.slane %v6896, 4
        %v6899 = vshll.u32 %v6869, 16
        %v6901 = vrot.slane %v6899, 5
        %v6902 = vor.u32 %v6898, %v6901
        %v6903 = vrot.slane %v6902, 4
        %v6905 = vshrl.u32 %v6870, 16
        %v6907 = vrot.slane %v6905, 4
        %v6908 = vshll.u32 %v6870, 16
        %v6910 = vrot.slane %v6908, 5
        %v6911 = vor.u32 %v6907, %v6910
        %v6912 = vrot.slane %v6911, 4
        %v6914 = vshrl.u32 %v6871, 16
        %v6916 = vrot.slane %v6914, 4
        %v6917 = vshll.u32 %v6871, 16
        %v6919 = vrot.slane %v6917, 5
        %v6920 = vor.u32 %v6916, %v6919
        %v6921 = vrot.slane %v6920, 4
        %v6923 = vshrl.u32 %v6872, 16
        %v6925 = vrot.slane %v6923, 4
        %v6926 = vshll.u32 %v6872, 16
        %v6928 = vrot.slane %v6926, 5
        %v6929 = vor.u32 %v6925, %v6928
        %v6930 = vrot.slane %v6929, 4
        %v6932 = vshrl.u32 %v6873, 16
        %v6934 = vrot.slane %v6932, 4
        %v6935 = vshll.u32 %v6873, 16
        %v6937 = vrot.slane %v6935, 5
        %v6938 = vor.u32 %v6934, %v6937
        %v6939 = vrot.slane %v6938, 4
        %v6941 = vshrl.u32 %v6874, 16
        %v6943 = vrot.slane %v6941, 4
        %v6944 = vshll.u32 %v6874, 16
        %v6946 = vrot.slane %v6944, 5
        %v6947 = vor.u32 %v6943, %v6946
        %v6948 = vrot.slane %v6947, 4
        %v6950 = vshrl.u32 %v6875, 16
        %v6952 = vrot.slane %v6950, 4
        %v6953 = vshll.u32 %v6875, 16
        %v6955 = vrot.slane %v6953, 5
        %v6956 = vor.u32 %v6952, %v6955
        %v6957 = vrot.slane %v6956, 4
        %v6959 = vshrl.u32 %v6876, 16
        %v6961 = vrot.slane %v6959, 4
        %v6962 = vshll.u32 %v6876, 16
        %v6964 = vrot.slane %v6962, 5
        %v6965 = vor.u32 %v6961, %v6964
        %v6966 = vrot.slane %v6965, 4
        %v6977 = vld [vmem:[#allocation3 + $0x4] sm:$0x7]
        %v6978 = vsel %vm1914, %v6885, %v6977
        %6979 = vst [vmem:[#allocation3 + $0x4] sm:$0x7] %v6978
        %v6980 = vld [vmem:[#allocation3 + $0xc] sm:$0x7]
        %v6981 = vsel %vm1914, %v6894, %v6980
        %6982 = vst [vmem:[#allocation3 + $0xc] sm:$0x7] %v6981
        %v6983 = vld [vmem:[#allocation3 + $0x14] sm:$0x7]
        %v6984 = vsel %vm1914, %v6903, %v6983
        %6985 = vst [vmem:[#allocation3 + $0x14] sm:$0x7] %v6984
        %v6986 = vld [vmem:[#allocation3 + $0x1c] sm:$0x7]
        %v6987 = vsel %vm1914, %v6912, %v6986
        %6988 = vst [vmem:[#allocation3 + $0x1c] sm:$0x7] %v6987
        %v6989 = vld [vmem:[#allocation3 + $0x24] sm:$0x7]
        %v6990 = vsel %vm1914, %v6921, %v6989
        %6991 = vst [vmem:[#allocation3 + $0x24] sm:$0x7] %v6990
        %v6992 = vld [vmem:[#allocation3 + $0x2c] sm:$0x7]
        %v6993 = vsel %vm1914, %v6930, %v6992
        %6994 = vst [vmem:[#allocation3 + $0x2c] sm:$0x7] %v6993
        %v6995 = vld [vmem:[#allocation3 + $0x34] sm:$0x7]
        %v6996 = vsel %vm1914, %v6939, %v6995
        %6997 = vst [vmem:[#allocation3 + $0x34] sm:$0x7] %v6996
        %v6998 = vld [vmem:[#allocation3 + $0x3c] sm:$0x7]
        %v6999 = vsel %vm1914, %v6948, %v6998
        %7000 = vst [vmem:[#allocation3 + $0x3c] sm:$0x7] %v6999
        %v7001 = vld [vmem:[#allocation3 + $0x44] sm:$0x7]
        %v7002 = vsel %vm1914, %v6957, %v7001
        %7003 = vst [vmem:[#allocation3 + $0x44] sm:$0x7] %v7002
        %v7004 = vld [vmem:[#allocation3 + $0x4c] sm:$0x7]
        %v7005 = vsel %vm1914, %v6966, %v7004
        %7006 = vst [vmem:[#allocation3 + $0x4c] sm:$0x7] %v7005
        %v7007 = vld [vmem:[%s3720] sm:$0x7]
        %v7008 = vld [vmem:[%s3720 + $0x4] sm:$0x7]
        %v7009 = vld [vmem:[%s3720 + $0x8] sm:$0x7]
        %v7010 = vld [vmem:[%s3720 + $0xc] sm:$0x7]
        %v7011 = vld [vmem:[%s3720 + $0x10] sm:$0x7]
        %v7012 = vld [vmem:[%s3720 + $0x14] sm:$0x7]
        %v7013 = vld [vmem:[%s3720 + $0x18] sm:$0x7]
        %v7014 = vld [vmem:[%s3720 + $0x1c] sm:$0x7]
        %v7015 = vld [vmem:[%s3720 + $0x20] sm:$0x7]
        %v7016 = vld [vmem:[%s3720 + $0x24] sm:$0x7]
        %v7018 = vshrl.u32 %v7007, 16
        %v7020 = vrot.slane %v7018, 4
        %v7021 = vshll.u32 %v7007, 16
        %v7023 = vrot.slane %v7021, 5
        %v7024 = vor.u32 %v7020, %v7023
        %v7025 = vrot.slane %v7024, 4
        %v7027 = vshrl.u32 %v7008, 16
        %v7029 = vrot.slane %v7027, 4
        %v7030 = vshll.u32 %v7008, 16
        %v7032 = vrot.slane %v7030, 5
        %v7033 = vor.u32 %v7029, %v7032
        %v7034 = vrot.slane %v7033, 4
        %v7036 = vshrl.u32 %v7009, 16
        %v7038 = vrot.slane %v7036, 4
        %v7039 = vshll.u32 %v7009, 16
        %v7041 = vrot.slane %v7039, 5
        %v7042 = vor.u32 %v7038, %v7041
        %v7043 = vrot.slane %v7042, 4
        %v7045 = vshrl.u32 %v7010, 16
        %v7047 = vrot.slane %v7045, 4
        %v7048 = vshll.u32 %v7010, 16
        %v7050 = vrot.slane %v7048, 5
        %v7051 = vor.u32 %v7047, %v7050
        %v7052 = vrot.slane %v7051, 4
        %v7054 = vshrl.u32 %v7011, 16
        %v7056 = vrot.slane %v7054, 4
        %v7057 = vshll.u32 %v7011, 16
        %v7059 = vrot.slane %v7057, 5
        %v7060 = vor.u32 %v7056, %v7059
        %v7061 = vrot.slane %v7060, 4
        %v7063 = vshrl.u32 %v7012, 16
        %v7065 = vrot.slane %v7063, 4
        %v7066 = vshll.u32 %v7012, 16
        %v7068 = vrot.slane %v7066, 5
        %v7069 = vor.u32 %v7065, %v7068
        %v7070 = vrot.slane %v7069, 4
        %v7072 = vshrl.u32 %v7013, 16
        %v7074 = vrot.slane %v7072, 4
        %v7075 = vshll.u32 %v7013, 16
        %v7077 = vrot.slane %v7075, 5
        %v7078 = vor.u32 %v7074, %v7077
        %v7079 = vrot.slane %v7078, 4
        %v7081 = vshrl.u32 %v7014, 16
        %v7083 = vrot.slane %v7081, 4
        %v7084 = vshll.u32 %v7014, 16
        %v7086 = vrot.slane %v7084, 5
        %v7087 = vor.u32 %v7083, %v7086
        %v7088 = vrot.slane %v7087, 4
        %v7090 = vshrl.u32 %v7015, 16
        %v7092 = vrot.slane %v7090, 4
        %v7093 = vshll.u32 %v7015, 16
        %v7095 = vrot.slane %v7093, 5
        %v7096 = vor.u32 %v7092, %v7095
        %v7097 = vrot.slane %v7096, 4
        %v7099 = vshrl.u32 %v7016, 16
        %v7101 = vrot.slane %v7099, 4
        %v7102 = vshll.u32 %v7016, 16
        %v7104 = vrot.slane %v7102, 5
        %v7105 = vor.u32 %v7101, %v7104
        %v7106 = vrot.slane %v7105, 4
        %7107 = vrot.lane.b32.xlu0 %v7025, 8
        %v7108 = vpop.permute.xlu0 %7107
        %7109 = vrot.lane.b32.xlu0 %v7034, 8
        %v7110 = vpop.permute.xlu0 %7109
        %7111 = vrot.lane.b32.xlu0 %v7043, 8
        %v7112 = vpop.permute.xlu0 %7111
        %7113 = vrot.lane.b32.xlu0 %v7052, 8
        %v7114 = vpop.permute.xlu0 %7113
        %7115 = vrot.lane.b32.xlu0 %v7061, 8
        %v7116 = vpop.permute.xlu0 %7115
        %7117 = vrot.lane.b32.xlu0 %v7070, 8
        %v7118 = vpop.permute.xlu0 %7117
        %7119 = vrot.lane.b32.xlu0 %v7079, 8
        %v7120 = vpop.permute.xlu0 %7119
        %7121 = vrot.lane.b32.xlu0 %v7088, 8
        %v7122 = vpop.permute.xlu0 %7121
        %7123 = vrot.lane.b32.xlu0 %v7097, 8
        %v7124 = vpop.permute.xlu0 %7123
        %7125 = vrot.lane.b32.xlu0 %v7106, 8
        %v7126 = vpop.permute.xlu0 %7125
        %v7137 = vld [vmem:[#allocation3 + $0x4] sm:$0x7]
        %v7138 = vsel %vm1996, %v7108, %v7137
        %7139 = vst [vmem:[#allocation3 + $0x4] sm:$0x7] %v7138
        %v7140 = vld [vmem:[#allocation3 + $0xc] sm:$0x7]
        %v7141 = vsel %vm1996, %v7110, %v7140
        %7142 = vst [vmem:[#allocation3 + $0xc] sm:$0x7] %v7141
        %v7143 = vld [vmem:[#allocation3 + $0x14] sm:$0x7]
        %v7144 = vsel %vm1996, %v7112, %v7143
        %7145 = vst [vmem:[#allocation3 + $0x14] sm:$0x7] %v7144
        %v7146 = vld [vmem:[#allocation3 + $0x1c] sm:$0x7]
        %v7147 = vsel %vm1996, %v7114, %v7146
        %7148 = vst [vmem:[#allocation3 + $0x1c] sm:$0x7] %v7147
        %v7149 = vld [vmem:[#allocation3 + $0x24] sm:$0x7]
        %v7150 = vsel %vm1996, %v7116, %v7149
        %7151 = vst [vmem:[#allocation3 + $0x24] sm:$0x7] %v7150
        %v7152 = vld [vmem:[#allocation3 + $0x2c] sm:$0x7]
        %v7153 = vsel %vm1996, %v7118, %v7152
        %7154 = vst [vmem:[#allocation3 + $0x2c] sm:$0x7] %v7153
        %v7155 = vld [vmem:[#allocation3 + $0x34] sm:$0x7]
        %v7156 = vsel %vm1996, %v7120, %v7155
        %7157 = vst [vmem:[#allocation3 + $0x34] sm:$0x7] %v7156
        %v7158 = vld [vmem:[#allocation3 + $0x3c] sm:$0x7]
        %v7159 = vsel %vm1996, %v7122, %v7158
        %7160 = vst [vmem:[#allocation3 + $0x3c] sm:$0x7] %v7159
        %v7161 = vld [vmem:[#allocation3 + $0x44] sm:$0x7]
        %v7162 = vsel %vm1996, %v7124, %v7161
        %7163 = vst [vmem:[#allocation3 + $0x44] sm:$0x7] %v7162
        %v7164 = vld [vmem:[#allocation3 + $0x4c] sm:$0x7]
        %v7165 = vsel %vm1996, %v7126, %v7164
        %7166 = vst [vmem:[#allocation3 + $0x4c] sm:$0x7] %v7165
        %v7167 = vld [vmem:[%s3637] sm:$0xe]
        %v7168 = vld [vmem:[%s3637 + $0x4] sm:$0xe]
        %v7169 = vld [vmem:[%s3637 + $0x8] sm:$0xe]
        %v7170 = vld [vmem:[%s3637 + $0xc] sm:$0xe]
        %v7171 = vld [vmem:[%s3637 + $0x10] sm:$0xe]
        %v7172 = vld [vmem:[%s3637 + $0x14] sm:$0xe]
        %v7173 = vld [vmem:[%s3637 + $0x18] sm:$0xe]
        %v7174 = vld [vmem:[%s3637 + $0x1c] sm:$0xe]
        %v7175 = vld [vmem:[%s3637 + $0x20] sm:$0xe]
        %v7176 = vld [vmem:[%s3637 + $0x24] sm:$0xe]
        %v7187 = vrot.slane %v7167, 5
        %v7188 = vrot.slane %v7187, 4
        %v7189 = vrot.slane %v7168, 5
        %v7190 = vrot.slane %v7189, 4
        %v7191 = vrot.slane %v7169, 5
        %v7192 = vrot.slane %v7191, 4
        %v7193 = vrot.slane %v7170, 5
        %v7194 = vrot.slane %v7193, 4
        %v7195 = vrot.slane %v7171, 5
        %v7196 = vrot.slane %v7195, 4
        %v7197 = vrot.slane %v7172, 5
        %v7198 = vrot.slane %v7197, 4
        %v7199 = vrot.slane %v7173, 5
        %v7200 = vrot.slane %v7199, 4
        %v7201 = vrot.slane %v7174, 5
        %v7202 = vrot.slane %v7201, 4
        %v7203 = vrot.slane %v7175, 5
        %v7204 = vrot.slane %v7203, 4
        %v7205 = vrot.slane %v7176, 5
        %v7206 = vrot.slane %v7205, 4
        %7207 = vrot.lane.b32.xlu0 %v7188, 16
        %v7208 = vpop.permute.xlu0 %7207
        %7209 = vrot.lane.b32.xlu0 %v7190, 16
        %v7210 = vpop.permute.xlu0 %7209
        %7211 = vrot.lane.b32.xlu0 %v7192, 16
        %v7212 = vpop.permute.xlu0 %7211
        %7213 = vrot.lane.b32.xlu0 %v7194, 16
        %v7214 = vpop.permute.xlu0 %7213
        %7215 = vrot.lane.b32.xlu0 %v7196, 16
        %v7216 = vpop.permute.xlu0 %7215
        %7217 = vrot.lane.b32.xlu0 %v7198, 16
        %v7218 = vpop.permute.xlu0 %7217
        %7219 = vrot.lane.b32.xlu0 %v7200, 16
        %v7220 = vpop.permute.xlu0 %7219
        %7221 = vrot.lane.b32.xlu0 %v7202, 16
        %v7222 = vpop.permute.xlu0 %7221
        %7223 = vrot.lane.b32.xlu0 %v7204, 16
        %v7224 = vpop.permute.xlu0 %7223
        %7225 = vrot.lane.b32.xlu0 %v7206, 16
        %v7226 = vpop.permute.xlu0 %7225
        %v7237 = vld [vmem:[#allocation3 + $0x4] sm:$0x7]
        %v7238 = vsel %vm2158, %v7208, %v7237
        %7239 = vst [vmem:[#allocation3 + $0x4] sm:$0x7] %v7238
        %v7240 = vld [vmem:[#allocation3 + $0xc] sm:$0x7]
        %v7241 = vsel %vm2158, %v7210, %v7240
        %7242 = vst [vmem:[#allocation3 + $0xc] sm:$0x7] %v7241
        %v7243 = vld [vmem:[#allocation3 + $0x14] sm:$0x7]
        %v7244 = vsel %vm2158, %v7212, %v7243
        %7245 = vst [vmem:[#allocation3 + $0x14] sm:$0x7] %v7244
        %v7246 = vld [vmem:[#allocation3 + $0x1c] sm:$0x7]
        %v7247 = vsel %vm2158, %v7214, %v7246
        %7248 = vst [vmem:[#allocation3 + $0x1c] sm:$0x7] %v7247
        %v7249 = vld [vmem:[#allocation3 + $0x24] sm:$0x7]
        %v7250 = vsel %vm2158, %v7216, %v7249
        %7251 = vst [vmem:[#allocation3 + $0x24] sm:$0x7] %v7250
        %v7252 = vld [vmem:[#allocation3 + $0x2c] sm:$0x7]
        %v7253 = vsel %vm2158, %v7218, %v7252
        %7254 = vst [vmem:[#allocation3 + $0x2c] sm:$0x7] %v7253
        %v7255 = vld [vmem:[#allocation3 + $0x34] sm:$0x7]
        %v7256 = vsel %vm2158, %v7220, %v7255
        %7257 = vst [vmem:[#allocation3 + $0x34] sm:$0x7] %v7256
        %v7258 = vld [vmem:[#allocation3 + $0x3c] sm:$0x7]
        %v7259 = vsel %vm2158, %v7222, %v7258
        %7260 = vst [vmem:[#allocation3 + $0x3c] sm:$0x7] %v7259
        %v7261 = vld [vmem:[#allocation3 + $0x44] sm:$0x7]
        %v7262 = vsel %vm2158, %v7224, %v7261
        %7263 = vst [vmem:[#allocation3 + $0x44] sm:$0x7] %v7262
        %v7264 = vld [vmem:[#allocation3 + $0x4c] sm:$0x7]
        %v7265 = vsel %vm2158, %v7226, %v7264
        %7266 = vst [vmem:[#allocation3 + $0x4c] sm:$0x7] %v7265
        %v7267 = vld [vmem:[%s3720] sm:$0xe]
        %v7268 = vld [vmem:[%s3720 + $0x4] sm:$0xe]
        %v7269 = vld [vmem:[%s3720 + $0x8] sm:$0xe]
        %v7270 = vld [vmem:[%s3720 + $0xc] sm:$0xe]
        %v7271 = vld [vmem:[%s3720 + $0x10] sm:$0xe]
        %v7272 = vld [vmem:[%s3720 + $0x14] sm:$0xe]
        %v7273 = vld [vmem:[%s3720 + $0x18] sm:$0xe]
        %v7274 = vld [vmem:[%s3720 + $0x1c] sm:$0xe]
        %v7275 = vld [vmem:[%s3720 + $0x20] sm:$0xe]
        %v7276 = vld [vmem:[%s3720 + $0x24] sm:$0xe]
        %v7287 = vrot.slane %v7267, 5
        %v7288 = vrot.slane %v7287, 4
        %v7289 = vrot.slane %v7268, 5
        %v7290 = vrot.slane %v7289, 4
        %v7291 = vrot.slane %v7269, 5
        %v7292 = vrot.slane %v7291, 4
        %v7293 = vrot.slane %v7270, 5
        %v7294 = vrot.slane %v7293, 4
        %v7295 = vrot.slane %v7271, 5
        %v7296 = vrot.slane %v7295, 4
        %v7297 = vrot.slane %v7272, 5
        %v7298 = vrot.slane %v7297, 4
        %v7299 = vrot.slane %v7273, 5
        %v7300 = vrot.slane %v7299, 4
        %v7301 = vrot.slane %v7274, 5
        %v7302 = vrot.slane %v7301, 4
        %v7303 = vrot.slane %v7275, 5
        %v7304 = vrot.slane %v7303, 4
        %v7305 = vrot.slane %v7276, 5
        %v7306 = vrot.slane %v7305, 4
        %7307 = vrot.lane.b32.xlu0 %v7288, 24
        %v7308 = vpop.permute.xlu0 %7307
        %7309 = vrot.lane.b32.xlu0 %v7290, 24
        %v7310 = vpop.permute.xlu0 %7309
        %7311 = vrot.lane.b32.xlu0 %v7292, 24
        %v7312 = vpop.permute.xlu0 %7311
        %7313 = vrot.lane.b32.xlu0 %v7294, 24
        %v7314 = vpop.permute.xlu0 %7313
        %7315 = vrot.lane.b32.xlu0 %v7296, 24
        %v7316 = vpop.permute.xlu0 %7315
        %7317 = vrot.lane.b32.xlu0 %v7298, 24
        %v7318 = vpop.permute.xlu0 %7317
        %7319 = vrot.lane.b32.xlu0 %v7300, 24
        %v7320 = vpop.permute.xlu0 %7319
        %7321 = vrot.lane.b32.xlu0 %v7302, 24
        %v7322 = vpop.permute.xlu0 %7321
        %7323 = vrot.lane.b32.xlu0 %v7304, 24
        %v7324 = vpop.permute.xlu0 %7323
        %7325 = vrot.lane.b32.xlu0 %v7306, 24
        %v7326 = vpop.permute.xlu0 %7325
        %v7337 = vld [vmem:[#allocation3 + $0x4] sm:$0x7]
        %v7338 = vsel %vm2320, %v7308, %v7337
        %7339 = vst [vmem:[#allocation3 + $0x4] sm:$0x7] %v7338
        %v7340 = vld [vmem:[#allocation3 + $0xc] sm:$0x7]
        %v7341 = vsel %vm2320, %v7310, %v7340
        %7342 = vst [vmem:[#allocation3 + $0xc] sm:$0x7] %v7341
        %v7343 = vld [vmem:[#allocation3 + $0x14] sm:$0x7]
        %v7344 = vsel %vm2320, %v7312, %v7343
        %7345 = vst [vmem:[#allocation3 + $0x14] sm:$0x7] %v7344
        %v7346 = vld [vmem:[#allocation3 + $0x1c] sm:$0x7]
        %v7347 = vsel %vm2320, %v7314, %v7346
        %7348 = vst [vmem:[#allocation3 + $0x1c] sm:$0x7] %v7347
        %v7349 = vld [vmem:[#allocation3 + $0x24] sm:$0x7]
        %v7350 = vsel %vm2320, %v7316, %v7349
        %7351 = vst [vmem:[#allocation3 + $0x24] sm:$0x7] %v7350
        %v7352 = vld [vmem:[#allocation3 + $0x2c] sm:$0x7]
        %v7353 = vsel %vm2320, %v7318, %v7352
        %7354 = vst [vmem:[#allocation3 + $0x2c] sm:$0x7] %v7353
        %v7355 = vld [vmem:[#allocation3 + $0x34] sm:$0x7]
        %v7356 = vsel %vm2320, %v7320, %v7355
        %7357 = vst [vmem:[#allocation3 + $0x34] sm:$0x7] %v7356
        %v7358 = vld [vmem:[#allocation3 + $0x3c] sm:$0x7]
        %v7359 = vsel %vm2320, %v7322, %v7358
        %7360 = vst [vmem:[#allocation3 + $0x3c] sm:$0x7] %v7359
        %v7361 = vld [vmem:[#allocation3 + $0x44] sm:$0x7]
        %v7362 = vsel %vm2320, %v7324, %v7361
        %7363 = vst [vmem:[#allocation3 + $0x44] sm:$0x7] %v7362
        %v7364 = vld [vmem:[#allocation3 + $0x4c] sm:$0x7]
        %v7365 = vsel %vm2320, %v7326, %v7364
        %7366 = vst [vmem:[#allocation3 + $0x4c] sm:$0x7] %v7365
        %v7367 = vld [vmem:[%s4262] sm:$0x7]
        %v7368 = vld [vmem:[%s4262 + $0x4] sm:$0x7]
        %v7369 = vld [vmem:[%s4262 + $0x8] sm:$0x7]
        %v7370 = vld [vmem:[%s4262 + $0xc] sm:$0x7]
        %v7371 = vld [vmem:[%s4262 + $0x10] sm:$0x7]
        %v7372 = vld [vmem:[%s4262 + $0x14] sm:$0x7]
        %v7373 = vld [vmem:[%s4262 + $0x18] sm:$0x7]
        %v7374 = vld [vmem:[%s4262 + $0x1c] sm:$0x7]
        %v7375 = vld [vmem:[%s4262 + $0x20] sm:$0x7]
        %v7376 = vld [vmem:[%s4262 + $0x24] sm:$0x7]
        %7387 = vrot.lane.b32.xlu0 %v7367, 32
        %v7388 = vpop.permute.xlu0 %7387
        %7389 = vrot.lane.b32.xlu0 %v7368, 32
        %v7390 = vpop.permute.xlu0 %7389
        %7391 = vrot.lane.b32.xlu0 %v7369, 32
        %v7392 = vpop.permute.xlu0 %7391
        %7393 = vrot.lane.b32.xlu0 %v7370, 32
        %v7394 = vpop.permute.xlu0 %7393
        %7395 = vrot.lane.b32.xlu0 %v7371, 32
        %v7396 = vpop.permute.xlu0 %7395
        %7397 = vrot.lane.b32.xlu0 %v7372, 32
        %v7398 = vpop.permute.xlu0 %7397
        %7399 = vrot.lane.b32.xlu0 %v7373, 32
        %v7400 = vpop.permute.xlu0 %7399
        %7401 = vrot.lane.b32.xlu0 %v7374, 32
        %v7402 = vpop.permute.xlu0 %7401
        %7403 = vrot.lane.b32.xlu0 %v7375, 32
        %v7404 = vpop.permute.xlu0 %7403
        %7405 = vrot.lane.b32.xlu0 %v7376, 32
        %v7406 = vpop.permute.xlu0 %7405
        %v7417 = vld [vmem:[#allocation3 + $0x4] sm:$0x7]
        %v7418 = vsel %vm2422, %v7388, %v7417
        %7419 = vst [vmem:[#allocation3 + $0x4] sm:$0x7] %v7418
        %v7420 = vld [vmem:[#allocation3 + $0xc] sm:$0x7]
        %v7421 = vsel %vm2422, %v7390, %v7420
        %7422 = vst [vmem:[#allocation3 + $0xc] sm:$0x7] %v7421
        %v7423 = vld [vmem:[#allocation3 + $0x14] sm:$0x7]
        %v7424 = vsel %vm2422, %v7392, %v7423
        %7425 = vst [vmem:[#allocation3 + $0x14] sm:$0x7] %v7424
        %v7426 = vld [vmem:[#allocation3 + $0x1c] sm:$0x7]
        %v7427 = vsel %vm2422, %v7394, %v7426
        %7428 = vst [vmem:[#allocation3 + $0x1c] sm:$0x7] %v7427
        %v7429 = vld [vmem:[#allocation3 + $0x24] sm:$0x7]
        %v7430 = vsel %vm2422, %v7396, %v7429
        %7431 = vst [vmem:[#allocation3 + $0x24] sm:$0x7] %v7430
        %v7432 = vld [vmem:[#allocation3 + $0x2c] sm:$0x7]
        %v7433 = vsel %vm2422, %v7398, %v7432
        %7434 = vst [vmem:[#allocation3 + $0x2c] sm:$0x7] %v7433
        %v7435 = vld [vmem:[#allocation3 + $0x34] sm:$0x7]
        %v7436 = vsel %vm2422, %v7400, %v7435
        %7437 = vst [vmem:[#allocation3 + $0x34] sm:$0x7] %v7436
        %v7438 = vld [vmem:[#allocation3 + $0x3c] sm:$0x7]
        %v7439 = vsel %vm2422, %v7402, %v7438
        %7440 = vst [vmem:[#allocation3 + $0x3c] sm:$0x7] %v7439
        %v7441 = vld [vmem:[#allocation3 + $0x44] sm:$0x7]
        %v7442 = vsel %vm2422, %v7404, %v7441
        %7443 = vst [vmem:[#allocation3 + $0x44] sm:$0x7] %v7442
        %v7444 = vld [vmem:[#allocation3 + $0x4c] sm:$0x7]
        %v7445 = vsel %vm2422, %v7406, %v7444
        %7446 = vst [vmem:[#allocation3 + $0x4c] sm:$0x7] %v7445
        %v7447 = vld [vmem:[%s4181] sm:$0x7]
        %v7448 = vld [vmem:[%s4181 + $0x4] sm:$0x7]
        %v7449 = vld [vmem:[%s4181 + $0x8] sm:$0x7]
        %v7450 = vld [vmem:[%s4181 + $0xc] sm:$0x7]
        %v7451 = vld [vmem:[%s4181 + $0x10] sm:$0x7]
        %v7452 = vld [vmem:[%s4181 + $0x14] sm:$0x7]
        %v7453 = vld [vmem:[%s4181 + $0x18] sm:$0x7]
        %v7454 = vld [vmem:[%s4181 + $0x1c] sm:$0x7]
        %v7455 = vld [vmem:[%s4181 + $0x20] sm:$0x7]
        %v7456 = vld [vmem:[%s4181 + $0x24] sm:$0x7]
        %v7458 = vshrl.u32 %v7447, 16
        %v7460 = vrot.slane %v7458, 4
        %v7461 = vshll.u32 %v7447, 16
        %v7463 = vrot.slane %v7461, 5
        %v7464 = vor.u32 %v7460, %v7463
        %v7465 = vrot.slane %v7464, 4
        %v7467 = vshrl.u32 %v7448, 16
        %v7469 = vrot.slane %v7467, 4
        %v7470 = vshll.u32 %v7448, 16
        %v7472 = vrot.slane %v7470, 5
        %v7473 = vor.u32 %v7469, %v7472
        %v7474 = vrot.slane %v7473, 4
        %v7476 = vshrl.u32 %v7449, 16
        %v7478 = vrot.slane %v7476, 4
        %v7479 = vshll.u32 %v7449, 16
        %v7481 = vrot.slane %v7479, 5
        %v7482 = vor.u32 %v7478, %v7481
        %v7483 = vrot.slane %v7482, 4
        %v7485 = vshrl.u32 %v7450, 16
        %v7487 = vrot.slane %v7485, 4
        %v7488 = vshll.u32 %v7450, 16
        %v7490 = vrot.slane %v7488, 5
        %v7491 = vor.u32 %v7487, %v7490
        %v7492 = vrot.slane %v7491, 4
        %v7494 = vshrl.u32 %v7451, 16
        %v7496 = vrot.slane %v7494, 4
        %v7497 = vshll.u32 %v7451, 16
        %v7499 = vrot.slane %v7497, 5
        %v7500 = vor.u32 %v7496, %v7499
        %v7501 = vrot.slane %v7500, 4
        %v7503 = vshrl.u32 %v7452, 16
        %v7505 = vrot.slane %v7503, 4
        %v7506 = vshll.u32 %v7452, 16
        %v7508 = vrot.slane %v7506, 5
        %v7509 = vor.u32 %v7505, %v7508
        %v7510 = vrot.slane %v7509, 4
        %v7512 = vshrl.u32 %v7453, 16
        %v7514 = vrot.slane %v7512, 4
        %v7515 = vshll.u32 %v7453, 16
        %v7517 = vrot.slane %v7515, 5
        %v7518 = vor.u32 %v7514, %v7517
        %v7519 = vrot.slane %v7518, 4
        %v7521 = vshrl.u32 %v7454, 16
        %v7523 = vrot.slane %v7521, 4
        %v7524 = vshll.u32 %v7454, 16
        %v7526 = vrot.slane %v7524, 5
        %v7527 = vor.u32 %v7523, %v7526
        %v7528 = vrot.slane %v7527, 4
        %v7530 = vshrl.u32 %v7455, 16
        %v7532 = vrot.slane %v7530, 4
        %v7533 = vshll.u32 %v7455, 16
        %v7535 = vrot.slane %v7533, 5
        %v7536 = vor.u32 %v7532, %v7535
        %v7537 = vrot.slane %v7536, 4
        %v7539 = vshrl.u32 %v7456, 16
        %v7541 = vrot.slane %v7539, 4
        %v7542 = vshll.u32 %v7456, 16
        %v7544 = vrot.slane %v7542, 5
        %v7545 = vor.u32 %v7541, %v7544
        %v7546 = vrot.slane %v7545, 4
        %7547 = vrot.lane.b32.xlu0 %v7465, 40
        %v7548 = vpop.permute.xlu0 %7547
        %7549 = vrot.lane.b32.xlu0 %v7474, 40
        %v7550 = vpop.permute.xlu0 %7549
        %7551 = vrot.lane.b32.xlu0 %v7483, 40
        %v7552 = vpop.permute.xlu0 %7551
        %7553 = vrot.lane.b32.xlu0 %v7492, 40
        %v7554 = vpop.permute.xlu0 %7553
        %7555 = vrot.lane.b32.xlu0 %v7501, 40
        %v7556 = vpop.permute.xlu0 %7555
        %7557 = vrot.lane.b32.xlu0 %v7510, 40
        %v7558 = vpop.permute.xlu0 %7557
        %7559 = vrot.lane.b32.xlu0 %v7519, 40
        %v7560 = vpop.permute.xlu0 %7559
        %7561 = vrot.lane.b32.xlu0 %v7528, 40
        %v7562 = vpop.permute.xlu0 %7561
        %7563 = vrot.lane.b32.xlu0 %v7537, 40
        %v7564 = vpop.permute.xlu0 %7563
        %7565 = vrot.lane.b32.xlu0 %v7546, 40
        %v7566 = vpop.permute.xlu0 %7565
        %v7577 = vld [vmem:[#allocation3 + $0x4] sm:$0x7]
        %v7578 = vsel %vm2505, %v7548, %v7577
        %7579 = vst [vmem:[#allocation3 + $0x4] sm:$0x7] %v7578
        %v7580 = vld [vmem:[#allocation3 + $0xc] sm:$0x7]
        %v7581 = vsel %vm2505, %v7550, %v7580
        %7582 = vst [vmem:[#allocation3 + $0xc] sm:$0x7] %v7581
        %v7583 = vld [vmem:[#allocation3 + $0x14] sm:$0x7]
        %v7584 = vsel %vm2505, %v7552, %v7583
        %7585 = vst [vmem:[#allocation3 + $0x14] sm:$0x7] %v7584
        %v7586 = vld [vmem:[#allocation3 + $0x1c] sm:$0x7]
        %v7587 = vsel %vm2505, %v7554, %v7586
        %7588 = vst [vmem:[#allocation3 + $0x1c] sm:$0x7] %v7587
        %v7589 = vld [vmem:[#allocation3 + $0x24] sm:$0x7]
        %v7590 = vsel %vm2505, %v7556, %v7589
        %7591 = vst [vmem:[#allocation3 + $0x24] sm:$0x7] %v7590
        %v7592 = vld [vmem:[#allocation3 + $0x2c] sm:$0x7]
        %v7593 = vsel %vm2505, %v7558, %v7592
        %7594 = vst [vmem:[#allocation3 + $0x2c] sm:$0x7] %v7593
        %v7595 = vld [vmem:[#allocation3 + $0x34] sm:$0x7]
        %v7596 = vsel %vm2505, %v7560, %v7595
        %7597 = vst [vmem:[#allocation3 + $0x34] sm:$0x7] %v7596
        %v7598 = vld [vmem:[#allocation3 + $0x3c] sm:$0x7]
        %v7599 = vsel %vm2505, %v7562, %v7598
        %7600 = vst [vmem:[#allocation3 + $0x3c] sm:$0x7] %v7599
        %v7601 = vld [vmem:[#allocation3 + $0x44] sm:$0x7]
        %v7602 = vsel %vm2505, %v7564, %v7601
        %7603 = vst [vmem:[#allocation3 + $0x44] sm:$0x7] %v7602
        %v7604 = vld [vmem:[#allocation3 + $0x4c] sm:$0x7]
        %v7605 = vsel %vm2505, %v7566, %v7604
        %7606 = vst [vmem:[#allocation3 + $0x4c] sm:$0x7] %v7605
        %v7607 = vld [vmem:[%s4262] sm:$0x7]
        %v7608 = vld [vmem:[%s4262 + $0x4] sm:$0x7]
        %v7609 = vld [vmem:[%s4262 + $0x8] sm:$0x7]
        %v7610 = vld [vmem:[%s4262 + $0xc] sm:$0x7]
        %v7611 = vld [vmem:[%s4262 + $0x10] sm:$0x7]
        %v7612 = vld [vmem:[%s4262 + $0x14] sm:$0x7]
        %v7613 = vld [vmem:[%s4262 + $0x18] sm:$0x7]
        %v7614 = vld [vmem:[%s4262 + $0x1c] sm:$0x7]
        %v7615 = vld [vmem:[%s4262 + $0x20] sm:$0x7]
        %v7616 = vld [vmem:[%s4262 + $0x24] sm:$0x7]
        %v7618 = vshrl.u32 %v7607, 16
        %v7620 = vrot.slane %v7618, 4
        %v7621 = vshll.u32 %v7607, 16
        %v7623 = vrot.slane %v7621, 5
        %v7624 = vor.u32 %v7620, %v7623
        %v7625 = vrot.slane %v7624, 4
        %v7627 = vshrl.u32 %v7608, 16
        %v7629 = vrot.slane %v7627, 4
        %v7630 = vshll.u32 %v7608, 16
        %v7632 = vrot.slane %v7630, 5
        %v7633 = vor.u32 %v7629, %v7632
        %v7634 = vrot.slane %v7633, 4
        %v7636 = vshrl.u32 %v7609, 16
        %v7638 = vrot.slane %v7636, 4
        %v7639 = vshll.u32 %v7609, 16
        %v7641 = vrot.slane %v7639, 5
        %v7642 = vor.u32 %v7638, %v7641
        %v7643 = vrot.slane %v7642, 4
        %v7645 = vshrl.u32 %v7610, 16
        %v7647 = vrot.slane %v7645, 4
        %v7648 = vshll.u32 %v7610, 16
        %v7650 = vrot.slane %v7648, 5
        %v7651 = vor.u32 %v7647, %v7650
        %v7652 = vrot.slane %v7651, 4
        %v7654 = vshrl.u32 %v7611, 16
        %v7656 = vrot.slane %v7654, 4
        %v7657 = vshll.u32 %v7611, 16
        %v7659 = vrot.slane %v7657, 5
        %v7660 = vor.u32 %v7656, %v7659
        %v7661 = vrot.slane %v7660, 4
        %v7663 = vshrl.u32 %v7612, 16
        %v7665 = vrot.slane %v7663, 4
        %v7666 = vshll.u32 %v7612, 16
        %v7668 = vrot.slane %v7666, 5
        %v7669 = vor.u32 %v7665, %v7668
        %v7670 = vrot.slane %v7669, 4
        %v7672 = vshrl.u32 %v7613, 16
        %v7674 = vrot.slane %v7672, 4
        %v7675 = vshll.u32 %v7613, 16
        %v7677 = vrot.slane %v7675, 5
        %v7678 = vor.u32 %v7674, %v7677
        %v7679 = vrot.slane %v7678, 4
        %v7681 = vshrl.u32 %v7614, 16
        %v7683 = vrot.slane %v7681, 4
        %v7684 = vshll.u32 %v7614, 16
        %v7686 = vrot.slane %v7684, 5
        %v7687 = vor.u32 %v7683, %v7686
        %v7688 = vrot.slane %v7687, 4
        %v7690 = vshrl.u32 %v7615, 16
        %v7692 = vrot.slane %v7690, 4
        %v7693 = vshll.u32 %v7615, 16
        %v7695 = vrot.slane %v7693, 5
        %v7696 = vor.u32 %v7692, %v7695
        %v7697 = vrot.slane %v7696, 4
        %v7699 = vshrl.u32 %v7616, 16
        %v7701 = vrot.slane %v7699, 4
        %v7702 = vshll.u32 %v7616, 16
        %v7704 = vrot.slane %v7702, 5
        %v7705 = vor.u32 %v7701, %v7704
        %v7706 = vrot.slane %v7705, 4
        %7707 = vrot.lane.b32.xlu0 %v7625, 48
        %v7708 = vpop.permute.xlu0 %7707
        %7709 = vrot.lane.b32.xlu0 %v7634, 48
        %v7710 = vpop.permute.xlu0 %7709
        %7711 = vrot.lane.b32.xlu0 %v7643, 48
        %v7712 = vpop.permute.xlu0 %7711
        %7713 = vrot.lane.b32.xlu0 %v7652, 48
        %v7714 = vpop.permute.xlu0 %7713
        %7715 = vrot.lane.b32.xlu0 %v7661, 48
        %v7716 = vpop.permute.xlu0 %7715
        %7717 = vrot.lane.b32.xlu0 %v7670, 48
        %v7718 = vpop.permute.xlu0 %7717
        %7719 = vrot.lane.b32.xlu0 %v7679, 48
        %v7720 = vpop.permute.xlu0 %7719
        %7721 = vrot.lane.b32.xlu0 %v7688, 48
        %v7722 = vpop.permute.xlu0 %7721
        %7723 = vrot.lane.b32.xlu0 %v7697, 48
        %v7724 = vpop.permute.xlu0 %7723
        %7725 = vrot.lane.b32.xlu0 %v7706, 48
        %v7726 = vpop.permute.xlu0 %7725
        %v7737 = vld [vmem:[#allocation3 + $0x4] sm:$0x7]
        %v7738 = vsel %vm2588, %v7708, %v7737
        %7739 = vst [vmem:[#allocation3 + $0x4] sm:$0x7] %v7738
        %v7740 = vld [vmem:[#allocation3 + $0xc] sm:$0x7]
        %v7741 = vsel %vm2588, %v7710, %v7740
        %7742 = vst [vmem:[#allocation3 + $0xc] sm:$0x7] %v7741
        %v7743 = vld [vmem:[#allocation3 + $0x14] sm:$0x7]
        %v7744 = vsel %vm2588, %v7712, %v7743
        %7745 = vst [vmem:[#allocation3 + $0x14] sm:$0x7] %v7744
        %v7746 = vld [vmem:[#allocation3 + $0x1c] sm:$0x7]
        %v7747 = vsel %vm2588, %v7714, %v7746
        %7748 = vst [vmem:[#allocation3 + $0x1c] sm:$0x7] %v7747
        %v7749 = vld [vmem:[#allocation3 + $0x24] sm:$0x7]
        %v7750 = vsel %vm2588, %v7716, %v7749
        %7751 = vst [vmem:[#allocation3 + $0x24] sm:$0x7] %v7750
        %v7752 = vld [vmem:[#allocation3 + $0x2c] sm:$0x7]
        %v7753 = vsel %vm2588, %v7718, %v7752
        %7754 = vst [vmem:[#allocation3 + $0x2c] sm:$0x7] %v7753
        %v7755 = vld [vmem:[#allocation3 + $0x34] sm:$0x7]
        %v7756 = vsel %vm2588, %v7720, %v7755
        %7757 = vst [vmem:[#allocation3 + $0x34] sm:$0x7] %v7756
        %v7758 = vld [vmem:[#allocation3 + $0x3c] sm:$0x7]
        %v7759 = vsel %vm2588, %v7722, %v7758
        %7760 = vst [vmem:[#allocation3 + $0x3c] sm:$0x7] %v7759
        %v7761 = vld [vmem:[#allocation3 + $0x44] sm:$0x7]
        %v7762 = vsel %vm2588, %v7724, %v7761
        %7763 = vst [vmem:[#allocation3 + $0x44] sm:$0x7] %v7762
        %v7764 = vld [vmem:[#allocation3 + $0x4c] sm:$0x7]
        %v7765 = vsel %vm2588, %v7726, %v7764
        %7766 = vst [vmem:[#allocation3 + $0x4c] sm:$0x7] %v7765
        %v7767 = vld [vmem:[%s4181] sm:$0xe]
        %v7768 = vld [vmem:[%s4181 + $0x4] sm:$0xe]
        %v7769 = vld [vmem:[%s4181 + $0x8] sm:$0xe]
        %v7770 = vld [vmem:[%s4181 + $0xc] sm:$0xe]
        %v7771 = vld [vmem:[%s4181 + $0x10] sm:$0xe]
        %v7772 = vld [vmem:[%s4181 + $0x14] sm:$0xe]
        %v7773 = vld [vmem:[%s4181 + $0x18] sm:$0xe]
        %v7774 = vld [vmem:[%s4181 + $0x1c] sm:$0xe]
        %v7775 = vld [vmem:[%s4181 + $0x20] sm:$0xe]
        %v7776 = vld [vmem:[%s4181 + $0x24] sm:$0xe]
        %v7787 = vrot.slane %v7767, 5
        %v7788 = vrot.slane %v7787, 4
        %v7789 = vrot.slane %v7768, 5
        %v7790 = vrot.slane %v7789, 4
        %v7791 = vrot.slane %v7769, 5
        %v7792 = vrot.slane %v7791, 4
        %v7793 = vrot.slane %v7770, 5
        %v7794 = vrot.slane %v7793, 4
        %v7795 = vrot.slane %v7771, 5
        %v7796 = vrot.slane %v7795, 4
        %v7797 = vrot.slane %v7772, 5
        %v7798 = vrot.slane %v7797, 4
        %v7799 = vrot.slane %v7773, 5
        %v7800 = vrot.slane %v7799, 4
        %v7801 = vrot.slane %v7774, 5
        %v7802 = vrot.slane %v7801, 4
        %v7803 = vrot.slane %v7775, 5
        %v7804 = vrot.slane %v7803, 4
        %v7805 = vrot.slane %v7776, 5
        %v7806 = vrot.slane %v7805, 4
        %7807 = vrot.lane.b32.xlu0 %v7788, 56
        %v7808 = vpop.permute.xlu0 %7807
        %7809 = vrot.lane.b32.xlu0 %v7790, 56
        %v7810 = vpop.permute.xlu0 %7809
        %7811 = vrot.lane.b32.xlu0 %v7792, 56
        %v7812 = vpop.permute.xlu0 %7811
        %7813 = vrot.lane.b32.xlu0 %v7794, 56
        %v7814 = vpop.permute.xlu0 %7813
        %7815 = vrot.lane.b32.xlu0 %v7796, 56
        %v7816 = vpop.permute.xlu0 %7815
        %7817 = vrot.lane.b32.xlu0 %v7798, 56
        %v7818 = vpop.permute.xlu0 %7817
        %7819 = vrot.lane.b32.xlu0 %v7800, 56
        %v7820 = vpop.permute.xlu0 %7819
        %7821 = vrot.lane.b32.xlu0 %v7802, 56
        %v7822 = vpop.permute.xlu0 %7821
        %7823 = vrot.lane.b32.xlu0 %v7804, 56
        %v7824 = vpop.permute.xlu0 %7823
        %7825 = vrot.lane.b32.xlu0 %v7806, 56
        %v7826 = vpop.permute.xlu0 %7825
        %v7837 = vld [vmem:[#allocation3 + $0x4] sm:$0x7]
        %v7838 = vsel %vm2750, %v7808, %v7837
        %7839 = vst [vmem:[#allocation3 + $0x4] sm:$0x7] %v7838
        %v7840 = vld [vmem:[#allocation3 + $0xc] sm:$0x7]
        %v7841 = vsel %vm2750, %v7810, %v7840
        %7842 = vst [vmem:[#allocation3 + $0xc] sm:$0x7] %v7841
        %v7843 = vld [vmem:[#allocation3 + $0x14] sm:$0x7]
        %v7844 = vsel %vm2750, %v7812, %v7843
        %7845 = vst [vmem:[#allocation3 + $0x14] sm:$0x7] %v7844
        %v7846 = vld [vmem:[#allocation3 + $0x1c] sm:$0x7]
        %v7847 = vsel %vm2750, %v7814, %v7846
        %7848 = vst [vmem:[#allocation3 + $0x1c] sm:$0x7] %v7847
        %v7849 = vld [vmem:[#allocation3 + $0x24] sm:$0x7]
        %v7850 = vsel %vm2750, %v7816, %v7849
        %7851 = vst [vmem:[#allocation3 + $0x24] sm:$0x7] %v7850
        %v7852 = vld [vmem:[#allocation3 + $0x2c] sm:$0x7]
        %v7853 = vsel %vm2750, %v7818, %v7852
        %7854 = vst [vmem:[#allocation3 + $0x2c] sm:$0x7] %v7853
        %v7855 = vld [vmem:[#allocation3 + $0x34] sm:$0x7]
        %v7856 = vsel %vm2750, %v7820, %v7855
        %7857 = vst [vmem:[#allocation3 + $0x34] sm:$0x7] %v7856
        %v7858 = vld [vmem:[#allocation3 + $0x3c] sm:$0x7]
        %v7859 = vsel %vm2750, %v7822, %v7858
        %7860 = vst [vmem:[#allocation3 + $0x3c] sm:$0x7] %v7859
        %v7861 = vld [vmem:[#allocation3 + $0x44] sm:$0x7]
        %v7862 = vsel %vm2750, %v7824, %v7861
        %7863 = vst [vmem:[#allocation3 + $0x44] sm:$0x7] %v7862
        %v7864 = vld [vmem:[#allocation3 + $0x4c] sm:$0x7]
        %v7865 = vsel %vm2750, %v7826, %v7864
        %7866 = vst [vmem:[#allocation3 + $0x4c] sm:$0x7] %v7865
        %v7867 = vld [vmem:[%s4262] sm:$0xe]
        %v7868 = vld [vmem:[%s4262 + $0x4] sm:$0xe]
        %v7869 = vld [vmem:[%s4262 + $0x8] sm:$0xe]
        %v7870 = vld [vmem:[%s4262 + $0xc] sm:$0xe]
        %v7871 = vld [vmem:[%s4262 + $0x10] sm:$0xe]
        %v7872 = vld [vmem:[%s4262 + $0x14] sm:$0xe]
        %v7873 = vld [vmem:[%s4262 + $0x18] sm:$0xe]
        %v7874 = vld [vmem:[%s4262 + $0x1c] sm:$0xe]
        %v7875 = vld [vmem:[%s4262 + $0x20] sm:$0xe]
        %v7876 = vld [vmem:[%s4262 + $0x24] sm:$0xe]
        %v7887 = vrot.slane %v7867, 5
        %v7888 = vrot.slane %v7887, 4
        %v7889 = vrot.slane %v7868, 5
        %v7890 = vrot.slane %v7889, 4
        %v7891 = vrot.slane %v7869, 5
        %v7892 = vrot.slane %v7891, 4
        %v7893 = vrot.slane %v7870, 5
        %v7894 = vrot.slane %v7893, 4
        %v7895 = vrot.slane %v7871, 5
        %v7896 = vrot.slane %v7895, 4
        %v7897 = vrot.slane %v7872, 5
        %v7898 = vrot.slane %v7897, 4
        %v7899 = vrot.slane %v7873, 5
        %v7900 = vrot.slane %v7899, 4
        %v7901 = vrot.slane %v7874, 5
        %v7902 = vrot.slane %v7901, 4
        %v7903 = vrot.slane %v7875, 5
        %v7904 = vrot.slane %v7903, 4
        %v7905 = vrot.slane %v7876, 5
        %v7906 = vrot.slane %v7905, 4
        %7907 = vrot.lane.b32.xlu0 %v7888, 64
        %v7908 = vpop.permute.xlu0 %7907
        %7909 = vrot.lane.b32.xlu0 %v7890, 64
        %v7910 = vpop.permute.xlu0 %7909
        %7911 = vrot.lane.b32.xlu0 %v7892, 64
        %v7912 = vpop.permute.xlu0 %7911
        %7913 = vrot.lane.b32.xlu0 %v7894, 64
        %v7914 = vpop.permute.xlu0 %7913
        %7915 = vrot.lane.b32.xlu0 %v7896, 64
        %v7916 = vpop.permute.xlu0 %7915
        %7917 = vrot.lane.b32.xlu0 %v7898, 64
        %v7918 = vpop.permute.xlu0 %7917
        %7919 = vrot.lane.b32.xlu0 %v7900, 64
        %v7920 = vpop.permute.xlu0 %7919
        %7921 = vrot.lane.b32.xlu0 %v7902, 64
        %v7922 = vpop.permute.xlu0 %7921
        %7923 = vrot.lane.b32.xlu0 %v7904, 64
        %v7924 = vpop.permute.xlu0 %7923
        %7925 = vrot.lane.b32.xlu0 %v7906, 64
        %v7926 = vpop.permute.xlu0 %7925
        %v7937 = vld [vmem:[#allocation3 + $0x4] sm:$0x7]
        %v7938 = vsel %vm2912, %v7908, %v7937
        %7939 = vst [vmem:[#allocation3 + $0x4] sm:$0x7] %v7938
        %v7940 = vld [vmem:[#allocation3 + $0xc] sm:$0x7]
        %v7941 = vsel %vm2912, %v7910, %v7940
        %7942 = vst [vmem:[#allocation3 + $0xc] sm:$0x7] %v7941
        %v7943 = vld [vmem:[#allocation3 + $0x14] sm:$0x7]
        %v7944 = vsel %vm2912, %v7912, %v7943
        %7945 = vst [vmem:[#allocation3 + $0x14] sm:$0x7] %v7944
        %v7946 = vld [vmem:[#allocation3 + $0x1c] sm:$0x7]
        %v7947 = vsel %vm2912, %v7914, %v7946
        %7948 = vst [vmem:[#allocation3 + $0x1c] sm:$0x7] %v7947
        %v7949 = vld [vmem:[#allocation3 + $0x24] sm:$0x7]
        %v7950 = vsel %vm2912, %v7916, %v7949
        %7951 = vst [vmem:[#allocation3 + $0x24] sm:$0x7] %v7950
        %v7952 = vld [vmem:[#allocation3 + $0x2c] sm:$0x7]
        %v7953 = vsel %vm2912, %v7918, %v7952
        %7954 = vst [vmem:[#allocation3 + $0x2c] sm:$0x7] %v7953
        %v7955 = vld [vmem:[#allocation3 + $0x34] sm:$0x7]
        %v7956 = vsel %vm2912, %v7920, %v7955
        %7957 = vst [vmem:[#allocation3 + $0x34] sm:$0x7] %v7956
        %v7958 = vld [vmem:[#allocation3 + $0x3c] sm:$0x7]
        %v7959 = vsel %vm2912, %v7922, %v7958
        %7960 = vst [vmem:[#allocation3 + $0x3c] sm:$0x7] %v7959
        %v7961 = vld [vmem:[#allocation3 + $0x44] sm:$0x7]
        %v7962 = vsel %vm2912, %v7924, %v7961
        %7963 = vst [vmem:[#allocation3 + $0x44] sm:$0x7] %v7962
        %v7964 = vld [vmem:[#allocation3 + $0x4c] sm:$0x7]
        %v7965 = vsel %vm2912, %v7926, %v7964
        %7966 = vst [vmem:[#allocation3 + $0x4c] sm:$0x7] %v7965
        %v7967 = vld [vmem:[#allocation3] sm:$0xff]
        %v7968 = vld [vmem:[#allocation3 + $0x8] sm:$0xff]
        %v7969 = vld [vmem:[#allocation3 + $0x10] sm:$0xff]
        %v7970 = vld [vmem:[#allocation3 + $0x18] sm:$0xff]
        %v7971 = vld [vmem:[#allocation3 + $0x20] sm:$0xff]
        %v7972 = vld [vmem:[#allocation3 + $0x28] sm:$0xff]
        %v7973 = vld [vmem:[#allocation3 + $0x30] sm:$0xff]
        %v7974 = vld [vmem:[#allocation3 + $0x38] sm:$0xff]
        %v7975 = vld [vmem:[#allocation3 + $0x40] sm:$0xff]
        %v7976 = vld [vmem:[#allocation3 + $0x48] sm:$0xff]
        %v7977 = vld [vmem:[%s3] sm:$0xf]
        %v7978 = vld [vmem:[%s3 + $0x4] sm:$0xf]
        %v7979 = vld [vmem:[%s3 + $0x8] sm:$0xf]
        %v7980 = vld [vmem:[%s3 + $0xc] sm:$0xf]
        %v7981 = vld [vmem:[%s3 + $0x10] sm:$0xf]
        %v7982 = vld [vmem:[%s3 + $0x14] sm:$0xf]
        %v7983 = vld [vmem:[%s3 + $0x18] sm:$0xf]
        %v7984 = vld [vmem:[%s3 + $0x1c] sm:$0xf]
        %v7985 = vld [vmem:[%s3 + $0x20] sm:$0xf]
        %v7986 = vld [vmem:[%s3 + $0x24] sm:$0xf]
        %v7987 = vld [vmem:[%s3 + $0x28] sm:$0xf]
        %v7988 = vld [vmem:[%s3 + $0x2c] sm:$0xf]
        %v7989 = vld [vmem:[%s3 + $0x30] sm:$0xf]
        %v7990 = vld [vmem:[%s3 + $0x34] sm:$0xf]
        %v7991 = vld [vmem:[%s3 + $0x38] sm:$0xf]
        %v7992 = vld [vmem:[%s3 + $0x3c] sm:$0xf]
        %v7993 = vld [vmem:[%s3 + $0x40] sm:$0xf]
        %v7994 = vld [vmem:[%s3 + $0x44] sm:$0xf]
        %v7995 = vld [vmem:[%s3 + $0x48] sm:$0xf]
        %v7996 = vld [vmem:[%s3 + $0x4c] sm:$0xf]
        %v7997 = vld [vmem:[%s3 + $0x50] sm:$0xf]
        %v7998 = vld [vmem:[%s3 + $0x54] sm:$0xf]
        %v7999 = vld [vmem:[%s3 + $0x58] sm:$0xf]
        %v8000 = vld [vmem:[%s3 + $0x5c] sm:$0xf]
        %v8001 = vld [vmem:[%s3 + $0x60] sm:$0xf]
        %v8012 = vunpack.c.l.b16 %v7967
        %v8013 = vunpack.c.h.b16 %v7967
        %v8014 = vunpack.c.l.b16 %v7968
        %v8015 = vunpack.c.h.b16 %v7968
        %v8016 = vunpack.c.l.b16 %v7969
        %v8017 = vunpack.c.h.b16 %v7969
        %v8018 = vunpack.c.l.b16 %v7970
        %v8019 = vunpack.c.h.b16 %v7970
        %v8020 = vunpack.c.l.b16 %v7971
        %v8021 = vunpack.c.h.b16 %v7971
        %v8022 = vunpack.c.l.b16 %v7972
        %v8023 = vunpack.c.h.b16 %v7972
        %v8024 = vunpack.c.l.b16 %v7973
        %v8025 = vunpack.c.h.b16 %v7973
        %v8026 = vunpack.c.l.b16 %v7974
        %v8027 = vunpack.c.h.b16 %v7974
        %v8028 = vunpack.c.l.b16 %v7975
        %v8029 = vunpack.c.h.b16 %v7975
        %v8030 = vunpack.c.l.b16 %v7976
        %v8031 = vunpack.c.h.b16 %v7976
        %v8032 = vpack.c.b16 %v8014, %v8012
        %v8033 = vpack.c.b16 %v8015, %v8013
        %v8034 = vpack.c.b16 %v8018, %v8016
        %v8035 = vpack.c.b16 %v8019, %v8017
        %v8036 = vpack.c.b16 %v8022, %v8020
        %v8037 = vpack.c.b16 %v8023, %v8021
        %v8038 = vpack.c.b16 %v8026, %v8024
        %v8039 = vpack.c.b16 %v8027, %v8025
        %v8040 = vpack.c.b16 %v8030, %v8028
        %v8041 = vpack.c.b16 %v8031, %v8029
        %v8072 = vunpack.c.l.b16 %v7977
        %v8073 = vunpack.c.l.b16 %v7978
        %v8074 = vunpack.c.l.b16 %v7979
        %v8075 = vunpack.c.l.b16 %v7980
        %v8076 = vunpack.c.l.b16 %v7981
        %v8077 = vunpack.c.l.b16 %v7982
        %v8078 = vunpack.c.l.b16 %v7983
        %v8079 = vunpack.c.l.b16 %v7984
        %v8080 = vunpack.c.l.b16 %v7985
        %v8081 = vunpack.c.l.b16 %v7986
        %v8082 = vunpack.c.l.b16 %v7987
        %v8083 = vunpack.c.l.b16 %v7988
        %v8084 = vunpack.c.l.b16 %v7989
        %v8085 = vunpack.c.l.b16 %v7990
        %v8086 = vunpack.c.l.b16 %v7991
        %v8087 = vunpack.c.l.b16 %v7992
        %v8088 = vunpack.c.l.b16 %v7993
        %v8089 = vunpack.c.l.b16 %v7994
        %v8090 = vunpack.c.l.b16 %v7995
        %v8091 = vunpack.c.l.b16 %v7996
        %v8092 = vunpack.c.l.b16 %v7997
        %v8093 = vunpack.c.l.b16 %v7998
        %v8094 = vunpack.c.l.b16 %v7999
        %v8095 = vunpack.c.l.b16 %v8000
        %v8096 = vunpack.c.l.b16 %v8001
        %v8097 = vpack.c.b16 %v8073, %v8072
        %v8098 = vpack.c.b16 %v8075, %v8074
        %v8099 = vpack.c.b16 %v8077, %v8076
        %v8100 = vpack.c.b16 %v8079, %v8078
        %v8101 = vpack.c.b16 %v8081, %v8080
        %v8102 = vpack.c.b16 %v8083, %v8082
        %v8103 = vpack.c.b16 %v8085, %v8084
        %v8104 = vpack.c.b16 %v8087, %v8086
        %v8105 = vpack.c.b16 %v8089, %v8088
        %v8106 = vpack.c.b16 %v8091, %v8090
        %v8107 = vpack.c.b16 %v8093, %v8092
        %v8108 = vpack.c.b16 %v8095, %v8094
        %v8109 = vpack.c.b16 %v8096, %v8096
        %v8123 = vsel %vm4924, %v8033, 0
        %v8126 = vsel %vm4924, %v8035, 0
        %v8129 = vsel %vm4924, %v8037, 0
        %v8132 = vsel %vm4924, %v8039, 0
        %v8135 = vsel %vm4924, %v8041, 0
        %v8138 = vsel %vm4940, %v8109, 0
        %8140 = vmatprep.subr.bf16.mxu0 0
        %8141 = vmatpush1.bf16.msra.mxu0 %v8104
        %8142 = vmatprep.subr.bf16.mxu0 0
        %8143 = vmatpush1.bf16.msra.mxu0 %v8103
        %8144 = vmatprep.subr.bf16.mxu0 0
        %8145 = vmatpush1.bf16.msra.mxu0 %v8102
        %8146 = vmatprep.subr.bf16.mxu0 0
        %8147 = vmatpush1.bf16.msra.mxu0 %v8101
        %8148 = vmatprep.subr.bf16.mxu0 0
        %8149 = vmatpush1.bf16.msra.mxu0 %v8100
        %8150 = vmatprep.subr.bf16.mxu0 0
        %8151 = vmatpush1.bf16.msra.mxu0 %v8099
        %8152 = vmatprep.subr.bf16.mxu0 0
        %8153 = vmatpush1.bf16.msra.mxu0 %v8098
        %8154 = vmatprep.subr.bf16.mxu0 0
        %8155 = vmatpush1.bf16.msra.mxu0 %v8097
        %8156 = vmatprep.subr.bf16.mxu0 0
        %8157 = vmatpush2.bf16.msra.mxu0 0
        %8158 = vmatprep.subr.bf16.mxu0 0
        %8159 = vmatpush2.bf16.msra.mxu0 0
        %8160 = vmatprep.subr.bf16.mxu0 0
        %8161 = vmatpush2.bf16.msra.mxu0 0
        %8162 = vmatprep.subr.bf16.mxu0 0
        %8163 = vmatpush2.bf16.msra.mxu0 %v8138
        %8164 = vmatprep.subr.bf16.mxu0 0
        %8165 = vmatpush2.bf16.msra.mxu0 %v8108
        %8166 = vmatprep.subr.bf16.mxu0 0
        %8167 = vmatpush2.bf16.msra.mxu0 %v8107
        %8168 = vmatprep.subr.bf16.mxu0 0
        %8169 = vmatpush2.bf16.msra.mxu0 %v8106
        %8170 = vmatprep.subr.bf16.mxu0 0
        %8171 = vmatpush2.bf16.msra.mxu0 %v8105
        %8172 = vmatprep.mubr.bf16.mxu0 %v8123
        %8173 = vmatmul.mubr.bf16.gmra.mxu0 %v8032
        %v8174 = vpop.f32.mrf.mxu0
        %v8175 = vadd.f32 %v4802, %v8174
        %v8176 = vpop.f32.mrf.mxu0
        %v8177 = vpop.f32.mrf.mxu0
        %v8178 = vadd.f32 %v4802, %v8177
        %v8179 = vpop.f32.mrf.mxu0
        %8180 = vmatprep.mubr.bf16.mxu0 %v8126
        %8181 = vmatmul.mubr.bf16.gmra.mxu0 %v8034
        %v8182 = vpop.f32.mrf.mxu0
        %v8183 = vadd.f32 %v4802, %v8182
        %v8184 = vpop.f32.mrf.mxu0
        %v8185 = vpop.f32.mrf.mxu0
        %v8186 = vadd.f32 %v4802, %v8185
        %v8187 = vpop.f32.mrf.mxu0
        %8188 = vmatprep.mubr.bf16.mxu0 %v8129
        %8189 = vmatmul.mubr.bf16.gmra.mxu0 %v8036
        %v8190 = vpop.f32.mrf.mxu0
        %v8191 = vadd.f32 %v4802, %v8190
        %v8192 = vpop.f32.mrf.mxu0
        %v8193 = vpop.f32.mrf.mxu0
        %v8194 = vadd.f32 %v4802, %v8193
        %v8195 = vpop.f32.mrf.mxu0
        %8196 = vmatprep.mubr.bf16.mxu0 %v8132
        %8197 = vmatmul.mubr.bf16.gmra.mxu0 %v8038
        %v8198 = vpop.f32.mrf.mxu0
        %v8199 = vadd.f32 %v4802, %v8198
        %v8200 = vpop.f32.mrf.mxu0
        %v8201 = vpop.f32.mrf.mxu0
        %v8202 = vadd.f32 %v4802, %v8201
        %v8203 = vpop.f32.mrf.mxu0
        %8204 = vmatprep.mubr.bf16.mxu0 %v8135
        %8205 = vmatmul.mubr.bf16.gmra.mxu0 %v8040
        %v8206 = vpop.f32.mrf.mxu0
        %v8207 = vadd.f32 %v4802, %v8206
        %v8208 = vpop.f32.mrf.mxu0
        %v8209 = vpop.f32.mrf.mxu0
        %v8210 = vadd.f32 %v4802, %v8209
        %v8211 = vpop.f32.mrf.mxu0
        %8212 = vdwg.mxu0
        %v8213 = vmax.f32 %v8175, 0.0
        %v8214 = vmax.f32 %v8178, 0.0
        %v8215 = vmax.f32 %v8183, 0.0
        %v8216 = vmax.f32 %v8186, 0.0
        %v8217 = vmax.f32 %v8191, 0.0
        %v8218 = vmax.f32 %v8194, 0.0
        %v8219 = vmax.f32 %v8199, 0.0
        %v8220 = vmax.f32 %v8202, 0.0
        %v8221 = vmax.f32 %v8207, 0.0
        %v8222 = vmax.f32 %v8210, 0.0
        %v8223 = vmax.f32 %v5017, %v8213
        %v8224 = vmax.f32 %v5018, %v8214
        %v8225 = vmax.f32 %v5019, %v8215
        %v8226 = vmax.f32 %v5020, %v8216
        %v8227 = vmax.f32 %v5021, %v8217
        %v8228 = vmax.f32 %v5022, %v8218
        %v8229 = vmax.f32 %v5023, %v8219
        %v8230 = vmax.f32 %v5024, %v8220
        %v8231 = vmax.f32 %v5025, %v8221
        %v8232 = vmax.f32 %v5026, %v8222
        %v8233 = vmax.f32 %v8223, %v8224
        %v8234 = vmax.f32 %v8225, %v8226
        %v8235 = vmax.f32 %v8227, %v8228
        %v8236 = vmax.f32 %v8229, %v8230
        %v8237 = vmax.f32 %v8231, %v8232
        %v8238 = vpack.c.bf16 %v8233, %v8233
        %vm8239 = vcmask 122880
        %vm8240 = vsmask.f32 256
        %vm8241 = vmand %vm8239, %vm8240
        %v8242 = vld [vmem:[#allocation4] sm:$0x1]
        %v8243 = vsel %vm8241, %v8238, %v8242
        %8244 = vst [vmem:[#allocation4] sm:$0x1] %v8243
        %v8247 = vunpack.c.l.s4 1966171168
        %v8248 = vunpack.c.0.s8 %v8247
        %v8249 = vlaneseq
        %v8250 = vshrl.u32 %v8249, 7
        %v8251 = vsub.s32 %v8248, %v8250
        %v8252 = vrot.slane %v8238, %v8251
        %v8254 = vunpack.c.l.s4 1966171168
        %v8255 = vunpack.c.0.s8 %v8254
        %v8256 = vlaneseq
        %v8257 = vshrl.u32 %v8256, 7
        %v8258 = vsub.s32 %v8255, %v8257
        %v8259 = vrot.slane %v8252, %v8258
        %v8261 = vshrl.u32 %v8259, 16
        %v8263 = vrot.slane %v8261, 7
        %v8264 = vrot.slane %v8263, 1
        %8265 = vrot.lane.b32.xlu0 %v8264, 16
        %v8266 = vpop.permute.xlu0 %8265
        %vm8268 = vcmask 254080
        %vm8269 = vmand %vm8268, %vm8240
        %v8270 = vld [vmem:[#allocation4] sm:$0x1]
        %v8271 = vsel %vm8269, %v8266, %v8270
        %8272 = vst [vmem:[#allocation4] sm:$0x1] %v8271
        %v8273 = vcombine.high %v8252, %v8252
        %v8275 = vunpack.c.l.s4 1966171168
        %v8276 = vunpack.c.0.s8 %v8275
        %v8277 = vlaneseq
        %v8278 = vshrl.u32 %v8277, 7
        %v8279 = vsub.s32 %v8276, %v8278
        %v8280 = vrot.slane %v8273, %v8279
        %8281 = vrot.lane.b32.xlu0 %v8280, 32
        %v8282 = vpop.permute.xlu0 %8281
        %vm8284 = vcmask 385280
        %vm8285 = vmand %vm8284, %vm8240
        %v8286 = vld [vmem:[#allocation4] sm:$0x1]
        %v8287 = vsel %vm8285, %v8282, %v8286
        %8288 = vst [vmem:[#allocation4] sm:$0x1] %v8287
        %v8290 = vshrl.u32 %v8280, 16
        %v8292 = vrot.slane %v8290, 7
        %v8293 = vrot.slane %v8292, 1
        %8294 = vrot.lane.b32.xlu0 %v8293, 48
        %v8295 = vpop.permute.xlu0 %8294
        %vm8297 = vcmask 516480
        %vm8298 = vmand %vm8297, %vm8240
        %v8299 = vld [vmem:[#allocation4] sm:$0x1]
        %v8300 = vsel %vm8298, %v8295, %v8299
        %8301 = vst [vmem:[#allocation4] sm:$0x1] %v8300
        %v8302 = vcombine.high %v8259, %v8259
        %8303 = vrot.lane.b32.xlu0 %v8302, 64
        %v8304 = vpop.permute.xlu0 %8303
        %vm8306 = vcmask 647680
        %vm8307 = vmand %vm8306, %vm8240
        %v8308 = vld [vmem:[#allocation4] sm:$0x1]
        %v8309 = vsel %vm8307, %v8304, %v8308
        %8310 = vst [vmem:[#allocation4] sm:$0x1] %v8309
        %v8311 = vpack.c.bf16 %v8234, %v8234
        %v8314 = vunpack.c.l.s4 1966171168
        %v8315 = vunpack.c.0.s8 %v8314
        %v8316 = vlaneseq
        %v8317 = vshrl.u32 %v8316, 7
        %v8318 = vsub.s32 %v8315, %v8317
        %v8319 = vrot.slane %v8311, %v8318
        %v8321 = vunpack.c.l.s4 1966171168
        %v8322 = vunpack.c.0.s8 %v8321
        %v8323 = vlaneseq
        %v8324 = vshrl.u32 %v8323, 7
        %v8325 = vsub.s32 %v8322, %v8324
        %v8326 = vrot.slane %v8319, %v8325
        %8327 = vrot.lane.b32.xlu0 %v8326, 80
        %v8328 = vpop.permute.xlu0 %8327
        %vm8330 = vcmask 778880
        %vm8331 = vmand %vm8330, %vm8240
        %v8332 = vld [vmem:[#allocation4] sm:$0x1]
        %v8333 = vsel %vm8331, %v8328, %v8332
        %8334 = vst [vmem:[#allocation4] sm:$0x1] %v8333
        %v8336 = vshrl.u32 %v8326, 16
        %v8338 = vrot.slane %v8336, 7
        %v8339 = vrot.slane %v8338, 1
        %8340 = vrot.lane.b32.xlu0 %v8339, 96
        %v8341 = vpop.permute.xlu0 %8340
        %vm8343 = vcmask 910080
        %vm8344 = vmand %vm8343, %vm8240
        %v8345 = vld [vmem:[#allocation4] sm:$0x1]
        %v8346 = vsel %vm8344, %v8341, %v8345
        %8347 = vst [vmem:[#allocation4] sm:$0x1] %v8346
        %v8348 = vcombine.high %v8319, %v8319
        %v8350 = vunpack.c.l.s4 1966171168
        %v8351 = vunpack.c.0.s8 %v8350
        %v8352 = vlaneseq
        %v8353 = vshrl.u32 %v8352, 7
        %v8354 = vsub.s32 %v8351, %v8353
        %v8355 = vrot.slane %v8348, %v8354
        %8356 = vrot.lane.b32.xlu0 %v8355, 112
        %v8357 = vpop.permute.xlu0 %8356
        %vm8359 = vcmask 1041280
        %vm8360 = vmand %vm8359, %vm8240
        %v8361 = vld [vmem:[#allocation4] sm:$0x1]
        %v8362 = vsel %vm8360, %v8357, %v8361
        %8363 = vst [vmem:[#allocation4] sm:$0x1] %v8362
        %v8365 = vshrl.u32 %v8355, 16
        %v8367 = vrot.slane %v8365, 7
        %v8368 = vrot.slane %v8367, 1
        %v8370 = vld [vmem:[#allocation4 + $0x1] sm:$0x1]
        %v8371 = vsel %vm8241, %v8368, %v8370
        %8372 = vst [vmem:[#allocation4 + $0x1] sm:$0x1] %v8371
        %v8373 = vcombine.high %v8326, %v8326
        %8374 = vrot.lane.b32.xlu0 %v8373, 16
        %v8375 = vpop.permute.xlu0 %8374
        %v8377 = vld [vmem:[#allocation4 + $0x1] sm:$0x1]
        %v8378 = vsel %vm8269, %v8375, %v8377
        %8379 = vst [vmem:[#allocation4 + $0x1] sm:$0x1] %v8378
        %v8380 = vpack.c.bf16 %v8235, %v8235
        %v8383 = vunpack.c.l.s4 1966171168
        %v8384 = vunpack.c.0.s8 %v8383
        %v8385 = vlaneseq
        %v8386 = vshrl.u32 %v8385, 7
        %v8387 = vsub.s32 %v8384, %v8386
        %v8388 = vrot.slane %v8380, %v8387
        %v8390 = vunpack.c.l.s4 1966171168
        %v8391 = vunpack.c.0.s8 %v8390
        %v8392 = vlaneseq
        %v8393 = vshrl.u32 %v8392, 7
        %v8394 = vsub.s32 %v8391, %v8393
        %v8395 = vrot.slane %v8388, %v8394
        %8396 = vrot.lane.b32.xlu0 %v8395, 32
        %v8397 = vpop.permute.xlu0 %8396
        %v8399 = vld [vmem:[#allocation4 + $0x1] sm:$0x1]
        %v8400 = vsel %vm8285, %v8397, %v8399
        %8401 = vst [vmem:[#allocation4 + $0x1] sm:$0x1] %v8400
        %v8403 = vshrl.u32 %v8395, 16
        %v8405 = vrot.slane %v8403, 7
        %v8406 = vrot.slane %v8405, 1
        %8407 = vrot.lane.b32.xlu0 %v8406, 48
        %v8408 = vpop.permute.xlu0 %8407
        %v8410 = vld [vmem:[#allocation4 + $0x1] sm:$0x1]
        %v8411 = vsel %vm8298, %v8408, %v8410
        %8412 = vst [vmem:[#allocation4 + $0x1] sm:$0x1] %v8411
        %v8413 = vcombine.high %v8388, %v8388
        %v8415 = vunpack.c.l.s4 1966171168
        %v8416 = vunpack.c.0.s8 %v8415
        %v8417 = vlaneseq
        %v8418 = vshrl.u32 %v8417, 7
        %v8419 = vsub.s32 %v8416, %v8418
        %v8420 = vrot.slane %v8413, %v8419
        %8421 = vrot.lane.b32.xlu0 %v8420, 64
        %v8422 = vpop.permute.xlu0 %8421
        %v8424 = vld [vmem:[#allocation4 + $0x1] sm:$0x1]
        %v8425 = vsel %vm8307, %v8422, %v8424
        %8426 = vst [vmem:[#allocation4 + $0x1] sm:$0x1] %v8425
        %v8428 = vshrl.u32 %v8420, 16
        %v8430 = vrot.slane %v8428, 7
        %v8431 = vrot.slane %v8430, 1
        %8432 = vrot.lane.b32.xlu0 %v8431, 80
        %v8433 = vpop.permute.xlu0 %8432
        %v8435 = vld [vmem:[#allocation4 + $0x1] sm:$0x1]
        %v8436 = vsel %vm8331, %v8433, %v8435
        %8437 = vst [vmem:[#allocation4 + $0x1] sm:$0x1] %v8436
        %v8438 = vcombine.high %v8395, %v8395
        %8439 = vrot.lane.b32.xlu0 %v8438, 96
        %v8440 = vpop.permute.xlu0 %8439
        %v8442 = vld [vmem:[#allocation4 + $0x1] sm:$0x1]
        %v8443 = vsel %vm8344, %v8440, %v8442
        %8444 = vst [vmem:[#allocation4 + $0x1] sm:$0x1] %v8443
        %v8445 = vpack.c.bf16 %v8236, %v8236
        %v8448 = vunpack.c.l.s4 1966171168
        %v8449 = vunpack.c.0.s8 %v8448
        %v8450 = vlaneseq
        %v8451 = vshrl.u32 %v8450, 7
        %v8452 = vsub.s32 %v8449, %v8451
        %v8453 = vrot.slane %v8445, %v8452
        %v8455 = vunpack.c.l.s4 1966171168
        %v8456 = vunpack.c.0.s8 %v8455
        %v8457 = vlaneseq
        %v8458 = vshrl.u32 %v8457, 7
        %v8459 = vsub.s32 %v8456, %v8458
        %v8460 = vrot.slane %v8453, %v8459
        %8461 = vrot.lane.b32.xlu0 %v8460, 112
        %v8462 = vpop.permute.xlu0 %8461
        %v8464 = vld [vmem:[#allocation4 + $0x1] sm:$0x1]
        %v8465 = vsel %vm8360, %v8462, %v8464
        %8466 = vst [vmem:[#allocation4 + $0x1] sm:$0x1] %v8465
        %v8468 = vshrl.u32 %v8460, 16
        %v8470 = vrot.slane %v8468, 7
        %v8471 = vrot.slane %v8470, 1
        %v8473 = vld [vmem:[#allocation4 + $0x2] sm:$0x1]
        %v8474 = vsel %vm8241, %v8471, %v8473
        %8475 = vst [vmem:[#allocation4 + $0x2] sm:$0x1] %v8474
        %v8476 = vcombine.high %v8453, %v8453
        %v8478 = vunpack.c.l.s4 1966171168
        %v8479 = vunpack.c.0.s8 %v8478
        %v8480 = vlaneseq
        %v8481 = vshrl.u32 %v8480, 7
        %v8482 = vsub.s32 %v8479, %v8481
        %v8483 = vrot.slane %v8476, %v8482
        %8484 = vrot.lane.b32.xlu0 %v8483, 16
        %v8485 = vpop.permute.xlu0 %8484
        %v8487 = vld [vmem:[#allocation4 + $0x2] sm:$0x1]
        %v8488 = vsel %vm8269, %v8485, %v8487
        %8489 = vst [vmem:[#allocation4 + $0x2] sm:$0x1] %v8488
        %v8491 = vshrl.u32 %v8483, 16
        %v8493 = vrot.slane %v8491, 7
        %v8494 = vrot.slane %v8493, 1
        %8495 = vrot.lane.b32.xlu0 %v8494, 32
        %v8496 = vpop.permute.xlu0 %8495
        %v8498 = vld [vmem:[#allocation4 + $0x2] sm:$0x1]
        %v8499 = vsel %vm8285, %v8496, %v8498
        %8500 = vst [vmem:[#allocation4 + $0x2] sm:$0x1] %v8499
        %v8501 = vcombine.high %v8460, %v8460
        %8502 = vrot.lane.b32.xlu0 %v8501, 48
        %v8503 = vpop.permute.xlu0 %8502
        %v8505 = vld [vmem:[#allocation4 + $0x2] sm:$0x1]
        %v8506 = vsel %vm8298, %v8503, %v8505
        %8507 = vst [vmem:[#allocation4 + $0x2] sm:$0x1] %v8506
        %v8508 = vpack.c.bf16 %v8237, %v8237
        %v8511 = vunpack.c.l.s4 1966171168
        %v8512 = vunpack.c.0.s8 %v8511
        %v8513 = vlaneseq
        %v8514 = vshrl.u32 %v8513, 7
        %v8515 = vsub.s32 %v8512, %v8514
        %v8516 = vrot.slane %v8508, %v8515
        %v8518 = vunpack.c.l.s4 1966171168
        %v8519 = vunpack.c.0.s8 %v8518
        %v8520 = vlaneseq
        %v8521 = vshrl.u32 %v8520, 7
        %v8522 = vsub.s32 %v8519, %v8521
        %v8523 = vrot.slane %v8516, %v8522
        %8524 = vrot.lane.b32.xlu0 %v8523, 64
        %v8525 = vpop.permute.xlu0 %8524
        %v8527 = vld [vmem:[#allocation4 + $0x2] sm:$0x1]
        %v8528 = vsel %vm8307, %v8525, %v8527
        %8529 = vst [vmem:[#allocation4 + $0x2] sm:$0x1] %v8528
        %v8531 = vshrl.u32 %v8523, 16
        %v8533 = vrot.slane %v8531, 7
        %v8534 = vrot.slane %v8533, 1
        %8535 = vrot.lane.b32.xlu0 %v8534, 80
        %v8536 = vpop.permute.xlu0 %8535
        %v8538 = vld [vmem:[#allocation4 + $0x2] sm:$0x1]
        %v8539 = vsel %vm8331, %v8536, %v8538
        %8540 = vst [vmem:[#allocation4 + $0x2] sm:$0x1] %v8539
        %v8541 = vcombine.high %v8516, %v8516
        %v8543 = vunpack.c.l.s4 1966171168
        %v8544 = vunpack.c.0.s8 %v8543
        %v8545 = vlaneseq
        %v8546 = vshrl.u32 %v8545, 7
        %v8547 = vsub.s32 %v8544, %v8546
        %v8548 = vrot.slane %v8541, %v8547
        %8549 = vrot.lane.b32.xlu0 %v8548, 96
        %v8550 = vpop.permute.xlu0 %8549
        %v8552 = vld [vmem:[#allocation4 + $0x2] sm:$0x1]
        %v8553 = vsel %vm8344, %v8550, %v8552
        %8554 = vst [vmem:[#allocation4 + $0x2] sm:$0x1] %v8553
        %v8556 = vshrl.u32 %v8548, 16
        %v8558 = vrot.slane %v8556, 7
        %v8559 = vrot.slane %v8558, 1
        %8560 = vrot.lane.b32.xlu0 %v8559, 112
        %v8561 = vpop.permute.xlu0 %8560
        %v8563 = vld [vmem:[#allocation4 + $0x2] sm:$0x1]
        %v8564 = vsel %vm8360, %v8561, %v8563
        %8565 = vst [vmem:[#allocation4 + $0x2] sm:$0x1] %v8564
        %v8566 = vcombine.high %v8523, %v8523
        %v8568 = vld [vmem:[#allocation4 + $0x3] sm:$0x1]
        %v8569 = vsel %vm8241, %v8566, %v8568
        %8570 = vst [vmem:[#allocation4 + $0x3] sm:$0x1] %v8569
        %v8571 = vld [vmem:[#allocation4] sm:$0xf]
        %v8572 = vld [vmem:[%s5] sm:$0xf]
        %v8573 = vld [vmem:[%s5 + $0x4] sm:$0xf]
        %v8574 = vld [vmem:[%s5 + $0x8] sm:$0xf]
        %v8575 = vld [vmem:[%s5 + $0xc] sm:$0xf]
        %v8576 = vld [vmem:[%s5 + $0x10] sm:$0xf]
        %v8577 = vld [vmem:[%s5 + $0x14] sm:$0xf]
        %v8578 = vld [vmem:[%s5 + $0x18] sm:$0xf]
        %v8579 = vld [vmem:[%s5 + $0x1c] sm:$0xf]
        %v8580 = vld [vmem:[%s5 + $0x20] sm:$0xf]
        %v8581 = vld [vmem:[%s5 + $0x24] sm:$0xf]
        %v8582 = vld [vmem:[%s5 + $0x28] sm:$0xf]
        %v8583 = vld [vmem:[%s5 + $0x2c] sm:$0xf]
        %v8584 = vld [vmem:[%s5 + $0x30] sm:$0xf]
        %v8585 = vld [vmem:[%s5 + $0x34] sm:$0xf]
        %v8586 = vld [vmem:[%s5 + $0x38] sm:$0xf]
        %v8587 = vld [vmem:[%s5 + $0x3c] sm:$0xf]
        %v8588 = vld [vmem:[%s5 + $0x40] sm:$0xf]
        %v8589 = vld [vmem:[%s5 + $0x44] sm:$0xf]
        %v8590 = vld [vmem:[%s5 + $0x48] sm:$0xf]
        %v8591 = vld [vmem:[%s5 + $0x4c] sm:$0xf]
        %v8592 = vld [vmem:[%s5 + $0x50] sm:$0xf]
        %v8593 = vld [vmem:[%s5 + $0x54] sm:$0xf]
        %v8594 = vld [vmem:[%s5 + $0x58] sm:$0xf]
        %v8595 = vld [vmem:[%s5 + $0x5c] sm:$0xf]
        %v8596 = vld [vmem:[%s5 + $0x60] sm:$0xf]
        %v8597 = vld [vmem:[%s5 + $0x64] sm:$0xf]
        %v8598 = vld [vmem:[%s5 + $0x68] sm:$0xf]
        %v8599 = vld [vmem:[%s5 + $0x6c] sm:$0xf]
        %v8600 = vld [vmem:[%s5 + $0x70] sm:$0xf]
        %v8601 = vld [vmem:[%s5 + $0x74] sm:$0xf]
        %v8602 = vld [vmem:[%s5 + $0x78] sm:$0xf]
        %v8603 = vld [vmem:[%s5 + $0x7c] sm:$0xf]
        %v8604 = vld [vmem:[%s5 + $0x80] sm:$0xf]
        %v8605 = vld [vmem:[%s5 + $0x84] sm:$0xf]
        %v8606 = vld [vmem:[%s5 + $0x88] sm:$0xf]
        %v8607 = vld [vmem:[%s5 + $0x8c] sm:$0xf]
        %v8608 = vld [vmem:[%s5 + $0x90] sm:$0xf]
        %v8609 = vld [vmem:[%s5 + $0x94] sm:$0xf]
        %v8610 = vld [vmem:[%s5 + $0x98] sm:$0xf]
        %v8611 = vld [vmem:[%s5 + $0x9c] sm:$0xf]
        %v8612 = vld [vmem:[%s5 + $0xa0] sm:$0xf]
        %v8613 = vld [vmem:[%s5 + $0xa4] sm:$0xf]
        %v8614 = vld [vmem:[%s5 + $0xa8] sm:$0xf]
        %v8615 = vld [vmem:[%s5 + $0xac] sm:$0xf]
        %v8616 = vld [vmem:[%s5 + $0xb0] sm:$0xf]
        %v8617 = vld [vmem:[%s5 + $0xb4] sm:$0xf]
        %v8618 = vld [vmem:[%s5 + $0xb8] sm:$0xf]
        %v8619 = vld [vmem:[%s5 + $0xbc] sm:$0xf]
        %v8620 = vld [vmem:[%s5 + $0xc0] sm:$0xf]
        %v8621 = vld [vmem:[%s5 + $0xc4] sm:$0xf]
        %v8622 = vld [vmem:[%s6] sm:$0x1]
        %v8625 = vunpack.c.l.s4 1966171168
        %v8626 = vunpack.c.0.s8 %v8625
        %v8627 = vlaneseq
        %v8628 = vshrl.u32 %v8627, 7
        %v8629 = vsub.s32 %v8626, %v8628
        %v8630 = vrot.slane %v8571, %v8629
        %v8631 = vcombine.high %v8630, %v8630
        %v8633 = vunpack.c.l.s4 1966171168
        %v8634 = vunpack.c.0.s8 %v8633
        %v8635 = vlaneseq
        %v8636 = vshrl.u32 %v8635, 7
        %v8637 = vsub.s32 %v8634, %v8636
        %v8638 = vrot.slane %v8630, %v8637
        %v8640 = vunpack.c.l.s4 1966171168
        %v8641 = vunpack.c.0.s8 %v8640
        %v8642 = vlaneseq
        %v8643 = vshrl.u32 %v8642, 7
        %v8644 = vsub.s32 %v8641, %v8643
        %v8645 = vrot.slane %v8631, %v8644
        %v8646 = vcombine.high %v8638, %v8638
        %v8647 = vcombine.high %v8645, %v8645
        %v8701 = vunpack.c.l.b16 %v8572
        %v8702 = vunpack.c.l.b16 %v8573
        %v8703 = vunpack.c.l.b16 %v8574
        %v8704 = vunpack.c.l.b16 %v8575
        %v8705 = vunpack.c.l.b16 %v8576
        %v8706 = vunpack.c.l.b16 %v8577
        %v8707 = vunpack.c.l.b16 %v8578
        %v8708 = vunpack.c.l.b16 %v8579
        %v8709 = vunpack.c.l.b16 %v8580
        %v8710 = vunpack.c.l.b16 %v8581
        %v8711 = vunpack.c.l.b16 %v8582
        %v8712 = vunpack.c.l.b16 %v8583
        %v8713 = vunpack.c.l.b16 %v8584
        %v8714 = vunpack.c.l.b16 %v8585
        %v8715 = vunpack.c.l.b16 %v8586
        %v8716 = vunpack.c.l.b16 %v8587
        %v8717 = vunpack.c.l.b16 %v8588
        %v8718 = vunpack.c.l.b16 %v8589
        %v8719 = vunpack.c.l.b16 %v8590
        %v8720 = vunpack.c.l.b16 %v8591
        %v8721 = vunpack.c.l.b16 %v8592
        %v8722 = vunpack.c.l.b16 %v8593
        %v8723 = vunpack.c.l.b16 %v8594
        %v8724 = vunpack.c.l.b16 %v8595
        %v8725 = vunpack.c.l.b16 %v8596
        %v8726 = vunpack.c.l.b16 %v8597
        %v8727 = vunpack.c.l.b16 %v8598
        %v8728 = vunpack.c.l.b16 %v8599
        %v8729 = vunpack.c.l.b16 %v8600
        %v8730 = vunpack.c.l.b16 %v8601
        %v8731 = vunpack.c.l.b16 %v8602
        %v8732 = vunpack.c.l.b16 %v8603
        %v8733 = vunpack.c.l.b16 %v8604
        %v8734 = vunpack.c.l.b16 %v8605
        %v8735 = vunpack.c.l.b16 %v8606
        %v8736 = vunpack.c.l.b16 %v8607
        %v8737 = vunpack.c.l.b16 %v8608
        %v8738 = vunpack.c.l.b16 %v8609
        %v8739 = vunpack.c.l.b16 %v8610
        %v8740 = vunpack.c.l.b16 %v8611
        %v8741 = vunpack.c.l.b16 %v8612
        %v8742 = vunpack.c.l.b16 %v8613
        %v8743 = vunpack.c.l.b16 %v8614
        %v8744 = vunpack.c.l.b16 %v8615
        %v8745 = vunpack.c.l.b16 %v8616
        %v8746 = vunpack.c.l.b16 %v8617
        %v8747 = vunpack.c.l.b16 %v8618
        %v8748 = vunpack.c.l.b16 %v8619
        %v8749 = vunpack.c.l.b16 %v8620
        %v8750 = vunpack.c.l.b16 %v8621
        %v8751 = vpack.c.b16 %v8702, %v8701
        %v8752 = vpack.c.b16 %v8704, %v8703
        %v8753 = vpack.c.b16 %v8706, %v8705
        %v8754 = vpack.c.b16 %v8708, %v8707
        %v8755 = vpack.c.b16 %v8710, %v8709
        %v8756 = vpack.c.b16 %v8712, %v8711
        %v8757 = vpack.c.b16 %v8714, %v8713
        %v8758 = vpack.c.b16 %v8716, %v8715
        %v8759 = vpack.c.b16 %v8718, %v8717
        %v8760 = vpack.c.b16 %v8720, %v8719
        %v8761 = vpack.c.b16 %v8722, %v8721
        %v8762 = vpack.c.b16 %v8724, %v8723
        %v8763 = vpack.c.b16 %v8726, %v8725
        %v8764 = vpack.c.b16 %v8728, %v8727
        %v8765 = vpack.c.b16 %v8730, %v8729
        %v8766 = vpack.c.b16 %v8732, %v8731
        %v8767 = vpack.c.b16 %v8734, %v8733
        %v8768 = vpack.c.b16 %v8736, %v8735
        %v8769 = vpack.c.b16 %v8738, %v8737
        %v8770 = vpack.c.b16 %v8740, %v8739
        %v8771 = vpack.c.b16 %v8742, %v8741
        %v8772 = vpack.c.b16 %v8744, %v8743
        %v8773 = vpack.c.b16 %v8746, %v8745
        %v8774 = vpack.c.b16 %v8748, %v8747
        %v8775 = vpack.c.b16 %v8750, %v8749
        %vm8801 = vcmask 130048
        %v8803 = vsel %vm8801, %v8647, 0
        %8805 = vmatprep.subr.bf16.mxu0 0
        %8806 = vmatpush1.bf16.msra.mxu0 %v8758
        %8807 = vmatprep.subr.bf16.mxu0 0
        %8808 = vmatpush1.bf16.msra.mxu0 %v8757
        %8809 = vmatprep.subr.bf16.mxu0 0
        %8810 = vmatpush1.bf16.msra.mxu0 %v8756
        %8811 = vmatprep.subr.bf16.mxu0 0
        %8812 = vmatpush1.bf16.msra.mxu0 %v8755
        %8813 = vmatprep.subr.bf16.mxu0 0
        %8814 = vmatpush1.bf16.msra.mxu0 %v8754
        %8815 = vmatprep.subr.bf16.mxu0 0
        %8816 = vmatpush1.bf16.msra.mxu0 %v8753
        %8817 = vmatprep.subr.bf16.mxu0 0
        %8818 = vmatpush1.bf16.msra.mxu0 %v8752
        %8819 = vmatprep.subr.bf16.mxu0 0
        %8820 = vmatpush1.bf16.msra.mxu0 %v8751
        %8821 = vmatprep.subr.bf16.mxu0 0
        %8822 = vmatpush2.bf16.msra.mxu0 %v8766
        %8823 = vmatprep.subr.bf16.mxu0 0
        %8824 = vmatpush2.bf16.msra.mxu0 %v8765
        %8825 = vmatprep.subr.bf16.mxu0 0
        %8826 = vmatpush2.bf16.msra.mxu0 %v8764
        %8827 = vmatprep.subr.bf16.mxu0 0
        %8828 = vmatpush2.bf16.msra.mxu0 %v8763
        %8829 = vmatprep.subr.bf16.mxu0 0
        %8830 = vmatpush2.bf16.msra.mxu0 %v8762
        %8831 = vmatprep.subr.bf16.mxu0 0
        %8832 = vmatpush2.bf16.msra.mxu0 %v8761
        %8833 = vmatprep.subr.bf16.mxu0 0
        %8834 = vmatpush2.bf16.msra.mxu0 %v8760
        %8835 = vmatprep.subr.bf16.mxu0 0
        %8836 = vmatpush2.bf16.msra.mxu0 %v8759
        %8837 = vmatprep.mubr.bf16.mxu0 %v8645
        %8838 = vmatmul.mubr.bf16.gmra.mxu0 %v8638
        %v8839 = vpop.f32.mrf.mxu0
        %v8840 = vadd.f32 %v8622, %v8839
        %v8841 = vpop.f32.mrf.mxu0
        %v8842 = vpop.f32.mrf.mxu0
        %v8843 = vpop.f32.mrf.mxu0
        %8844 = vdwg.mxu0
        %8845 = vmatprep.subr.bf16.mxu0 0
        %8846 = vmatpush1.bf16.msra.mxu0 %v8774
        %8847 = vmatprep.subr.bf16.mxu0 0
        %8848 = vmatpush1.bf16.msra.mxu0 %v8773
        %8849 = vmatprep.subr.bf16.mxu0 0
        %8850 = vmatpush1.bf16.msra.mxu0 %v8772
        %8851 = vmatprep.subr.bf16.mxu0 0
        %8852 = vmatpush1.bf16.msra.mxu0 %v8771
        %8853 = vmatprep.subr.bf16.mxu0 0
        %8854 = vmatpush1.bf16.msra.mxu0 %v8770
        %8855 = vmatprep.subr.bf16.mxu0 0
        %8856 = vmatpush1.bf16.msra.mxu0 %v8769
        %8857 = vmatprep.subr.bf16.mxu0 0
        %8858 = vmatpush1.bf16.msra.mxu0 %v8768
        %8859 = vmatprep.subr.bf16.mxu0 0
        %8860 = vmatpush1.bf16.msra.mxu0 %v8767
        %8861 = vmatprep.subr.bf16.mxu0 0
        %8862 = vmatpush2.bf16.msra.mxu0 0
        %8863 = vmatprep.subr.bf16.mxu0 0
        %8864 = vmatpush2.bf16.msra.mxu0 0
        %8865 = vmatprep.subr.bf16.mxu0 0
        %8866 = vmatpush2.bf16.msra.mxu0 0
        %8867 = vmatprep.subr.bf16.mxu0 0
        %8868 = vmatpush2.bf16.msra.mxu0 0
        %8869 = vmatprep.subr.bf16.mxu0 0
        %8870 = vmatpush2.bf16.msra.mxu0 0
        %8871 = vmatprep.subr.bf16.mxu0 0
        %8872 = vmatpush2.bf16.msra.mxu0 0
        %8873 = vmatprep.subr.bf16.mxu0 0
        %8874 = vmatpush2.bf16.msra.mxu0 0
        %8875 = vmatprep.subr.bf16.mxu0 0
        %8876 = vmatpush2.bf16.msra.mxu0 %v8775
        %8877 = vmatprep.mubr.bf16.mxu0 %v8803
        %8878 = vmatmul.mubr.bf16.gmra.mxu0 %v8646
        %v8879 = vpop.f32.mrf.mxu0
        %v8880 = vadd.f32 %v8840, %v8879
        %v8881 = vpop.f32.mrf.mxu0
        %v8882 = vpop.f32.mrf.mxu0
        %v8883 = vpop.f32.mrf.mxu0
        %8884 = vdwg.mxu0
        %v8885 = vmax.f32 %v8880, 0.0
        %v8886 = vpack.c.bf16 %v8885, %v8885
        %v8887 = vld [vmem:[%s7] sm:$0xf]
        %v8888 = vld [vmem:[%s7 + $0x4] sm:$0xf]
        %v8889 = vld [vmem:[%s7 + $0x8] sm:$0xf]
        %v8890 = vld [vmem:[%s7 + $0xc] sm:$0xf]
        %v8891 = vld [vmem:[%s7 + $0x10] sm:$0xf]
        %v8892 = vld [vmem:[%s7 + $0x14] sm:$0xf]
        %v8893 = vld [vmem:[%s7 + $0x18] sm:$0xf]
        %v8894 = vld [vmem:[%s7 + $0x1c] sm:$0xf]
        %v8895 = vld [vmem:[%s7 + $0x20] sm:$0xf]
        %v8896 = vld [vmem:[%s7 + $0x24] sm:$0xf]
        %v8897 = vld [vmem:[%s7 + $0x28] sm:$0xf]
        %v8898 = vld [vmem:[%s7 + $0x2c] sm:$0xf]
        %v8899 = vld [vmem:[%s7 + $0x30] sm:$0xf]
        %v8900 = vld [vmem:[%s7 + $0x34] sm:$0xf]
        %v8901 = vld [vmem:[%s7 + $0x38] sm:$0xf]
        %v8902 = vld [vmem:[%s7 + $0x3c] sm:$0xf]
        %v8903 = vld [vmem:[%s8] sm:$0x1]
        %v8920 = vunpack.c.l.b16 %v8887
        %v8921 = vunpack.c.l.b16 %v8888
        %v8922 = vunpack.c.l.b16 %v8889
        %v8923 = vunpack.c.l.b16 %v8890
        %v8924 = vunpack.c.l.b16 %v8891
        %v8925 = vunpack.c.l.b16 %v8892
        %v8926 = vunpack.c.l.b16 %v8893
        %v8927 = vunpack.c.l.b16 %v8894
        %v8928 = vunpack.c.l.b16 %v8895
        %v8929 = vunpack.c.l.b16 %v8896
        %v8930 = vunpack.c.l.b16 %v8897
        %v8931 = vunpack.c.l.b16 %v8898
        %v8932 = vunpack.c.l.b16 %v8899
        %v8933 = vunpack.c.l.b16 %v8900
        %v8934 = vunpack.c.l.b16 %v8901
        %v8935 = vunpack.c.l.b16 %v8902
        %v8936 = vpack.c.b16 %v8921, %v8920
        %v8937 = vpack.c.b16 %v8923, %v8922
        %v8938 = vpack.c.b16 %v8925, %v8924
        %v8939 = vpack.c.b16 %v8927, %v8926
        %v8940 = vpack.c.b16 %v8929, %v8928
        %v8941 = vpack.c.b16 %v8931, %v8930
        %v8942 = vpack.c.b16 %v8933, %v8932
        %v8943 = vpack.c.b16 %v8935, %v8934
        %8952 = vmatprep.subr.bf16.mxu0 0
        %8953 = vmatpush1.bf16.msra.mxu0 %v8943
        %8954 = vmatprep.subr.bf16.mxu0 0
        %8955 = vmatpush1.bf16.msra.mxu0 %v8942
        %8956 = vmatprep.subr.bf16.mxu0 0
        %8957 = vmatpush1.bf16.msra.mxu0 %v8941
        %8958 = vmatprep.subr.bf16.mxu0 0
        %8959 = vmatpush1.bf16.msra.mxu0 %v8940
        %8960 = vmatprep.subr.bf16.mxu0 0
        %8961 = vmatpush1.bf16.msra.mxu0 %v8939
        %8962 = vmatprep.subr.bf16.mxu0 0
        %8963 = vmatpush1.bf16.msra.mxu0 %v8938
        %8964 = vmatprep.subr.bf16.mxu0 0
        %8965 = vmatpush1.bf16.msra.mxu0 %v8937
        %8966 = vmatprep.subr.bf16.mxu0 0
        %8967 = vmatpush1.bf16.msra.mxu0 %v8936
        %8968 = vmatprep.subr.bf16.mxu0 0
        %8969 = vmatpush2.bf16.msra.mxu0 0
        %8970 = vmatprep.subr.bf16.mxu0 0
        %8971 = vmatpush2.bf16.msra.mxu0 0
        %8972 = vmatprep.subr.bf16.mxu0 0
        %8973 = vmatpush2.bf16.msra.mxu0 0
        %8974 = vmatprep.subr.bf16.mxu0 0
        %8975 = vmatpush2.bf16.msra.mxu0 0
        %8976 = vmatprep.subr.bf16.mxu0 0
        %8977 = vmatpush2.bf16.msra.mxu0 0
        %8978 = vmatprep.subr.bf16.mxu0 0
        %8979 = vmatpush2.bf16.msra.mxu0 0
        %8980 = vmatprep.subr.bf16.mxu0 0
        %8981 = vmatpush2.bf16.msra.mxu0 0
        %8982 = vmatprep.subr.bf16.mxu0 0
        %8983 = vmatpush2.bf16.msra.mxu0 0
        %8984 = vmatprep.mubr.bf16.mxu0 0
        %8985 = vmatmul.mubr.bf16.gmra.mxu0 %v8886
        %v8986 = vpop.f32.mrf.mxu0
        %v8987 = vadd.f32 %v8903, %v8986
        %v8988 = vpop.f32.mrf.mxu0
        %v8989 = vpop.f32.mrf.mxu0
        %v8990 = vpop.f32.mrf.mxu0
        %8991 = vdwg.mxu0
        %v8992 = vmax.f32 %v8987, 0.0
        %v8993 = vpack.c.bf16 %v8992, %v8992
        %v8994 = vld [vmem:[%s9] sm:$0xf]
        %v8995 = vld [vmem:[%s9 + $0x4] sm:$0xf]
        %v8996 = vld [vmem:[%s9 + $0x8] sm:$0xf]
        %v8997 = vld [vmem:[%s9 + $0xc] sm:$0xf]
        %v8998 = vld [vmem:[%s9 + $0x10] sm:$0xf]
        %v8999 = vld [vmem:[%s9 + $0x14] sm:$0xf]
        %v9000 = vld [vmem:[%s9 + $0x18] sm:$0xf]
        %v9001 = vld [vmem:[%s9 + $0x1c] sm:$0xf]
        %v9002 = vld [vmem:[%s9 + $0x20] sm:$0xf]
        %v9003 = vld [vmem:[%s9 + $0x24] sm:$0xf]
        %v9004 = vld [vmem:[%s9 + $0x28] sm:$0xf]
        %v9005 = vld [vmem:[%s9 + $0x2c] sm:$0xf]
        %v9006 = vld [vmem:[%s9 + $0x30] sm:$0xf]
        %v9007 = vld [vmem:[%s9 + $0x34] sm:$0xf]
        %v9008 = vld [vmem:[%s9 + $0x38] sm:$0xf]
        %v9009 = vld [vmem:[%s9 + $0x3c] sm:$0xf]
        %v9010 = vld [vmem:[%s10] sm:$0x1]
        %v9027 = vunpack.c.l.b16 %v8994
        %v9028 = vunpack.c.l.b16 %v8995
        %v9029 = vunpack.c.l.b16 %v8996
        %v9030 = vunpack.c.l.b16 %v8997
        %v9031 = vunpack.c.l.b16 %v8998
        %v9032 = vunpack.c.l.b16 %v8999
        %v9033 = vunpack.c.l.b16 %v9000
        %v9034 = vunpack.c.l.b16 %v9001
        %v9035 = vunpack.c.l.b16 %v9002
        %v9036 = vunpack.c.l.b16 %v9003
        %v9037 = vunpack.c.l.b16 %v9004
        %v9038 = vunpack.c.l.b16 %v9005
        %v9039 = vunpack.c.l.b16 %v9006
        %v9040 = vunpack.c.l.b16 %v9007
        %v9041 = vunpack.c.l.b16 %v9008
        %v9042 = vunpack.c.l.b16 %v9009
        %v9043 = vpack.c.b16 %v9028, %v9027
        %v9044 = vpack.c.b16 %v9030, %v9029
        %v9045 = vpack.c.b16 %v9032, %v9031
        %v9046 = vpack.c.b16 %v9034, %v9033
        %v9047 = vpack.c.b16 %v9036, %v9035
        %v9048 = vpack.c.b16 %v9038, %v9037
        %v9049 = vpack.c.b16 %v9040, %v9039
        %v9050 = vpack.c.b16 %v9042, %v9041
        %9059 = vmatprep.subr.bf16.mxu0 0
        %9060 = vmatpush1.bf16.msra.mxu0 %v9050
        %9061 = vmatprep.subr.bf16.mxu0 0
        %9062 = vmatpush1.bf16.msra.mxu0 %v9049
        %9063 = vmatprep.subr.bf16.mxu0 0
        %9064 = vmatpush1.bf16.msra.mxu0 %v9048
        %9065 = vmatprep.subr.bf16.mxu0 0
        %9066 = vmatpush1.bf16.msra.mxu0 %v9047
        %9067 = vmatprep.subr.bf16.mxu0 0
        %9068 = vmatpush1.bf16.msra.mxu0 %v9046
        %9069 = vmatprep.subr.bf16.mxu0 0
        %9070 = vmatpush1.bf16.msra.mxu0 %v9045
        %9071 = vmatprep.subr.bf16.mxu0 0
        %9072 = vmatpush1.bf16.msra.mxu0 %v9044
        %9073 = vmatprep.subr.bf16.mxu0 0
        %9074 = vmatpush1.bf16.msra.mxu0 %v9043
        %9075 = vmatprep.subr.bf16.mxu0 0
        %9076 = vmatpush2.bf16.msra.mxu0 0
        %9077 = vmatprep.subr.bf16.mxu0 0
        %9078 = vmatpush2.bf16.msra.mxu0 0
        %9079 = vmatprep.subr.bf16.mxu0 0
        %9080 = vmatpush2.bf16.msra.mxu0 0
        %9081 = vmatprep.subr.bf16.mxu0 0
        %9082 = vmatpush2.bf16.msra.mxu0 0
        %9083 = vmatprep.subr.bf16.mxu0 0
        %9084 = vmatpush2.bf16.msra.mxu0 0
        %9085 = vmatprep.subr.bf16.mxu0 0
        %9086 = vmatpush2.bf16.msra.mxu0 0
        %9087 = vmatprep.subr.bf16.mxu0 0
        %9088 = vmatpush2.bf16.msra.mxu0 0
        %9089 = vmatprep.subr.bf16.mxu0 0
        %9090 = vmatpush2.bf16.msra.mxu0 0
        %9091 = vmatprep.mubr.bf16.mxu0 0
        %9092 = vmatmul.mubr.bf16.gmra.mxu0 %v8993
        %v9093 = vpop.f32.mrf.mxu0
        %v9094 = vadd.f32 %v9010, %v9093
        %v9095 = vpop.f32.mrf.mxu0
        %v9096 = vpop.f32.mrf.mxu0
        %v9097 = vpop.f32.mrf.mxu0
        %9098 = vdwg.mxu0
        %v9099 = vmax.f32 %v9094, 0.0
        %v9100 = vpack.c.bf16 %v9099, %v9099
        %v9101 = vld [vmem:[%s11] sm:$0xf]
        %v9102 = vld [vmem:[%s11 + $0x4] sm:$0xf]
        %v9103 = vld [vmem:[%s11 + $0x8] sm:$0xf]
        %v9104 = vld [vmem:[%s11 + $0xc] sm:$0xf]
        %v9105 = vld [vmem:[%s11 + $0x10] sm:$0xf]
        %v9106 = vld [vmem:[%s11 + $0x14] sm:$0xf]
        %v9107 = vld [vmem:[%s11 + $0x18] sm:$0xf]
        %v9108 = vld [vmem:[%s11 + $0x1c] sm:$0xf]
        %v9109 = vld [vmem:[%s11 + $0x20] sm:$0xf]
        %v9110 = vld [vmem:[%s11 + $0x24] sm:$0xf]
        %v9111 = vld [vmem:[%s11 + $0x28] sm:$0xf]
        %v9112 = vld [vmem:[%s11 + $0x2c] sm:$0xf]
        %v9113 = vld [vmem:[%s11 + $0x30] sm:$0xf]
        %v9114 = vld [vmem:[%s11 + $0x34] sm:$0xf]
        %v9115 = vld [vmem:[%s11 + $0x38] sm:$0xf]
        %v9116 = vld [vmem:[%s11 + $0x3c] sm:$0xf]
        %v9117 = vld [vmem:[%s12] sm:$0x1]
        %v9134 = vunpack.c.l.b16 %v9101
        %v9135 = vunpack.c.l.b16 %v9102
        %v9136 = vunpack.c.l.b16 %v9103
        %v9137 = vunpack.c.l.b16 %v9104
        %v9138 = vunpack.c.l.b16 %v9105
        %v9139 = vunpack.c.l.b16 %v9106
        %v9140 = vunpack.c.l.b16 %v9107
        %v9141 = vunpack.c.l.b16 %v9108
        %v9142 = vunpack.c.l.b16 %v9109
        %v9143 = vunpack.c.l.b16 %v9110
        %v9144 = vunpack.c.l.b16 %v9111
        %v9145 = vunpack.c.l.b16 %v9112
        %v9146 = vunpack.c.l.b16 %v9113
        %v9147 = vunpack.c.l.b16 %v9114
        %v9148 = vunpack.c.l.b16 %v9115
        %v9149 = vunpack.c.l.b16 %v9116
        %v9150 = vpack.c.b16 %v9135, %v9134
        %v9151 = vpack.c.b16 %v9137, %v9136
        %v9152 = vpack.c.b16 %v9139, %v9138
        %v9153 = vpack.c.b16 %v9141, %v9140
        %v9154 = vpack.c.b16 %v9143, %v9142
        %v9155 = vpack.c.b16 %v9145, %v9144
        %v9156 = vpack.c.b16 %v9147, %v9146
        %v9157 = vpack.c.b16 %v9149, %v9148
        %9166 = vmatprep.subr.bf16.mxu0 0
        %9167 = vmatpush1.bf16.msra.mxu0 %v9157
        %9168 = vmatprep.subr.bf16.mxu0 0
        %9169 = vmatpush1.bf16.msra.mxu0 %v9156
        %9170 = vmatprep.subr.bf16.mxu0 0
        %9171 = vmatpush1.bf16.msra.mxu0 %v9155
        %9172 = vmatprep.subr.bf16.mxu0 0
        %9173 = vmatpush1.bf16.msra.mxu0 %v9154
        %9174 = vmatprep.subr.bf16.mxu0 0
        %9175 = vmatpush1.bf16.msra.mxu0 %v9153
        %9176 = vmatprep.subr.bf16.mxu0 0
        %9177 = vmatpush1.bf16.msra.mxu0 %v9152
        %9178 = vmatprep.subr.bf16.mxu0 0
        %9179 = vmatpush1.bf16.msra.mxu0 %v9151
        %9180 = vmatprep.subr.bf16.mxu0 0
        %9181 = vmatpush1.bf16.msra.mxu0 %v9150
        %9182 = vmatprep.subr.bf16.mxu0 0
        %9183 = vmatpush2.bf16.msra.mxu0 0
        %9184 = vmatprep.subr.bf16.mxu0 0
        %9185 = vmatpush2.bf16.msra.mxu0 0
        %9186 = vmatprep.subr.bf16.mxu0 0
        %9187 = vmatpush2.bf16.msra.mxu0 0
        %9188 = vmatprep.subr.bf16.mxu0 0
        %9189 = vmatpush2.bf16.msra.mxu0 0
        %9190 = vmatprep.subr.bf16.mxu0 0
        %9191 = vmatpush2.bf16.msra.mxu0 0
        %9192 = vmatprep.subr.bf16.mxu0 0
        %9193 = vmatpush2.bf16.msra.mxu0 0
        %9194 = vmatprep.subr.bf16.mxu0 0
        %9195 = vmatpush2.bf16.msra.mxu0 0
        %9196 = vmatprep.subr.bf16.mxu0 0
        %9197 = vmatpush2.bf16.msra.mxu0 0
        %9198 = vmatprep.mubr.bf16.mxu0 0
        %9199 = vmatmul.mubr.bf16.gmra.mxu0 %v9100
        %v9200 = vpop.f32.mrf.mxu0
        %v9201 = vadd.f32 %v9117, %v9200
        %v9202 = vpop.f32.mrf.mxu0
        %v9203 = vpop.f32.mrf.mxu0
        %v9204 = vpop.f32.mrf.mxu0
        %9205 = vdwg.mxu0
        %9206 = vst [vmem:[%s432] sm:$0x1] %v9201
        %s9207 = sand.u32 %s313, 1
        %s9208 = scalar_lea.sflag [#allocation6], %s9207
        %s9209 = sand.u32 %s313, 1
        %s9210 = scalar_lea.vmem [#allocation5], %s9209
        // Predicated region
        $region73: #{lenet_forward.1} parent=71 // pred_check
          %p9211 = pneg %p323
        $region74: #{lenet_forward.1} parent=71 // pred_check_branch
          %9213 = sbr.rel (%p9211) target = $region76
        $region75: #{lenet_forward.1} parent=71 // pred_region
          %s9215 = ssub.s32 16, 16
          %9216 = vsyncadd %s9208, %s9215
          %s9217 = smul.addr %s27, 16
          %s9218 = scalar_lea.hbm %s13, %s9217
          %s9220 = sshll.u32 %s9210, 4
          %s9221 = int_to_ptr.vmem [resolvable:$true] %s9220
          %9223 = dma.vmem_to_hbm [thread:$0]  %s9221, 16, %s9218, %s9208
        $region76: #{lenet_forward.1} parent=71 // pred_fallthru
          _
      $region72: #{lenet_forward.1} parent=5 // pred_fallthru
        _
      %p9224 = scmp.le.s32.totalorder 2, %s22
      // Predicated region
      $region77: #{lenet_forward.1} parent=5 // pred_check
        %p9225 = pneg %p9224
      $region78: #{lenet_forward.1} parent=5 // pred_check_branch
        %9227 = sbr.rel (%p9225) target = $region80
      $region79: #{lenet_forward.1} parent=5 // pred_region
        %s9228 = ssub.s32 %s22, 2
        // Predicated region
        $region81: #{lenet_forward.1} parent=79 // pred_check
          %p9229 = pneg %p329
        $region82: #{lenet_forward.1} parent=79 // pred_check_branch
          %9231 = sbr.rel (%p9229) target = $region84
        $region83: #{lenet_forward.1} parent=79 // pred_region
          %s9232 = sand.u32 %s314, 1
          %s9233 = scalar_lea.sflag [#allocation6], %s9232
          %s9234 = sand.u32 %s314, 1
          %s9235 = scalar_lea.vmem [#allocation5], %s9234
          %9236 = dma.done %s9233, 16
        $region84: #{lenet_forward.1} parent=79 // pred_fallthru
          _
      $region80: #{lenet_forward.1} parent=5 // pred_fallthru
        _
    $region6: #{lenet_forward.1} parent=1 // loop_footer
      %s26 = sadd.s32 1, %s22
    $region7: #{lenet_forward.1} parent=1 // loop_footer_branch
      %21 = sbr.rel target = $region3
    $region8: #{lenet_forward.1} parent=1 // loop_exit
      _
    %9237 = vsyncpa [#allocation6], 1
    %s9238 = scalar_lea.sflag [#allocation6], 1
    %9239 = vsyncpa %s9238, 1

</llo_original>
